<compile_context>
chip_gen: v5e
topology: v5e:2x2
jax: 0.10.0
libtpu: 0.0.40
codegen_flags: <defaults>
</compile_context>

<pallas_src>
import numpy as np
import jax
import jax.numpy as jnp
from jax import lax
from jax.experimental import pallas as pl
from jax.experimental.pallas import tpu as pltpu


# ----------------------------------------------------------------------------
# Kernel: one batch element per grid step, everything resident in VMEM.
# ----------------------------------------------------------------------------
def _double_conv3d_kernel(xp_ref, w1_ref, w2_ref, s1_ref, b1_ref,
                          s2_ref, b2_ref, o_ref, mid_ref):
    # xp_ref : (D+2, (H+2)(W+2)Cin)           bf16  zero-padded, lane-folded x
    # w1_ref : (3, (H+2)(W+2)Cin, (H+2)(W+2)Cm) bf16  dz-indexed Toeplitz weights
    # w2_ref : (3, (H+2)(W+2)Cm,  H*W*Co)       bf16
    # s1/b1  : (1, (H+2)(W+2)Cm)  f32   folded BN1 (zero on halo columns)
    # s2/b2  : (1, H*W*Co)        f32   folded BN2
    # o_ref  : (D, H*W*Co)        f32
    # mid_ref: (D+2, (H+2)(W+2)Cm) bf16 scratch (layer-1 activation, z-halo = 0)
    Dp = xp_ref.shape[0]
    D = Dp - 2
    PPm = mid_ref.shape[1]
    PO = o_ref.shape[1]

    def silu(y):
        # exp and approx-reciprocal both go to the EUP slot; VALU only mul/add.
        return y * pl.reciprocal(1.0 + jnp.exp(-y), approx=True)

    # ---- Layer 1: 3 MXU matmuls, K = (H+2)(W+2)Cin, N = (H+2)(W+2)Cm ------
    acc1 = jnp.zeros((D, PPm), jnp.float32)
    for dz in range(3):
        acc1 = acc1 + jnp.dot(xp_ref[dz:dz + D, :], w1_ref[dz],
                              preferred_element_type=jnp.float32)
    # BN + SiLU; halo columns have scale = bias = 0 -> stay exactly zero.
    y1 = silu(acc1 * s1_ref[...] + b1_ref[...])

    # Stage layer-1 activation into the padded bf16 scratch (z-halo rows = 0).
    mid_ref[0:1, :] = jnp.zeros((1, PPm), mid_ref.dtype)
    mid_ref[D + 1:D + 2, :] = jnp.zeros((1, PPm), mid_ref.dtype)
    mid_ref[1:D + 1, :] = y1.astype(mid_ref.dtype)

    # ---- Layer 2: 3 MXU matmuls, K = (H+2)(W+2)Cm, N = H*W*Co -------------
    acc2 = jnp.zeros((D, PO), jnp.float32)
    for dz in range(3):
        acc2 = acc2 + jnp.dot(mid_ref[dz:dz + D, :], w2_ref[dz],
                              preferred_element_type=jnp.float32)
    o_ref[...] = silu(acc2 * s2_ref[...] + b2_ref[...]).astype(o_ref.dtype)


# ----------------------------------------------------------------------------
# Wrapper
# ----------------------------------------------------------------------------
def double3dconv_forward(x, params):
    """x: (N, D, H, W, Cin) float32 (NDHWC). Returns (N, D, H, W, Cout) f32."""
    N, D, H, W, Cin = x.shape
    w1 = params["w1_toep"]          # (3, (H+2)(W+2)Cin, (H+2)(W+2)Cm) bf16
    w2 = params["w2_toep"]          # (3, (H+2)(W+2)Cm,  H*W*Co)       bf16
    Hp, Wp = H + 2, W + 2
    PP1 = Hp * Wp * Cin
    PPm = w1.shape[-1]
    PO = w2.shape[-1]
    Co = PO // (H * W)

    # bf16 at the HBM boundary; spatial zero-pad + lane-fold in one XLA op.
    xp = jnp.pad(x.astype(jnp.bfloat16),
                 ((0, 0), (1, 1), (1, 1), (1, 1), (0, 0)))
    xp = xp.reshape(N, D + 2, PP1)

    out = pl.pallas_call(
        _double_conv3d_kernel,
        out_shape=jax.ShapeDtypeStruct((N, D, PO), jnp.float32),
        grid=(N,),
        in_specs=[
            pl.BlockSpec((pl.Squeezed(), D + 2, PP1), lambda n: (n, 0, 0)),
            pl.BlockSpec((3, PP1, PPm), lambda n: (0, 0, 0)),
            pl.BlockSpec((3, PPm, PO), lambda n: (0, 0, 0)),
            pl.BlockSpec((1, PPm), lambda n: (0, 0)),
            pl.BlockSpec((1, PPm), lambda n: (0, 0)),
            pl.BlockSpec((1, PO), lambda n: (0, 0)),
            pl.BlockSpec((1, PO), lambda n: (0, 0)),
        ],
        out_specs=pl.BlockSpec((pl.Squeezed(), D, PO), lambda n: (n, 0, 0)),
        scratch_shapes=[pltpu.VMEM((D + 2, PPm), jnp.bfloat16)],
        compiler_params=pltpu.CompilerParams(
            dimension_semantics=("parallel",),
            vmem_limit_bytes=32 * 1024 * 1024),
    )(xp, w1, w2, params["bn1_scale_pad"], params["bn1_bias_pad"],
      params["bn2_scale_tiled"], params["bn2_bias_tiled"])

    return out.reshape(N, D, H, W, Co)


# ----------------------------------------------------------------------------
# One-time weight / BN repacking (wrapper side, numpy).
# ----------------------------------------------------------------------------
def fold_conv_weights_toeplitz(w, H, W, pad_out):
    """(Co, Ci, 3, 3, 3) PyTorch Conv3d weights -> (3, rows, cols) f32.

    rows = (H+2)(W+2)*Ci (padded input plane, channel-minor).
    cols = (H+2)(W+2)*Co if pad_out else H*W*Co.
    Folds the (dy, dx) taps, the (y, x) output positions and the channel
    contraction into one dense MXU contraction so operands stay lane-dense
    even with tiny channel counts.
    """
    w = np.asarray(w, np.float32)
    Co, Ci = w.shape[0], w.shape[1]
    Hp, Wp = H + 2, W + 2
    rows = Hp * Wp * Ci
    cols = (Hp * Wp if pad_out else H * W) * Co
    wt = np.zeros((3, rows, cols), np.float32)
    for dz in range(3):
        for dy in range(3):
            for dx in range(3):
                blk = w[:, :, dz, dy, dx].T                  # (Ci, Co)
                for y in range(H):
                    for x in range(W):
                        r = ((y + dy) * Wp + (x + dx)) * Ci
                        c = (((y + 1) * Wp + (x + 1)) * Co if pad_out
                             else (y * W + x) * Co)
                        wt[dz, r:r + Ci, c:c + Co] = blk
    return wt


def tile_bn_vec(v, H, W, pad_out):
    """Per-channel BN vector -> per-column vector in the lane-folded layout.
    With pad_out=True the halo columns get 0 so SiLU keeps them exactly 0."""
    v = np.asarray(v, np.float32)
    C = v.shape[0]
    if not pad_out:
        return jnp.asarray(np.tile(v, H * W).reshape(1, H * W * C))
    Hp, Wp = H + 2, W + 2
    out = np.zeros((Hp, Wp, C), np.float32)
    out[1:H + 1, 1:W + 1, :] = v
    return jnp.asarray(out.reshape(1, Hp * Wp * C))


# ----------------------------------------------------------------------------
# Pure-JAX reference (eval-mode Double3DConv, NDHWC) for correctness check.
# ----------------------------------------------------------------------------
def reference_forward(x, params):
    def cbr(z, w_dhwio, s, b):
        y = lax.conv_general_dilated(
            z.astype(jnp.bfloat16), w_dhwio.astype(jnp.bfloat16),
            window_strides=(1, 1, 1), padding="SAME",
            dimension_numbers=("NDHWC", "DHWIO", "NDHWC"),
            preferred_element_type=jnp.float32)
        y = y * s + b
        return y * jax.nn.sigmoid(y)

    y = cbr(x, params["w1_dhwio"], params["bn1_scale"], params["bn1_bias"])
    y = cbr(y, params["w2_dhwio"], params["bn2_scale"], params["bn2_bias"])
    return y


if __name__ == "__main__":
    key = jax.random.PRNGKey(0)
    ks = jax.random.split(key, 11)

    # Small shapes consistent with the module (torch NCDHW: [2, 4, 8, 8, 8]).
    N, Cin, Cout = 2, 4, 8
    Cmid = Cout                       # mid_channels defaults to out_channels
    D = H = W = 8

    x = jax.random.normal(ks[0], (N, D, H, W, Cin), jnp.float32)

    # Conv3d weights in PyTorch layout (Cout, Cin, kD, kH, kW), bias=False.
    w1 = 0.15 * jax.random.normal(ks[1], (Cmid, Cin, 3, 3, 3), jnp.float32)
    w2 = 0.15 * jax.random.normal(ks[2], (Cout, Cmid, 3, 3, 3), jnp.float32)

    # Eval-mode BatchNorm3d folded into per-channel scale/bias.
    def fold_bn(kg, kb, km, kv, c):
        gamma = 1.0 + 0.1 * jax.random.normal(kg, (c,), jnp.float32)
        beta = 0.1 * jax.random.normal(kb, (c,), jnp.float32)
        rmean = 0.1 * jax.random.normal(km, (c,), jnp.float32)
        rvar = 1.0 + 0.1 * jax.random.uniform(kv, (c,), jnp.float32)
        scale = gamma / jnp.sqrt(rvar + 1e-5)
        return scale, beta - rmean * scale

    s1, b1 = fold_bn(ks[3], ks[4], ks[5], ks[6], Cmid)
    s2, b2 = fold_bn(ks[7], ks[8], ks[9], ks[10], Cout)

    def to_dhwio(w):      # (Co, Ci, kD, kH, kW) -> (kD, kH, kW, Ci, Co)
        return jnp.transpose(w, (2, 3, 4, 1, 0))

    params = dict(
        # Kernel-side (lane-folded, bf16) parameters.
        w1_toep=jnp.asarray(fold_conv_weights_toeplitz(w1, H, W, pad_out=True),
                            jnp.bfloat16),
        w2_toep=jnp.asarray(fold_conv_weights_toeplitz(w2, H, W, pad_out=False),
                            jnp.bfloat16),
        bn1_scale_pad=tile_bn_vec(s1, H, W, pad_out=True),
        bn1_bias_pad=tile_bn_vec(b1, H, W, pad_out=True),
        bn2_scale_tiled=tile_bn_vec(s2, H, W, pad_out=False),
        bn2_bias_tiled=tile_bn_vec(b2, H, W, pad_out=False),
        # Reference-side parameters.
        w1_dhwio=to_dhwio(w1), w2_dhwio=to_dhwio(w2),
        bn1_scale=s1, bn1_bias=b1, bn2_scale=s2, bn2_bias=b2,
    )

    out = jax.block_until_ready(double3dconv_forward(x, params))
    ref = jax.block_until_ready(reference_forward(x, params))

    assert out.shape == (N, D, H, W, Cout)
    np.testing.assert_allclose(np.asarray(out), np.asarray(ref),
                               rtol=2e-2, atol=2e-2)
    print("KERNEL_OK")
</pallas_src>

<mosaic_0001>
module attributes {stable_mosaic.version = 11 : i64} {
  func.func @_double_conv3d_kernel(%arg0: i32, %arg1: memref<1x10x400xbf16, #tpu.memory_space<vmem>>, %arg2: memref<3x400x800xbf16, #tpu.memory_space<vmem>>, %arg3: memref<3x800x512xbf16, #tpu.memory_space<vmem>>, %arg4: memref<1x800xf32, #tpu.memory_space<vmem>>, %arg5: memref<1x800xf32, #tpu.memory_space<vmem>>, %arg6: memref<1x512xf32, #tpu.memory_space<vmem>>, %arg7: memref<1x512xf32, #tpu.memory_space<vmem>>, %arg8: memref<1x8x512xf32, #tpu.memory_space<vmem>>, %arg9: memref<10x800xbf16, #tpu.memory_space<vmem>>) attributes {dimension_semantics = [#tpu.dimension_semantics<parallel>], iteration_bounds = array<i64: 2>, scalar_prefetch = 0 : i64, scratch_operands = 1 : i64, tpu.core_type = #tpu.core_type<tc>, window_params = [{transform_indices = @transform_0, window_bounds = array<i64: 1, 10, 400>}, {pipeline_mode = #tpu.pipeline_mode<synchronous>, transform_indices = @transform_1, window_bounds = array<i64: 3, 400, 800>}, {pipeline_mode = #tpu.pipeline_mode<synchronous>, transform_indices = @transform_2, window_bounds = array<i64: 3, 800, 512>}, {pipeline_mode = #tpu.pipeline_mode<synchronous>, transform_indices = @transform_3, window_bounds = array<i64: 1, 800>}, {pipeline_mode = #tpu.pipeline_mode<synchronous>, transform_indices = @transform_4, window_bounds = array<i64: 1, 800>}, {pipeline_mode = #tpu.pipeline_mode<synchronous>, transform_indices = @transform_5, window_bounds = array<i64: 1, 512>}, {pipeline_mode = #tpu.pipeline_mode<synchronous>, transform_indices = @transform_6, window_bounds = array<i64: 1, 512>}, {transform_indices = @transform_7, window_bounds = array<i64: 1, 8, 512>}]} {
    %cst = arith.constant 0.000000e+00 : f32
    %0 = vector.broadcast %cst : f32 to vector<8x800xf32>
    %c0 = arith.constant 0 : index
    %c0_0 = arith.constant 0 : index
    %c0_1 = arith.constant 0 : index
    %1 = vector.load %arg1[%c0, %c0_0, %c0_1] : memref<1x10x400xbf16, #tpu.memory_space<vmem>>, vector<1x8x400xbf16>
    %2 = vector.shape_cast %1 : vector<1x8x400xbf16> to vector<8x400xbf16>
    %c0_2 = arith.constant 0 : index
    %c0_3 = arith.constant 0 : index
    %c0_4 = arith.constant 0 : index
    %3 = vector.load %arg2[%c0_2, %c0_3, %c0_4] : memref<3x400x800xbf16, #tpu.memory_space<vmem>>, vector<1x400x800xbf16>
    %4 = vector.shape_cast %3 : vector<1x400x800xbf16> to vector<400x800xbf16>
    %cst_5 = arith.constant dense<0.000000e+00> : vector<8x800xf32>
    %5 = tpu.matmul %2, %4, %cst_5 {dimension_numbers = #tpu.dot_dimension_numbers<[1], [0], [0], [1], [0, 0, 1, 1], [], []>} : vector<8x400xbf16>, vector<400x800xbf16>, vector<8x800xf32> -> vector<8x800xf32>
    %6 = arith.addf %0, %5 : vector<8x800xf32>
    %c0_6 = arith.constant 0 : index
    %c1 = arith.constant 1 : index
    %c0_7 = arith.constant 0 : index
    %7 = vector.load %arg1[%c0_6, %c1, %c0_7] : memref<1x10x400xbf16, #tpu.memory_space<vmem>>, vector<1x8x400xbf16>
    %8 = vector.shape_cast %7 : vector<1x8x400xbf16> to vector<8x400xbf16>
    %c1_8 = arith.constant 1 : index
    %c0_9 = arith.constant 0 : index
    %c0_10 = arith.constant 0 : index
    %9 = vector.load %arg2[%c1_8, %c0_9, %c0_10] : memref<3x400x800xbf16, #tpu.memory_space<vmem>>, vector<1x400x800xbf16>
    %10 = vector.shape_cast %9 : vector<1x400x800xbf16> to vector<400x800xbf16>
    %cst_11 = arith.constant dense<0.000000e+00> : vector<8x800xf32>
    %11 = tpu.matmul %8, %10, %cst_11 {dimension_numbers = #tpu.dot_dimension_numbers<[1], [0], [0], [1], [0, 0, 1, 1], [], []>} : vector<8x400xbf16>, vector<400x800xbf16>, vector<8x800xf32> -> vector<8x800xf32>
    %12 = arith.addf %6, %11 : vector<8x800xf32>
    %c0_12 = arith.constant 0 : index
    %c2 = arith.constant 2 : index
    %c0_13 = arith.constant 0 : index
    %13 = vector.load %arg1[%c0_12, %c2, %c0_13] : memref<1x10x400xbf16, #tpu.memory_space<vmem>>, vector<1x8x400xbf16>
    %14 = vector.shape_cast %13 : vector<1x8x400xbf16> to vector<8x400xbf16>
    %c2_14 = arith.constant 2 : index
    %c0_15 = arith.constant 0 : index
    %c0_16 = arith.constant 0 : index
    %15 = vector.load %arg2[%c2_14, %c0_15, %c0_16] : memref<3x400x800xbf16, #tpu.memory_space<vmem>>, vector<1x400x800xbf16>
    %16 = vector.shape_cast %15 : vector<1x400x800xbf16> to vector<400x800xbf16>
    %cst_17 = arith.constant dense<0.000000e+00> : vector<8x800xf32>
    %17 = tpu.matmul %14, %16, %cst_17 {dimension_numbers = #tpu.dot_dimension_numbers<[1], [0], [0], [1], [0, 0, 1, 1], [], []>} : vector<8x400xbf16>, vector<400x800xbf16>, vector<8x800xf32> -> vector<8x800xf32>
    %18 = arith.addf %12, %17 : vector<8x800xf32>
    %c0_18 = arith.constant 0 : index
    %c0_19 = arith.constant 0 : index
    %19 = vector.load %arg4[%c0_18, %c0_19] : memref<1x800xf32, #tpu.memory_space<vmem>>, vector<1x800xf32>
    %20 = vector.broadcast %19 : vector<1x800xf32> to vector<8x800xf32>
    %21 = arith.mulf %18, %20 : vector<8x800xf32>
    %c0_20 = arith.constant 0 : index
    %c0_21 = arith.constant 0 : index
    %22 = vector.load %arg5[%c0_20, %c0_21] : memref<1x800xf32, #tpu.memory_space<vmem>>, vector<1x800xf32>
    %23 = vector.broadcast %22 : vector<1x800xf32> to vector<8x800xf32>
    %24 = arith.addf %21, %23 : vector<8x800xf32>
    %cst_22 = arith.constant 0.000000e+00 : f32
    %25 = vector.broadcast %cst_22 : f32 to vector<8x800xf32>
    %26 = arith.subf %25, %24 : vector<8x800xf32>
    %27 = math.exp %26 : vector<8x800xf32>
    %cst_23 = arith.constant 1.000000e+00 : f32
    %28 = vector.broadcast %cst_23 : f32 to vector<8x800xf32>
    %29 = arith.addf %28, %27 : vector<8x800xf32>
    %30 = tpu.reciprocal %29 {approx = true} : vector<8x800xf32> -> vector<8x800xf32>
    %31 = arith.mulf %24, %30 : vector<8x800xf32>
    %cst_24 = arith.constant 0.000000e+00 : bf16
    %32 = vector.broadcast %cst_24 : bf16 to vector<1x800xbf16>
    %c0_25 = arith.constant 0 : index
    %c0_26 = arith.constant 0 : index
    %33 = vector.load %arg9[%c0_25, %c0_26] : memref<10x800xbf16, #tpu.memory_space<vmem>>, vector<1x800xbf16>
    tpu.vector_store %arg9[%c0_25, %c0_26], %32 {strides = array<i32>} : memref<10x800xbf16, #tpu.memory_space<vmem>>, vector<1x800xbf16>,
    %cst_27 = arith.constant 0.000000e+00 : bf16
    %34 = vector.broadcast %cst_27 : bf16 to vector<1x800xbf16>
    %c9 = arith.constant 9 : index
    %c0_28 = arith.constant 0 : index
    %35 = vector.load %arg9[%c9, %c0_28] : memref<10x800xbf16, #tpu.memory_space<vmem>>, vector<1x800xbf16>
    tpu.vector_store %arg9[%c9, %c0_28], %34 {strides = array<i32>} : memref<10x800xbf16, #tpu.memory_space<vmem>>, vector<1x800xbf16>,
    %36 = arith.truncf %31 : vector<8x800xf32> to vector<8x800xbf16>
    %c1_29 = arith.constant 1 : index
    %c0_30 = arith.constant 0 : index
    %37 = vector.load %arg9[%c1_29, %c0_30] : memref<10x800xbf16, #tpu.memory_space<vmem>>, vector<8x800xbf16>
    tpu.vector_store %arg9[%c1_29, %c0_30], %36 {strides = array<i32>} : memref<10x800xbf16, #tpu.memory_space<vmem>>, vector<8x800xbf16>,
    %cst_31 = arith.constant 0.000000e+00 : f32
    %38 = vector.broadcast %cst_31 : f32 to vector<8x512xf32>
    %c0_32 = arith.constant 0 : index
    %c0_33 = arith.constant 0 : index
    %39 = vector.load %arg9[%c0_32, %c0_33] : memref<10x800xbf16, #tpu.memory_space<vmem>>, vector<8x800xbf16>
    %c0_34 = arith.constant 0 : index
    %c0_35 = arith.constant 0 : index
    %c0_36 = arith.constant 0 : index
    %40 = vector.load %arg3[%c0_34, %c0_35, %c0_36] : memref<3x800x512xbf16, #tpu.memory_space<vmem>>, vector<1x800x512xbf16>
    %41 = vector.shape_cast %40 : vector<1x800x512xbf16> to vector<800x512xbf16>
    %cst_37 = arith.constant dense<0.000000e+00> : vector<8x512xf32>
    %42 = tpu.matmul %39, %41, %cst_37 {dimension_numbers = #tpu.dot_dimension_numbers<[1], [0], [0], [1], [0, 0, 1, 1], [], []>} : vector<8x800xbf16>, vector<800x512xbf16>, vector<8x512xf32> -> vector<8x512xf32>
    %43 = arith.addf %38, %42 : vector<8x512xf32>
    %c1_38 = arith.constant 1 : index
    %c0_39 = arith.constant 0 : index
    %44 = vector.load %arg9[%c1_38, %c0_39] : memref<10x800xbf16, #tpu.memory_space<vmem>>, vector<8x800xbf16>
    %c1_40 = arith.constant 1 : index
    %c0_41 = arith.constant 0 : index
    %c0_42 = arith.constant 0 : index
    %45 = vector.load %arg3[%c1_40, %c0_41, %c0_42] : memref<3x800x512xbf16, #tpu.memory_space<vmem>>, vector<1x800x512xbf16>
    %46 = vector.shape_cast %45 : vector<1x800x512xbf16> to vector<800x512xbf16>
    %cst_43 = arith.constant dense<0.000000e+00> : vector<8x512xf32>
    %47 = tpu.matmul %44, %46, %cst_43 {dimension_numbers = #tpu.dot_dimension_numbers<[1], [0], [0], [1], [0, 0, 1, 1], [], []>} : vector<8x800xbf16>, vector<800x512xbf16>, vector<8x512xf32> -> vector<8x512xf32>
    %48 = arith.addf %43, %47 : vector<8x512xf32>
    %c2_44 = arith.constant 2 : index
    %c0_45 = arith.constant 0 : index
    %49 = vector.load %arg9[%c2_44, %c0_45] : memref<10x800xbf16, #tpu.memory_space<vmem>>, vector<8x800xbf16>
    %c2_46 = arith.constant 2 : index
    %c0_47 = arith.constant 0 : index
    %c0_48 = arith.constant 0 : index
    %50 = vector.load %arg3[%c2_46, %c0_47, %c0_48] : memref<3x800x512xbf16, #tpu.memory_space<vmem>>, vector<1x800x512xbf16>
    %51 = vector.shape_cast %50 : vector<1x800x512xbf16> to vector<800x512xbf16>
    %cst_49 = arith.constant dense<0.000000e+00> : vector<8x512xf32>
    %52 = tpu.matmul %49, %51, %cst_49 {dimension_numbers = #tpu.dot_dimension_numbers<[1], [0], [0], [1], [0, 0, 1, 1], [], []>} : vector<8x800xbf16>, vector<800x512xbf16>, vector<8x512xf32> -> vector<8x512xf32>
    %53 = arith.addf %48, %52 : vector<8x512xf32>
    %c0_50 = arith.constant 0 : index
    %c0_51 = arith.constant 0 : index
    %54 = vector.load %arg6[%c0_50, %c0_51] : memref<1x512xf32, #tpu.memory_space<vmem>>, vector<1x512xf32>
    %55 = vector.broadcast %54 : vector<1x512xf32> to vector<8x512xf32>
    %56 = arith.mulf %53, %55 : vector<8x512xf32>
    %c0_52 = arith.constant 0 : index
    %c0_53 = arith.constant 0 : index
    %57 = vector.load %arg7[%c0_52, %c0_53] : memref<1x512xf32, #tpu.memory_space<vmem>>, vector<1x512xf32>
    %58 = vector.broadcast %57 : vector<1x512xf32> to vector<8x512xf32>
    %59 = arith.addf %56, %58 : vector<8x512xf32>
    %cst_54 = arith.constant 0.000000e+00 : f32
    %60 = vector.broadcast %cst_54 : f32 to vector<8x512xf32>
    %61 = arith.subf %60, %59 : vector<8x512xf32>
    %62 = math.exp %61 : vector<8x512xf32>
    %cst_55 = arith.constant 1.000000e+00 : f32
    %63 = vector.broadcast %cst_55 : f32 to vector<8x512xf32>
    %64 = arith.addf %63, %62 : vector<8x512xf32>
    %65 = tpu.reciprocal %64 {approx = true} : vector<8x512xf32> -> vector<8x512xf32>
    %66 = arith.mulf %59, %65 : vector<8x512xf32>
    %c0_56 = arith.constant 0 : index
    %c0_57 = arith.constant 0 : index
    %c0_58 = arith.constant 0 : index
    %67 = vector.load %arg8[%c0_56, %c0_57, %c0_58] : memref<1x8x512xf32, #tpu.memory_space<vmem>>, vector<1x8x512xf32>
    %68 = vector.shape_cast %67 : vector<1x8x512xf32> to vector<8x512xf32>
    %69 = vector.shape_cast %66 : vector<8x512xf32> to vector<1x8x512xf32>
    tpu.vector_store %arg8[%c0_56, %c0_57, %c0_58], %69 {strides = array<i32>} : memref<1x8x512xf32, #tpu.memory_space<vmem>>, vector<1x8x512xf32>,
    return
  }
  func.func @transform_0(%arg0: i32) -> (i32, i32, i32) {
    %c0_i32 = arith.constant 0 : i32
    %c0_i32_0 = arith.constant 0 : i32
    %c0_i32_1 = arith.constant 0 : i32
    return %arg0, %c0_i32, %c0_i32_0 : i32, i32, i32
  }
  func.func @transform_1(%arg0: i32) -> (i32, i32, i32) {
    %c0_i32 = arith.constant 0 : i32
    %c0_i32_0 = arith.constant 0 : i32
    %c0_i32_1 = arith.constant 0 : i32
    %c0_i32_2 = arith.constant 0 : i32
    return %c0_i32, %c0_i32_0, %c0_i32_1 : i32, i32, i32
  }
  func.func @transform_2(%arg0: i32) -> (i32, i32, i32) {
    %c0_i32 = arith.constant 0 : i32
    %c0_i32_0 = arith.constant 0 : i32
    %c0_i32_1 = arith.constant 0 : i32
    %c0_i32_2 = arith.constant 0 : i32
    return %c0_i32, %c0_i32_0, %c0_i32_1 : i32, i32, i32
  }
  func.func @transform_3(%arg0: i32) -> (i32, i32) {
    %c0_i32 = arith.constant 0 : i32
    %c0_i32_0 = arith.constant 0 : i32
    %c0_i32_1 = arith.constant 0 : i32
    return %c0_i32, %c0_i32_0 : i32, i32
  }
  func.func @transform_4(%arg0: i32) -> (i32, i32) {
    %c0_i32 = arith.constant 0 : i32
    %c0_i32_0 = arith.constant 0 : i32
    %c0_i32_1 = arith.constant 0 : i32
    return %c0_i32, %c0_i32_0 : i32, i32
  }
  func.func @transform_5(%arg0: i32) -> (i32, i32) {
    %c0_i32 = arith.constant 0 : i32
    %c0_i32_0 = arith.constant 0 : i32
    %c0_i32_1 = arith.constant 0 : i32
    return %c0_i32, %c0_i32_0 : i32, i32
  }
  func.func @transform_6(%arg0: i32) -> (i32, i32) {
    %c0_i32 = arith.constant 0 : i32
    %c0_i32_0 = arith.constant 0 : i32
    %c0_i32_1 = arith.constant 0 : i32
    return %c0_i32, %c0_i32_0 : i32, i32
  }
  func.func @transform_7(%arg0: i32) -> (i32, i32, i32) {
    %c0_i32 = arith.constant 0 : i32
    %c0_i32_0 = arith.constant 0 : i32
    %c0_i32_1 = arith.constant 0 : i32
    return %arg0, %c0_i32, %c0_i32_0 : i32, i32, i32
  }
}

</mosaic_0001>

<llo_original>
// kernel: tpu_custom_call.1
$region0: #{tpu_custom_call.1}
  #allocation0 [shape = 'u32[]', space=smem, size = 0x4, offset = 0x4, fixed_abs, tag = 'smem constant byte address 0x4 - core index']
  #allocation1 [shape = 'u32[72,128]{1,0:T(1,128)}', space=vmem, size = 0x9000, scoped, tag = 'internal scratch']
  #allocation2 [shape = 'bf16[10,800]{1,0:T(8,128)(2,1)}', space=vmem, size = 0x7000, scoped, tag = 'scratch operand']
  %s0 = inlined_call_operand.vmem [shape: bf16[2,10,400], index: 0, kind: input, shape index: {}]
  %s1 = inlined_call_operand.hbm [shape: bf16[3,400,800], index: 1, kind: input, shape index: {}]
  %s2 = inlined_call_operand.hbm [shape: bf16[3,800,512], index: 2, kind: input, shape index: {}]
  %s3 = inlined_call_operand.hbm [shape: f32[1,800], index: 3, kind: input, shape index: {}]
  %s4 = inlined_call_operand.hbm [shape: f32[1,800], index: 4, kind: input, shape index: {}]
  %s5 = inlined_call_operand.hbm [shape: f32[1,512], index: 5, kind: input, shape index: {}]
  %s6 = inlined_call_operand.hbm [shape: f32[1,512], index: 6, kind: input, shape index: {}]
  %s7 = inlined_call_operand.hbm [shape: f32[2,8,512], index: 7, kind: output, shape index: {}]
  %s8 = sld [smem:[#allocation0]]
  $region85: #{tpu_custom_call.1} parent=0
    _
  %s10 = ssub.s32 1, %s8
  %s11 = scalar_select 0, %s10, %s8
  $region1: #{tpu_custom_call.1} parent=0
    #allocation3 [shape = 'u8[2150400]{0}', space=vmem, size = 0x20d000, scoped, tag = 'input window, operand 1, single buffered']
    #allocation4 [shape = 's32[2]{0}', space=sflag, size = 0x8, scoped, tag = 'scoped memory for tpu_custom_call.1']
    #allocation5 [shape = 's32[2]{0}', space=sflag, size = 0x8, scoped, tag = 'scoped memory for tpu_custom_call.1']
    #allocation6 [shape = 'u8[2457600]{0}', space=vmem, size = 0x258000, scoped, tag = 'input window, operand 2, single buffered']
    #allocation7 [shape = 's32[1]{0}', space=sflag, size = 0x4, scoped, tag = 'scoped memory for tpu_custom_call.1']
    #allocation8 [shape = 'u8[3584]{0}', space=vmem, size = 0x1000, scoped, tag = 'input window, operand 3, single buffered']
    #allocation9 [shape = 'u8[3584]{0}', space=vmem, size = 0x1000, scoped, tag = 'input window, operand 4, single buffered']
    #allocation10 [shape = 's32[1]{0}', space=sflag, size = 0x4, scoped, tag = 'scoped memory for tpu_custom_call.1']
    #allocation11 [shape = 'u8[2048]{0}', space=vmem, size = 0x800, scoped, tag = 'input window, operand 5, single buffered']
    #allocation12 [shape = 'u8[2048]{0}', space=vmem, size = 0x800, scoped, tag = 'input window, operand 6, single buffered']
    #allocation13 [shape = 's32[1]{0}', space=sflag, size = 0x4, scoped, tag = 'scoped memory for tpu_custom_call.1']
    #allocation14 [shape = 'u8[32768]{0}', space=vmem, size = 0x8000, scoped, tag = 'output window, operand 0']
    %12 = vsyncpa [#allocation4], 0
    %13 = vsyncpa [#allocation7], 0
    %14 = vsyncpa [#allocation10], 0
    %15 = vsyncpa [#allocation13], 0
    %16 = vsyncpa [#allocation5], 0
    %s17 = scalar_lea.sflag [#allocation5], 1
    %18 = vsyncpa %s17, 0
    loop: start=0, step=1, limit=4
    $region2: #{tpu_custom_call.1} parent=1 // loop_pre_header
      _
    $region3: #{tpu_custom_call.1} parent=1 // loop_header
      %s20 = sphi 0, %s24
      %p21 = scmp.ge.s32.totalorder %s20, 4
      %s30 = sphi 0, %s32
      %s33 = sphi 0, %s30
      %s34 = sphi 0, %s33
      %s50 = sphi 0, %s34
      %s54 = sphi 0, %s54
      %s56 = sphi 0, %s54
      %s57 = sphi 0, %s56
      %s71 = sphi 0, %s57
      %s75 = sphi 0, %s75
      %s77 = sphi 0, %s75
      %s78 = sphi 0, %s77
      %s92 = sphi 0, %s78
      %s96 = sphi 0, %s96
      %s98 = sphi 0, %s96
      %s99 = sphi 0, %s98
      %s113 = sphi 0, %s99
      %s117 = sphi 0, %s117
      %s119 = sphi 0, %s117
      %s120 = sphi 0, %s119
      %s134 = sphi 0, %s120
      %s138 = sphi 0, %s138
      %s140 = sphi 0, %s138
      %s141 = sphi 0, %s140
      %s155 = sphi 0, %s141
      %s159 = sphi 0, %s159
      %s161 = sphi 0, %s159
      %s162 = sphi 0, %s161
      %s176 = sphi 0, %s162
      %s182 = sphi 0, %s184
      %s185 = sphi 0, %s182
      %s186 = sphi 0, %s185
      %s202 = sphi 0, %s186
    $region4: #{tpu_custom_call.1} parent=1 // loop_header_branch
      %23 = sbr.rel (%p21) target = $region8
    $region5: #{tpu_custom_call.1} parent=1 // loop_body
      %s25 = ssub.s32 %s20, 1
      %s26 = ssub.s32 %s20, 2
      %s27 = sadd.s32 %s20, 1
      %s28 = ssub.s32 %s20, %s27
      %p29 = scmp.eq.s32.totalorder %s28, 0
      %s31 = sadd.s32 %s30, 1
      %s32 = scalar_select %p29, %s30, %s31
      %p35 = pneg %p29
      %p36 = scmp.eq.s32.totalorder %s20, 1
      %p37 = por %p35, %p36
      %p38 = scmp.ne.s32.totalorder %s30, %s33
      %p39 = scmp.eq.s32.totalorder %s20, 0
      %p40 = por %p38, %p39
      %p41 = scmp.ne.s32.totalorder %s30, %s33
      %p42 = scmp.eq.s32.totalorder %s25, 1
      %p43 = por %p41, %p42
      %p44 = scmp.ne.s32.totalorder %s33, %s34
      %p45 = scmp.eq.s32.totalorder %s25, 0
      %p46 = por %p44, %p45
      %p47 = scmp.ne.s32.totalorder %s33, %s34
      %p48 = scmp.eq.s32.totalorder %s26, 1
      %p49 = por %p47, %p48
      %p51 = scmp.ne.s32.totalorder %s34, %s50
      %p52 = scmp.eq.s32.totalorder %s26, 0
      %p53 = por %p51, %p52
      %s55 = sadd.s32 %s54, 1
      %p58 = scmp.eq.s32.totalorder %s20, 1
      %p59 = scmp.ne.s32.totalorder %s54, %s56
      %p60 = scmp.eq.s32.totalorder %s20, 0
      %p61 = por %p59, %p60
      %p62 = scmp.ne.s32.totalorder %s54, %s56
      %p63 = scmp.eq.s32.totalorder %s25, 1
      %p64 = por %p62, %p63
      %p65 = scmp.ne.s32.totalorder %s56, %s57
      %p66 = scmp.eq.s32.totalorder %s25, 0
      %p67 = por %p65, %p66
      %p68 = scmp.ne.s32.totalorder %s56, %s57
      %p69 = scmp.eq.s32.totalorder %s26, 1
      %p70 = por %p68, %p69
      %p72 = scmp.ne.s32.totalorder %s57, %s71
      %p73 = scmp.eq.s32.totalorder %s26, 0
      %p74 = por %p72, %p73
      %s76 = sadd.s32 %s75, 1
      %p79 = scmp.eq.s32.totalorder %s20, 1
      %p80 = scmp.ne.s32.totalorder %s75, %s77
      %p81 = scmp.eq.s32.totalorder %s20, 0
      %p82 = por %p80, %p81
      %p83 = scmp.ne.s32.totalorder %s75, %s77
      %p84 = scmp.eq.s32.totalorder %s25, 1
      %p85 = por %p83, %p84
      %p86 = scmp.ne.s32.totalorder %s77, %s78
      %p87 = scmp.eq.s32.totalorder %s25, 0
      %p88 = por %p86, %p87
      %p89 = scmp.ne.s32.totalorder %s77, %s78
      %p90 = scmp.eq.s32.totalorder %s26, 1
      %p91 = por %p89, %p90
      %p93 = scmp.ne.s32.totalorder %s78, %s92
      %p94 = scmp.eq.s32.totalorder %s26, 0
      %p95 = por %p93, %p94
      %s97 = sadd.s32 %s96, 1
      %p100 = scmp.eq.s32.totalorder %s20, 1
      %p101 = scmp.ne.s32.totalorder %s96, %s98
      %p102 = scmp.eq.s32.totalorder %s20, 0
      %p103 = por %p101, %p102
      %p104 = scmp.ne.s32.totalorder %s96, %s98
      %p105 = scmp.eq.s32.totalorder %s25, 1
      %p106 = por %p104, %p105
      %p107 = scmp.ne.s32.totalorder %s98, %s99
      %p108 = scmp.eq.s32.totalorder %s25, 0
      %p109 = por %p107, %p108
      %p110 = scmp.ne.s32.totalorder %s98, %s99
      %p111 = scmp.eq.s32.totalorder %s26, 1
      %p112 = por %p110, %p111
      %p114 = scmp.ne.s32.totalorder %s99, %s113
      %p115 = scmp.eq.s32.totalorder %s26, 0
      %p116 = por %p114, %p115
      %s118 = sadd.s32 %s117, 1
      %p121 = scmp.eq.s32.totalorder %s20, 1
      %p122 = scmp.ne.s32.totalorder %s117, %s119
      %p123 = scmp.eq.s32.totalorder %s20, 0
      %p124 = por %p122, %p123
      %p125 = scmp.ne.s32.totalorder %s117, %s119
      %p126 = scmp.eq.s32.totalorder %s25, 1
      %p127 = por %p125, %p126
      %p128 = scmp.ne.s32.totalorder %s119, %s120
      %p129 = scmp.eq.s32.totalorder %s25, 0
      %p130 = por %p128, %p129
      %p131 = scmp.ne.s32.totalorder %s119, %s120
      %p132 = scmp.eq.s32.totalorder %s26, 1
      %p133 = por %p131, %p132
      %p135 = scmp.ne.s32.totalorder %s120, %s134
      %p136 = scmp.eq.s32.totalorder %s26, 0
      %p137 = por %p135, %p136
      %s139 = sadd.s32 %s138, 1
      %p142 = scmp.eq.s32.totalorder %s20, 1
      %p143 = scmp.ne.s32.totalorder %s138, %s140
      %p144 = scmp.eq.s32.totalorder %s20, 0
      %p145 = por %p143, %p144
      %p146 = scmp.ne.s32.totalorder %s138, %s140
      %p147 = scmp.eq.s32.totalorder %s25, 1
      %p148 = por %p146, %p147
      %p149 = scmp.ne.s32.totalorder %s140, %s141
      %p150 = scmp.eq.s32.totalorder %s25, 0
      %p151 = por %p149, %p150
      %p152 = scmp.ne.s32.totalorder %s140, %s141
      %p153 = scmp.eq.s32.totalorder %s26, 1
      %p154 = por %p152, %p153
      %p156 = scmp.ne.s32.totalorder %s141, %s155
      %p157 = scmp.eq.s32.totalorder %s26, 0
      %p158 = por %p156, %p157
      %s160 = sadd.s32 %s159, 1
      %p163 = scmp.eq.s32.totalorder %s20, 1
      %p164 = scmp.ne.s32.totalorder %s159, %s161
      %p165 = scmp.eq.s32.totalorder %s20, 0
      %p166 = por %p164, %p165
      %p167 = scmp.ne.s32.totalorder %s159, %s161
      %p168 = scmp.eq.s32.totalorder %s25, 1
      %p169 = por %p167, %p168
      %p170 = scmp.ne.s32.totalorder %s161, %s162
      %p171 = scmp.eq.s32.totalorder %s25, 0
      %p172 = por %p170, %p171
      %p173 = scmp.ne.s32.totalorder %s161, %s162
      %p174 = scmp.eq.s32.totalorder %s26, 1
      %p175 = por %p173, %p174
      %p177 = scmp.ne.s32.totalorder %s162, %s176
      %p178 = scmp.eq.s32.totalorder %s26, 0
      %p179 = por %p177, %p178
      %s180 = ssub.s32 %s20, %s27
      %p181 = scmp.eq.s32.totalorder %s180, 0
      %s183 = sadd.s32 %s182, 1
      %s184 = scalar_select %p181, %s182, %s183
      %p187 = pneg %p181
      %p188 = scmp.eq.s32.totalorder %s20, 1
      %p189 = por %p187, %p188
      %p190 = scmp.ne.s32.totalorder %s182, %s185
      %p191 = scmp.eq.s32.totalorder %s20, 0
      %p192 = por %p190, %p191
      %p193 = scmp.ne.s32.totalorder %s182, %s185
      %p194 = scmp.eq.s32.totalorder %s25, 1
      %p195 = por %p193, %p194
      %p196 = scmp.ne.s32.totalorder %s185, %s186
      %p197 = scmp.eq.s32.totalorder %s25, 0
      %p198 = por %p196, %p197
      %p199 = scmp.ne.s32.totalorder %s185, %s186
      %p200 = scmp.eq.s32.totalorder %s26, 1
      %p201 = por %p199, %p200
      %p203 = scmp.ne.s32.totalorder %s186, %s202
      %p204 = scmp.eq.s32.totalorder %s26, 0
      %p205 = por %p203, %p204
      %p206 = scmp.le.s32.totalorder 1, %s20
      %p207 = scmp.lt.s32.totalorder %s20, 3
      %p208 = pnand %p206, %p207
      %p209 = pneg %p208
      // Predicated region
      $region9: #{tpu_custom_call.1} parent=5 // pred_check
        _
      $region10: #{tpu_custom_call.1} parent=5 // pred_check_branch
        %211 = sbr.rel (%p208) target = $region12
      $region11: #{tpu_custom_call.1} parent=5 // pred_region
        %s212 = ssub.s32 %s20, 1
        // Predicated region
        $region13: #{tpu_custom_call.1} parent=11 // pred_check
          %p213 = pneg %p67
        $region14: #{tpu_custom_call.1} parent=11 // pred_check_branch
          %215 = sbr.rel (%p213) target = $region16
        $region15: #{tpu_custom_call.1} parent=11 // pred_region
          %217 = vsyncadd [#allocation4], 0
          %s218 = sshll.u32 %s1, 4
          %s219 = int_to_ptr.hbm [resolvable:$true] %s218
          %s220 = sshll.u32 [#allocation3], 4
          %s221 = int_to_ptr.vmem [resolvable:$true] %s220
          %226 = dma.hbm_to_vmem [thread:$0]  %s219, 67200, %s221, [#allocation4], 448, 448, 28
        $region16: #{tpu_custom_call.1} parent=11 // pred_fallthru
          _
        // Predicated region
        $region17: #{tpu_custom_call.1} parent=11 // pred_check
          %p227 = pneg %p88
        $region18: #{tpu_custom_call.1} parent=11 // pred_check_branch
          %229 = sbr.rel (%p227) target = $region20
        $region19: #{tpu_custom_call.1} parent=11 // pred_region
          %231 = vsyncadd [#allocation7], 0
          %s232 = sshll.u32 %s2, 4
          %s233 = int_to_ptr.hbm [resolvable:$true] %s232
          %s234 = sshll.u32 [#allocation6], 4
          %s235 = int_to_ptr.vmem [resolvable:$true] %s234
          %240 = dma.hbm_to_vmem [thread:$0]  %s233, 76800, %s235, [#allocation7], 256, 256, 16
        $region20: #{tpu_custom_call.1} parent=11 // pred_fallthru
          _
        // Predicated region
        $region21: #{tpu_custom_call.1} parent=11 // pred_check
          %p241 = pneg %p109
        $region22: #{tpu_custom_call.1} parent=11 // pred_check_branch
          %243 = sbr.rel (%p241) target = $region24
        $region23: #{tpu_custom_call.1} parent=11 // pred_region
          %245 = vsyncadd [#allocation7], 0
          %s247 = sshll.u32 %s3, 4
          %s248 = int_to_ptr.hbm [resolvable:$true] %s247
          %s249 = sshll.u32 [#allocation8], 4
          %s250 = int_to_ptr.vmem [resolvable:$true] %s249
          %252 = dma.hbm_to_vmem [thread:$0]  %s248, 112, %s250, [#allocation7]
        $region24: #{tpu_custom_call.1} parent=11 // pred_fallthru
          _
        // Predicated region
        $region25: #{tpu_custom_call.1} parent=11 // pred_check
          %p253 = pneg %p130
        $region26: #{tpu_custom_call.1} parent=11 // pred_check_branch
          %255 = sbr.rel (%p253) target = $region28
        $region27: #{tpu_custom_call.1} parent=11 // pred_region
          %257 = vsyncadd [#allocation10], 0
          %s259 = sshll.u32 %s4, 4
          %s260 = int_to_ptr.hbm [resolvable:$true] %s259
          %s261 = sshll.u32 [#allocation9], 4
          %s262 = int_to_ptr.vmem [resolvable:$true] %s261
          %264 = dma.hbm_to_vmem [thread:$0]  %s260, 112, %s262, [#allocation10]
        $region28: #{tpu_custom_call.1} parent=11 // pred_fallthru
          _
        // Predicated region
        $region29: #{tpu_custom_call.1} parent=11 // pred_check
          %p265 = pneg %p151
        $region30: #{tpu_custom_call.1} parent=11 // pred_check_branch
          %267 = sbr.rel (%p265) target = $region32
        $region31: #{tpu_custom_call.1} parent=11 // pred_region
          %269 = vsyncadd [#allocation10], 0
          %s271 = sshll.u32 %s5, 4
          %s272 = int_to_ptr.hbm [resolvable:$true] %s271
          %s273 = sshll.u32 [#allocation11], 4
          %s274 = int_to_ptr.vmem [resolvable:$true] %s273
          %276 = dma.hbm_to_vmem [thread:$0]  %s272, 64, %s274, [#allocation10]
        $region32: #{tpu_custom_call.1} parent=11 // pred_fallthru
          _
        // Predicated region
        $region33: #{tpu_custom_call.1} parent=11 // pred_check
          %p277 = pneg %p172
        $region34: #{tpu_custom_call.1} parent=11 // pred_check_branch
          %279 = sbr.rel (%p277) target = $region36
        $region35: #{tpu_custom_call.1} parent=11 // pred_region
          %281 = vsyncadd [#allocation13], 0
          %s283 = sshll.u32 %s6, 4
          %s284 = int_to_ptr.hbm [resolvable:$true] %s283
          %s285 = sshll.u32 [#allocation12], 4
          %s286 = int_to_ptr.vmem [resolvable:$true] %s285
          %288 = dma.hbm_to_vmem [thread:$0]  %s284, 64, %s286, [#allocation13]
        $region36: #{tpu_custom_call.1} parent=11 // pred_fallthru
          _
      $region12: #{tpu_custom_call.1} parent=5 // pred_fallthru
        _
      %p289 = scmp.lt.s32.totalorder %s20, 2
      // Predicated region
      $region37: #{tpu_custom_call.1} parent=5 // pred_check
        %p290 = pneg %p289
      $region38: #{tpu_custom_call.1} parent=5 // pred_check_branch
        %292 = sbr.rel (%p290) target = $region40
      $region39: #{tpu_custom_call.1} parent=5 // pred_region
        // Predicated region
        $region41: #{tpu_custom_call.1} parent=39 // pred_check
          %p293 = pneg %p40
        $region42: #{tpu_custom_call.1} parent=39 // pred_check_branch
          %295 = sbr.rel (%p293) target = $region44
        $region43: #{tpu_custom_call.1} parent=39 // pred_region
          %p296 = scmp.lt.s32.totalorder %s20, 1
          %s297 = scalar_select %p296, %s20, 1
          %s298 = smul.addr %s297, 8
          %s299 = smul.addr %s298, 4
          %s300 = scalar_lea.vmem %s0, %s299
        $region44: #{tpu_custom_call.1} parent=39 // pred_fallthru
          _
      $region40: #{tpu_custom_call.1} parent=5 // pred_fallthru
        _
      %p301 = scmp.le.s32.totalorder 1, %s20
      %p302 = scmp.lt.s32.totalorder %s20, 3
      %p303 = pnand %p301, %p302
      %p304 = pneg %p303
      // Predicated region
      $region45: #{tpu_custom_call.1} parent=5 // pred_check
        _
      $region46: #{tpu_custom_call.1} parent=5 // pred_check_branch
        %306 = sbr.rel (%p303) target = $region48
      $region47: #{tpu_custom_call.1} parent=5 // pred_region
        %s307 = ssub.s32 %s20, 1
        // Predicated region
        $region49: #{tpu_custom_call.1} parent=47 // pred_check
          %p308 = pneg %p67
        $region50: #{tpu_custom_call.1} parent=47 // pred_check_branch
          %310 = sbr.rel (%p308) target = $region52
        $region51: #{tpu_custom_call.1} parent=47 // pred_region
          %312 = dma.done [#allocation4], 67200
        $region52: #{tpu_custom_call.1} parent=47 // pred_fallthru
          _
        // Predicated region
        $region53: #{tpu_custom_call.1} parent=47 // pred_check
          %p313 = pneg %p88
        $region54: #{tpu_custom_call.1} parent=47 // pred_check_branch
          %315 = sbr.rel (%p313) target = $region56
        $region55: #{tpu_custom_call.1} parent=47 // pred_region
          %317 = dma.done [#allocation7], 76800
        $region56: #{tpu_custom_call.1} parent=47 // pred_fallthru
          _
        // Predicated region
        $region57: #{tpu_custom_call.1} parent=47 // pred_check
          %p318 = pneg %p109
        $region58: #{tpu_custom_call.1} parent=47 // pred_check_branch
          %320 = sbr.rel (%p318) target = $region60
        $region59: #{tpu_custom_call.1} parent=47 // pred_region
          %322 = dma.done [#allocation7], 112
        $region60: #{tpu_custom_call.1} parent=47 // pred_fallthru
          _
        // Predicated region
        $region61: #{tpu_custom_call.1} parent=47 // pred_check
          %p323 = pneg %p130
        $region62: #{tpu_custom_call.1} parent=47 // pred_check_branch
          %325 = sbr.rel (%p323) target = $region64
        $region63: #{tpu_custom_call.1} parent=47 // pred_region
          %327 = dma.done [#allocation10], 112
        $region64: #{tpu_custom_call.1} parent=47 // pred_fallthru
          _
        // Predicated region
        $region65: #{tpu_custom_call.1} parent=47 // pred_check
          %p328 = pneg %p151
        $region66: #{tpu_custom_call.1} parent=47 // pred_check_branch
          %330 = sbr.rel (%p328) target = $region68
        $region67: #{tpu_custom_call.1} parent=47 // pred_region
          %332 = dma.done [#allocation10], 64
        $region68: #{tpu_custom_call.1} parent=47 // pred_fallthru
          _
        // Predicated region
        $region69: #{tpu_custom_call.1} parent=47 // pred_check
          %p333 = pneg %p172
        $region70: #{tpu_custom_call.1} parent=47 // pred_check_branch
          %335 = sbr.rel (%p333) target = $region72
        $region71: #{tpu_custom_call.1} parent=47 // pred_region
          %337 = dma.done [#allocation13], 64
        $region72: #{tpu_custom_call.1} parent=47 // pred_fallthru
          _
        %p338 = scmp.lt.s32.totalorder %s25, 1
        %s339 = scalar_select %p338, %s25, 1
        %s340 = smul.addr %s339, 8
        %s341 = smul.addr %s340, 4
        %s342 = scalar_lea.vmem %s0, %s341
        %p343 = pneg %p46
        %p344 = pneg %p43
        %p345 = pneg %p67
        %p346 = pneg %p64
        %p347 = pneg %p88
        %p348 = pneg %p85
        %p349 = pneg %p109
        %p350 = pneg %p106
        %p351 = pneg %p130
        %p352 = pneg %p127
        %p353 = pneg %p151
        %p354 = pneg %p148
        %p355 = pneg %p172
        %p356 = pneg %p169
        %p357 = pneg %p198
        %p358 = pneg %p195
        %s359 = sand.u32 %s185, 1
        %s360 = scalar_lea.sflag [#allocation5], %s359
        %s361 = sand.u32 %s185, 1
        %s362 = smul.addr %s361, 32
        %s363 = scalar_lea.vmem [#allocation14], %s362
        %p364 = scmp.lt.s32.totalorder %s25, 1
        %s365 = scalar_select %p364, %s25, 1
        %s366 = smul.addr %s365, 8
        %s367 = smul.addr %s366, 4
        %s368 = scalar_lea.vmem %s0, %s367
        %v370 = vld [vmem:[%s368] sm:$0xff]
        %v371 = vld [vmem:[%s368 + $0x8] sm:$0xff]
        %v372 = vld [vmem:[#allocation3] sm:$0xff]
        %v373 = vld [vmem:[#allocation3 + $0x8] sm:$0xff]
        %v374 = vld [vmem:[#allocation3 + $0x10] sm:$0xff]
        %v375 = vld [vmem:[#allocation3 + $0x18] sm:$0xf]
        %v376 = vld [vmem:[#allocation3 + $0x1c] sm:$0xff]
        %v377 = vld [vmem:[#allocation3 + $0x24] sm:$0xff]
        %v378 = vld [vmem:[#allocation3 + $0x2c] sm:$0xff]
        %v379 = vld [vmem:[#allocation3 + $0x34] sm:$0xf]
        %v380 = vld [vmem:[#allocation3 + $0x38] sm:$0xff]
        %v381 = vld [vmem:[#allocation3 + $0x40] sm:$0xff]
        %v382 = vld [vmem:[#allocation3 + $0x48] sm:$0xff]
        %v383 = vld [vmem:[#allocation3 + $0x50] sm:$0xf]
        %v384 = vld [vmem:[#allocation3 + $0x54] sm:$0xff]
        %v385 = vld [vmem:[#allocation3 + $0x5c] sm:$0xff]
        %v386 = vld [vmem:[#allocation3 + $0x64] sm:$0xff]
        %v387 = vld [vmem:[#allocation3 + $0x6c] sm:$0xf]
        %v388 = vld [vmem:[#allocation3 + $0x70] sm:$0xff]
        %v389 = vld [vmem:[#allocation3 + $0x78] sm:$0xff]
        %v390 = vld [vmem:[#allocation3 + $0x80] sm:$0xff]
        %v391 = vld [vmem:[#allocation3 + $0x88] sm:$0xf]
        %v392 = vld [vmem:[#allocation3 + $0x8c] sm:$0xff]
        %v393 = vld [vmem:[#allocation3 + $0x94] sm:$0xff]
        %v394 = vld [vmem:[#allocation3 + $0x9c] sm:$0xff]
        %v395 = vld [vmem:[#allocation3 + $0xa4] sm:$0xf]
        %v396 = vld [vmem:[#allocation3 + $0xa8] sm:$0xff]
        %v397 = vld [vmem:[#allocation3 + $0xb0] sm:$0xff]
        %v398 = vld [vmem:[#allocation3 + $0xb8] sm:$0xff]
        %v399 = vld [vmem:[#allocation3 + $0xc0] sm:$0xf]
        %v400 = vld [vmem:[#allocation3 + $0xc4] sm:$0xff]
        %v401 = vld [vmem:[#allocation3 + $0xcc] sm:$0xff]
        %v402 = vld [vmem:[#allocation3 + $0xd4] sm:$0xff]
        %v403 = vld [vmem:[#allocation3 + $0xdc] sm:$0xf]
        %v404 = vld [vmem:[#allocation3 + $0xe0] sm:$0xff]
        %v405 = vld [vmem:[#allocation3 + $0xe8] sm:$0xff]
        %v406 = vld [vmem:[#allocation3 + $0xf0] sm:$0xff]
        %v407 = vld [vmem:[#allocation3 + $0xf8] sm:$0xf]
        %v408 = vld [vmem:[#allocation3 + $0xfc] sm:$0xff]
        %v409 = vld [vmem:[#allocation3 + $0x104] sm:$0xff]
        %v410 = vld [vmem:[#allocation3 + $0x10c] sm:$0xff]
        %v411 = vld [vmem:[#allocation3 + $0x114] sm:$0xf]
        %v412 = vld [vmem:[#allocation3 + $0x118] sm:$0xff]
        %v413 = vld [vmem:[#allocation3 + $0x120] sm:$0xff]
        %v414 = vld [vmem:[#allocation3 + $0x128] sm:$0xff]
        %v415 = vld [vmem:[#allocation3 + $0x130] sm:$0xf]
        %v416 = vld [vmem:[#allocation3 + $0x134] sm:$0xff]
        %v417 = vld [vmem:[#allocation3 + $0x13c] sm:$0xff]
        %v418 = vld [vmem:[#allocation3 + $0x144] sm:$0xff]
        %v419 = vld [vmem:[#allocation3 + $0x14c] sm:$0xf]
        %v420 = vld [vmem:[#allocation3 + $0x150] sm:$0xff]
        %v421 = vld [vmem:[#allocation3 + $0x158] sm:$0xff]
        %v422 = vld [vmem:[#allocation3 + $0x160] sm:$0xff]
        %v423 = vld [vmem:[#allocation3 + $0x168] sm:$0xf]
        %v424 = vld [vmem:[#allocation3 + $0x16c] sm:$0xff]
        %v425 = vld [vmem:[#allocation3 + $0x174] sm:$0xff]
        %v426 = vld [vmem:[#allocation3 + $0x17c] sm:$0xff]
        %v427 = vld [vmem:[#allocation3 + $0x184] sm:$0xf]
        %v428 = vld [vmem:[#allocation3 + $0x188] sm:$0xff]
        %v429 = vld [vmem:[#allocation3 + $0x190] sm:$0xff]
        %v430 = vld [vmem:[#allocation3 + $0x198] sm:$0xff]
        %v431 = vld [vmem:[#allocation3 + $0x1a0] sm:$0xf]
        %v432 = vld [vmem:[#allocation3 + $0x1a4] sm:$0xff]
        %v433 = vld [vmem:[#allocation3 + $0x1ac] sm:$0xff]
        %v434 = vld [vmem:[#allocation3 + $0x1b4] sm:$0xff]
        %v435 = vld [vmem:[#allocation3 + $0x1bc] sm:$0xf]
        %v436 = vld [vmem:[#allocation3 + $0x1c0] sm:$0xff]
        %v437 = vld [vmem:[#allocation3 + $0x1c8] sm:$0xff]
        %v438 = vld [vmem:[#allocation3 + $0x1d0] sm:$0xff]
        %v439 = vld [vmem:[#allocation3 + $0x1d8] sm:$0xf]
        %v440 = vld [vmem:[#allocation3 + $0x1dc] sm:$0xff]
        %v441 = vld [vmem:[#allocation3 + $0x1e4] sm:$0xff]
        %v442 = vld [vmem:[#allocation3 + $0x1ec] sm:$0xff]
        %v443 = vld [vmem:[#allocation3 + $0x1f4] sm:$0xf]
        %v444 = vld [vmem:[#allocation3 + $0x1f8] sm:$0xff]
        %v445 = vld [vmem:[#allocation3 + $0x200] sm:$0xff]
        %v446 = vld [vmem:[#allocation3 + $0x208] sm:$0xff]
        %v447 = vld [vmem:[#allocation3 + $0x210] sm:$0xf]
        %v448 = vld [vmem:[#allocation3 + $0x214] sm:$0xff]
        %v449 = vld [vmem:[#allocation3 + $0x21c] sm:$0xff]
        %v450 = vld [vmem:[#allocation3 + $0x224] sm:$0xff]
        %v451 = vld [vmem:[#allocation3 + $0x22c] sm:$0xf]
        %v452 = vld [vmem:[#allocation3 + $0x230] sm:$0xff]
        %v453 = vld [vmem:[#allocation3 + $0x238] sm:$0xff]
        %v454 = vld [vmem:[#allocation3 + $0x240] sm:$0xff]
        %v455 = vld [vmem:[#allocation3 + $0x248] sm:$0xf]
        %v456 = vld [vmem:[#allocation3 + $0x24c] sm:$0xff]
        %v457 = vld [vmem:[#allocation3 + $0x254] sm:$0xff]
        %v458 = vld [vmem:[#allocation3 + $0x25c] sm:$0xff]
        %v459 = vld [vmem:[#allocation3 + $0x264] sm:$0xf]
        %v460 = vld [vmem:[#allocation3 + $0x268] sm:$0xff]
        %v461 = vld [vmem:[#allocation3 + $0x270] sm:$0xff]
        %v462 = vld [vmem:[#allocation3 + $0x278] sm:$0xff]
        %v463 = vld [vmem:[#allocation3 + $0x280] sm:$0xf]
        %v464 = vld [vmem:[#allocation3 + $0x284] sm:$0xff]
        %v465 = vld [vmem:[#allocation3 + $0x28c] sm:$0xff]
        %v466 = vld [vmem:[#allocation3 + $0x294] sm:$0xff]
        %v467 = vld [vmem:[#allocation3 + $0x29c] sm:$0xf]
        %v468 = vld [vmem:[#allocation3 + $0x2a0] sm:$0xff]
        %v469 = vld [vmem:[#allocation3 + $0x2a8] sm:$0xff]
        %v470 = vld [vmem:[#allocation3 + $0x2b0] sm:$0xff]
        %v471 = vld [vmem:[#allocation3 + $0x2b8] sm:$0xf]
        %v472 = vld [vmem:[#allocation3 + $0x2bc] sm:$0xff]
        %v473 = vld [vmem:[#allocation3 + $0x2c4] sm:$0xff]
        %v474 = vld [vmem:[#allocation3 + $0x2cc] sm:$0xff]
        %v475 = vld [vmem:[#allocation3 + $0x2d4] sm:$0xf]
        %v476 = vld [vmem:[#allocation3 + $0x2d8] sm:$0xff]
        %v477 = vld [vmem:[#allocation3 + $0x2e0] sm:$0xff]
        %v478 = vld [vmem:[#allocation3 + $0x2e8] sm:$0xff]
        %v479 = vld [vmem:[#allocation3 + $0x2f0] sm:$0xf]
        %v480 = vld [vmem:[#allocation3 + $0x2f4] sm:$0xff]
        %v481 = vld [vmem:[#allocation3 + $0x2fc] sm:$0xff]
        %v482 = vld [vmem:[#allocation3 + $0x304] sm:$0xff]
        %v483 = vld [vmem:[#allocation3 + $0x30c] sm:$0xf]
        %v484 = vld [vmem:[#allocation3 + $0x310] sm:$0xff]
        %v485 = vld [vmem:[#allocation3 + $0x318] sm:$0xff]
        %v486 = vld [vmem:[#allocation3 + $0x320] sm:$0xff]
        %v487 = vld [vmem:[#allocation3 + $0x328] sm:$0xf]
        %v488 = vld [vmem:[#allocation3 + $0x32c] sm:$0xff]
        %v489 = vld [vmem:[#allocation3 + $0x334] sm:$0xff]
        %v490 = vld [vmem:[#allocation3 + $0x33c] sm:$0xff]
        %v491 = vld [vmem:[#allocation3 + $0x344] sm:$0xf]
        %v492 = vld [vmem:[#allocation3 + $0x348] sm:$0xff]
        %v493 = vld [vmem:[#allocation3 + $0x350] sm:$0xff]
        %v494 = vld [vmem:[#allocation3 + $0x358] sm:$0xff]
        %v495 = vld [vmem:[#allocation3 + $0x360] sm:$0xf]
        %v496 = vld [vmem:[#allocation3 + $0x364] sm:$0xff]
        %v497 = vld [vmem:[#allocation3 + $0x36c] sm:$0xff]
        %v498 = vld [vmem:[#allocation3 + $0x374] sm:$0xff]
        %v499 = vld [vmem:[#allocation3 + $0x37c] sm:$0xf]
        %v500 = vld [vmem:[#allocation3 + $0x380] sm:$0xff]
        %v501 = vld [vmem:[#allocation3 + $0x388] sm:$0xff]
        %v502 = vld [vmem:[#allocation3 + $0x390] sm:$0xff]
        %v503 = vld [vmem:[#allocation3 + $0x398] sm:$0xf]
        %v504 = vld [vmem:[#allocation3 + $0x39c] sm:$0xff]
        %v505 = vld [vmem:[#allocation3 + $0x3a4] sm:$0xff]
        %v506 = vld [vmem:[#allocation3 + $0x3ac] sm:$0xff]
        %v507 = vld [vmem:[#allocation3 + $0x3b4] sm:$0xf]
        %v508 = vld [vmem:[#allocation3 + $0x3b8] sm:$0xff]
        %v509 = vld [vmem:[#allocation3 + $0x3c0] sm:$0xff]
        %v510 = vld [vmem:[#allocation3 + $0x3c8] sm:$0xff]
        %v511 = vld [vmem:[#allocation3 + $0x3d0] sm:$0xf]
        %v512 = vld [vmem:[#allocation3 + $0x3d4] sm:$0xff]
        %v513 = vld [vmem:[#allocation3 + $0x3dc] sm:$0xff]
        %v514 = vld [vmem:[#allocation3 + $0x3e4] sm:$0xff]
        %v515 = vld [vmem:[#allocation3 + $0x3ec] sm:$0xf]
        %v516 = vld [vmem:[#allocation3 + $0x3f0] sm:$0xff]
        %v517 = vld [vmem:[#allocation3 + $0x3f8] sm:$0xff]
        %v518 = vld [vmem:[#allocation3 + $0x400] sm:$0xff]
        %v519 = vld [vmem:[#allocation3 + $0x408] sm:$0xf]
        %v520 = vld [vmem:[#allocation3 + $0x40c] sm:$0xff]
        %v521 = vld [vmem:[#allocation3 + $0x414] sm:$0xff]
        %v522 = vld [vmem:[#allocation3 + $0x41c] sm:$0xff]
        %v523 = vld [vmem:[#allocation3 + $0x424] sm:$0xf]
        %v524 = vld [vmem:[#allocation3 + $0x428] sm:$0xff]
        %v525 = vld [vmem:[#allocation3 + $0x430] sm:$0xff]
        %v526 = vld [vmem:[#allocation3 + $0x438] sm:$0xff]
        %v527 = vld [vmem:[#allocation3 + $0x440] sm:$0xf]
        %v528 = vld [vmem:[#allocation3 + $0x444] sm:$0xff]
        %v529 = vld [vmem:[#allocation3 + $0x44c] sm:$0xff]
        %v530 = vld [vmem:[#allocation3 + $0x454] sm:$0xff]
        %v531 = vld [vmem:[#allocation3 + $0x45c] sm:$0xf]
        %v532 = vld [vmem:[#allocation3 + $0x460] sm:$0xff]
        %v533 = vld [vmem:[#allocation3 + $0x468] sm:$0xff]
        %v534 = vld [vmem:[#allocation3 + $0x470] sm:$0xff]
        %v535 = vld [vmem:[#allocation3 + $0x478] sm:$0xf]
        %v536 = vld [vmem:[#allocation3 + $0x47c] sm:$0xff]
        %v537 = vld [vmem:[#allocation3 + $0x484] sm:$0xff]
        %v538 = vld [vmem:[#allocation3 + $0x48c] sm:$0xff]
        %v539 = vld [vmem:[#allocation3 + $0x494] sm:$0xf]
        %v540 = vld [vmem:[#allocation3 + $0x498] sm:$0xff]
        %v541 = vld [vmem:[#allocation3 + $0x4a0] sm:$0xff]
        %v542 = vld [vmem:[#allocation3 + $0x4a8] sm:$0xff]
        %v543 = vld [vmem:[#allocation3 + $0x4b0] sm:$0xf]
        %v544 = vld [vmem:[#allocation3 + $0x4b4] sm:$0xff]
        %v545 = vld [vmem:[#allocation3 + $0x4bc] sm:$0xff]
        %v546 = vld [vmem:[#allocation3 + $0x4c4] sm:$0xff]
        %v547 = vld [vmem:[#allocation3 + $0x4cc] sm:$0xf]
        %v548 = vld [vmem:[#allocation3 + $0x4d0] sm:$0xff]
        %v549 = vld [vmem:[#allocation3 + $0x4d8] sm:$0xff]
        %v550 = vld [vmem:[#allocation3 + $0x4e0] sm:$0xff]
        %v551 = vld [vmem:[#allocation3 + $0x4e8] sm:$0xf]
        %v552 = vld [vmem:[#allocation3 + $0x4ec] sm:$0xff]
        %v553 = vld [vmem:[#allocation3 + $0x4f4] sm:$0xff]
        %v554 = vld [vmem:[#allocation3 + $0x4fc] sm:$0xff]
        %v555 = vld [vmem:[#allocation3 + $0x504] sm:$0xf]
        %v556 = vld [vmem:[#allocation3 + $0x508] sm:$0xff]
        %v557 = vld [vmem:[#allocation3 + $0x510] sm:$0xff]
        %v558 = vld [vmem:[#allocation3 + $0x518] sm:$0xff]
        %v559 = vld [vmem:[#allocation3 + $0x520] sm:$0xf]
        %v560 = vld [vmem:[#allocation3 + $0x524] sm:$0xff]
        %v561 = vld [vmem:[#allocation3 + $0x52c] sm:$0xff]
        %v562 = vld [vmem:[#allocation3 + $0x534] sm:$0xff]
        %v563 = vld [vmem:[#allocation3 + $0x53c] sm:$0xf]
        %v564 = vld [vmem:[#allocation3 + $0x540] sm:$0xff]
        %v565 = vld [vmem:[#allocation3 + $0x548] sm:$0xff]
        %v566 = vld [vmem:[#allocation3 + $0x550] sm:$0xff]
        %v567 = vld [vmem:[#allocation3 + $0x558] sm:$0xf]
        %v568 = vld [vmem:[#allocation3 + $0x55c] sm:$0xff]
        %v569 = vld [vmem:[#allocation3 + $0x564] sm:$0xff]
        %v570 = vld [vmem:[#allocation3 + $0x56c] sm:$0xff]
        %v571 = vld [vmem:[#allocation3 + $0x574] sm:$0xf]
        %v572 = vld [vmem:[%s368 + $0x10] sm:$0x11]
        %v573 = vld [vmem:[%s368 + $0x18] sm:$0x11]
        %s574 = scalar_lea.vmem [#allocation3], 1400
        %v575 = vld [vmem:[%s574] sm:$0xff]
        %v576 = vld [vmem:[%s574 + $0x8] sm:$0xff]
        %v577 = vld [vmem:[%s574 + $0x10] sm:$0xff]
        %v578 = vld [vmem:[%s574 + $0x18] sm:$0xf]
        %v579 = vld [vmem:[%s574 + $0x1c] sm:$0xff]
        %v580 = vld [vmem:[%s574 + $0x24] sm:$0xff]
        %v581 = vld [vmem:[%s574 + $0x2c] sm:$0xff]
        %v582 = vld [vmem:[%s574 + $0x34] sm:$0xf]
        %v583 = vld [vmem:[%s574 + $0x38] sm:$0xff]
        %v584 = vld [vmem:[%s574 + $0x40] sm:$0xff]
        %v585 = vld [vmem:[%s574 + $0x48] sm:$0xff]
        %v586 = vld [vmem:[%s574 + $0x50] sm:$0xf]
        %v587 = vld [vmem:[%s574 + $0x54] sm:$0xff]
        %v588 = vld [vmem:[%s574 + $0x5c] sm:$0xff]
        %v589 = vld [vmem:[%s574 + $0x64] sm:$0xff]
        %v590 = vld [vmem:[%s574 + $0x6c] sm:$0xf]
        %v591 = vld [vmem:[%s574 + $0x70] sm:$0xff]
        %v592 = vld [vmem:[%s574 + $0x78] sm:$0xff]
        %v593 = vld [vmem:[%s574 + $0x80] sm:$0xff]
        %v594 = vld [vmem:[%s574 + $0x88] sm:$0xf]
        %v595 = vld [vmem:[%s574 + $0x8c] sm:$0xff]
        %v596 = vld [vmem:[%s574 + $0x94] sm:$0xff]
        %v597 = vld [vmem:[%s574 + $0x9c] sm:$0xff]
        %v598 = vld [vmem:[%s574 + $0xa4] sm:$0xf]
        %v599 = vld [vmem:[%s574 + $0xa8] sm:$0xff]
        %v600 = vld [vmem:[%s574 + $0xb0] sm:$0xff]
        %v601 = vld [vmem:[%s574 + $0xb8] sm:$0xff]
        %v602 = vld [vmem:[%s574 + $0xc0] sm:$0xf]
        %v603 = vld [vmem:[%s574 + $0xc4] sm:$0xff]
        %v604 = vld [vmem:[%s574 + $0xcc] sm:$0xff]
        %v605 = vld [vmem:[%s574 + $0xd4] sm:$0xff]
        %v606 = vld [vmem:[%s574 + $0xdc] sm:$0xf]
        %v607 = vld [vmem:[%s574 + $0xe0] sm:$0xff]
        %v608 = vld [vmem:[%s574 + $0xe8] sm:$0xff]
        %v609 = vld [vmem:[%s574 + $0xf0] sm:$0xff]
        %v610 = vld [vmem:[%s574 + $0xf8] sm:$0xf]
        %v611 = vld [vmem:[%s574 + $0xfc] sm:$0xff]
        %v612 = vld [vmem:[%s574 + $0x104] sm:$0xff]
        %v613 = vld [vmem:[%s574 + $0x10c] sm:$0xff]
        %v614 = vld [vmem:[%s574 + $0x114] sm:$0xf]
        %v615 = vld [vmem:[%s574 + $0x118] sm:$0xff]
        %v616 = vld [vmem:[%s574 + $0x120] sm:$0xff]
        %v617 = vld [vmem:[%s574 + $0x128] sm:$0xff]
        %v618 = vld [vmem:[%s574 + $0x130] sm:$0xf]
        %v619 = vld [vmem:[%s574 + $0x134] sm:$0xff]
        %v620 = vld [vmem:[%s574 + $0x13c] sm:$0xff]
        %v621 = vld [vmem:[%s574 + $0x144] sm:$0xff]
        %v622 = vld [vmem:[%s574 + $0x14c] sm:$0xf]
        %v623 = vld [vmem:[%s574 + $0x150] sm:$0xff]
        %v624 = vld [vmem:[%s574 + $0x158] sm:$0xff]
        %v625 = vld [vmem:[%s574 + $0x160] sm:$0xff]
        %v626 = vld [vmem:[%s574 + $0x168] sm:$0xf]
        %v627 = vld [vmem:[%s574 + $0x16c] sm:$0xff]
        %v628 = vld [vmem:[%s574 + $0x174] sm:$0xff]
        %v629 = vld [vmem:[%s574 + $0x17c] sm:$0xff]
        %v630 = vld [vmem:[%s574 + $0x184] sm:$0xf]
        %v631 = vld [vmem:[%s574 + $0x188] sm:$0xff]
        %v632 = vld [vmem:[%s574 + $0x190] sm:$0xff]
        %v633 = vld [vmem:[%s574 + $0x198] sm:$0xff]
        %v634 = vld [vmem:[%s574 + $0x1a0] sm:$0xf]
        %v635 = vld [vmem:[%s574 + $0x1a4] sm:$0xff]
        %v636 = vld [vmem:[%s574 + $0x1ac] sm:$0xff]
        %v637 = vld [vmem:[%s574 + $0x1b4] sm:$0xff]
        %v638 = vld [vmem:[%s574 + $0x1bc] sm:$0xf]
        %v639 = vld [vmem:[%s574 + $0x1c0] sm:$0xff]
        %v640 = vld [vmem:[%s574 + $0x1c8] sm:$0xff]
        %v641 = vld [vmem:[%s574 + $0x1d0] sm:$0xff]
        %v642 = vld [vmem:[%s574 + $0x1d8] sm:$0xf]
        %v643 = vld [vmem:[%s574 + $0x1dc] sm:$0xff]
        %v644 = vld [vmem:[%s574 + $0x1e4] sm:$0xff]
        %v645 = vld [vmem:[%s574 + $0x1ec] sm:$0xff]
        %v646 = vld [vmem:[%s574 + $0x1f4] sm:$0xf]
        %v647 = vld [vmem:[%s574 + $0x1f8] sm:$0xff]
        %v648 = vld [vmem:[%s574 + $0x200] sm:$0xff]
        %v649 = vld [vmem:[%s574 + $0x208] sm:$0xff]
        %v650 = vld [vmem:[%s574 + $0x210] sm:$0xf]
        %v651 = vld [vmem:[%s574 + $0x214] sm:$0xff]
        %v652 = vld [vmem:[%s574 + $0x21c] sm:$0xff]
        %v653 = vld [vmem:[%s574 + $0x224] sm:$0xff]
        %v654 = vld [vmem:[%s574 + $0x22c] sm:$0xf]
        %v655 = vld [vmem:[%s574 + $0x230] sm:$0xff]
        %v656 = vld [vmem:[%s574 + $0x238] sm:$0xff]
        %v657 = vld [vmem:[%s574 + $0x240] sm:$0xff]
        %v658 = vld [vmem:[%s574 + $0x248] sm:$0xf]
        %v659 = vld [vmem:[%s574 + $0x24c] sm:$0xff]
        %v660 = vld [vmem:[%s574 + $0x254] sm:$0xff]
        %v661 = vld [vmem:[%s574 + $0x25c] sm:$0xff]
        %v662 = vld [vmem:[%s574 + $0x264] sm:$0xf]
        %v663 = vld [vmem:[%s574 + $0x268] sm:$0xff]
        %v664 = vld [vmem:[%s574 + $0x270] sm:$0xff]
        %v665 = vld [vmem:[%s574 + $0x278] sm:$0xff]
        %v666 = vld [vmem:[%s574 + $0x280] sm:$0xf]
        %v667 = vld [vmem:[%s574 + $0x284] sm:$0xff]
        %v668 = vld [vmem:[%s574 + $0x28c] sm:$0xff]
        %v669 = vld [vmem:[%s574 + $0x294] sm:$0xff]
        %v670 = vld [vmem:[%s574 + $0x29c] sm:$0xf]
        %v671 = vld [vmem:[%s574 + $0x2a0] sm:$0xff]
        %v672 = vld [vmem:[%s574 + $0x2a8] sm:$0xff]
        %v673 = vld [vmem:[%s574 + $0x2b0] sm:$0xff]
        %v674 = vld [vmem:[%s574 + $0x2b8] sm:$0xf]
        %v675 = vld [vmem:[%s574 + $0x2bc] sm:$0xff]
        %v676 = vld [vmem:[%s574 + $0x2c4] sm:$0xff]
        %v677 = vld [vmem:[%s574 + $0x2cc] sm:$0xff]
        %v678 = vld [vmem:[%s574 + $0x2d4] sm:$0xf]
        %v679 = vld [vmem:[%s574 + $0x2d8] sm:$0xff]
        %v680 = vld [vmem:[%s574 + $0x2e0] sm:$0xff]
        %v681 = vld [vmem:[%s574 + $0x2e8] sm:$0xff]
        %v682 = vld [vmem:[%s574 + $0x2f0] sm:$0xf]
        %v683 = vld [vmem:[%s574 + $0x2f4] sm:$0xff]
        %v684 = vld [vmem:[%s574 + $0x2fc] sm:$0xff]
        %v685 = vld [vmem:[%s574 + $0x304] sm:$0xff]
        %v686 = vld [vmem:[%s574 + $0x30c] sm:$0xf]
        %v687 = vld [vmem:[%s574 + $0x310] sm:$0xff]
        %v688 = vld [vmem:[%s574 + $0x318] sm:$0xff]
        %v689 = vld [vmem:[%s574 + $0x320] sm:$0xff]
        %v690 = vld [vmem:[%s574 + $0x328] sm:$0xf]
        %v691 = vld [vmem:[%s574 + $0x32c] sm:$0xff]
        %v692 = vld [vmem:[%s574 + $0x334] sm:$0xff]
        %v693 = vld [vmem:[%s574 + $0x33c] sm:$0xff]
        %v694 = vld [vmem:[%s574 + $0x344] sm:$0xf]
        %v695 = vld [vmem:[%s574 + $0x348] sm:$0xff]
        %v696 = vld [vmem:[%s574 + $0x350] sm:$0xff]
        %v697 = vld [vmem:[%s574 + $0x358] sm:$0xff]
        %v698 = vld [vmem:[%s574 + $0x360] sm:$0xf]
        %v699 = vld [vmem:[%s574 + $0x364] sm:$0xff]
        %v700 = vld [vmem:[%s574 + $0x36c] sm:$0xff]
        %v701 = vld [vmem:[%s574 + $0x374] sm:$0xff]
        %v702 = vld [vmem:[%s574 + $0x37c] sm:$0xf]
        %v703 = vld [vmem:[%s574 + $0x380] sm:$0xff]
        %v704 = vld [vmem:[%s574 + $0x388] sm:$0xff]
        %v705 = vld [vmem:[%s574 + $0x390] sm:$0xff]
        %v706 = vld [vmem:[%s574 + $0x398] sm:$0xf]
        %v707 = vld [vmem:[%s574 + $0x39c] sm:$0xff]
        %v708 = vld [vmem:[%s574 + $0x3a4] sm:$0xff]
        %v709 = vld [vmem:[%s574 + $0x3ac] sm:$0xff]
        %v710 = vld [vmem:[%s574 + $0x3b4] sm:$0xf]
        %v711 = vld [vmem:[%s574 + $0x3b8] sm:$0xff]
        %v712 = vld [vmem:[%s574 + $0x3c0] sm:$0xff]
        %v713 = vld [vmem:[%s574 + $0x3c8] sm:$0xff]
        %v714 = vld [vmem:[%s574 + $0x3d0] sm:$0xf]
        %v715 = vld [vmem:[%s574 + $0x3d4] sm:$0xff]
        %v716 = vld [vmem:[%s574 + $0x3dc] sm:$0xff]
        %v717 = vld [vmem:[%s574 + $0x3e4] sm:$0xff]
        %v718 = vld [vmem:[%s574 + $0x3ec] sm:$0xf]
        %v719 = vld [vmem:[%s574 + $0x3f0] sm:$0xff]
        %v720 = vld [vmem:[%s574 + $0x3f8] sm:$0xff]
        %v721 = vld [vmem:[%s574 + $0x400] sm:$0xff]
        %v722 = vld [vmem:[%s574 + $0x408] sm:$0xf]
        %v723 = vld [vmem:[%s574 + $0x40c] sm:$0xff]
        %v724 = vld [vmem:[%s574 + $0x414] sm:$0xff]
        %v725 = vld [vmem:[%s574 + $0x41c] sm:$0xff]
        %v726 = vld [vmem:[%s574 + $0x424] sm:$0xf]
        %v727 = vld [vmem:[%s574 + $0x428] sm:$0xff]
        %v728 = vld [vmem:[%s574 + $0x430] sm:$0xff]
        %v729 = vld [vmem:[%s574 + $0x438] sm:$0xff]
        %v730 = vld [vmem:[%s574 + $0x440] sm:$0xf]
        %v731 = vld [vmem:[%s574 + $0x444] sm:$0xff]
        %v732 = vld [vmem:[%s574 + $0x44c] sm:$0xff]
        %v733 = vld [vmem:[%s574 + $0x454] sm:$0xff]
        %v734 = vld [vmem:[%s574 + $0x45c] sm:$0xf]
        %v735 = vld [vmem:[%s574 + $0x460] sm:$0xff]
        %v736 = vld [vmem:[%s574 + $0x468] sm:$0xff]
        %v737 = vld [vmem:[%s574 + $0x470] sm:$0xff]
        %v738 = vld [vmem:[%s574 + $0x478] sm:$0xf]
        %v739 = vld [vmem:[%s574 + $0x47c] sm:$0xff]
        %v740 = vld [vmem:[%s574 + $0x484] sm:$0xff]
        %v741 = vld [vmem:[%s574 + $0x48c] sm:$0xff]
        %v742 = vld [vmem:[%s574 + $0x494] sm:$0xf]
        %v743 = vld [vmem:[%s574 + $0x498] sm:$0xff]
        %v744 = vld [vmem:[%s574 + $0x4a0] sm:$0xff]
        %v745 = vld [vmem:[%s574 + $0x4a8] sm:$0xff]
        %v746 = vld [vmem:[%s574 + $0x4b0] sm:$0xf]
        %v747 = vld [vmem:[%s574 + $0x4b4] sm:$0xff]
        %v748 = vld [vmem:[%s574 + $0x4bc] sm:$0xff]
        %v749 = vld [vmem:[%s574 + $0x4c4] sm:$0xff]
        %v750 = vld [vmem:[%s574 + $0x4cc] sm:$0xf]
        %v751 = vld [vmem:[%s574 + $0x4d0] sm:$0xff]
        %v752 = vld [vmem:[%s574 + $0x4d8] sm:$0xff]
        %v753 = vld [vmem:[%s574 + $0x4e0] sm:$0xff]
        %v754 = vld [vmem:[%s574 + $0x4e8] sm:$0xf]
        %v755 = vld [vmem:[%s574 + $0x4ec] sm:$0xff]
        %v756 = vld [vmem:[%s574 + $0x4f4] sm:$0xff]
        %v757 = vld [vmem:[%s574 + $0x4fc] sm:$0xff]
        %v758 = vld [vmem:[%s574 + $0x504] sm:$0xf]
        %v759 = vld [vmem:[%s574 + $0x508] sm:$0xff]
        %v760 = vld [vmem:[%s574 + $0x510] sm:$0xff]
        %v761 = vld [vmem:[%s574 + $0x518] sm:$0xff]
        %v762 = vld [vmem:[%s574 + $0x520] sm:$0xf]
        %v763 = vld [vmem:[%s574 + $0x524] sm:$0xff]
        %v764 = vld [vmem:[%s574 + $0x52c] sm:$0xff]
        %v765 = vld [vmem:[%s574 + $0x534] sm:$0xff]
        %v766 = vld [vmem:[%s574 + $0x53c] sm:$0xf]
        %v767 = vld [vmem:[%s574 + $0x540] sm:$0xff]
        %v768 = vld [vmem:[%s574 + $0x548] sm:$0xff]
        %v769 = vld [vmem:[%s574 + $0x550] sm:$0xff]
        %v770 = vld [vmem:[%s574 + $0x558] sm:$0xf]
        %v771 = vld [vmem:[%s574 + $0x55c] sm:$0xff]
        %v772 = vld [vmem:[%s574 + $0x564] sm:$0xff]
        %v773 = vld [vmem:[%s574 + $0x56c] sm:$0xff]
        %v774 = vld [vmem:[%s574 + $0x574] sm:$0xf]
        %v779 = vunpack.c.l.b16 %v370
        %v780 = vunpack.c.h.b16 %v370
        %v781 = vunpack.c.l.b16 %v371
        %v782 = vunpack.c.h.b16 %v371
        %v783 = vunpack.c.l.b16 %v572
        %v784 = vunpack.c.h.b16 %v572
        %v785 = vunpack.c.l.b16 %v573
        %v786 = vunpack.c.h.b16 %v573
        %v787 = vpack.c.b16 %v783, %v779
        %v788 = vpack.c.b16 %v784, %v780
        %v789 = vpack.c.b16 %v785, %v781
        %v790 = vpack.c.b16 %v786, %v782
        %v792 = vshrl.u32 %v787, 16
        %v794 = vshll.u32 %v787, 16
        %v796 = vrot.slane %v794, 1
        %v797 = vor.u32 %v792, %v796
        %v799 = vshrl.u32 %v788, 16
        %v801 = vshll.u32 %v788, 16
        %v803 = vrot.slane %v801, 1
        %v804 = vor.u32 %v799, %v803
        %v806 = vshrl.u32 %v789, 16
        %v808 = vshll.u32 %v789, 16
        %v810 = vrot.slane %v808, 1
        %v811 = vor.u32 %v806, %v810
        %v813 = vshrl.u32 %v790, 16
        %v815 = vshll.u32 %v790, 16
        %v817 = vrot.slane %v815, 1
        %v818 = vor.u32 %v813, %v817
        %v1022 = vunpack.c.l.b16 %v575
        %v1023 = vunpack.c.h.b16 %v575
        %v1024 = vunpack.c.l.b16 %v576
        %v1025 = vunpack.c.h.b16 %v576
        %v1026 = vunpack.c.l.b16 %v577
        %v1027 = vunpack.c.h.b16 %v577
        %v1028 = vunpack.c.l.b16 %v578
        %v1029 = vunpack.c.l.b16 %v579
        %v1030 = vunpack.c.h.b16 %v579
        %v1031 = vunpack.c.l.b16 %v580
        %v1032 = vunpack.c.h.b16 %v580
        %v1033 = vunpack.c.l.b16 %v581
        %v1034 = vunpack.c.h.b16 %v581
        %v1035 = vunpack.c.l.b16 %v582
        %v1036 = vunpack.c.l.b16 %v583
        %v1037 = vunpack.c.h.b16 %v583
        %v1038 = vunpack.c.l.b16 %v584
        %v1039 = vunpack.c.h.b16 %v584
        %v1040 = vunpack.c.l.b16 %v585
        %v1041 = vunpack.c.h.b16 %v585
        %v1042 = vunpack.c.l.b16 %v586
        %v1043 = vunpack.c.l.b16 %v587
        %v1044 = vunpack.c.h.b16 %v587
        %v1045 = vunpack.c.l.b16 %v588
        %v1046 = vunpack.c.h.b16 %v588
        %v1047 = vunpack.c.l.b16 %v589
        %v1048 = vunpack.c.h.b16 %v589
        %v1049 = vunpack.c.l.b16 %v590
        %v1050 = vunpack.c.l.b16 %v591
        %v1051 = vunpack.c.h.b16 %v591
        %v1052 = vunpack.c.l.b16 %v592
        %v1053 = vunpack.c.h.b16 %v592
        %v1054 = vunpack.c.l.b16 %v593
        %v1055 = vunpack.c.h.b16 %v593
        %v1056 = vunpack.c.l.b16 %v594
        %v1057 = vunpack.c.l.b16 %v595
        %v1058 = vunpack.c.h.b16 %v595
        %v1059 = vunpack.c.l.b16 %v596
        %v1060 = vunpack.c.h.b16 %v596
        %v1061 = vunpack.c.l.b16 %v597
        %v1062 = vunpack.c.h.b16 %v597
        %v1063 = vunpack.c.l.b16 %v598
        %v1064 = vunpack.c.l.b16 %v599
        %v1065 = vunpack.c.h.b16 %v599
        %v1066 = vunpack.c.l.b16 %v600
        %v1067 = vunpack.c.h.b16 %v600
        %v1068 = vunpack.c.l.b16 %v601
        %v1069 = vunpack.c.h.b16 %v601
        %v1070 = vunpack.c.l.b16 %v602
        %v1071 = vunpack.c.l.b16 %v603
        %v1072 = vunpack.c.h.b16 %v603
        %v1073 = vunpack.c.l.b16 %v604
        %v1074 = vunpack.c.h.b16 %v604
        %v1075 = vunpack.c.l.b16 %v605
        %v1076 = vunpack.c.h.b16 %v605
        %v1077 = vunpack.c.l.b16 %v606
        %v1078 = vunpack.c.l.b16 %v607
        %v1079 = vunpack.c.h.b16 %v607
        %v1080 = vunpack.c.l.b16 %v608
        %v1081 = vunpack.c.h.b16 %v608
        %v1082 = vunpack.c.l.b16 %v609
        %v1083 = vunpack.c.h.b16 %v609
        %v1084 = vunpack.c.l.b16 %v610
        %v1085 = vunpack.c.l.b16 %v611
        %v1086 = vunpack.c.h.b16 %v611
        %v1087 = vunpack.c.l.b16 %v612
        %v1088 = vunpack.c.h.b16 %v612
        %v1089 = vunpack.c.l.b16 %v613
        %v1090 = vunpack.c.h.b16 %v613
        %v1091 = vunpack.c.l.b16 %v614
        %v1092 = vunpack.c.l.b16 %v615
        %v1093 = vunpack.c.h.b16 %v615
        %v1094 = vunpack.c.l.b16 %v616
        %v1095 = vunpack.c.h.b16 %v616
        %v1096 = vunpack.c.l.b16 %v617
        %v1097 = vunpack.c.h.b16 %v617
        %v1098 = vunpack.c.l.b16 %v618
        %v1099 = vunpack.c.l.b16 %v619
        %v1100 = vunpack.c.h.b16 %v619
        %v1101 = vunpack.c.l.b16 %v620
        %v1102 = vunpack.c.h.b16 %v620
        %v1103 = vunpack.c.l.b16 %v621
        %v1104 = vunpack.c.h.b16 %v621
        %v1105 = vunpack.c.l.b16 %v622
        %v1106 = vunpack.c.l.b16 %v623
        %v1107 = vunpack.c.h.b16 %v623
        %v1108 = vunpack.c.l.b16 %v624
        %v1109 = vunpack.c.h.b16 %v624
        %v1110 = vunpack.c.l.b16 %v625
        %v1111 = vunpack.c.h.b16 %v625
        %v1112 = vunpack.c.l.b16 %v626
        %v1113 = vunpack.c.l.b16 %v627
        %v1114 = vunpack.c.h.b16 %v627
        %v1115 = vunpack.c.l.b16 %v628
        %v1116 = vunpack.c.h.b16 %v628
        %v1117 = vunpack.c.l.b16 %v629
        %v1118 = vunpack.c.h.b16 %v629
        %v1119 = vunpack.c.l.b16 %v630
        %v1120 = vunpack.c.l.b16 %v631
        %v1121 = vunpack.c.h.b16 %v631
        %v1122 = vunpack.c.l.b16 %v632
        %v1123 = vunpack.c.h.b16 %v632
        %v1124 = vunpack.c.l.b16 %v633
        %v1125 = vunpack.c.h.b16 %v633
        %v1126 = vunpack.c.l.b16 %v634
        %v1127 = vunpack.c.l.b16 %v635
        %v1128 = vunpack.c.h.b16 %v635
        %v1129 = vunpack.c.l.b16 %v636
        %v1130 = vunpack.c.h.b16 %v636
        %v1131 = vunpack.c.l.b16 %v637
        %v1132 = vunpack.c.h.b16 %v637
        %v1133 = vunpack.c.l.b16 %v638
        %v1134 = vunpack.c.l.b16 %v639
        %v1135 = vunpack.c.h.b16 %v639
        %v1136 = vunpack.c.l.b16 %v640
        %v1137 = vunpack.c.h.b16 %v640
        %v1138 = vunpack.c.l.b16 %v641
        %v1139 = vunpack.c.h.b16 %v641
        %v1140 = vunpack.c.l.b16 %v642
        %v1141 = vunpack.c.l.b16 %v643
        %v1142 = vunpack.c.h.b16 %v643
        %v1143 = vunpack.c.l.b16 %v644
        %v1144 = vunpack.c.h.b16 %v644
        %v1145 = vunpack.c.l.b16 %v645
        %v1146 = vunpack.c.h.b16 %v645
        %v1147 = vunpack.c.l.b16 %v646
        %v1148 = vunpack.c.l.b16 %v647
        %v1149 = vunpack.c.h.b16 %v647
        %v1150 = vunpack.c.l.b16 %v648
        %v1151 = vunpack.c.h.b16 %v648
        %v1152 = vunpack.c.l.b16 %v649
        %v1153 = vunpack.c.h.b16 %v649
        %v1154 = vunpack.c.l.b16 %v650
        %v1155 = vunpack.c.l.b16 %v651
        %v1156 = vunpack.c.h.b16 %v651
        %v1157 = vunpack.c.l.b16 %v652
        %v1158 = vunpack.c.h.b16 %v652
        %v1159 = vunpack.c.l.b16 %v653
        %v1160 = vunpack.c.h.b16 %v653
        %v1161 = vunpack.c.l.b16 %v654
        %v1162 = vunpack.c.l.b16 %v655
        %v1163 = vunpack.c.h.b16 %v655
        %v1164 = vunpack.c.l.b16 %v656
        %v1165 = vunpack.c.h.b16 %v656
        %v1166 = vunpack.c.l.b16 %v657
        %v1167 = vunpack.c.h.b16 %v657
        %v1168 = vunpack.c.l.b16 %v658
        %v1169 = vunpack.c.l.b16 %v659
        %v1170 = vunpack.c.h.b16 %v659
        %v1171 = vunpack.c.l.b16 %v660
        %v1172 = vunpack.c.h.b16 %v660
        %v1173 = vunpack.c.l.b16 %v661
        %v1174 = vunpack.c.h.b16 %v661
        %v1175 = vunpack.c.l.b16 %v662
        %v1176 = vunpack.c.l.b16 %v663
        %v1177 = vunpack.c.h.b16 %v663
        %v1178 = vunpack.c.l.b16 %v664
        %v1179 = vunpack.c.h.b16 %v664
        %v1180 = vunpack.c.l.b16 %v665
        %v1181 = vunpack.c.h.b16 %v665
        %v1182 = vunpack.c.l.b16 %v666
        %v1183 = vunpack.c.l.b16 %v667
        %v1184 = vunpack.c.h.b16 %v667
        %v1185 = vunpack.c.l.b16 %v668
        %v1186 = vunpack.c.h.b16 %v668
        %v1187 = vunpack.c.l.b16 %v669
        %v1188 = vunpack.c.h.b16 %v669
        %v1189 = vunpack.c.l.b16 %v670
        %v1190 = vunpack.c.l.b16 %v671
        %v1191 = vunpack.c.h.b16 %v671
        %v1192 = vunpack.c.l.b16 %v672
        %v1193 = vunpack.c.h.b16 %v672
        %v1194 = vunpack.c.l.b16 %v673
        %v1195 = vunpack.c.h.b16 %v673
        %v1196 = vunpack.c.l.b16 %v674
        %v1197 = vunpack.c.l.b16 %v675
        %v1198 = vunpack.c.h.b16 %v675
        %v1199 = vunpack.c.l.b16 %v676
        %v1200 = vunpack.c.h.b16 %v676
        %v1201 = vunpack.c.l.b16 %v677
        %v1202 = vunpack.c.h.b16 %v677
        %v1203 = vunpack.c.l.b16 %v678
        %v1204 = vunpack.c.l.b16 %v679
        %v1205 = vunpack.c.h.b16 %v679
        %v1206 = vunpack.c.l.b16 %v680
        %v1207 = vunpack.c.h.b16 %v680
        %v1208 = vunpack.c.l.b16 %v681
        %v1209 = vunpack.c.h.b16 %v681
        %v1210 = vunpack.c.l.b16 %v682
        %v1211 = vunpack.c.l.b16 %v683
        %v1212 = vunpack.c.h.b16 %v683
        %v1213 = vunpack.c.l.b16 %v684
        %v1214 = vunpack.c.h.b16 %v684
        %v1215 = vunpack.c.l.b16 %v685
        %v1216 = vunpack.c.h.b16 %v685
        %v1217 = vunpack.c.l.b16 %v686
        %v1218 = vunpack.c.l.b16 %v687
        %v1219 = vunpack.c.h.b16 %v687
        %v1220 = vunpack.c.l.b16 %v688
        %v1221 = vunpack.c.h.b16 %v688
        %v1222 = vunpack.c.l.b16 %v689
        %v1223 = vunpack.c.h.b16 %v689
        %v1224 = vunpack.c.l.b16 %v690
        %v1225 = vunpack.c.l.b16 %v691
        %v1226 = vunpack.c.h.b16 %v691
        %v1227 = vunpack.c.l.b16 %v692
        %v1228 = vunpack.c.h.b16 %v692
        %v1229 = vunpack.c.l.b16 %v693
        %v1230 = vunpack.c.h.b16 %v693
        %v1231 = vunpack.c.l.b16 %v694
        %v1232 = vunpack.c.l.b16 %v695
        %v1233 = vunpack.c.h.b16 %v695
        %v1234 = vunpack.c.l.b16 %v696
        %v1235 = vunpack.c.h.b16 %v696
        %v1236 = vunpack.c.l.b16 %v697
        %v1237 = vunpack.c.h.b16 %v697
        %v1238 = vunpack.c.l.b16 %v698
        %v1239 = vunpack.c.l.b16 %v699
        %v1240 = vunpack.c.h.b16 %v699
        %v1241 = vunpack.c.l.b16 %v700
        %v1242 = vunpack.c.h.b16 %v700
        %v1243 = vunpack.c.l.b16 %v701
        %v1244 = vunpack.c.h.b16 %v701
        %v1245 = vunpack.c.l.b16 %v702
        %v1246 = vunpack.c.l.b16 %v703
        %v1247 = vunpack.c.h.b16 %v703
        %v1248 = vunpack.c.l.b16 %v704
        %v1249 = vunpack.c.h.b16 %v704
        %v1250 = vunpack.c.l.b16 %v705
        %v1251 = vunpack.c.h.b16 %v705
        %v1252 = vunpack.c.l.b16 %v706
        %v1253 = vunpack.c.l.b16 %v707
        %v1254 = vunpack.c.h.b16 %v707
        %v1255 = vunpack.c.l.b16 %v708
        %v1256 = vunpack.c.h.b16 %v708
        %v1257 = vunpack.c.l.b16 %v709
        %v1258 = vunpack.c.h.b16 %v709
        %v1259 = vunpack.c.l.b16 %v710
        %v1260 = vunpack.c.l.b16 %v711
        %v1261 = vunpack.c.h.b16 %v711
        %v1262 = vunpack.c.l.b16 %v712
        %v1263 = vunpack.c.h.b16 %v712
        %v1264 = vunpack.c.l.b16 %v713
        %v1265 = vunpack.c.h.b16 %v713
        %v1266 = vunpack.c.l.b16 %v714
        %v1267 = vunpack.c.l.b16 %v715
        %v1268 = vunpack.c.h.b16 %v715
        %v1269 = vunpack.c.l.b16 %v716
        %v1270 = vunpack.c.h.b16 %v716
        %v1271 = vunpack.c.l.b16 %v717
        %v1272 = vunpack.c.h.b16 %v717
        %v1273 = vunpack.c.l.b16 %v718
        %v1274 = vunpack.c.l.b16 %v719
        %v1275 = vunpack.c.h.b16 %v719
        %v1276 = vunpack.c.l.b16 %v720
        %v1277 = vunpack.c.h.b16 %v720
        %v1278 = vunpack.c.l.b16 %v721
        %v1279 = vunpack.c.h.b16 %v721
        %v1280 = vunpack.c.l.b16 %v722
        %v1281 = vunpack.c.l.b16 %v723
        %v1282 = vunpack.c.h.b16 %v723
        %v1283 = vunpack.c.l.b16 %v724
        %v1284 = vunpack.c.h.b16 %v724
        %v1285 = vunpack.c.l.b16 %v725
        %v1286 = vunpack.c.h.b16 %v725
        %v1287 = vunpack.c.l.b16 %v726
        %v1288 = vunpack.c.l.b16 %v727
        %v1289 = vunpack.c.h.b16 %v727
        %v1290 = vunpack.c.l.b16 %v728
        %v1291 = vunpack.c.h.b16 %v728
        %v1292 = vunpack.c.l.b16 %v729
        %v1293 = vunpack.c.h.b16 %v729
        %v1294 = vunpack.c.l.b16 %v730
        %v1295 = vunpack.c.l.b16 %v731
        %v1296 = vunpack.c.h.b16 %v731
        %v1297 = vunpack.c.l.b16 %v732
        %v1298 = vunpack.c.h.b16 %v732
        %v1299 = vunpack.c.l.b16 %v733
        %v1300 = vunpack.c.h.b16 %v733
        %v1301 = vunpack.c.l.b16 %v734
        %v1302 = vunpack.c.l.b16 %v735
        %v1303 = vunpack.c.h.b16 %v735
        %v1304 = vunpack.c.l.b16 %v736
        %v1305 = vunpack.c.h.b16 %v736
        %v1306 = vunpack.c.l.b16 %v737
        %v1307 = vunpack.c.h.b16 %v737
        %v1308 = vunpack.c.l.b16 %v738
        %v1309 = vunpack.c.l.b16 %v739
        %v1310 = vunpack.c.h.b16 %v739
        %v1311 = vunpack.c.l.b16 %v740
        %v1312 = vunpack.c.h.b16 %v740
        %v1313 = vunpack.c.l.b16 %v741
        %v1314 = vunpack.c.h.b16 %v741
        %v1315 = vunpack.c.l.b16 %v742
        %v1316 = vunpack.c.l.b16 %v743
        %v1317 = vunpack.c.h.b16 %v743
        %v1318 = vunpack.c.l.b16 %v744
        %v1319 = vunpack.c.h.b16 %v744
        %v1320 = vunpack.c.l.b16 %v745
        %v1321 = vunpack.c.h.b16 %v745
        %v1322 = vunpack.c.l.b16 %v746
        %v1323 = vunpack.c.l.b16 %v747
        %v1324 = vunpack.c.h.b16 %v747
        %v1325 = vunpack.c.l.b16 %v748
        %v1326 = vunpack.c.h.b16 %v748
        %v1327 = vunpack.c.l.b16 %v749
        %v1328 = vunpack.c.h.b16 %v749
        %v1329 = vunpack.c.l.b16 %v750
        %v1330 = vunpack.c.l.b16 %v751
        %v1331 = vunpack.c.h.b16 %v751
        %v1332 = vunpack.c.l.b16 %v752
        %v1333 = vunpack.c.h.b16 %v752
        %v1334 = vunpack.c.l.b16 %v753
        %v1335 = vunpack.c.h.b16 %v753
        %v1336 = vunpack.c.l.b16 %v754
        %v1337 = vunpack.c.l.b16 %v755
        %v1338 = vunpack.c.h.b16 %v755
        %v1339 = vunpack.c.l.b16 %v756
        %v1340 = vunpack.c.h.b16 %v756
        %v1341 = vunpack.c.l.b16 %v757
        %v1342 = vunpack.c.h.b16 %v757
        %v1343 = vunpack.c.l.b16 %v758
        %v1344 = vunpack.c.l.b16 %v759
        %v1345 = vunpack.c.h.b16 %v759
        %v1346 = vunpack.c.l.b16 %v760
        %v1347 = vunpack.c.h.b16 %v760
        %v1348 = vunpack.c.l.b16 %v761
        %v1349 = vunpack.c.h.b16 %v761
        %v1350 = vunpack.c.l.b16 %v762
        %v1351 = vunpack.c.l.b16 %v763
        %v1352 = vunpack.c.h.b16 %v763
        %v1353 = vunpack.c.l.b16 %v764
        %v1354 = vunpack.c.h.b16 %v764
        %v1355 = vunpack.c.l.b16 %v765
        %v1356 = vunpack.c.h.b16 %v765
        %v1357 = vunpack.c.l.b16 %v766
        %v1358 = vunpack.c.l.b16 %v767
        %v1359 = vunpack.c.h.b16 %v767
        %v1360 = vunpack.c.l.b16 %v768
        %v1361 = vunpack.c.h.b16 %v768
        %v1362 = vunpack.c.l.b16 %v769
        %v1363 = vunpack.c.h.b16 %v769
        %v1364 = vunpack.c.l.b16 %v770
        %v1365 = vunpack.c.l.b16 %v771
        %v1366 = vunpack.c.h.b16 %v771
        %v1367 = vunpack.c.l.b16 %v772
        %v1368 = vunpack.c.h.b16 %v772
        %v1369 = vunpack.c.l.b16 %v773
        %v1370 = vunpack.c.h.b16 %v773
        %v1371 = vunpack.c.l.b16 %v774
        %v1372 = vpack.c.b16 %v1029, %v1022
        %v1373 = vpack.c.b16 %v1030, %v1023
        %v1374 = vpack.c.b16 %v1031, %v1024
        %v1375 = vpack.c.b16 %v1032, %v1025
        %v1376 = vpack.c.b16 %v1033, %v1026
        %v1377 = vpack.c.b16 %v1034, %v1027
        %v1378 = vpack.c.b16 %v1035, %v1028
        %v1379 = vpack.c.b16 %v1043, %v1036
        %v1380 = vpack.c.b16 %v1044, %v1037
        %v1381 = vpack.c.b16 %v1045, %v1038
        %v1382 = vpack.c.b16 %v1046, %v1039
        %v1383 = vpack.c.b16 %v1047, %v1040
        %v1384 = vpack.c.b16 %v1048, %v1041
        %v1385 = vpack.c.b16 %v1049, %v1042
        %v1386 = vpack.c.b16 %v1057, %v1050
        %v1387 = vpack.c.b16 %v1058, %v1051
        %v1388 = vpack.c.b16 %v1059, %v1052
        %v1389 = vpack.c.b16 %v1060, %v1053
        %v1390 = vpack.c.b16 %v1061, %v1054
        %v1391 = vpack.c.b16 %v1062, %v1055
        %v1392 = vpack.c.b16 %v1063, %v1056
        %v1393 = vpack.c.b16 %v1071, %v1064
        %v1394 = vpack.c.b16 %v1072, %v1065
        %v1395 = vpack.c.b16 %v1073, %v1066
        %v1396 = vpack.c.b16 %v1074, %v1067
        %v1397 = vpack.c.b16 %v1075, %v1068
        %v1398 = vpack.c.b16 %v1076, %v1069
        %v1399 = vpack.c.b16 %v1077, %v1070
        %v1400 = vpack.c.b16 %v1085, %v1078
        %v1401 = vpack.c.b16 %v1086, %v1079
        %v1402 = vpack.c.b16 %v1087, %v1080
        %v1403 = vpack.c.b16 %v1088, %v1081
        %v1404 = vpack.c.b16 %v1089, %v1082
        %v1405 = vpack.c.b16 %v1090, %v1083
        %v1406 = vpack.c.b16 %v1091, %v1084
        %v1407 = vpack.c.b16 %v1099, %v1092
        %v1408 = vpack.c.b16 %v1100, %v1093
        %v1409 = vpack.c.b16 %v1101, %v1094
        %v1410 = vpack.c.b16 %v1102, %v1095
        %v1411 = vpack.c.b16 %v1103, %v1096
        %v1412 = vpack.c.b16 %v1104, %v1097
        %v1413 = vpack.c.b16 %v1105, %v1098
        %v1414 = vpack.c.b16 %v1113, %v1106
        %v1415 = vpack.c.b16 %v1114, %v1107
        %v1416 = vpack.c.b16 %v1115, %v1108
        %v1417 = vpack.c.b16 %v1116, %v1109
        %v1418 = vpack.c.b16 %v1117, %v1110
        %v1419 = vpack.c.b16 %v1118, %v1111
        %v1420 = vpack.c.b16 %v1119, %v1112
        %v1421 = vpack.c.b16 %v1127, %v1120
        %v1422 = vpack.c.b16 %v1128, %v1121
        %v1423 = vpack.c.b16 %v1129, %v1122
        %v1424 = vpack.c.b16 %v1130, %v1123
        %v1425 = vpack.c.b16 %v1131, %v1124
        %v1426 = vpack.c.b16 %v1132, %v1125
        %v1427 = vpack.c.b16 %v1133, %v1126
        %v1428 = vpack.c.b16 %v1141, %v1134
        %v1429 = vpack.c.b16 %v1142, %v1135
        %v1430 = vpack.c.b16 %v1143, %v1136
        %v1431 = vpack.c.b16 %v1144, %v1137
        %v1432 = vpack.c.b16 %v1145, %v1138
        %v1433 = vpack.c.b16 %v1146, %v1139
        %v1434 = vpack.c.b16 %v1147, %v1140
        %v1435 = vpack.c.b16 %v1155, %v1148
        %v1436 = vpack.c.b16 %v1156, %v1149
        %v1437 = vpack.c.b16 %v1157, %v1150
        %v1438 = vpack.c.b16 %v1158, %v1151
        %v1439 = vpack.c.b16 %v1159, %v1152
        %v1440 = vpack.c.b16 %v1160, %v1153
        %v1441 = vpack.c.b16 %v1161, %v1154
        %v1442 = vpack.c.b16 %v1169, %v1162
        %v1443 = vpack.c.b16 %v1170, %v1163
        %v1444 = vpack.c.b16 %v1171, %v1164
        %v1445 = vpack.c.b16 %v1172, %v1165
        %v1446 = vpack.c.b16 %v1173, %v1166
        %v1447 = vpack.c.b16 %v1174, %v1167
        %v1448 = vpack.c.b16 %v1175, %v1168
        %v1449 = vpack.c.b16 %v1183, %v1176
        %v1450 = vpack.c.b16 %v1184, %v1177
        %v1451 = vpack.c.b16 %v1185, %v1178
        %v1452 = vpack.c.b16 %v1186, %v1179
        %v1453 = vpack.c.b16 %v1187, %v1180
        %v1454 = vpack.c.b16 %v1188, %v1181
        %v1455 = vpack.c.b16 %v1189, %v1182
        %v1456 = vpack.c.b16 %v1197, %v1190
        %v1457 = vpack.c.b16 %v1198, %v1191
        %v1458 = vpack.c.b16 %v1199, %v1192
        %v1459 = vpack.c.b16 %v1200, %v1193
        %v1460 = vpack.c.b16 %v1201, %v1194
        %v1461 = vpack.c.b16 %v1202, %v1195
        %v1462 = vpack.c.b16 %v1203, %v1196
        %v1463 = vpack.c.b16 %v1211, %v1204
        %v1464 = vpack.c.b16 %v1212, %v1205
        %v1465 = vpack.c.b16 %v1213, %v1206
        %v1466 = vpack.c.b16 %v1214, %v1207
        %v1467 = vpack.c.b16 %v1215, %v1208
        %v1468 = vpack.c.b16 %v1216, %v1209
        %v1469 = vpack.c.b16 %v1217, %v1210
        %v1470 = vpack.c.b16 %v1225, %v1218
        %v1471 = vpack.c.b16 %v1226, %v1219
        %v1472 = vpack.c.b16 %v1227, %v1220
        %v1473 = vpack.c.b16 %v1228, %v1221
        %v1474 = vpack.c.b16 %v1229, %v1222
        %v1475 = vpack.c.b16 %v1230, %v1223
        %v1476 = vpack.c.b16 %v1231, %v1224
        %v1477 = vpack.c.b16 %v1239, %v1232
        %v1478 = vpack.c.b16 %v1240, %v1233
        %v1479 = vpack.c.b16 %v1241, %v1234
        %v1480 = vpack.c.b16 %v1242, %v1235
        %v1481 = vpack.c.b16 %v1243, %v1236
        %v1482 = vpack.c.b16 %v1244, %v1237
        %v1483 = vpack.c.b16 %v1245, %v1238
        %v1484 = vpack.c.b16 %v1253, %v1246
        %v1485 = vpack.c.b16 %v1254, %v1247
        %v1486 = vpack.c.b16 %v1255, %v1248
        %v1487 = vpack.c.b16 %v1256, %v1249
        %v1488 = vpack.c.b16 %v1257, %v1250
        %v1489 = vpack.c.b16 %v1258, %v1251
        %v1490 = vpack.c.b16 %v1259, %v1252
        %v1491 = vpack.c.b16 %v1267, %v1260
        %v1492 = vpack.c.b16 %v1268, %v1261
        %v1493 = vpack.c.b16 %v1269, %v1262
        %v1494 = vpack.c.b16 %v1270, %v1263
        %v1495 = vpack.c.b16 %v1271, %v1264
        %v1496 = vpack.c.b16 %v1272, %v1265
        %v1497 = vpack.c.b16 %v1273, %v1266
        %v1498 = vpack.c.b16 %v1281, %v1274
        %v1499 = vpack.c.b16 %v1282, %v1275
        %v1500 = vpack.c.b16 %v1283, %v1276
        %v1501 = vpack.c.b16 %v1284, %v1277
        %v1502 = vpack.c.b16 %v1285, %v1278
        %v1503 = vpack.c.b16 %v1286, %v1279
        %v1504 = vpack.c.b16 %v1287, %v1280
        %v1505 = vpack.c.b16 %v1295, %v1288
        %v1506 = vpack.c.b16 %v1296, %v1289
        %v1507 = vpack.c.b16 %v1297, %v1290
        %v1508 = vpack.c.b16 %v1298, %v1291
        %v1509 = vpack.c.b16 %v1299, %v1292
        %v1510 = vpack.c.b16 %v1300, %v1293
        %v1511 = vpack.c.b16 %v1301, %v1294
        %v1512 = vpack.c.b16 %v1309, %v1302
        %v1513 = vpack.c.b16 %v1310, %v1303
        %v1514 = vpack.c.b16 %v1311, %v1304
        %v1515 = vpack.c.b16 %v1312, %v1305
        %v1516 = vpack.c.b16 %v1313, %v1306
        %v1517 = vpack.c.b16 %v1314, %v1307
        %v1518 = vpack.c.b16 %v1315, %v1308
        %v1519 = vpack.c.b16 %v1323, %v1316
        %v1520 = vpack.c.b16 %v1324, %v1317
        %v1521 = vpack.c.b16 %v1325, %v1318
        %v1522 = vpack.c.b16 %v1326, %v1319
        %v1523 = vpack.c.b16 %v1327, %v1320
        %v1524 = vpack.c.b16 %v1328, %v1321
        %v1525 = vpack.c.b16 %v1329, %v1322
        %v1526 = vpack.c.b16 %v1337, %v1330
        %v1527 = vpack.c.b16 %v1338, %v1331
        %v1528 = vpack.c.b16 %v1339, %v1332
        %v1529 = vpack.c.b16 %v1340, %v1333
        %v1530 = vpack.c.b16 %v1341, %v1334
        %v1531 = vpack.c.b16 %v1342, %v1335
        %v1532 = vpack.c.b16 %v1343, %v1336
        %v1533 = vpack.c.b16 %v1351, %v1344
        %v1534 = vpack.c.b16 %v1352, %v1345
        %v1535 = vpack.c.b16 %v1353, %v1346
        %v1536 = vpack.c.b16 %v1354, %v1347
        %v1537 = vpack.c.b16 %v1355, %v1348
        %v1538 = vpack.c.b16 %v1356, %v1349
        %v1539 = vpack.c.b16 %v1357, %v1350
        %v1540 = vpack.c.b16 %v1365, %v1358
        %v1541 = vpack.c.b16 %v1366, %v1359
        %v1542 = vpack.c.b16 %v1367, %v1360
        %v1543 = vpack.c.b16 %v1368, %v1361
        %v1544 = vpack.c.b16 %v1369, %v1362
        %v1545 = vpack.c.b16 %v1370, %v1363
        %v1546 = vpack.c.b16 %v1371, %v1364
        %vm1722 = vcmask 130048
        %v1724 = vsel %vm1722, %v818, 0
        %1726 = vmatpush.bf16.msra.mxu0 %v1421
        %1727 = vmatpush.bf16.msra.mxu0 %v1414
        %1728 = vmatpush.bf16.msra.mxu0 %v1407
        %1729 = vmatpush.bf16.msra.mxu0 %v1400
        %1730 = vmatpush.bf16.msra.mxu0 %v1393
        %1731 = vmatpush.bf16.msra.mxu0 %v1386
        %1732 = vmatpush.bf16.msra.mxu0 %v1379
        %1733 = vmatpush.bf16.msra.mxu0 %v1372
        %1734 = vmatmul.bf16.gmra.mxu0 %v797
        %v1735 = vpop.f32.mrf.mxu0
        %v1736 = vadd.f32 0.0, %v1735
        %v1737 = vpop.f32.mrf.mxu0
        %1738 = vdwg.mxu0
        %1739 = vmatpush.bf16.msra.mxu0 %v1477
        %1740 = vmatpush.bf16.msra.mxu0 %v1470
        %1741 = vmatpush.bf16.msra.mxu0 %v1463
        %1742 = vmatpush.bf16.msra.mxu0 %v1456
        %1743 = vmatpush.bf16.msra.mxu0 %v1449
        %1744 = vmatpush.bf16.msra.mxu0 %v1442
        %1745 = vmatpush.bf16.msra.mxu0 %v1435
        %1746 = vmatpush.bf16.msra.mxu0 %v1428
        %1747 = vmatmul.bf16.gmra.mxu0 %v804
        %v1748 = vpop.f32.mrf.mxu0
        %v1749 = vadd.f32 %v1736, %v1748
        %v1750 = vpop.f32.mrf.mxu0
        %1751 = vdwg.mxu0
        %1752 = vmatpush.bf16.msra.mxu0 %v1533
        %1753 = vmatpush.bf16.msra.mxu0 %v1526
        %1754 = vmatpush.bf16.msra.mxu0 %v1519
        %1755 = vmatpush.bf16.msra.mxu0 %v1512
        %1756 = vmatpush.bf16.msra.mxu0 %v1505
        %1757 = vmatpush.bf16.msra.mxu0 %v1498
        %1758 = vmatpush.bf16.msra.mxu0 %v1491
        %1759 = vmatpush.bf16.msra.mxu0 %v1484
        %1760 = vmatmul.bf16.gmra.mxu0 %v811
        %v1761 = vpop.f32.mrf.mxu0
        %v1762 = vadd.f32 %v1749, %v1761
        %v1763 = vpop.f32.mrf.mxu0
        %1764 = vdwg.mxu0
        %1765 = vmatpush.bf16.msra.mxu0 0
        %1766 = vmatpush.bf16.msra.mxu0 0
        %1767 = vmatpush.bf16.msra.mxu0 0
        %1768 = vmatpush.bf16.msra.mxu0 0
        %1769 = vmatpush.bf16.msra.mxu0 0
        %1770 = vmatpush.bf16.msra.mxu0 0
        %1771 = vmatpush.bf16.msra.mxu0 0
        %1772 = vmatpush.bf16.msra.mxu0 %v1540
        %1773 = vmatmul.bf16.gmra.mxu0 %v1724
        %v1774 = vpop.f32.mrf.mxu0
        %v1775 = vadd.f32 %v1762, %v1774
        %v1776 = vpop.f32.mrf.mxu0
        %1777 = vdwg.mxu0
        %1778 = vmatpush.bf16.msra.mxu0 %v1422
        %1779 = vmatpush.bf16.msra.mxu0 %v1415
        %1780 = vmatpush.bf16.msra.mxu0 %v1408
        %1781 = vmatpush.bf16.msra.mxu0 %v1401
        %1782 = vmatpush.bf16.msra.mxu0 %v1394
        %1783 = vmatpush.bf16.msra.mxu0 %v1387
        %1784 = vmatpush.bf16.msra.mxu0 %v1380
        %1785 = vmatpush.bf16.msra.mxu0 %v1373
        %1786 = vmatmul.bf16.gmra.mxu0 %v797
        %v1787 = vpop.f32.mrf.mxu0
        %v1788 = vadd.f32 0.0, %v1787
        %v1789 = vpop.f32.mrf.mxu0
        %1790 = vdwg.mxu0
        %1791 = vmatpush.bf16.msra.mxu0 %v1478
        %1792 = vmatpush.bf16.msra.mxu0 %v1471
        %1793 = vmatpush.bf16.msra.mxu0 %v1464
        %1794 = vmatpush.bf16.msra.mxu0 %v1457
        %1795 = vmatpush.bf16.msra.mxu0 %v1450
        %1796 = vmatpush.bf16.msra.mxu0 %v1443
        %1797 = vmatpush.bf16.msra.mxu0 %v1436
        %1798 = vmatpush.bf16.msra.mxu0 %v1429
        %1799 = vmatmul.bf16.gmra.mxu0 %v804
        %v1800 = vpop.f32.mrf.mxu0
        %v1801 = vadd.f32 %v1788, %v1800
        %v1802 = vpop.f32.mrf.mxu0
        %1803 = vdwg.mxu0
        %1804 = vmatpush.bf16.msra.mxu0 %v1534
        %1805 = vmatpush.bf16.msra.mxu0 %v1527
        %1806 = vmatpush.bf16.msra.mxu0 %v1520
        %1807 = vmatpush.bf16.msra.mxu0 %v1513
        %1808 = vmatpush.bf16.msra.mxu0 %v1506
        %1809 = vmatpush.bf16.msra.mxu0 %v1499
        %1810 = vmatpush.bf16.msra.mxu0 %v1492
        %1811 = vmatpush.bf16.msra.mxu0 %v1485
        %1812 = vmatmul.bf16.gmra.mxu0 %v811
        %v1813 = vpop.f32.mrf.mxu0
        %v1814 = vadd.f32 %v1801, %v1813
        %v1815 = vpop.f32.mrf.mxu0
        %1816 = vdwg.mxu0
        %1817 = vmatpush.bf16.msra.mxu0 0
        %1818 = vmatpush.bf16.msra.mxu0 0
        %1819 = vmatpush.bf16.msra.mxu0 0
        %1820 = vmatpush.bf16.msra.mxu0 0
        %1821 = vmatpush.bf16.msra.mxu0 0
        %1822 = vmatpush.bf16.msra.mxu0 0
        %1823 = vmatpush.bf16.msra.mxu0 0
        %1824 = vmatpush.bf16.msra.mxu0 %v1541
        %1825 = vmatmul.bf16.gmra.mxu0 %v1724
        %v1826 = vpop.f32.mrf.mxu0
        %v1827 = vadd.f32 %v1814, %v1826
        %v1828 = vpop.f32.mrf.mxu0
        %1829 = vdwg.mxu0
        %1830 = vmatpush.bf16.msra.mxu0 %v1423
        %1831 = vmatpush.bf16.msra.mxu0 %v1416
        %1832 = vmatpush.bf16.msra.mxu0 %v1409
        %1833 = vmatpush.bf16.msra.mxu0 %v1402
        %1834 = vmatpush.bf16.msra.mxu0 %v1395
        %1835 = vmatpush.bf16.msra.mxu0 %v1388
        %1836 = vmatpush.bf16.msra.mxu0 %v1381
        %1837 = vmatpush.bf16.msra.mxu0 %v1374
        %1838 = vmatmul.bf16.gmra.mxu0 %v797
        %v1839 = vpop.f32.mrf.mxu0
        %v1840 = vadd.f32 0.0, %v1839
        %v1841 = vpop.f32.mrf.mxu0
        %1842 = vdwg.mxu0
        %1843 = vmatpush.bf16.msra.mxu0 %v1479
        %1844 = vmatpush.bf16.msra.mxu0 %v1472
        %1845 = vmatpush.bf16.msra.mxu0 %v1465
        %1846 = vmatpush.bf16.msra.mxu0 %v1458
        %1847 = vmatpush.bf16.msra.mxu0 %v1451
        %1848 = vmatpush.bf16.msra.mxu0 %v1444
        %1849 = vmatpush.bf16.msra.mxu0 %v1437
        %1850 = vmatpush.bf16.msra.mxu0 %v1430
        %1851 = vmatmul.bf16.gmra.mxu0 %v804
        %v1852 = vpop.f32.mrf.mxu0
        %v1853 = vadd.f32 %v1840, %v1852
        %v1854 = vpop.f32.mrf.mxu0
        %1855 = vdwg.mxu0
        %1856 = vmatpush.bf16.msra.mxu0 %v1535
        %1857 = vmatpush.bf16.msra.mxu0 %v1528
        %1858 = vmatpush.bf16.msra.mxu0 %v1521
        %1859 = vmatpush.bf16.msra.mxu0 %v1514
        %1860 = vmatpush.bf16.msra.mxu0 %v1507
        %1861 = vmatpush.bf16.msra.mxu0 %v1500
        %1862 = vmatpush.bf16.msra.mxu0 %v1493
        %1863 = vmatpush.bf16.msra.mxu0 %v1486
        %1864 = vmatmul.bf16.gmra.mxu0 %v811
        %v1865 = vpop.f32.mrf.mxu0
        %v1866 = vadd.f32 %v1853, %v1865
        %v1867 = vpop.f32.mrf.mxu0
        %1868 = vdwg.mxu0
        %1869 = vmatpush.bf16.msra.mxu0 0
        %1870 = vmatpush.bf16.msra.mxu0 0
        %1871 = vmatpush.bf16.msra.mxu0 0
        %1872 = vmatpush.bf16.msra.mxu0 0
        %1873 = vmatpush.bf16.msra.mxu0 0
        %1874 = vmatpush.bf16.msra.mxu0 0
        %1875 = vmatpush.bf16.msra.mxu0 0
        %1876 = vmatpush.bf16.msra.mxu0 %v1542
        %1877 = vmatmul.bf16.gmra.mxu0 %v1724
        %v1878 = vpop.f32.mrf.mxu0
        %v1879 = vadd.f32 %v1866, %v1878
        %v1880 = vpop.f32.mrf.mxu0
        %1881 = vdwg.mxu0
        %1882 = vmatpush.bf16.msra.mxu0 %v1424
        %1883 = vmatpush.bf16.msra.mxu0 %v1417
        %1884 = vmatpush.bf16.msra.mxu0 %v1410
        %1885 = vmatpush.bf16.msra.mxu0 %v1403
        %1886 = vmatpush.bf16.msra.mxu0 %v1396
        %1887 = vmatpush.bf16.msra.mxu0 %v1389
        %1888 = vmatpush.bf16.msra.mxu0 %v1382
        %1889 = vmatpush.bf16.msra.mxu0 %v1375
        %1890 = vmatmul.bf16.gmra.mxu0 %v797
        %v1891 = vpop.f32.mrf.mxu0
        %v1892 = vadd.f32 0.0, %v1891
        %v1893 = vpop.f32.mrf.mxu0
        %1894 = vdwg.mxu0
        %1895 = vmatpush.bf16.msra.mxu0 %v1480
        %1896 = vmatpush.bf16.msra.mxu0 %v1473
        %1897 = vmatpush.bf16.msra.mxu0 %v1466
        %1898 = vmatpush.bf16.msra.mxu0 %v1459
        %1899 = vmatpush.bf16.msra.mxu0 %v1452
        %1900 = vmatpush.bf16.msra.mxu0 %v1445
        %1901 = vmatpush.bf16.msra.mxu0 %v1438
        %1902 = vmatpush.bf16.msra.mxu0 %v1431
        %1903 = vmatmul.bf16.gmra.mxu0 %v804
        %v1904 = vpop.f32.mrf.mxu0
        %v1905 = vadd.f32 %v1892, %v1904
        %v1906 = vpop.f32.mrf.mxu0
        %1907 = vdwg.mxu0
        %1908 = vmatpush.bf16.msra.mxu0 %v1536
        %1909 = vmatpush.bf16.msra.mxu0 %v1529
        %1910 = vmatpush.bf16.msra.mxu0 %v1522
        %1911 = vmatpush.bf16.msra.mxu0 %v1515
        %1912 = vmatpush.bf16.msra.mxu0 %v1508
        %1913 = vmatpush.bf16.msra.mxu0 %v1501
        %1914 = vmatpush.bf16.msra.mxu0 %v1494
        %1915 = vmatpush.bf16.msra.mxu0 %v1487
        %1916 = vmatmul.bf16.gmra.mxu0 %v811
        %v1917 = vpop.f32.mrf.mxu0
        %v1918 = vadd.f32 %v1905, %v1917
        %v1919 = vpop.f32.mrf.mxu0
        %1920 = vdwg.mxu0
        %1921 = vmatpush.bf16.msra.mxu0 0
        %1922 = vmatpush.bf16.msra.mxu0 0
        %1923 = vmatpush.bf16.msra.mxu0 0
        %1924 = vmatpush.bf16.msra.mxu0 0
        %1925 = vmatpush.bf16.msra.mxu0 0
        %1926 = vmatpush.bf16.msra.mxu0 0
        %1927 = vmatpush.bf16.msra.mxu0 0
        %1928 = vmatpush.bf16.msra.mxu0 %v1543
        %1929 = vmatmul.bf16.gmra.mxu0 %v1724
        %v1930 = vpop.f32.mrf.mxu0
        %v1931 = vadd.f32 %v1918, %v1930
        %v1932 = vpop.f32.mrf.mxu0
        %1933 = vdwg.mxu0
        %1934 = vmatpush.bf16.msra.mxu0 %v1425
        %1935 = vmatpush.bf16.msra.mxu0 %v1418
        %1936 = vmatpush.bf16.msra.mxu0 %v1411
        %1937 = vmatpush.bf16.msra.mxu0 %v1404
        %1938 = vmatpush.bf16.msra.mxu0 %v1397
        %1939 = vmatpush.bf16.msra.mxu0 %v1390
        %1940 = vmatpush.bf16.msra.mxu0 %v1383
        %1941 = vmatpush.bf16.msra.mxu0 %v1376
        %1942 = vmatmul.bf16.gmra.mxu0 %v797
        %v1943 = vpop.f32.mrf.mxu0
        %v1944 = vadd.f32 0.0, %v1943
        %v1945 = vpop.f32.mrf.mxu0
        %1946 = vdwg.mxu0
        %1947 = vmatpush.bf16.msra.mxu0 %v1481
        %1948 = vmatpush.bf16.msra.mxu0 %v1474
        %1949 = vmatpush.bf16.msra.mxu0 %v1467
        %1950 = vmatpush.bf16.msra.mxu0 %v1460
        %1951 = vmatpush.bf16.msra.mxu0 %v1453
        %1952 = vmatpush.bf16.msra.mxu0 %v1446
        %1953 = vmatpush.bf16.msra.mxu0 %v1439
        %1954 = vmatpush.bf16.msra.mxu0 %v1432
        %1955 = vmatmul.bf16.gmra.mxu0 %v804
        %v1956 = vpop.f32.mrf.mxu0
        %v1957 = vadd.f32 %v1944, %v1956
        %v1958 = vpop.f32.mrf.mxu0
        %1959 = vdwg.mxu0
        %1960 = vmatpush.bf16.msra.mxu0 %v1537
        %1961 = vmatpush.bf16.msra.mxu0 %v1530
        %1962 = vmatpush.bf16.msra.mxu0 %v1523
        %1963 = vmatpush.bf16.msra.mxu0 %v1516
        %1964 = vmatpush.bf16.msra.mxu0 %v1509
        %1965 = vmatpush.bf16.msra.mxu0 %v1502
        %1966 = vmatpush.bf16.msra.mxu0 %v1495
        %1967 = vmatpush.bf16.msra.mxu0 %v1488
        %1968 = vmatmul.bf16.gmra.mxu0 %v811
        %v1969 = vpop.f32.mrf.mxu0
        %v1970 = vadd.f32 %v1957, %v1969
        %v1971 = vpop.f32.mrf.mxu0
        %1972 = vdwg.mxu0
        %1973 = vmatpush.bf16.msra.mxu0 0
        %1974 = vmatpush.bf16.msra.mxu0 0
        %1975 = vmatpush.bf16.msra.mxu0 0
        %1976 = vmatpush.bf16.msra.mxu0 0
        %1977 = vmatpush.bf16.msra.mxu0 0
        %1978 = vmatpush.bf16.msra.mxu0 0
        %1979 = vmatpush.bf16.msra.mxu0 0
        %1980 = vmatpush.bf16.msra.mxu0 %v1544
        %1981 = vmatmul.bf16.gmra.mxu0 %v1724
        %v1982 = vpop.f32.mrf.mxu0
        %v1983 = vadd.f32 %v1970, %v1982
        %v1984 = vpop.f32.mrf.mxu0
        %1985 = vdwg.mxu0
        %1986 = vmatpush.bf16.msra.mxu0 %v1426
        %1987 = vmatpush.bf16.msra.mxu0 %v1419
        %1988 = vmatpush.bf16.msra.mxu0 %v1412
        %1989 = vmatpush.bf16.msra.mxu0 %v1405
        %1990 = vmatpush.bf16.msra.mxu0 %v1398
        %1991 = vmatpush.bf16.msra.mxu0 %v1391
        %1992 = vmatpush.bf16.msra.mxu0 %v1384
        %1993 = vmatpush.bf16.msra.mxu0 %v1377
        %1994 = vmatmul.bf16.gmra.mxu0 %v797
        %v1995 = vpop.f32.mrf.mxu0
        %v1996 = vadd.f32 0.0, %v1995
        %v1997 = vpop.f32.mrf.mxu0
        %1998 = vdwg.mxu0
        %1999 = vmatpush.bf16.msra.mxu0 %v1482
        %2000 = vmatpush.bf16.msra.mxu0 %v1475
        %2001 = vmatpush.bf16.msra.mxu0 %v1468
        %2002 = vmatpush.bf16.msra.mxu0 %v1461
        %2003 = vmatpush.bf16.msra.mxu0 %v1454
        %2004 = vmatpush.bf16.msra.mxu0 %v1447
        %2005 = vmatpush.bf16.msra.mxu0 %v1440
        %2006 = vmatpush.bf16.msra.mxu0 %v1433
        %2007 = vmatmul.bf16.gmra.mxu0 %v804
        %v2008 = vpop.f32.mrf.mxu0
        %v2009 = vadd.f32 %v1996, %v2008
        %v2010 = vpop.f32.mrf.mxu0
        %2011 = vdwg.mxu0
        %2012 = vmatpush.bf16.msra.mxu0 %v1538
        %2013 = vmatpush.bf16.msra.mxu0 %v1531
        %2014 = vmatpush.bf16.msra.mxu0 %v1524
        %2015 = vmatpush.bf16.msra.mxu0 %v1517
        %2016 = vmatpush.bf16.msra.mxu0 %v1510
        %2017 = vmatpush.bf16.msra.mxu0 %v1503
        %2018 = vmatpush.bf16.msra.mxu0 %v1496
        %2019 = vmatpush.bf16.msra.mxu0 %v1489
        %2020 = vmatmul.bf16.gmra.mxu0 %v811
        %v2021 = vpop.f32.mrf.mxu0
        %v2022 = vadd.f32 %v2009, %v2021
        %v2023 = vpop.f32.mrf.mxu0
        %2024 = vdwg.mxu0
        %2025 = vmatpush.bf16.msra.mxu0 0
        %2026 = vmatpush.bf16.msra.mxu0 0
        %2027 = vmatpush.bf16.msra.mxu0 0
        %2028 = vmatpush.bf16.msra.mxu0 0
        %2029 = vmatpush.bf16.msra.mxu0 0
        %2030 = vmatpush.bf16.msra.mxu0 0
        %2031 = vmatpush.bf16.msra.mxu0 0
        %2032 = vmatpush.bf16.msra.mxu0 %v1545
        %2033 = vmatmul.bf16.gmra.mxu0 %v1724
        %v2034 = vpop.f32.mrf.mxu0
        %v2035 = vadd.f32 %v2022, %v2034
        %v2036 = vpop.f32.mrf.mxu0
        %2037 = vdwg.mxu0
        %2038 = vmatpush.bf16.msra.mxu0 %v1427
        %2039 = vmatpush.bf16.msra.mxu0 %v1420
        %2040 = vmatpush.bf16.msra.mxu0 %v1413
        %2041 = vmatpush.bf16.msra.mxu0 %v1406
        %2042 = vmatpush.bf16.msra.mxu0 %v1399
        %2043 = vmatpush.bf16.msra.mxu0 %v1392
        %2044 = vmatpush.bf16.msra.mxu0 %v1385
        %2045 = vmatpush.bf16.msra.mxu0 %v1378
        %2046 = vmatmul.bf16.gmra.mxu0 %v797
        %v2047 = vpop.f32.mrf.mxu0
        %v2048 = vadd.f32 0.0, %v2047
        %v2049 = vpop.f32.mrf.mxu0
        %2050 = vdwg.mxu0
        %2051 = vmatpush.bf16.msra.mxu0 %v1483
        %2052 = vmatpush.bf16.msra.mxu0 %v1476
        %2053 = vmatpush.bf16.msra.mxu0 %v1469
        %2054 = vmatpush.bf16.msra.mxu0 %v1462
        %2055 = vmatpush.bf16.msra.mxu0 %v1455
        %2056 = vmatpush.bf16.msra.mxu0 %v1448
        %2057 = vmatpush.bf16.msra.mxu0 %v1441
        %2058 = vmatpush.bf16.msra.mxu0 %v1434
        %2059 = vmatmul.bf16.gmra.mxu0 %v804
        %v2060 = vpop.f32.mrf.mxu0
        %v2061 = vadd.f32 %v2048, %v2060
        %v2062 = vpop.f32.mrf.mxu0
        %2063 = vdwg.mxu0
        %2064 = vmatpush.bf16.msra.mxu0 %v1539
        %2065 = vmatpush.bf16.msra.mxu0 %v1532
        %2066 = vmatpush.bf16.msra.mxu0 %v1525
        %2067 = vmatpush.bf16.msra.mxu0 %v1518
        %2068 = vmatpush.bf16.msra.mxu0 %v1511
        %2069 = vmatpush.bf16.msra.mxu0 %v1504
        %2070 = vmatpush.bf16.msra.mxu0 %v1497
        %2071 = vmatpush.bf16.msra.mxu0 %v1490
        %2072 = vmatmul.bf16.gmra.mxu0 %v811
        %v2073 = vpop.f32.mrf.mxu0
        %v2074 = vadd.f32 %v2061, %v2073
        %v2075 = vpop.f32.mrf.mxu0
        %2076 = vdwg.mxu0
        %2077 = vmatpush.bf16.msra.mxu0 0
        %2078 = vmatpush.bf16.msra.mxu0 0
        %2079 = vmatpush.bf16.msra.mxu0 0
        %2080 = vmatpush.bf16.msra.mxu0 0
        %2081 = vmatpush.bf16.msra.mxu0 0
        %2082 = vmatpush.bf16.msra.mxu0 0
        %2083 = vmatpush.bf16.msra.mxu0 0
        %2084 = vmatpush.bf16.msra.mxu0 %v1546
        %2085 = vmatmul.bf16.gmra.mxu0 %v1724
        %v2086 = vpop.f32.mrf.mxu0
        %v2087 = vadd.f32 %v2074, %v2086
        %v2088 = vpop.f32.mrf.mxu0
        %2089 = vdwg.mxu0
        %v2090 = vpack.c.b16 %v779, %v779
        %v2091 = vpack.c.b16 %v780, %v780
        %v2092 = vpack.c.b16 %v781, %v781
        %v2093 = vpack.c.b16 %v782, %v782
        %v2297 = vunpack.c.l.b16 %v372
        %v2298 = vunpack.c.h.b16 %v372
        %v2299 = vunpack.c.l.b16 %v373
        %v2300 = vunpack.c.h.b16 %v373
        %v2301 = vunpack.c.l.b16 %v374
        %v2302 = vunpack.c.h.b16 %v374
        %v2303 = vunpack.c.l.b16 %v375
        %v2304 = vunpack.c.l.b16 %v376
        %v2305 = vunpack.c.h.b16 %v376
        %v2306 = vunpack.c.l.b16 %v377
        %v2307 = vunpack.c.h.b16 %v377
        %v2308 = vunpack.c.l.b16 %v378
        %v2309 = vunpack.c.h.b16 %v378
        %v2310 = vunpack.c.l.b16 %v379
        %v2311 = vunpack.c.l.b16 %v380
        %v2312 = vunpack.c.h.b16 %v380
        %v2313 = vunpack.c.l.b16 %v381
        %v2314 = vunpack.c.h.b16 %v381
        %v2315 = vunpack.c.l.b16 %v382
        %v2316 = vunpack.c.h.b16 %v382
        %v2317 = vunpack.c.l.b16 %v383
        %v2318 = vunpack.c.l.b16 %v384
        %v2319 = vunpack.c.h.b16 %v384
        %v2320 = vunpack.c.l.b16 %v385
        %v2321 = vunpack.c.h.b16 %v385
        %v2322 = vunpack.c.l.b16 %v386
        %v2323 = vunpack.c.h.b16 %v386
        %v2324 = vunpack.c.l.b16 %v387
        %v2325 = vunpack.c.l.b16 %v388
        %v2326 = vunpack.c.h.b16 %v388
        %v2327 = vunpack.c.l.b16 %v389
        %v2328 = vunpack.c.h.b16 %v389
        %v2329 = vunpack.c.l.b16 %v390
        %v2330 = vunpack.c.h.b16 %v390
        %v2331 = vunpack.c.l.b16 %v391
        %v2332 = vunpack.c.l.b16 %v392
        %v2333 = vunpack.c.h.b16 %v392
        %v2334 = vunpack.c.l.b16 %v393
        %v2335 = vunpack.c.h.b16 %v393
        %v2336 = vunpack.c.l.b16 %v394
        %v2337 = vunpack.c.h.b16 %v394
        %v2338 = vunpack.c.l.b16 %v395
        %v2339 = vunpack.c.l.b16 %v396
        %v2340 = vunpack.c.h.b16 %v396
        %v2341 = vunpack.c.l.b16 %v397
        %v2342 = vunpack.c.h.b16 %v397
        %v2343 = vunpack.c.l.b16 %v398
        %v2344 = vunpack.c.h.b16 %v398
        %v2345 = vunpack.c.l.b16 %v399
        %v2346 = vunpack.c.l.b16 %v400
        %v2347 = vunpack.c.h.b16 %v400
        %v2348 = vunpack.c.l.b16 %v401
        %v2349 = vunpack.c.h.b16 %v401
        %v2350 = vunpack.c.l.b16 %v402
        %v2351 = vunpack.c.h.b16 %v402
        %v2352 = vunpack.c.l.b16 %v403
        %v2353 = vunpack.c.l.b16 %v404
        %v2354 = vunpack.c.h.b16 %v404
        %v2355 = vunpack.c.l.b16 %v405
        %v2356 = vunpack.c.h.b16 %v405
        %v2357 = vunpack.c.l.b16 %v406
        %v2358 = vunpack.c.h.b16 %v406
        %v2359 = vunpack.c.l.b16 %v407
        %v2360 = vunpack.c.l.b16 %v408
        %v2361 = vunpack.c.h.b16 %v408
        %v2362 = vunpack.c.l.b16 %v409
        %v2363 = vunpack.c.h.b16 %v409
        %v2364 = vunpack.c.l.b16 %v410
        %v2365 = vunpack.c.h.b16 %v410
        %v2366 = vunpack.c.l.b16 %v411
        %v2367 = vunpack.c.l.b16 %v412
        %v2368 = vunpack.c.h.b16 %v412
        %v2369 = vunpack.c.l.b16 %v413
        %v2370 = vunpack.c.h.b16 %v413
        %v2371 = vunpack.c.l.b16 %v414
        %v2372 = vunpack.c.h.b16 %v414
        %v2373 = vunpack.c.l.b16 %v415
        %v2374 = vunpack.c.l.b16 %v416
        %v2375 = vunpack.c.h.b16 %v416
        %v2376 = vunpack.c.l.b16 %v417
        %v2377 = vunpack.c.h.b16 %v417
        %v2378 = vunpack.c.l.b16 %v418
        %v2379 = vunpack.c.h.b16 %v418
        %v2380 = vunpack.c.l.b16 %v419
        %v2381 = vunpack.c.l.b16 %v420
        %v2382 = vunpack.c.h.b16 %v420
        %v2383 = vunpack.c.l.b16 %v421
        %v2384 = vunpack.c.h.b16 %v421
        %v2385 = vunpack.c.l.b16 %v422
        %v2386 = vunpack.c.h.b16 %v422
        %v2387 = vunpack.c.l.b16 %v423
        %v2388 = vunpack.c.l.b16 %v424
        %v2389 = vunpack.c.h.b16 %v424
        %v2390 = vunpack.c.l.b16 %v425
        %v2391 = vunpack.c.h.b16 %v425
        %v2392 = vunpack.c.l.b16 %v426
        %v2393 = vunpack.c.h.b16 %v426
        %v2394 = vunpack.c.l.b16 %v427
        %v2395 = vunpack.c.l.b16 %v428
        %v2396 = vunpack.c.h.b16 %v428
        %v2397 = vunpack.c.l.b16 %v429
        %v2398 = vunpack.c.h.b16 %v429
        %v2399 = vunpack.c.l.b16 %v430
        %v2400 = vunpack.c.h.b16 %v430
        %v2401 = vunpack.c.l.b16 %v431
        %v2402 = vunpack.c.l.b16 %v432
        %v2403 = vunpack.c.h.b16 %v432
        %v2404 = vunpack.c.l.b16 %v433
        %v2405 = vunpack.c.h.b16 %v433
        %v2406 = vunpack.c.l.b16 %v434
        %v2407 = vunpack.c.h.b16 %v434
        %v2408 = vunpack.c.l.b16 %v435
        %v2409 = vunpack.c.l.b16 %v436
        %v2410 = vunpack.c.h.b16 %v436
        %v2411 = vunpack.c.l.b16 %v437
        %v2412 = vunpack.c.h.b16 %v437
        %v2413 = vunpack.c.l.b16 %v438
        %v2414 = vunpack.c.h.b16 %v438
        %v2415 = vunpack.c.l.b16 %v439
        %v2416 = vunpack.c.l.b16 %v440
        %v2417 = vunpack.c.h.b16 %v440
        %v2418 = vunpack.c.l.b16 %v441
        %v2419 = vunpack.c.h.b16 %v441
        %v2420 = vunpack.c.l.b16 %v442
        %v2421 = vunpack.c.h.b16 %v442
        %v2422 = vunpack.c.l.b16 %v443
        %v2423 = vunpack.c.l.b16 %v444
        %v2424 = vunpack.c.h.b16 %v444
        %v2425 = vunpack.c.l.b16 %v445
        %v2426 = vunpack.c.h.b16 %v445
        %v2427 = vunpack.c.l.b16 %v446
        %v2428 = vunpack.c.h.b16 %v446
        %v2429 = vunpack.c.l.b16 %v447
        %v2430 = vunpack.c.l.b16 %v448
        %v2431 = vunpack.c.h.b16 %v448
        %v2432 = vunpack.c.l.b16 %v449
        %v2433 = vunpack.c.h.b16 %v449
        %v2434 = vunpack.c.l.b16 %v450
        %v2435 = vunpack.c.h.b16 %v450
        %v2436 = vunpack.c.l.b16 %v451
        %v2437 = vunpack.c.l.b16 %v452
        %v2438 = vunpack.c.h.b16 %v452
        %v2439 = vunpack.c.l.b16 %v453
        %v2440 = vunpack.c.h.b16 %v453
        %v2441 = vunpack.c.l.b16 %v454
        %v2442 = vunpack.c.h.b16 %v454
        %v2443 = vunpack.c.l.b16 %v455
        %v2444 = vunpack.c.l.b16 %v456
        %v2445 = vunpack.c.h.b16 %v456
        %v2446 = vunpack.c.l.b16 %v457
        %v2447 = vunpack.c.h.b16 %v457
        %v2448 = vunpack.c.l.b16 %v458
        %v2449 = vunpack.c.h.b16 %v458
        %v2450 = vunpack.c.l.b16 %v459
        %v2451 = vunpack.c.l.b16 %v460
        %v2452 = vunpack.c.h.b16 %v460
        %v2453 = vunpack.c.l.b16 %v461
        %v2454 = vunpack.c.h.b16 %v461
        %v2455 = vunpack.c.l.b16 %v462
        %v2456 = vunpack.c.h.b16 %v462
        %v2457 = vunpack.c.l.b16 %v463
        %v2458 = vunpack.c.l.b16 %v464
        %v2459 = vunpack.c.h.b16 %v464
        %v2460 = vunpack.c.l.b16 %v465
        %v2461 = vunpack.c.h.b16 %v465
        %v2462 = vunpack.c.l.b16 %v466
        %v2463 = vunpack.c.h.b16 %v466
        %v2464 = vunpack.c.l.b16 %v467
        %v2465 = vunpack.c.l.b16 %v468
        %v2466 = vunpack.c.h.b16 %v468
        %v2467 = vunpack.c.l.b16 %v469
        %v2468 = vunpack.c.h.b16 %v469
        %v2469 = vunpack.c.l.b16 %v470
        %v2470 = vunpack.c.h.b16 %v470
        %v2471 = vunpack.c.l.b16 %v471
        %v2472 = vunpack.c.l.b16 %v472
        %v2473 = vunpack.c.h.b16 %v472
        %v2474 = vunpack.c.l.b16 %v473
        %v2475 = vunpack.c.h.b16 %v473
        %v2476 = vunpack.c.l.b16 %v474
        %v2477 = vunpack.c.h.b16 %v474
        %v2478 = vunpack.c.l.b16 %v475
        %v2479 = vunpack.c.l.b16 %v476
        %v2480 = vunpack.c.h.b16 %v476
        %v2481 = vunpack.c.l.b16 %v477
        %v2482 = vunpack.c.h.b16 %v477
        %v2483 = vunpack.c.l.b16 %v478
        %v2484 = vunpack.c.h.b16 %v478
        %v2485 = vunpack.c.l.b16 %v479
        %v2486 = vunpack.c.l.b16 %v480
        %v2487 = vunpack.c.h.b16 %v480
        %v2488 = vunpack.c.l.b16 %v481
        %v2489 = vunpack.c.h.b16 %v481
        %v2490 = vunpack.c.l.b16 %v482
        %v2491 = vunpack.c.h.b16 %v482
        %v2492 = vunpack.c.l.b16 %v483
        %v2493 = vunpack.c.l.b16 %v484
        %v2494 = vunpack.c.h.b16 %v484
        %v2495 = vunpack.c.l.b16 %v485
        %v2496 = vunpack.c.h.b16 %v485
        %v2497 = vunpack.c.l.b16 %v486
        %v2498 = vunpack.c.h.b16 %v486
        %v2499 = vunpack.c.l.b16 %v487
        %v2500 = vunpack.c.l.b16 %v488
        %v2501 = vunpack.c.h.b16 %v488
        %v2502 = vunpack.c.l.b16 %v489
        %v2503 = vunpack.c.h.b16 %v489
        %v2504 = vunpack.c.l.b16 %v490
        %v2505 = vunpack.c.h.b16 %v490
        %v2506 = vunpack.c.l.b16 %v491
        %v2507 = vunpack.c.l.b16 %v492
        %v2508 = vunpack.c.h.b16 %v492
        %v2509 = vunpack.c.l.b16 %v493
        %v2510 = vunpack.c.h.b16 %v493
        %v2511 = vunpack.c.l.b16 %v494
        %v2512 = vunpack.c.h.b16 %v494
        %v2513 = vunpack.c.l.b16 %v495
        %v2514 = vunpack.c.l.b16 %v496
        %v2515 = vunpack.c.h.b16 %v496
        %v2516 = vunpack.c.l.b16 %v497
        %v2517 = vunpack.c.h.b16 %v497
        %v2518 = vunpack.c.l.b16 %v498
        %v2519 = vunpack.c.h.b16 %v498
        %v2520 = vunpack.c.l.b16 %v499
        %v2521 = vunpack.c.l.b16 %v500
        %v2522 = vunpack.c.h.b16 %v500
        %v2523 = vunpack.c.l.b16 %v501
        %v2524 = vunpack.c.h.b16 %v501
        %v2525 = vunpack.c.l.b16 %v502
        %v2526 = vunpack.c.h.b16 %v502
        %v2527 = vunpack.c.l.b16 %v503
        %v2528 = vunpack.c.l.b16 %v504
        %v2529 = vunpack.c.h.b16 %v504
        %v2530 = vunpack.c.l.b16 %v505
        %v2531 = vunpack.c.h.b16 %v505
        %v2532 = vunpack.c.l.b16 %v506
        %v2533 = vunpack.c.h.b16 %v506
        %v2534 = vunpack.c.l.b16 %v507
        %v2535 = vunpack.c.l.b16 %v508
        %v2536 = vunpack.c.h.b16 %v508
        %v2537 = vunpack.c.l.b16 %v509
        %v2538 = vunpack.c.h.b16 %v509
        %v2539 = vunpack.c.l.b16 %v510
        %v2540 = vunpack.c.h.b16 %v510
        %v2541 = vunpack.c.l.b16 %v511
        %v2542 = vunpack.c.l.b16 %v512
        %v2543 = vunpack.c.h.b16 %v512
        %v2544 = vunpack.c.l.b16 %v513
        %v2545 = vunpack.c.h.b16 %v513
        %v2546 = vunpack.c.l.b16 %v514
        %v2547 = vunpack.c.h.b16 %v514
        %v2548 = vunpack.c.l.b16 %v515
        %v2549 = vunpack.c.l.b16 %v516
        %v2550 = vunpack.c.h.b16 %v516
        %v2551 = vunpack.c.l.b16 %v517
        %v2552 = vunpack.c.h.b16 %v517
        %v2553 = vunpack.c.l.b16 %v518
        %v2554 = vunpack.c.h.b16 %v518
        %v2555 = vunpack.c.l.b16 %v519
        %v2556 = vunpack.c.l.b16 %v520
        %v2557 = vunpack.c.h.b16 %v520
        %v2558 = vunpack.c.l.b16 %v521
        %v2559 = vunpack.c.h.b16 %v521
        %v2560 = vunpack.c.l.b16 %v522
        %v2561 = vunpack.c.h.b16 %v522
        %v2562 = vunpack.c.l.b16 %v523
        %v2563 = vunpack.c.l.b16 %v524
        %v2564 = vunpack.c.h.b16 %v524
        %v2565 = vunpack.c.l.b16 %v525
        %v2566 = vunpack.c.h.b16 %v525
        %v2567 = vunpack.c.l.b16 %v526
        %v2568 = vunpack.c.h.b16 %v526
        %v2569 = vunpack.c.l.b16 %v527
        %v2570 = vunpack.c.l.b16 %v528
        %v2571 = vunpack.c.h.b16 %v528
        %v2572 = vunpack.c.l.b16 %v529
        %v2573 = vunpack.c.h.b16 %v529
        %v2574 = vunpack.c.l.b16 %v530
        %v2575 = vunpack.c.h.b16 %v530
        %v2576 = vunpack.c.l.b16 %v531
        %v2577 = vunpack.c.l.b16 %v532
        %v2578 = vunpack.c.h.b16 %v532
        %v2579 = vunpack.c.l.b16 %v533
        %v2580 = vunpack.c.h.b16 %v533
        %v2581 = vunpack.c.l.b16 %v534
        %v2582 = vunpack.c.h.b16 %v534
        %v2583 = vunpack.c.l.b16 %v535
        %v2584 = vunpack.c.l.b16 %v536
        %v2585 = vunpack.c.h.b16 %v536
        %v2586 = vunpack.c.l.b16 %v537
        %v2587 = vunpack.c.h.b16 %v537
        %v2588 = vunpack.c.l.b16 %v538
        %v2589 = vunpack.c.h.b16 %v538
        %v2590 = vunpack.c.l.b16 %v539
        %v2591 = vunpack.c.l.b16 %v540
        %v2592 = vunpack.c.h.b16 %v540
        %v2593 = vunpack.c.l.b16 %v541
        %v2594 = vunpack.c.h.b16 %v541
        %v2595 = vunpack.c.l.b16 %v542
        %v2596 = vunpack.c.h.b16 %v542
        %v2597 = vunpack.c.l.b16 %v543
        %v2598 = vunpack.c.l.b16 %v544
        %v2599 = vunpack.c.h.b16 %v544
        %v2600 = vunpack.c.l.b16 %v545
        %v2601 = vunpack.c.h.b16 %v545
        %v2602 = vunpack.c.l.b16 %v546
        %v2603 = vunpack.c.h.b16 %v546
        %v2604 = vunpack.c.l.b16 %v547
        %v2605 = vunpack.c.l.b16 %v548
        %v2606 = vunpack.c.h.b16 %v548
        %v2607 = vunpack.c.l.b16 %v549
        %v2608 = vunpack.c.h.b16 %v549
        %v2609 = vunpack.c.l.b16 %v550
        %v2610 = vunpack.c.h.b16 %v550
        %v2611 = vunpack.c.l.b16 %v551
        %v2612 = vunpack.c.l.b16 %v552
        %v2613 = vunpack.c.h.b16 %v552
        %v2614 = vunpack.c.l.b16 %v553
        %v2615 = vunpack.c.h.b16 %v553
        %v2616 = vunpack.c.l.b16 %v554
        %v2617 = vunpack.c.h.b16 %v554
        %v2618 = vunpack.c.l.b16 %v555
        %v2619 = vunpack.c.l.b16 %v556
        %v2620 = vunpack.c.h.b16 %v556
        %v2621 = vunpack.c.l.b16 %v557
        %v2622 = vunpack.c.h.b16 %v557
        %v2623 = vunpack.c.l.b16 %v558
        %v2624 = vunpack.c.h.b16 %v558
        %v2625 = vunpack.c.l.b16 %v559
        %v2626 = vunpack.c.l.b16 %v560
        %v2627 = vunpack.c.h.b16 %v560
        %v2628 = vunpack.c.l.b16 %v561
        %v2629 = vunpack.c.h.b16 %v561
        %v2630 = vunpack.c.l.b16 %v562
        %v2631 = vunpack.c.h.b16 %v562
        %v2632 = vunpack.c.l.b16 %v563
        %v2633 = vunpack.c.l.b16 %v564
        %v2634 = vunpack.c.h.b16 %v564
        %v2635 = vunpack.c.l.b16 %v565
        %v2636 = vunpack.c.h.b16 %v565
        %v2637 = vunpack.c.l.b16 %v566
        %v2638 = vunpack.c.h.b16 %v566
        %v2639 = vunpack.c.l.b16 %v567
        %v2640 = vunpack.c.l.b16 %v568
        %v2641 = vunpack.c.h.b16 %v568
        %v2642 = vunpack.c.l.b16 %v569
        %v2643 = vunpack.c.h.b16 %v569
        %v2644 = vunpack.c.l.b16 %v570
        %v2645 = vunpack.c.h.b16 %v570
        %v2646 = vunpack.c.l.b16 %v571
        %v2647 = vpack.c.b16 %v2304, %v2297
        %v2648 = vpack.c.b16 %v2305, %v2298
        %v2649 = vpack.c.b16 %v2306, %v2299
        %v2650 = vpack.c.b16 %v2307, %v2300
        %v2651 = vpack.c.b16 %v2308, %v2301
        %v2652 = vpack.c.b16 %v2309, %v2302
        %v2653 = vpack.c.b16 %v2310, %v2303
        %v2654 = vpack.c.b16 %v2318, %v2311
        %v2655 = vpack.c.b16 %v2319, %v2312
        %v2656 = vpack.c.b16 %v2320, %v2313
        %v2657 = vpack.c.b16 %v2321, %v2314
        %v2658 = vpack.c.b16 %v2322, %v2315
        %v2659 = vpack.c.b16 %v2323, %v2316
        %v2660 = vpack.c.b16 %v2324, %v2317
        %v2661 = vpack.c.b16 %v2332, %v2325
        %v2662 = vpack.c.b16 %v2333, %v2326
        %v2663 = vpack.c.b16 %v2334, %v2327
        %v2664 = vpack.c.b16 %v2335, %v2328
        %v2665 = vpack.c.b16 %v2336, %v2329
        %v2666 = vpack.c.b16 %v2337, %v2330
        %v2667 = vpack.c.b16 %v2338, %v2331
        %v2668 = vpack.c.b16 %v2346, %v2339
        %v2669 = vpack.c.b16 %v2347, %v2340
        %v2670 = vpack.c.b16 %v2348, %v2341
        %v2671 = vpack.c.b16 %v2349, %v2342
        %v2672 = vpack.c.b16 %v2350, %v2343
        %v2673 = vpack.c.b16 %v2351, %v2344
        %v2674 = vpack.c.b16 %v2352, %v2345
        %v2675 = vpack.c.b16 %v2360, %v2353
        %v2676 = vpack.c.b16 %v2361, %v2354
        %v2677 = vpack.c.b16 %v2362, %v2355
        %v2678 = vpack.c.b16 %v2363, %v2356
        %v2679 = vpack.c.b16 %v2364, %v2357
        %v2680 = vpack.c.b16 %v2365, %v2358
        %v2681 = vpack.c.b16 %v2366, %v2359
        %v2682 = vpack.c.b16 %v2374, %v2367
        %v2683 = vpack.c.b16 %v2375, %v2368
        %v2684 = vpack.c.b16 %v2376, %v2369
        %v2685 = vpack.c.b16 %v2377, %v2370
        %v2686 = vpack.c.b16 %v2378, %v2371
        %v2687 = vpack.c.b16 %v2379, %v2372
        %v2688 = vpack.c.b16 %v2380, %v2373
        %v2689 = vpack.c.b16 %v2388, %v2381
        %v2690 = vpack.c.b16 %v2389, %v2382
        %v2691 = vpack.c.b16 %v2390, %v2383
        %v2692 = vpack.c.b16 %v2391, %v2384
        %v2693 = vpack.c.b16 %v2392, %v2385
        %v2694 = vpack.c.b16 %v2393, %v2386
        %v2695 = vpack.c.b16 %v2394, %v2387
        %v2696 = vpack.c.b16 %v2402, %v2395
        %v2697 = vpack.c.b16 %v2403, %v2396
        %v2698 = vpack.c.b16 %v2404, %v2397
        %v2699 = vpack.c.b16 %v2405, %v2398
        %v2700 = vpack.c.b16 %v2406, %v2399
        %v2701 = vpack.c.b16 %v2407, %v2400
        %v2702 = vpack.c.b16 %v2408, %v2401
        %v2703 = vpack.c.b16 %v2416, %v2409
        %v2704 = vpack.c.b16 %v2417, %v2410
        %v2705 = vpack.c.b16 %v2418, %v2411
        %v2706 = vpack.c.b16 %v2419, %v2412
        %v2707 = vpack.c.b16 %v2420, %v2413
        %v2708 = vpack.c.b16 %v2421, %v2414
        %v2709 = vpack.c.b16 %v2422, %v2415
        %v2710 = vpack.c.b16 %v2430, %v2423
        %v2711 = vpack.c.b16 %v2431, %v2424
        %v2712 = vpack.c.b16 %v2432, %v2425
        %v2713 = vpack.c.b16 %v2433, %v2426
        %v2714 = vpack.c.b16 %v2434, %v2427
        %v2715 = vpack.c.b16 %v2435, %v2428
        %v2716 = vpack.c.b16 %v2436, %v2429
        %v2717 = vpack.c.b16 %v2444, %v2437
        %v2718 = vpack.c.b16 %v2445, %v2438
        %v2719 = vpack.c.b16 %v2446, %v2439
        %v2720 = vpack.c.b16 %v2447, %v2440
        %v2721 = vpack.c.b16 %v2448, %v2441
        %v2722 = vpack.c.b16 %v2449, %v2442
        %v2723 = vpack.c.b16 %v2450, %v2443
        %v2724 = vpack.c.b16 %v2458, %v2451
        %v2725 = vpack.c.b16 %v2459, %v2452
        %v2726 = vpack.c.b16 %v2460, %v2453
        %v2727 = vpack.c.b16 %v2461, %v2454
        %v2728 = vpack.c.b16 %v2462, %v2455
        %v2729 = vpack.c.b16 %v2463, %v2456
        %v2730 = vpack.c.b16 %v2464, %v2457
        %v2731 = vpack.c.b16 %v2472, %v2465
        %v2732 = vpack.c.b16 %v2473, %v2466
        %v2733 = vpack.c.b16 %v2474, %v2467
        %v2734 = vpack.c.b16 %v2475, %v2468
        %v2735 = vpack.c.b16 %v2476, %v2469
        %v2736 = vpack.c.b16 %v2477, %v2470
        %v2737 = vpack.c.b16 %v2478, %v2471
        %v2738 = vpack.c.b16 %v2486, %v2479
        %v2739 = vpack.c.b16 %v2487, %v2480
        %v2740 = vpack.c.b16 %v2488, %v2481
        %v2741 = vpack.c.b16 %v2489, %v2482
        %v2742 = vpack.c.b16 %v2490, %v2483
        %v2743 = vpack.c.b16 %v2491, %v2484
        %v2744 = vpack.c.b16 %v2492, %v2485
        %v2745 = vpack.c.b16 %v2500, %v2493
        %v2746 = vpack.c.b16 %v2501, %v2494
        %v2747 = vpack.c.b16 %v2502, %v2495
        %v2748 = vpack.c.b16 %v2503, %v2496
        %v2749 = vpack.c.b16 %v2504, %v2497
        %v2750 = vpack.c.b16 %v2505, %v2498
        %v2751 = vpack.c.b16 %v2506, %v2499
        %v2752 = vpack.c.b16 %v2514, %v2507
        %v2753 = vpack.c.b16 %v2515, %v2508
        %v2754 = vpack.c.b16 %v2516, %v2509
        %v2755 = vpack.c.b16 %v2517, %v2510
        %v2756 = vpack.c.b16 %v2518, %v2511
        %v2757 = vpack.c.b16 %v2519, %v2512
        %v2758 = vpack.c.b16 %v2520, %v2513
        %v2759 = vpack.c.b16 %v2528, %v2521
        %v2760 = vpack.c.b16 %v2529, %v2522
        %v2761 = vpack.c.b16 %v2530, %v2523
        %v2762 = vpack.c.b16 %v2531, %v2524
        %v2763 = vpack.c.b16 %v2532, %v2525
        %v2764 = vpack.c.b16 %v2533, %v2526
        %v2765 = vpack.c.b16 %v2534, %v2527
        %v2766 = vpack.c.b16 %v2542, %v2535
        %v2767 = vpack.c.b16 %v2543, %v2536
        %v2768 = vpack.c.b16 %v2544, %v2537
        %v2769 = vpack.c.b16 %v2545, %v2538
        %v2770 = vpack.c.b16 %v2546, %v2539
        %v2771 = vpack.c.b16 %v2547, %v2540
        %v2772 = vpack.c.b16 %v2548, %v2541
        %v2773 = vpack.c.b16 %v2556, %v2549
        %v2774 = vpack.c.b16 %v2557, %v2550
        %v2775 = vpack.c.b16 %v2558, %v2551
        %v2776 = vpack.c.b16 %v2559, %v2552
        %v2777 = vpack.c.b16 %v2560, %v2553
        %v2778 = vpack.c.b16 %v2561, %v2554
        %v2779 = vpack.c.b16 %v2562, %v2555
        %v2780 = vpack.c.b16 %v2570, %v2563
        %v2781 = vpack.c.b16 %v2571, %v2564
        %v2782 = vpack.c.b16 %v2572, %v2565
        %v2783 = vpack.c.b16 %v2573, %v2566
        %v2784 = vpack.c.b16 %v2574, %v2567
        %v2785 = vpack.c.b16 %v2575, %v2568
        %v2786 = vpack.c.b16 %v2576, %v2569
        %v2787 = vpack.c.b16 %v2584, %v2577
        %v2788 = vpack.c.b16 %v2585, %v2578
        %v2789 = vpack.c.b16 %v2586, %v2579
        %v2790 = vpack.c.b16 %v2587, %v2580
        %v2791 = vpack.c.b16 %v2588, %v2581
        %v2792 = vpack.c.b16 %v2589, %v2582
        %v2793 = vpack.c.b16 %v2590, %v2583
        %v2794 = vpack.c.b16 %v2598, %v2591
        %v2795 = vpack.c.b16 %v2599, %v2592
        %v2796 = vpack.c.b16 %v2600, %v2593
        %v2797 = vpack.c.b16 %v2601, %v2594
        %v2798 = vpack.c.b16 %v2602, %v2595
        %v2799 = vpack.c.b16 %v2603, %v2596
        %v2800 = vpack.c.b16 %v2604, %v2597
        %v2801 = vpack.c.b16 %v2612, %v2605
        %v2802 = vpack.c.b16 %v2613, %v2606
        %v2803 = vpack.c.b16 %v2614, %v2607
        %v2804 = vpack.c.b16 %v2615, %v2608
        %v2805 = vpack.c.b16 %v2616, %v2609
        %v2806 = vpack.c.b16 %v2617, %v2610
        %v2807 = vpack.c.b16 %v2618, %v2611
        %v2808 = vpack.c.b16 %v2626, %v2619
        %v2809 = vpack.c.b16 %v2627, %v2620
        %v2810 = vpack.c.b16 %v2628, %v2621
        %v2811 = vpack.c.b16 %v2629, %v2622
        %v2812 = vpack.c.b16 %v2630, %v2623
        %v2813 = vpack.c.b16 %v2631, %v2624
        %v2814 = vpack.c.b16 %v2632, %v2625
        %v2815 = vpack.c.b16 %v2640, %v2633
        %v2816 = vpack.c.b16 %v2641, %v2634
        %v2817 = vpack.c.b16 %v2642, %v2635
        %v2818 = vpack.c.b16 %v2643, %v2636
        %v2819 = vpack.c.b16 %v2644, %v2637
        %v2820 = vpack.c.b16 %v2645, %v2638
        %v2821 = vpack.c.b16 %v2646, %v2639
        %v2998 = vsel %vm1722, %v2093, 0
        %3000 = vmatpush.bf16.msra.mxu0 %v2696
        %3001 = vmatpush.bf16.msra.mxu0 %v2689
        %3002 = vmatpush.bf16.msra.mxu0 %v2682
        %3003 = vmatpush.bf16.msra.mxu0 %v2675
        %3004 = vmatpush.bf16.msra.mxu0 %v2668
        %3005 = vmatpush.bf16.msra.mxu0 %v2661
        %3006 = vmatpush.bf16.msra.mxu0 %v2654
        %3007 = vmatpush.bf16.msra.mxu0 %v2647
        %3008 = vmatmul.bf16.gmra.mxu0 %v2090
        %v3009 = vpop.f32.mrf.mxu0
        %v3010 = vadd.f32 %v1775, %v3009
        %v3011 = vpop.f32.mrf.mxu0
        %3012 = vdwg.mxu0
        %3013 = vmatpush.bf16.msra.mxu0 %v2752
        %3014 = vmatpush.bf16.msra.mxu0 %v2745
        %3015 = vmatpush.bf16.msra.mxu0 %v2738
        %3016 = vmatpush.bf16.msra.mxu0 %v2731
        %3017 = vmatpush.bf16.msra.mxu0 %v2724
        %3018 = vmatpush.bf16.msra.mxu0 %v2717
        %3019 = vmatpush.bf16.msra.mxu0 %v2710
        %3020 = vmatpush.bf16.msra.mxu0 %v2703
        %3021 = vmatmul.bf16.gmra.mxu0 %v2091
        %v3022 = vpop.f32.mrf.mxu0
        %v3023 = vadd.f32 %v3010, %v3022
        %v3024 = vpop.f32.mrf.mxu0
        %3025 = vdwg.mxu0
        %3026 = vmatpush.bf16.msra.mxu0 %v2808
        %3027 = vmatpush.bf16.msra.mxu0 %v2801
        %3028 = vmatpush.bf16.msra.mxu0 %v2794
        %3029 = vmatpush.bf16.msra.mxu0 %v2787
        %3030 = vmatpush.bf16.msra.mxu0 %v2780
        %3031 = vmatpush.bf16.msra.mxu0 %v2773
        %3032 = vmatpush.bf16.msra.mxu0 %v2766
        %3033 = vmatpush.bf16.msra.mxu0 %v2759
        %3034 = vmatmul.bf16.gmra.mxu0 %v2092
        %v3035 = vpop.f32.mrf.mxu0
        %v3036 = vadd.f32 %v3023, %v3035
        %v3037 = vpop.f32.mrf.mxu0
        %3038 = vdwg.mxu0
        %3039 = vmatpush.bf16.msra.mxu0 0
        %3040 = vmatpush.bf16.msra.mxu0 0
        %3041 = vmatpush.bf16.msra.mxu0 0
        %3042 = vmatpush.bf16.msra.mxu0 0
        %3043 = vmatpush.bf16.msra.mxu0 0
        %3044 = vmatpush.bf16.msra.mxu0 0
        %3045 = vmatpush.bf16.msra.mxu0 0
        %3046 = vmatpush.bf16.msra.mxu0 %v2815
        %3047 = vmatmul.bf16.gmra.mxu0 %v2998
        %v3048 = vpop.f32.mrf.mxu0
        %v3049 = vadd.f32 %v3036, %v3048
        %v3050 = vpop.f32.mrf.mxu0
        %3051 = vdwg.mxu0
        %3052 = vmatpush.bf16.msra.mxu0 %v2697
        %3053 = vmatpush.bf16.msra.mxu0 %v2690
        %3054 = vmatpush.bf16.msra.mxu0 %v2683
        %3055 = vmatpush.bf16.msra.mxu0 %v2676
        %3056 = vmatpush.bf16.msra.mxu0 %v2669
        %3057 = vmatpush.bf16.msra.mxu0 %v2662
        %3058 = vmatpush.bf16.msra.mxu0 %v2655
        %3059 = vmatpush.bf16.msra.mxu0 %v2648
        %3060 = vmatmul.bf16.gmra.mxu0 %v2090
        %v3061 = vpop.f32.mrf.mxu0
        %v3062 = vadd.f32 %v1827, %v3061
        %v3063 = vpop.f32.mrf.mxu0
        %3064 = vdwg.mxu0
        %3065 = vmatpush.bf16.msra.mxu0 %v2753
        %3066 = vmatpush.bf16.msra.mxu0 %v2746
        %3067 = vmatpush.bf16.msra.mxu0 %v2739
        %3068 = vmatpush.bf16.msra.mxu0 %v2732
        %3069 = vmatpush.bf16.msra.mxu0 %v2725
        %3070 = vmatpush.bf16.msra.mxu0 %v2718
        %3071 = vmatpush.bf16.msra.mxu0 %v2711
        %3072 = vmatpush.bf16.msra.mxu0 %v2704
        %3073 = vmatmul.bf16.gmra.mxu0 %v2091
        %v3074 = vpop.f32.mrf.mxu0
        %v3075 = vadd.f32 %v3062, %v3074
        %v3076 = vpop.f32.mrf.mxu0
        %3077 = vdwg.mxu0
        %3078 = vmatpush.bf16.msra.mxu0 %v2809
        %3079 = vmatpush.bf16.msra.mxu0 %v2802
        %3080 = vmatpush.bf16.msra.mxu0 %v2795
        %3081 = vmatpush.bf16.msra.mxu0 %v2788
        %3082 = vmatpush.bf16.msra.mxu0 %v2781
        %3083 = vmatpush.bf16.msra.mxu0 %v2774
        %3084 = vmatpush.bf16.msra.mxu0 %v2767
        %3085 = vmatpush.bf16.msra.mxu0 %v2760
        %3086 = vmatmul.bf16.gmra.mxu0 %v2092
        %v3087 = vpop.f32.mrf.mxu0
        %v3088 = vadd.f32 %v3075, %v3087
        %v3089 = vpop.f32.mrf.mxu0
        %3090 = vdwg.mxu0
        %3091 = vmatpush.bf16.msra.mxu0 0
        %3092 = vmatpush.bf16.msra.mxu0 0
        %3093 = vmatpush.bf16.msra.mxu0 0
        %3094 = vmatpush.bf16.msra.mxu0 0
        %3095 = vmatpush.bf16.msra.mxu0 0
        %3096 = vmatpush.bf16.msra.mxu0 0
        %3097 = vmatpush.bf16.msra.mxu0 0
        %3098 = vmatpush.bf16.msra.mxu0 %v2816
        %3099 = vmatmul.bf16.gmra.mxu0 %v2998
        %v3100 = vpop.f32.mrf.mxu0
        %v3101 = vadd.f32 %v3088, %v3100
        %v3102 = vpop.f32.mrf.mxu0
        %3103 = vdwg.mxu0
        %3104 = vmatpush.bf16.msra.mxu0 %v2698
        %3105 = vmatpush.bf16.msra.mxu0 %v2691
        %3106 = vmatpush.bf16.msra.mxu0 %v2684
        %3107 = vmatpush.bf16.msra.mxu0 %v2677
        %3108 = vmatpush.bf16.msra.mxu0 %v2670
        %3109 = vmatpush.bf16.msra.mxu0 %v2663
        %3110 = vmatpush.bf16.msra.mxu0 %v2656
        %3111 = vmatpush.bf16.msra.mxu0 %v2649
        %3112 = vmatmul.bf16.gmra.mxu0 %v2090
        %v3113 = vpop.f32.mrf.mxu0
        %v3114 = vadd.f32 %v1879, %v3113
        %v3115 = vpop.f32.mrf.mxu0
        %3116 = vdwg.mxu0
        %3117 = vmatpush.bf16.msra.mxu0 %v2754
        %3118 = vmatpush.bf16.msra.mxu0 %v2747
        %3119 = vmatpush.bf16.msra.mxu0 %v2740
        %3120 = vmatpush.bf16.msra.mxu0 %v2733
        %3121 = vmatpush.bf16.msra.mxu0 %v2726
        %3122 = vmatpush.bf16.msra.mxu0 %v2719
        %3123 = vmatpush.bf16.msra.mxu0 %v2712
        %3124 = vmatpush.bf16.msra.mxu0 %v2705
        %3125 = vmatmul.bf16.gmra.mxu0 %v2091
        %v3126 = vpop.f32.mrf.mxu0
        %v3127 = vadd.f32 %v3114, %v3126
        %v3128 = vpop.f32.mrf.mxu0
        %3129 = vdwg.mxu0
        %3130 = vmatpush.bf16.msra.mxu0 %v2810
        %3131 = vmatpush.bf16.msra.mxu0 %v2803
        %3132 = vmatpush.bf16.msra.mxu0 %v2796
        %3133 = vmatpush.bf16.msra.mxu0 %v2789
        %3134 = vmatpush.bf16.msra.mxu0 %v2782
        %3135 = vmatpush.bf16.msra.mxu0 %v2775
        %3136 = vmatpush.bf16.msra.mxu0 %v2768
        %3137 = vmatpush.bf16.msra.mxu0 %v2761
        %3138 = vmatmul.bf16.gmra.mxu0 %v2092
        %v3139 = vpop.f32.mrf.mxu0
        %v3140 = vadd.f32 %v3127, %v3139
        %v3141 = vpop.f32.mrf.mxu0
        %3142 = vdwg.mxu0
        %3143 = vmatpush.bf16.msra.mxu0 0
        %3144 = vmatpush.bf16.msra.mxu0 0
        %3145 = vmatpush.bf16.msra.mxu0 0
        %3146 = vmatpush.bf16.msra.mxu0 0
        %3147 = vmatpush.bf16.msra.mxu0 0
        %3148 = vmatpush.bf16.msra.mxu0 0
        %3149 = vmatpush.bf16.msra.mxu0 0
        %3150 = vmatpush.bf16.msra.mxu0 %v2817
        %3151 = vmatmul.bf16.gmra.mxu0 %v2998
        %v3152 = vpop.f32.mrf.mxu0
        %v3153 = vadd.f32 %v3140, %v3152
        %v3154 = vpop.f32.mrf.mxu0
        %3155 = vdwg.mxu0
        %3156 = vmatpush.bf16.msra.mxu0 %v2699
        %3157 = vmatpush.bf16.msra.mxu0 %v2692
        %3158 = vmatpush.bf16.msra.mxu0 %v2685
        %3159 = vmatpush.bf16.msra.mxu0 %v2678
        %3160 = vmatpush.bf16.msra.mxu0 %v2671
        %3161 = vmatpush.bf16.msra.mxu0 %v2664
        %3162 = vmatpush.bf16.msra.mxu0 %v2657
        %3163 = vmatpush.bf16.msra.mxu0 %v2650
        %3164 = vmatmul.bf16.gmra.mxu0 %v2090
        %v3165 = vpop.f32.mrf.mxu0
        %v3166 = vadd.f32 %v1931, %v3165
        %v3167 = vpop.f32.mrf.mxu0
        %3168 = vdwg.mxu0
        %3169 = vmatpush.bf16.msra.mxu0 %v2755
        %3170 = vmatpush.bf16.msra.mxu0 %v2748
        %3171 = vmatpush.bf16.msra.mxu0 %v2741
        %3172 = vmatpush.bf16.msra.mxu0 %v2734
        %3173 = vmatpush.bf16.msra.mxu0 %v2727
        %3174 = vmatpush.bf16.msra.mxu0 %v2720
        %3175 = vmatpush.bf16.msra.mxu0 %v2713
        %3176 = vmatpush.bf16.msra.mxu0 %v2706
        %3177 = vmatmul.bf16.gmra.mxu0 %v2091
        %v3178 = vpop.f32.mrf.mxu0
        %v3179 = vadd.f32 %v3166, %v3178
        %v3180 = vpop.f32.mrf.mxu0
        %3181 = vdwg.mxu0
        %3182 = vmatpush.bf16.msra.mxu0 %v2811
        %3183 = vmatpush.bf16.msra.mxu0 %v2804
        %3184 = vmatpush.bf16.msra.mxu0 %v2797
        %3185 = vmatpush.bf16.msra.mxu0 %v2790
        %3186 = vmatpush.bf16.msra.mxu0 %v2783
        %3187 = vmatpush.bf16.msra.mxu0 %v2776
        %3188 = vmatpush.bf16.msra.mxu0 %v2769
        %3189 = vmatpush.bf16.msra.mxu0 %v2762
        %3190 = vmatmul.bf16.gmra.mxu0 %v2092
        %v3191 = vpop.f32.mrf.mxu0
        %v3192 = vadd.f32 %v3179, %v3191
        %v3193 = vpop.f32.mrf.mxu0
        %3194 = vdwg.mxu0
        %3195 = vmatpush.bf16.msra.mxu0 0
        %3196 = vmatpush.bf16.msra.mxu0 0
        %3197 = vmatpush.bf16.msra.mxu0 0
        %3198 = vmatpush.bf16.msra.mxu0 0
        %3199 = vmatpush.bf16.msra.mxu0 0
        %3200 = vmatpush.bf16.msra.mxu0 0
        %3201 = vmatpush.bf16.msra.mxu0 0
        %3202 = vmatpush.bf16.msra.mxu0 %v2818
        %3203 = vmatmul.bf16.gmra.mxu0 %v2998
        %v3204 = vpop.f32.mrf.mxu0
        %v3205 = vadd.f32 %v3192, %v3204
        %v3206 = vpop.f32.mrf.mxu0
        %3207 = vdwg.mxu0
        %3208 = vmatpush.bf16.msra.mxu0 %v2700
        %3209 = vmatpush.bf16.msra.mxu0 %v2693
        %3210 = vmatpush.bf16.msra.mxu0 %v2686
        %3211 = vmatpush.bf16.msra.mxu0 %v2679
        %3212 = vmatpush.bf16.msra.mxu0 %v2672
        %3213 = vmatpush.bf16.msra.mxu0 %v2665
        %3214 = vmatpush.bf16.msra.mxu0 %v2658
        %3215 = vmatpush.bf16.msra.mxu0 %v2651
        %3216 = vmatmul.bf16.gmra.mxu0 %v2090
        %v3217 = vpop.f32.mrf.mxu0
        %v3218 = vadd.f32 %v1983, %v3217
        %v3219 = vpop.f32.mrf.mxu0
        %3220 = vdwg.mxu0
        %3221 = vmatpush.bf16.msra.mxu0 %v2756
        %3222 = vmatpush.bf16.msra.mxu0 %v2749
        %3223 = vmatpush.bf16.msra.mxu0 %v2742
        %3224 = vmatpush.bf16.msra.mxu0 %v2735
        %3225 = vmatpush.bf16.msra.mxu0 %v2728
        %3226 = vmatpush.bf16.msra.mxu0 %v2721
        %3227 = vmatpush.bf16.msra.mxu0 %v2714
        %3228 = vmatpush.bf16.msra.mxu0 %v2707
        %3229 = vmatmul.bf16.gmra.mxu0 %v2091
        %v3230 = vpop.f32.mrf.mxu0
        %v3231 = vadd.f32 %v3218, %v3230
        %v3232 = vpop.f32.mrf.mxu0
        %3233 = vdwg.mxu0
        %3234 = vmatpush.bf16.msra.mxu0 %v2812
        %3235 = vmatpush.bf16.msra.mxu0 %v2805
        %3236 = vmatpush.bf16.msra.mxu0 %v2798
        %3237 = vmatpush.bf16.msra.mxu0 %v2791
        %3238 = vmatpush.bf16.msra.mxu0 %v2784
        %3239 = vmatpush.bf16.msra.mxu0 %v2777
        %3240 = vmatpush.bf16.msra.mxu0 %v2770
        %3241 = vmatpush.bf16.msra.mxu0 %v2763
        %3242 = vmatmul.bf16.gmra.mxu0 %v2092
        %v3243 = vpop.f32.mrf.mxu0
        %v3244 = vadd.f32 %v3231, %v3243
        %v3245 = vpop.f32.mrf.mxu0
        %3246 = vdwg.mxu0
        %3247 = vmatpush.bf16.msra.mxu0 0
        %3248 = vmatpush.bf16.msra.mxu0 0
        %3249 = vmatpush.bf16.msra.mxu0 0
        %3250 = vmatpush.bf16.msra.mxu0 0
        %3251 = vmatpush.bf16.msra.mxu0 0
        %3252 = vmatpush.bf16.msra.mxu0 0
        %3253 = vmatpush.bf16.msra.mxu0 0
        %3254 = vmatpush.bf16.msra.mxu0 %v2819
        %3255 = vmatmul.bf16.gmra.mxu0 %v2998
        %v3256 = vpop.f32.mrf.mxu0
        %v3257 = vadd.f32 %v3244, %v3256
        %v3258 = vpop.f32.mrf.mxu0
        %3259 = vdwg.mxu0
        %3260 = vmatpush.bf16.msra.mxu0 %v2701
        %3261 = vmatpush.bf16.msra.mxu0 %v2694
        %3262 = vmatpush.bf16.msra.mxu0 %v2687
        %3263 = vmatpush.bf16.msra.mxu0 %v2680
        %3264 = vmatpush.bf16.msra.mxu0 %v2673
        %3265 = vmatpush.bf16.msra.mxu0 %v2666
        %3266 = vmatpush.bf16.msra.mxu0 %v2659
        %3267 = vmatpush.bf16.msra.mxu0 %v2652
        %3268 = vmatmul.bf16.gmra.mxu0 %v2090
        %v3269 = vpop.f32.mrf.mxu0
        %v3270 = vadd.f32 %v2035, %v3269
        %v3271 = vpop.f32.mrf.mxu0
        %3272 = vdwg.mxu0
        %3273 = vmatpush.bf16.msra.mxu0 %v2757
        %3274 = vmatpush.bf16.msra.mxu0 %v2750
        %3275 = vmatpush.bf16.msra.mxu0 %v2743
        %3276 = vmatpush.bf16.msra.mxu0 %v2736
        %3277 = vmatpush.bf16.msra.mxu0 %v2729
        %3278 = vmatpush.bf16.msra.mxu0 %v2722
        %3279 = vmatpush.bf16.msra.mxu0 %v2715
        %3280 = vmatpush.bf16.msra.mxu0 %v2708
        %3281 = vmatmul.bf16.gmra.mxu0 %v2091
        %v3282 = vpop.f32.mrf.mxu0
        %v3283 = vadd.f32 %v3270, %v3282
        %v3284 = vpop.f32.mrf.mxu0
        %3285 = vdwg.mxu0
        %3286 = vmatpush.bf16.msra.mxu0 %v2813
        %3287 = vmatpush.bf16.msra.mxu0 %v2806
        %3288 = vmatpush.bf16.msra.mxu0 %v2799
        %3289 = vmatpush.bf16.msra.mxu0 %v2792
        %3290 = vmatpush.bf16.msra.mxu0 %v2785
        %3291 = vmatpush.bf16.msra.mxu0 %v2778
        %3292 = vmatpush.bf16.msra.mxu0 %v2771
        %3293 = vmatpush.bf16.msra.mxu0 %v2764
        %3294 = vmatmul.bf16.gmra.mxu0 %v2092
        %v3295 = vpop.f32.mrf.mxu0
        %v3296 = vadd.f32 %v3283, %v3295
        %v3297 = vpop.f32.mrf.mxu0
        %3298 = vdwg.mxu0
        %3299 = vmatpush.bf16.msra.mxu0 0
        %3300 = vmatpush.bf16.msra.mxu0 0
        %3301 = vmatpush.bf16.msra.mxu0 0
        %3302 = vmatpush.bf16.msra.mxu0 0
        %3303 = vmatpush.bf16.msra.mxu0 0
        %3304 = vmatpush.bf16.msra.mxu0 0
        %3305 = vmatpush.bf16.msra.mxu0 0
        %3306 = vmatpush.bf16.msra.mxu0 %v2820
        %3307 = vmatmul.bf16.gmra.mxu0 %v2998
        %v3308 = vpop.f32.mrf.mxu0
        %v3309 = vadd.f32 %v3296, %v3308
        %v3310 = vpop.f32.mrf.mxu0
        %3311 = vdwg.mxu0
        %3312 = vmatpush.bf16.msra.mxu0 %v2702
        %3313 = vmatpush.bf16.msra.mxu0 %v2695
        %3314 = vmatpush.bf16.msra.mxu0 %v2688
        %3315 = vmatpush.bf16.msra.mxu0 %v2681
        %3316 = vmatpush.bf16.msra.mxu0 %v2674
        %3317 = vmatpush.bf16.msra.mxu0 %v2667
        %3318 = vmatpush.bf16.msra.mxu0 %v2660
        %3319 = vmatpush.bf16.msra.mxu0 %v2653
        %3320 = vmatmul.bf16.gmra.mxu0 %v2090
        %v3321 = vpop.f32.mrf.mxu0
        %v3322 = vadd.f32 %v2087, %v3321
        %v3323 = vpop.f32.mrf.mxu0
        %3324 = vdwg.mxu0
        %3325 = vmatpush.bf16.msra.mxu0 %v2758
        %3326 = vmatpush.bf16.msra.mxu0 %v2751
        %3327 = vmatpush.bf16.msra.mxu0 %v2744
        %3328 = vmatpush.bf16.msra.mxu0 %v2737
        %3329 = vmatpush.bf16.msra.mxu0 %v2730
        %3330 = vmatpush.bf16.msra.mxu0 %v2723
        %3331 = vmatpush.bf16.msra.mxu0 %v2716
        %3332 = vmatpush.bf16.msra.mxu0 %v2709
        %3333 = vmatmul.bf16.gmra.mxu0 %v2091
        %v3334 = vpop.f32.mrf.mxu0
        %v3335 = vadd.f32 %v3322, %v3334
        %v3336 = vpop.f32.mrf.mxu0
        %3337 = vdwg.mxu0
        %3338 = vmatpush.bf16.msra.mxu0 %v2814
        %3339 = vmatpush.bf16.msra.mxu0 %v2807
        %3340 = vmatpush.bf16.msra.mxu0 %v2800
        %3341 = vmatpush.bf16.msra.mxu0 %v2793
        %3342 = vmatpush.bf16.msra.mxu0 %v2786
        %3343 = vmatpush.bf16.msra.mxu0 %v2779
        %3344 = vmatpush.bf16.msra.mxu0 %v2772
        %3345 = vmatpush.bf16.msra.mxu0 %v2765
        %3346 = vmatmul.bf16.gmra.mxu0 %v2092
        %v3347 = vpop.f32.mrf.mxu0
        %v3348 = vadd.f32 %v3335, %v3347
        %v3349 = vpop.f32.mrf.mxu0
        %3350 = vdwg.mxu0
        %3351 = vmatpush.bf16.msra.mxu0 0
        %3352 = vmatpush.bf16.msra.mxu0 0
        %3353 = vmatpush.bf16.msra.mxu0 0
        %3354 = vmatpush.bf16.msra.mxu0 0
        %3355 = vmatpush.bf16.msra.mxu0 0
        %3356 = vmatpush.bf16.msra.mxu0 0
        %3357 = vmatpush.bf16.msra.mxu0 0
        %3358 = vmatpush.bf16.msra.mxu0 %v2821
        %3359 = vmatmul.bf16.gmra.mxu0 %v2998
        %v3360 = vpop.f32.mrf.mxu0
        %v3361 = vadd.f32 %v3348, %v3360
        %v3362 = vpop.f32.mrf.mxu0
        %3363 = vdwg.mxu0
        %v3364 = vld [vmem:[%s368] sm:$0xee]
        %v3365 = vld [vmem:[%s368 + $0x8] sm:$0xee]
        %s3366 = scalar_lea.vmem [#allocation3], 2800
        %v3367 = vld [vmem:[%s3366] sm:$0xff]
        %v3368 = vld [vmem:[%s3366 + $0x8] sm:$0xff]
        %v3369 = vld [vmem:[%s3366 + $0x10] sm:$0xff]
        %v3370 = vld [vmem:[%s3366 + $0x18] sm:$0xf]
        %v3371 = vld [vmem:[%s3366 + $0x1c] sm:$0xff]
        %v3372 = vld [vmem:[%s3366 + $0x24] sm:$0xff]
        %v3373 = vld [vmem:[%s3366 + $0x2c] sm:$0xff]
        %v3374 = vld [vmem:[%s3366 + $0x34] sm:$0xf]
        %v3375 = vld [vmem:[%s3366 + $0x38] sm:$0xff]
        %v3376 = vld [vmem:[%s3366 + $0x40] sm:$0xff]
        %v3377 = vld [vmem:[%s3366 + $0x48] sm:$0xff]
        %v3378 = vld [vmem:[%s3366 + $0x50] sm:$0xf]
        %v3379 = vld [vmem:[%s3366 + $0x54] sm:$0xff]
        %v3380 = vld [vmem:[%s3366 + $0x5c] sm:$0xff]
        %v3381 = vld [vmem:[%s3366 + $0x64] sm:$0xff]
        %v3382 = vld [vmem:[%s3366 + $0x6c] sm:$0xf]
        %v3383 = vld [vmem:[%s3366 + $0x70] sm:$0xff]
        %v3384 = vld [vmem:[%s3366 + $0x78] sm:$0xff]
        %v3385 = vld [vmem:[%s3366 + $0x80] sm:$0xff]
        %v3386 = vld [vmem:[%s3366 + $0x88] sm:$0xf]
        %v3387 = vld [vmem:[%s3366 + $0x8c] sm:$0xff]
        %v3388 = vld [vmem:[%s3366 + $0x94] sm:$0xff]
        %v3389 = vld [vmem:[%s3366 + $0x9c] sm:$0xff]
        %v3390 = vld [vmem:[%s3366 + $0xa4] sm:$0xf]
        %v3391 = vld [vmem:[%s3366 + $0xa8] sm:$0xff]
        %v3392 = vld [vmem:[%s3366 + $0xb0] sm:$0xff]
        %v3393 = vld [vmem:[%s3366 + $0xb8] sm:$0xff]
        %v3394 = vld [vmem:[%s3366 + $0xc0] sm:$0xf]
        %v3395 = vld [vmem:[%s3366 + $0xc4] sm:$0xff]
        %v3396 = vld [vmem:[%s3366 + $0xcc] sm:$0xff]
        %v3397 = vld [vmem:[%s3366 + $0xd4] sm:$0xff]
        %v3398 = vld [vmem:[%s3366 + $0xdc] sm:$0xf]
        %v3399 = vld [vmem:[%s3366 + $0xe0] sm:$0xff]
        %v3400 = vld [vmem:[%s3366 + $0xe8] sm:$0xff]
        %v3401 = vld [vmem:[%s3366 + $0xf0] sm:$0xff]
        %v3402 = vld [vmem:[%s3366 + $0xf8] sm:$0xf]
        %v3403 = vld [vmem:[%s3366 + $0xfc] sm:$0xff]
        %v3404 = vld [vmem:[%s3366 + $0x104] sm:$0xff]
        %v3405 = vld [vmem:[%s3366 + $0x10c] sm:$0xff]
        %v3406 = vld [vmem:[%s3366 + $0x114] sm:$0xf]
        %v3407 = vld [vmem:[%s3366 + $0x118] sm:$0xff]
        %v3408 = vld [vmem:[%s3366 + $0x120] sm:$0xff]
        %v3409 = vld [vmem:[%s3366 + $0x128] sm:$0xff]
        %v3410 = vld [vmem:[%s3366 + $0x130] sm:$0xf]
        %v3411 = vld [vmem:[%s3366 + $0x134] sm:$0xff]
        %v3412 = vld [vmem:[%s3366 + $0x13c] sm:$0xff]
        %v3413 = vld [vmem:[%s3366 + $0x144] sm:$0xff]
        %v3414 = vld [vmem:[%s3366 + $0x14c] sm:$0xf]
        %v3415 = vld [vmem:[%s3366 + $0x150] sm:$0xff]
        %v3416 = vld [vmem:[%s3366 + $0x158] sm:$0xff]
        %v3417 = vld [vmem:[%s3366 + $0x160] sm:$0xff]
        %v3418 = vld [vmem:[%s3366 + $0x168] sm:$0xf]
        %v3419 = vld [vmem:[%s3366 + $0x16c] sm:$0xff]
        %v3420 = vld [vmem:[%s3366 + $0x174] sm:$0xff]
        %v3421 = vld [vmem:[%s3366 + $0x17c] sm:$0xff]
        %v3422 = vld [vmem:[%s3366 + $0x184] sm:$0xf]
        %v3423 = vld [vmem:[%s3366 + $0x188] sm:$0xff]
        %v3424 = vld [vmem:[%s3366 + $0x190] sm:$0xff]
        %v3425 = vld [vmem:[%s3366 + $0x198] sm:$0xff]
        %v3426 = vld [vmem:[%s3366 + $0x1a0] sm:$0xf]
        %v3427 = vld [vmem:[%s3366 + $0x1a4] sm:$0xff]
        %v3428 = vld [vmem:[%s3366 + $0x1ac] sm:$0xff]
        %v3429 = vld [vmem:[%s3366 + $0x1b4] sm:$0xff]
        %v3430 = vld [vmem:[%s3366 + $0x1bc] sm:$0xf]
        %v3431 = vld [vmem:[%s3366 + $0x1c0] sm:$0xff]
        %v3432 = vld [vmem:[%s3366 + $0x1c8] sm:$0xff]
        %v3433 = vld [vmem:[%s3366 + $0x1d0] sm:$0xff]
        %v3434 = vld [vmem:[%s3366 + $0x1d8] sm:$0xf]
        %v3435 = vld [vmem:[%s3366 + $0x1dc] sm:$0xff]
        %v3436 = vld [vmem:[%s3366 + $0x1e4] sm:$0xff]
        %v3437 = vld [vmem:[%s3366 + $0x1ec] sm:$0xff]
        %v3438 = vld [vmem:[%s3366 + $0x1f4] sm:$0xf]
        %v3439 = vld [vmem:[%s3366 + $0x1f8] sm:$0xff]
        %v3440 = vld [vmem:[%s3366 + $0x200] sm:$0xff]
        %v3441 = vld [vmem:[%s3366 + $0x208] sm:$0xff]
        %v3442 = vld [vmem:[%s3366 + $0x210] sm:$0xf]
        %v3443 = vld [vmem:[%s3366 + $0x214] sm:$0xff]
        %v3444 = vld [vmem:[%s3366 + $0x21c] sm:$0xff]
        %v3445 = vld [vmem:[%s3366 + $0x224] sm:$0xff]
        %v3446 = vld [vmem:[%s3366 + $0x22c] sm:$0xf]
        %v3447 = vld [vmem:[%s3366 + $0x230] sm:$0xff]
        %v3448 = vld [vmem:[%s3366 + $0x238] sm:$0xff]
        %v3449 = vld [vmem:[%s3366 + $0x240] sm:$0xff]
        %v3450 = vld [vmem:[%s3366 + $0x248] sm:$0xf]
        %v3451 = vld [vmem:[%s3366 + $0x24c] sm:$0xff]
        %v3452 = vld [vmem:[%s3366 + $0x254] sm:$0xff]
        %v3453 = vld [vmem:[%s3366 + $0x25c] sm:$0xff]
        %v3454 = vld [vmem:[%s3366 + $0x264] sm:$0xf]
        %v3455 = vld [vmem:[%s3366 + $0x268] sm:$0xff]
        %v3456 = vld [vmem:[%s3366 + $0x270] sm:$0xff]
        %v3457 = vld [vmem:[%s3366 + $0x278] sm:$0xff]
        %v3458 = vld [vmem:[%s3366 + $0x280] sm:$0xf]
        %v3459 = vld [vmem:[%s3366 + $0x284] sm:$0xff]
        %v3460 = vld [vmem:[%s3366 + $0x28c] sm:$0xff]
        %v3461 = vld [vmem:[%s3366 + $0x294] sm:$0xff]
        %v3462 = vld [vmem:[%s3366 + $0x29c] sm:$0xf]
        %v3463 = vld [vmem:[%s3366 + $0x2a0] sm:$0xff]
        %v3464 = vld [vmem:[%s3366 + $0x2a8] sm:$0xff]
        %v3465 = vld [vmem:[%s3366 + $0x2b0] sm:$0xff]
        %v3466 = vld [vmem:[%s3366 + $0x2b8] sm:$0xf]
        %v3467 = vld [vmem:[%s3366 + $0x2bc] sm:$0xff]
        %v3468 = vld [vmem:[%s3366 + $0x2c4] sm:$0xff]
        %v3469 = vld [vmem:[%s3366 + $0x2cc] sm:$0xff]
        %v3470 = vld [vmem:[%s3366 + $0x2d4] sm:$0xf]
        %v3471 = vld [vmem:[%s3366 + $0x2d8] sm:$0xff]
        %v3472 = vld [vmem:[%s3366 + $0x2e0] sm:$0xff]
        %v3473 = vld [vmem:[%s3366 + $0x2e8] sm:$0xff]
        %v3474 = vld [vmem:[%s3366 + $0x2f0] sm:$0xf]
        %v3475 = vld [vmem:[%s3366 + $0x2f4] sm:$0xff]
        %v3476 = vld [vmem:[%s3366 + $0x2fc] sm:$0xff]
        %v3477 = vld [vmem:[%s3366 + $0x304] sm:$0xff]
        %v3478 = vld [vmem:[%s3366 + $0x30c] sm:$0xf]
        %v3479 = vld [vmem:[%s3366 + $0x310] sm:$0xff]
        %v3480 = vld [vmem:[%s3366 + $0x318] sm:$0xff]
        %v3481 = vld [vmem:[%s3366 + $0x320] sm:$0xff]
        %v3482 = vld [vmem:[%s3366 + $0x328] sm:$0xf]
        %v3483 = vld [vmem:[%s3366 + $0x32c] sm:$0xff]
        %v3484 = vld [vmem:[%s3366 + $0x334] sm:$0xff]
        %v3485 = vld [vmem:[%s3366 + $0x33c] sm:$0xff]
        %v3486 = vld [vmem:[%s3366 + $0x344] sm:$0xf]
        %v3487 = vld [vmem:[%s3366 + $0x348] sm:$0xff]
        %v3488 = vld [vmem:[%s3366 + $0x350] sm:$0xff]
        %v3489 = vld [vmem:[%s3366 + $0x358] sm:$0xff]
        %v3490 = vld [vmem:[%s3366 + $0x360] sm:$0xf]
        %v3491 = vld [vmem:[%s3366 + $0x364] sm:$0xff]
        %v3492 = vld [vmem:[%s3366 + $0x36c] sm:$0xff]
        %v3493 = vld [vmem:[%s3366 + $0x374] sm:$0xff]
        %v3494 = vld [vmem:[%s3366 + $0x37c] sm:$0xf]
        %v3495 = vld [vmem:[%s3366 + $0x380] sm:$0xff]
        %v3496 = vld [vmem:[%s3366 + $0x388] sm:$0xff]
        %v3497 = vld [vmem:[%s3366 + $0x390] sm:$0xff]
        %v3498 = vld [vmem:[%s3366 + $0x398] sm:$0xf]
        %v3499 = vld [vmem:[%s3366 + $0x39c] sm:$0xff]
        %v3500 = vld [vmem:[%s3366 + $0x3a4] sm:$0xff]
        %v3501 = vld [vmem:[%s3366 + $0x3ac] sm:$0xff]
        %v3502 = vld [vmem:[%s3366 + $0x3b4] sm:$0xf]
        %v3503 = vld [vmem:[%s3366 + $0x3b8] sm:$0xff]
        %v3504 = vld [vmem:[%s3366 + $0x3c0] sm:$0xff]
        %v3505 = vld [vmem:[%s3366 + $0x3c8] sm:$0xff]
        %v3506 = vld [vmem:[%s3366 + $0x3d0] sm:$0xf]
        %v3507 = vld [vmem:[%s3366 + $0x3d4] sm:$0xff]
        %v3508 = vld [vmem:[%s3366 + $0x3dc] sm:$0xff]
        %v3509 = vld [vmem:[%s3366 + $0x3e4] sm:$0xff]
        %v3510 = vld [vmem:[%s3366 + $0x3ec] sm:$0xf]
        %v3511 = vld [vmem:[%s3366 + $0x3f0] sm:$0xff]
        %v3512 = vld [vmem:[%s3366 + $0x3f8] sm:$0xff]
        %v3513 = vld [vmem:[%s3366 + $0x400] sm:$0xff]
        %v3514 = vld [vmem:[%s3366 + $0x408] sm:$0xf]
        %v3515 = vld [vmem:[%s3366 + $0x40c] sm:$0xff]
        %v3516 = vld [vmem:[%s3366 + $0x414] sm:$0xff]
        %v3517 = vld [vmem:[%s3366 + $0x41c] sm:$0xff]
        %v3518 = vld [vmem:[%s3366 + $0x424] sm:$0xf]
        %v3519 = vld [vmem:[%s3366 + $0x428] sm:$0xff]
        %v3520 = vld [vmem:[%s3366 + $0x430] sm:$0xff]
        %v3521 = vld [vmem:[%s3366 + $0x438] sm:$0xff]
        %v3522 = vld [vmem:[%s3366 + $0x440] sm:$0xf]
        %v3523 = vld [vmem:[%s3366 + $0x444] sm:$0xff]
        %v3524 = vld [vmem:[%s3366 + $0x44c] sm:$0xff]
        %v3525 = vld [vmem:[%s3366 + $0x454] sm:$0xff]
        %v3526 = vld [vmem:[%s3366 + $0x45c] sm:$0xf]
        %v3527 = vld [vmem:[%s3366 + $0x460] sm:$0xff]
        %v3528 = vld [vmem:[%s3366 + $0x468] sm:$0xff]
        %v3529 = vld [vmem:[%s3366 + $0x470] sm:$0xff]
        %v3530 = vld [vmem:[%s3366 + $0x478] sm:$0xf]
        %v3531 = vld [vmem:[%s3366 + $0x47c] sm:$0xff]
        %v3532 = vld [vmem:[%s3366 + $0x484] sm:$0xff]
        %v3533 = vld [vmem:[%s3366 + $0x48c] sm:$0xff]
        %v3534 = vld [vmem:[%s3366 + $0x494] sm:$0xf]
        %v3535 = vld [vmem:[%s3366 + $0x498] sm:$0xff]
        %v3536 = vld [vmem:[%s3366 + $0x4a0] sm:$0xff]
        %v3537 = vld [vmem:[%s3366 + $0x4a8] sm:$0xff]
        %v3538 = vld [vmem:[%s3366 + $0x4b0] sm:$0xf]
        %v3539 = vld [vmem:[%s3366 + $0x4b4] sm:$0xff]
        %v3540 = vld [vmem:[%s3366 + $0x4bc] sm:$0xff]
        %v3541 = vld [vmem:[%s3366 + $0x4c4] sm:$0xff]
        %v3542 = vld [vmem:[%s3366 + $0x4cc] sm:$0xf]
        %v3543 = vld [vmem:[%s3366 + $0x4d0] sm:$0xff]
        %v3544 = vld [vmem:[%s3366 + $0x4d8] sm:$0xff]
        %v3545 = vld [vmem:[%s3366 + $0x4e0] sm:$0xff]
        %v3546 = vld [vmem:[%s3366 + $0x4e8] sm:$0xf]
        %v3547 = vld [vmem:[%s3366 + $0x4ec] sm:$0xff]
        %v3548 = vld [vmem:[%s3366 + $0x4f4] sm:$0xff]
        %v3549 = vld [vmem:[%s3366 + $0x4fc] sm:$0xff]
        %v3550 = vld [vmem:[%s3366 + $0x504] sm:$0xf]
        %v3551 = vld [vmem:[%s3366 + $0x508] sm:$0xff]
        %v3552 = vld [vmem:[%s3366 + $0x510] sm:$0xff]
        %v3553 = vld [vmem:[%s3366 + $0x518] sm:$0xff]
        %v3554 = vld [vmem:[%s3366 + $0x520] sm:$0xf]
        %v3555 = vld [vmem:[%s3366 + $0x524] sm:$0xff]
        %v3556 = vld [vmem:[%s3366 + $0x52c] sm:$0xff]
        %v3557 = vld [vmem:[%s3366 + $0x534] sm:$0xff]
        %v3558 = vld [vmem:[%s3366 + $0x53c] sm:$0xf]
        %v3559 = vld [vmem:[%s3366 + $0x540] sm:$0xff]
        %v3560 = vld [vmem:[%s3366 + $0x548] sm:$0xff]
        %v3561 = vld [vmem:[%s3366 + $0x550] sm:$0xff]
        %v3562 = vld [vmem:[%s3366 + $0x558] sm:$0xf]
        %v3563 = vld [vmem:[%s3366 + $0x55c] sm:$0xff]
        %v3564 = vld [vmem:[%s3366 + $0x564] sm:$0xff]
        %v3565 = vld [vmem:[%s3366 + $0x56c] sm:$0xff]
        %v3566 = vld [vmem:[%s3366 + $0x574] sm:$0xf]
        %v3569 = vunpack.c.l.b16 %v3364
        %v3570 = vunpack.c.h.b16 %v3364
        %v3571 = vunpack.c.l.b16 %v3365
        %v3572 = vunpack.c.h.b16 %v3365
        %v3573 = vpack.c.b16 %v783, %v3569
        %v3574 = vpack.c.b16 %v784, %v3570
        %v3575 = vpack.c.b16 %v785, %v3571
        %v3576 = vpack.c.b16 %v786, %v3572
        %v3577 = vrot.slane %v3573, 1
        %v3578 = vrot.slane %v3574, 1
        %v3579 = vrot.slane %v3575, 1
        %v3580 = vrot.slane %v3576, 1
        %v3784 = vunpack.c.l.b16 %v3367
        %v3785 = vunpack.c.h.b16 %v3367
        %v3786 = vunpack.c.l.b16 %v3368
        %v3787 = vunpack.c.h.b16 %v3368
        %v3788 = vunpack.c.l.b16 %v3369
        %v3789 = vunpack.c.h.b16 %v3369
        %v3790 = vunpack.c.l.b16 %v3370
        %v3791 = vunpack.c.l.b16 %v3371
        %v3792 = vunpack.c.h.b16 %v3371
        %v3793 = vunpack.c.l.b16 %v3372
        %v3794 = vunpack.c.h.b16 %v3372
        %v3795 = vunpack.c.l.b16 %v3373
        %v3796 = vunpack.c.h.b16 %v3373
        %v3797 = vunpack.c.l.b16 %v3374
        %v3798 = vunpack.c.l.b16 %v3375
        %v3799 = vunpack.c.h.b16 %v3375
        %v3800 = vunpack.c.l.b16 %v3376
        %v3801 = vunpack.c.h.b16 %v3376
        %v3802 = vunpack.c.l.b16 %v3377
        %v3803 = vunpack.c.h.b16 %v3377
        %v3804 = vunpack.c.l.b16 %v3378
        %v3805 = vunpack.c.l.b16 %v3379
        %v3806 = vunpack.c.h.b16 %v3379
        %v3807 = vunpack.c.l.b16 %v3380
        %v3808 = vunpack.c.h.b16 %v3380
        %v3809 = vunpack.c.l.b16 %v3381
        %v3810 = vunpack.c.h.b16 %v3381
        %v3811 = vunpack.c.l.b16 %v3382
        %v3812 = vunpack.c.l.b16 %v3383
        %v3813 = vunpack.c.h.b16 %v3383
        %v3814 = vunpack.c.l.b16 %v3384
        %v3815 = vunpack.c.h.b16 %v3384
        %v3816 = vunpack.c.l.b16 %v3385
        %v3817 = vunpack.c.h.b16 %v3385
        %v3818 = vunpack.c.l.b16 %v3386
        %v3819 = vunpack.c.l.b16 %v3387
        %v3820 = vunpack.c.h.b16 %v3387
        %v3821 = vunpack.c.l.b16 %v3388
        %v3822 = vunpack.c.h.b16 %v3388
        %v3823 = vunpack.c.l.b16 %v3389
        %v3824 = vunpack.c.h.b16 %v3389
        %v3825 = vunpack.c.l.b16 %v3390
        %v3826 = vunpack.c.l.b16 %v3391
        %v3827 = vunpack.c.h.b16 %v3391
        %v3828 = vunpack.c.l.b16 %v3392
        %v3829 = vunpack.c.h.b16 %v3392
        %v3830 = vunpack.c.l.b16 %v3393
        %v3831 = vunpack.c.h.b16 %v3393
        %v3832 = vunpack.c.l.b16 %v3394
        %v3833 = vunpack.c.l.b16 %v3395
        %v3834 = vunpack.c.h.b16 %v3395
        %v3835 = vunpack.c.l.b16 %v3396
        %v3836 = vunpack.c.h.b16 %v3396
        %v3837 = vunpack.c.l.b16 %v3397
        %v3838 = vunpack.c.h.b16 %v3397
        %v3839 = vunpack.c.l.b16 %v3398
        %v3840 = vunpack.c.l.b16 %v3399
        %v3841 = vunpack.c.h.b16 %v3399
        %v3842 = vunpack.c.l.b16 %v3400
        %v3843 = vunpack.c.h.b16 %v3400
        %v3844 = vunpack.c.l.b16 %v3401
        %v3845 = vunpack.c.h.b16 %v3401
        %v3846 = vunpack.c.l.b16 %v3402
        %v3847 = vunpack.c.l.b16 %v3403
        %v3848 = vunpack.c.h.b16 %v3403
        %v3849 = vunpack.c.l.b16 %v3404
        %v3850 = vunpack.c.h.b16 %v3404
        %v3851 = vunpack.c.l.b16 %v3405
        %v3852 = vunpack.c.h.b16 %v3405
        %v3853 = vunpack.c.l.b16 %v3406
        %v3854 = vunpack.c.l.b16 %v3407
        %v3855 = vunpack.c.h.b16 %v3407
        %v3856 = vunpack.c.l.b16 %v3408
        %v3857 = vunpack.c.h.b16 %v3408
        %v3858 = vunpack.c.l.b16 %v3409
        %v3859 = vunpack.c.h.b16 %v3409
        %v3860 = vunpack.c.l.b16 %v3410
        %v3861 = vunpack.c.l.b16 %v3411
        %v3862 = vunpack.c.h.b16 %v3411
        %v3863 = vunpack.c.l.b16 %v3412
        %v3864 = vunpack.c.h.b16 %v3412
        %v3865 = vunpack.c.l.b16 %v3413
        %v3866 = vunpack.c.h.b16 %v3413
        %v3867 = vunpack.c.l.b16 %v3414
        %v3868 = vunpack.c.l.b16 %v3415
        %v3869 = vunpack.c.h.b16 %v3415
        %v3870 = vunpack.c.l.b16 %v3416
        %v3871 = vunpack.c.h.b16 %v3416
        %v3872 = vunpack.c.l.b16 %v3417
        %v3873 = vunpack.c.h.b16 %v3417
        %v3874 = vunpack.c.l.b16 %v3418
        %v3875 = vunpack.c.l.b16 %v3419
        %v3876 = vunpack.c.h.b16 %v3419
        %v3877 = vunpack.c.l.b16 %v3420
        %v3878 = vunpack.c.h.b16 %v3420
        %v3879 = vunpack.c.l.b16 %v3421
        %v3880 = vunpack.c.h.b16 %v3421
        %v3881 = vunpack.c.l.b16 %v3422
        %v3882 = vunpack.c.l.b16 %v3423
        %v3883 = vunpack.c.h.b16 %v3423
        %v3884 = vunpack.c.l.b16 %v3424
        %v3885 = vunpack.c.h.b16 %v3424
        %v3886 = vunpack.c.l.b16 %v3425
        %v3887 = vunpack.c.h.b16 %v3425
        %v3888 = vunpack.c.l.b16 %v3426
        %v3889 = vunpack.c.l.b16 %v3427
        %v3890 = vunpack.c.h.b16 %v3427
        %v3891 = vunpack.c.l.b16 %v3428
        %v3892 = vunpack.c.h.b16 %v3428
        %v3893 = vunpack.c.l.b16 %v3429
        %v3894 = vunpack.c.h.b16 %v3429
        %v3895 = vunpack.c.l.b16 %v3430
        %v3896 = vunpack.c.l.b16 %v3431
        %v3897 = vunpack.c.h.b16 %v3431
        %v3898 = vunpack.c.l.b16 %v3432
        %v3899 = vunpack.c.h.b16 %v3432
        %v3900 = vunpack.c.l.b16 %v3433
        %v3901 = vunpack.c.h.b16 %v3433
        %v3902 = vunpack.c.l.b16 %v3434
        %v3903 = vunpack.c.l.b16 %v3435
        %v3904 = vunpack.c.h.b16 %v3435
        %v3905 = vunpack.c.l.b16 %v3436
        %v3906 = vunpack.c.h.b16 %v3436
        %v3907 = vunpack.c.l.b16 %v3437
        %v3908 = vunpack.c.h.b16 %v3437
        %v3909 = vunpack.c.l.b16 %v3438
        %v3910 = vunpack.c.l.b16 %v3439
        %v3911 = vunpack.c.h.b16 %v3439
        %v3912 = vunpack.c.l.b16 %v3440
        %v3913 = vunpack.c.h.b16 %v3440
        %v3914 = vunpack.c.l.b16 %v3441
        %v3915 = vunpack.c.h.b16 %v3441
        %v3916 = vunpack.c.l.b16 %v3442
        %v3917 = vunpack.c.l.b16 %v3443
        %v3918 = vunpack.c.h.b16 %v3443
        %v3919 = vunpack.c.l.b16 %v3444
        %v3920 = vunpack.c.h.b16 %v3444
        %v3921 = vunpack.c.l.b16 %v3445
        %v3922 = vunpack.c.h.b16 %v3445
        %v3923 = vunpack.c.l.b16 %v3446
        %v3924 = vunpack.c.l.b16 %v3447
        %v3925 = vunpack.c.h.b16 %v3447
        %v3926 = vunpack.c.l.b16 %v3448
        %v3927 = vunpack.c.h.b16 %v3448
        %v3928 = vunpack.c.l.b16 %v3449
        %v3929 = vunpack.c.h.b16 %v3449
        %v3930 = vunpack.c.l.b16 %v3450
        %v3931 = vunpack.c.l.b16 %v3451
        %v3932 = vunpack.c.h.b16 %v3451
        %v3933 = vunpack.c.l.b16 %v3452
        %v3934 = vunpack.c.h.b16 %v3452
        %v3935 = vunpack.c.l.b16 %v3453
        %v3936 = vunpack.c.h.b16 %v3453
        %v3937 = vunpack.c.l.b16 %v3454
        %v3938 = vunpack.c.l.b16 %v3455
        %v3939 = vunpack.c.h.b16 %v3455
        %v3940 = vunpack.c.l.b16 %v3456
        %v3941 = vunpack.c.h.b16 %v3456
        %v3942 = vunpack.c.l.b16 %v3457
        %v3943 = vunpack.c.h.b16 %v3457
        %v3944 = vunpack.c.l.b16 %v3458
        %v3945 = vunpack.c.l.b16 %v3459
        %v3946 = vunpack.c.h.b16 %v3459
        %v3947 = vunpack.c.l.b16 %v3460
        %v3948 = vunpack.c.h.b16 %v3460
        %v3949 = vunpack.c.l.b16 %v3461
        %v3950 = vunpack.c.h.b16 %v3461
        %v3951 = vunpack.c.l.b16 %v3462
        %v3952 = vunpack.c.l.b16 %v3463
        %v3953 = vunpack.c.h.b16 %v3463
        %v3954 = vunpack.c.l.b16 %v3464
        %v3955 = vunpack.c.h.b16 %v3464
        %v3956 = vunpack.c.l.b16 %v3465
        %v3957 = vunpack.c.h.b16 %v3465
        %v3958 = vunpack.c.l.b16 %v3466
        %v3959 = vunpack.c.l.b16 %v3467
        %v3960 = vunpack.c.h.b16 %v3467
        %v3961 = vunpack.c.l.b16 %v3468
        %v3962 = vunpack.c.h.b16 %v3468
        %v3963 = vunpack.c.l.b16 %v3469
        %v3964 = vunpack.c.h.b16 %v3469
        %v3965 = vunpack.c.l.b16 %v3470
        %v3966 = vunpack.c.l.b16 %v3471
        %v3967 = vunpack.c.h.b16 %v3471
        %v3968 = vunpack.c.l.b16 %v3472
        %v3969 = vunpack.c.h.b16 %v3472
        %v3970 = vunpack.c.l.b16 %v3473
        %v3971 = vunpack.c.h.b16 %v3473
        %v3972 = vunpack.c.l.b16 %v3474
        %v3973 = vunpack.c.l.b16 %v3475
        %v3974 = vunpack.c.h.b16 %v3475
        %v3975 = vunpack.c.l.b16 %v3476
        %v3976 = vunpack.c.h.b16 %v3476
        %v3977 = vunpack.c.l.b16 %v3477
        %v3978 = vunpack.c.h.b16 %v3477
        %v3979 = vunpack.c.l.b16 %v3478
        %v3980 = vunpack.c.l.b16 %v3479
        %v3981 = vunpack.c.h.b16 %v3479
        %v3982 = vunpack.c.l.b16 %v3480
        %v3983 = vunpack.c.h.b16 %v3480
        %v3984 = vunpack.c.l.b16 %v3481
        %v3985 = vunpack.c.h.b16 %v3481
        %v3986 = vunpack.c.l.b16 %v3482
        %v3987 = vunpack.c.l.b16 %v3483
        %v3988 = vunpack.c.h.b16 %v3483
        %v3989 = vunpack.c.l.b16 %v3484
        %v3990 = vunpack.c.h.b16 %v3484
        %v3991 = vunpack.c.l.b16 %v3485
        %v3992 = vunpack.c.h.b16 %v3485
        %v3993 = vunpack.c.l.b16 %v3486
        %v3994 = vunpack.c.l.b16 %v3487
        %v3995 = vunpack.c.h.b16 %v3487
        %v3996 = vunpack.c.l.b16 %v3488
        %v3997 = vunpack.c.h.b16 %v3488
        %v3998 = vunpack.c.l.b16 %v3489
        %v3999 = vunpack.c.h.b16 %v3489
        %v4000 = vunpack.c.l.b16 %v3490
        %v4001 = vunpack.c.l.b16 %v3491
        %v4002 = vunpack.c.h.b16 %v3491
        %v4003 = vunpack.c.l.b16 %v3492
        %v4004 = vunpack.c.h.b16 %v3492
        %v4005 = vunpack.c.l.b16 %v3493
        %v4006 = vunpack.c.h.b16 %v3493
        %v4007 = vunpack.c.l.b16 %v3494
        %v4008 = vunpack.c.l.b16 %v3495
        %v4009 = vunpack.c.h.b16 %v3495
        %v4010 = vunpack.c.l.b16 %v3496
        %v4011 = vunpack.c.h.b16 %v3496
        %v4012 = vunpack.c.l.b16 %v3497
        %v4013 = vunpack.c.h.b16 %v3497
        %v4014 = vunpack.c.l.b16 %v3498
        %v4015 = vunpack.c.l.b16 %v3499
        %v4016 = vunpack.c.h.b16 %v3499
        %v4017 = vunpack.c.l.b16 %v3500
        %v4018 = vunpack.c.h.b16 %v3500
        %v4019 = vunpack.c.l.b16 %v3501
        %v4020 = vunpack.c.h.b16 %v3501
        %v4021 = vunpack.c.l.b16 %v3502
        %v4022 = vunpack.c.l.b16 %v3503
        %v4023 = vunpack.c.h.b16 %v3503
        %v4024 = vunpack.c.l.b16 %v3504
        %v4025 = vunpack.c.h.b16 %v3504
        %v4026 = vunpack.c.l.b16 %v3505
        %v4027 = vunpack.c.h.b16 %v3505
        %v4028 = vunpack.c.l.b16 %v3506
        %v4029 = vunpack.c.l.b16 %v3507
        %v4030 = vunpack.c.h.b16 %v3507
        %v4031 = vunpack.c.l.b16 %v3508
        %v4032 = vunpack.c.h.b16 %v3508
        %v4033 = vunpack.c.l.b16 %v3509
        %v4034 = vunpack.c.h.b16 %v3509
        %v4035 = vunpack.c.l.b16 %v3510
        %v4036 = vunpack.c.l.b16 %v3511
        %v4037 = vunpack.c.h.b16 %v3511
        %v4038 = vunpack.c.l.b16 %v3512
        %v4039 = vunpack.c.h.b16 %v3512
        %v4040 = vunpack.c.l.b16 %v3513
        %v4041 = vunpack.c.h.b16 %v3513
        %v4042 = vunpack.c.l.b16 %v3514
        %v4043 = vunpack.c.l.b16 %v3515
        %v4044 = vunpack.c.h.b16 %v3515
        %v4045 = vunpack.c.l.b16 %v3516
        %v4046 = vunpack.c.h.b16 %v3516
        %v4047 = vunpack.c.l.b16 %v3517
        %v4048 = vunpack.c.h.b16 %v3517
        %v4049 = vunpack.c.l.b16 %v3518
        %v4050 = vunpack.c.l.b16 %v3519
        %v4051 = vunpack.c.h.b16 %v3519
        %v4052 = vunpack.c.l.b16 %v3520
        %v4053 = vunpack.c.h.b16 %v3520
        %v4054 = vunpack.c.l.b16 %v3521
        %v4055 = vunpack.c.h.b16 %v3521
        %v4056 = vunpack.c.l.b16 %v3522
        %v4057 = vunpack.c.l.b16 %v3523
        %v4058 = vunpack.c.h.b16 %v3523
        %v4059 = vunpack.c.l.b16 %v3524
        %v4060 = vunpack.c.h.b16 %v3524
        %v4061 = vunpack.c.l.b16 %v3525
        %v4062 = vunpack.c.h.b16 %v3525
        %v4063 = vunpack.c.l.b16 %v3526
        %v4064 = vunpack.c.l.b16 %v3527
        %v4065 = vunpack.c.h.b16 %v3527
        %v4066 = vunpack.c.l.b16 %v3528
        %v4067 = vunpack.c.h.b16 %v3528
        %v4068 = vunpack.c.l.b16 %v3529
        %v4069 = vunpack.c.h.b16 %v3529
        %v4070 = vunpack.c.l.b16 %v3530
        %v4071 = vunpack.c.l.b16 %v3531
        %v4072 = vunpack.c.h.b16 %v3531
        %v4073 = vunpack.c.l.b16 %v3532
        %v4074 = vunpack.c.h.b16 %v3532
        %v4075 = vunpack.c.l.b16 %v3533
        %v4076 = vunpack.c.h.b16 %v3533
        %v4077 = vunpack.c.l.b16 %v3534
        %v4078 = vunpack.c.l.b16 %v3535
        %v4079 = vunpack.c.h.b16 %v3535
        %v4080 = vunpack.c.l.b16 %v3536
        %v4081 = vunpack.c.h.b16 %v3536
        %v4082 = vunpack.c.l.b16 %v3537
        %v4083 = vunpack.c.h.b16 %v3537
        %v4084 = vunpack.c.l.b16 %v3538
        %v4085 = vunpack.c.l.b16 %v3539
        %v4086 = vunpack.c.h.b16 %v3539
        %v4087 = vunpack.c.l.b16 %v3540
        %v4088 = vunpack.c.h.b16 %v3540
        %v4089 = vunpack.c.l.b16 %v3541
        %v4090 = vunpack.c.h.b16 %v3541
        %v4091 = vunpack.c.l.b16 %v3542
        %v4092 = vunpack.c.l.b16 %v3543
        %v4093 = vunpack.c.h.b16 %v3543
        %v4094 = vunpack.c.l.b16 %v3544
        %v4095 = vunpack.c.h.b16 %v3544
        %v4096 = vunpack.c.l.b16 %v3545
        %v4097 = vunpack.c.h.b16 %v3545
        %v4098 = vunpack.c.l.b16 %v3546
        %v4099 = vunpack.c.l.b16 %v3547
        %v4100 = vunpack.c.h.b16 %v3547
        %v4101 = vunpack.c.l.b16 %v3548
        %v4102 = vunpack.c.h.b16 %v3548
        %v4103 = vunpack.c.l.b16 %v3549
        %v4104 = vunpack.c.h.b16 %v3549
        %v4105 = vunpack.c.l.b16 %v3550
        %v4106 = vunpack.c.l.b16 %v3551
        %v4107 = vunpack.c.h.b16 %v3551
        %v4108 = vunpack.c.l.b16 %v3552
        %v4109 = vunpack.c.h.b16 %v3552
        %v4110 = vunpack.c.l.b16 %v3553
        %v4111 = vunpack.c.h.b16 %v3553
        %v4112 = vunpack.c.l.b16 %v3554
        %v4113 = vunpack.c.l.b16 %v3555
        %v4114 = vunpack.c.h.b16 %v3555
        %v4115 = vunpack.c.l.b16 %v3556
        %v4116 = vunpack.c.h.b16 %v3556
        %v4117 = vunpack.c.l.b16 %v3557
        %v4118 = vunpack.c.h.b16 %v3557
        %v4119 = vunpack.c.l.b16 %v3558
        %v4120 = vunpack.c.l.b16 %v3559
        %v4121 = vunpack.c.h.b16 %v3559
        %v4122 = vunpack.c.l.b16 %v3560
        %v4123 = vunpack.c.h.b16 %v3560
        %v4124 = vunpack.c.l.b16 %v3561
        %v4125 = vunpack.c.h.b16 %v3561
        %v4126 = vunpack.c.l.b16 %v3562
        %v4127 = vunpack.c.l.b16 %v3563
        %v4128 = vunpack.c.h.b16 %v3563
        %v4129 = vunpack.c.l.b16 %v3564
        %v4130 = vunpack.c.h.b16 %v3564
        %v4131 = vunpack.c.l.b16 %v3565
        %v4132 = vunpack.c.h.b16 %v3565
        %v4133 = vunpack.c.l.b16 %v3566
        %v4134 = vpack.c.b16 %v3791, %v3784
        %v4135 = vpack.c.b16 %v3792, %v3785
        %v4136 = vpack.c.b16 %v3793, %v3786
        %v4137 = vpack.c.b16 %v3794, %v3787
        %v4138 = vpack.c.b16 %v3795, %v3788
        %v4139 = vpack.c.b16 %v3796, %v3789
        %v4140 = vpack.c.b16 %v3797, %v3790
        %v4141 = vpack.c.b16 %v3805, %v3798
        %v4142 = vpack.c.b16 %v3806, %v3799
        %v4143 = vpack.c.b16 %v3807, %v3800
        %v4144 = vpack.c.b16 %v3808, %v3801
        %v4145 = vpack.c.b16 %v3809, %v3802
        %v4146 = vpack.c.b16 %v3810, %v3803
        %v4147 = vpack.c.b16 %v3811, %v3804
        %v4148 = vpack.c.b16 %v3819, %v3812
        %v4149 = vpack.c.b16 %v3820, %v3813
        %v4150 = vpack.c.b16 %v3821, %v3814
        %v4151 = vpack.c.b16 %v3822, %v3815
        %v4152 = vpack.c.b16 %v3823, %v3816
        %v4153 = vpack.c.b16 %v3824, %v3817
        %v4154 = vpack.c.b16 %v3825, %v3818
        %v4155 = vpack.c.b16 %v3833, %v3826
        %v4156 = vpack.c.b16 %v3834, %v3827
        %v4157 = vpack.c.b16 %v3835, %v3828
        %v4158 = vpack.c.b16 %v3836, %v3829
        %v4159 = vpack.c.b16 %v3837, %v3830
        %v4160 = vpack.c.b16 %v3838, %v3831
        %v4161 = vpack.c.b16 %v3839, %v3832
        %v4162 = vpack.c.b16 %v3847, %v3840
        %v4163 = vpack.c.b16 %v3848, %v3841
        %v4164 = vpack.c.b16 %v3849, %v3842
        %v4165 = vpack.c.b16 %v3850, %v3843
        %v4166 = vpack.c.b16 %v3851, %v3844
        %v4167 = vpack.c.b16 %v3852, %v3845
        %v4168 = vpack.c.b16 %v3853, %v3846
        %v4169 = vpack.c.b16 %v3861, %v3854
        %v4170 = vpack.c.b16 %v3862, %v3855
        %v4171 = vpack.c.b16 %v3863, %v3856
        %v4172 = vpack.c.b16 %v3864, %v3857
        %v4173 = vpack.c.b16 %v3865, %v3858
        %v4174 = vpack.c.b16 %v3866, %v3859
        %v4175 = vpack.c.b16 %v3867, %v3860
        %v4176 = vpack.c.b16 %v3875, %v3868
        %v4177 = vpack.c.b16 %v3876, %v3869
        %v4178 = vpack.c.b16 %v3877, %v3870
        %v4179 = vpack.c.b16 %v3878, %v3871
        %v4180 = vpack.c.b16 %v3879, %v3872
        %v4181 = vpack.c.b16 %v3880, %v3873
        %v4182 = vpack.c.b16 %v3881, %v3874
        %v4183 = vpack.c.b16 %v3889, %v3882
        %v4184 = vpack.c.b16 %v3890, %v3883
        %v4185 = vpack.c.b16 %v3891, %v3884
        %v4186 = vpack.c.b16 %v3892, %v3885
        %v4187 = vpack.c.b16 %v3893, %v3886
        %v4188 = vpack.c.b16 %v3894, %v3887
        %v4189 = vpack.c.b16 %v3895, %v3888
        %v4190 = vpack.c.b16 %v3903, %v3896
        %v4191 = vpack.c.b16 %v3904, %v3897
        %v4192 = vpack.c.b16 %v3905, %v3898
        %v4193 = vpack.c.b16 %v3906, %v3899
        %v4194 = vpack.c.b16 %v3907, %v3900
        %v4195 = vpack.c.b16 %v3908, %v3901
        %v4196 = vpack.c.b16 %v3909, %v3902
        %v4197 = vpack.c.b16 %v3917, %v3910
        %v4198 = vpack.c.b16 %v3918, %v3911
        %v4199 = vpack.c.b16 %v3919, %v3912
        %v4200 = vpack.c.b16 %v3920, %v3913
        %v4201 = vpack.c.b16 %v3921, %v3914
        %v4202 = vpack.c.b16 %v3922, %v3915
        %v4203 = vpack.c.b16 %v3923, %v3916
        %v4204 = vpack.c.b16 %v3931, %v3924
        %v4205 = vpack.c.b16 %v3932, %v3925
        %v4206 = vpack.c.b16 %v3933, %v3926
        %v4207 = vpack.c.b16 %v3934, %v3927
        %v4208 = vpack.c.b16 %v3935, %v3928
        %v4209 = vpack.c.b16 %v3936, %v3929
        %v4210 = vpack.c.b16 %v3937, %v3930
        %v4211 = vpack.c.b16 %v3945, %v3938
        %v4212 = vpack.c.b16 %v3946, %v3939
        %v4213 = vpack.c.b16 %v3947, %v3940
        %v4214 = vpack.c.b16 %v3948, %v3941
        %v4215 = vpack.c.b16 %v3949, %v3942
        %v4216 = vpack.c.b16 %v3950, %v3943
        %v4217 = vpack.c.b16 %v3951, %v3944
        %v4218 = vpack.c.b16 %v3959, %v3952
        %v4219 = vpack.c.b16 %v3960, %v3953
        %v4220 = vpack.c.b16 %v3961, %v3954
        %v4221 = vpack.c.b16 %v3962, %v3955
        %v4222 = vpack.c.b16 %v3963, %v3956
        %v4223 = vpack.c.b16 %v3964, %v3957
        %v4224 = vpack.c.b16 %v3965, %v3958
        %v4225 = vpack.c.b16 %v3973, %v3966
        %v4226 = vpack.c.b16 %v3974, %v3967
        %v4227 = vpack.c.b16 %v3975, %v3968
        %v4228 = vpack.c.b16 %v3976, %v3969
        %v4229 = vpack.c.b16 %v3977, %v3970
        %v4230 = vpack.c.b16 %v3978, %v3971
        %v4231 = vpack.c.b16 %v3979, %v3972
        %v4232 = vpack.c.b16 %v3987, %v3980
        %v4233 = vpack.c.b16 %v3988, %v3981
        %v4234 = vpack.c.b16 %v3989, %v3982
        %v4235 = vpack.c.b16 %v3990, %v3983
        %v4236 = vpack.c.b16 %v3991, %v3984
        %v4237 = vpack.c.b16 %v3992, %v3985
        %v4238 = vpack.c.b16 %v3993, %v3986
        %v4239 = vpack.c.b16 %v4001, %v3994
        %v4240 = vpack.c.b16 %v4002, %v3995
        %v4241 = vpack.c.b16 %v4003, %v3996
        %v4242 = vpack.c.b16 %v4004, %v3997
        %v4243 = vpack.c.b16 %v4005, %v3998
        %v4244 = vpack.c.b16 %v4006, %v3999
        %v4245 = vpack.c.b16 %v4007, %v4000
        %v4246 = vpack.c.b16 %v4015, %v4008
        %v4247 = vpack.c.b16 %v4016, %v4009
        %v4248 = vpack.c.b16 %v4017, %v4010
        %v4249 = vpack.c.b16 %v4018, %v4011
        %v4250 = vpack.c.b16 %v4019, %v4012
        %v4251 = vpack.c.b16 %v4020, %v4013
        %v4252 = vpack.c.b16 %v4021, %v4014
        %v4253 = vpack.c.b16 %v4029, %v4022
        %v4254 = vpack.c.b16 %v4030, %v4023
        %v4255 = vpack.c.b16 %v4031, %v4024
        %v4256 = vpack.c.b16 %v4032, %v4025
        %v4257 = vpack.c.b16 %v4033, %v4026
        %v4258 = vpack.c.b16 %v4034, %v4027
        %v4259 = vpack.c.b16 %v4035, %v4028
        %v4260 = vpack.c.b16 %v4043, %v4036
        %v4261 = vpack.c.b16 %v4044, %v4037
        %v4262 = vpack.c.b16 %v4045, %v4038
        %v4263 = vpack.c.b16 %v4046, %v4039
        %v4264 = vpack.c.b16 %v4047, %v4040
        %v4265 = vpack.c.b16 %v4048, %v4041
        %v4266 = vpack.c.b16 %v4049, %v4042
        %v4267 = vpack.c.b16 %v4057, %v4050
        %v4268 = vpack.c.b16 %v4058, %v4051
        %v4269 = vpack.c.b16 %v4059, %v4052
        %v4270 = vpack.c.b16 %v4060, %v4053
        %v4271 = vpack.c.b16 %v4061, %v4054
        %v4272 = vpack.c.b16 %v4062, %v4055
        %v4273 = vpack.c.b16 %v4063, %v4056
        %v4274 = vpack.c.b16 %v4071, %v4064
        %v4275 = vpack.c.b16 %v4072, %v4065
        %v4276 = vpack.c.b16 %v4073, %v4066
        %v4277 = vpack.c.b16 %v4074, %v4067
        %v4278 = vpack.c.b16 %v4075, %v4068
        %v4279 = vpack.c.b16 %v4076, %v4069
        %v4280 = vpack.c.b16 %v4077, %v4070
        %v4281 = vpack.c.b16 %v4085, %v4078
        %v4282 = vpack.c.b16 %v4086, %v4079
        %v4283 = vpack.c.b16 %v4087, %v4080
        %v4284 = vpack.c.b16 %v4088, %v4081
        %v4285 = vpack.c.b16 %v4089, %v4082
        %v4286 = vpack.c.b16 %v4090, %v4083
        %v4287 = vpack.c.b16 %v4091, %v4084
        %v4288 = vpack.c.b16 %v4099, %v4092
        %v4289 = vpack.c.b16 %v4100, %v4093
        %v4290 = vpack.c.b16 %v4101, %v4094
        %v4291 = vpack.c.b16 %v4102, %v4095
        %v4292 = vpack.c.b16 %v4103, %v4096
        %v4293 = vpack.c.b16 %v4104, %v4097
        %v4294 = vpack.c.b16 %v4105, %v4098
        %v4295 = vpack.c.b16 %v4113, %v4106
        %v4296 = vpack.c.b16 %v4114, %v4107
        %v4297 = vpack.c.b16 %v4115, %v4108
        %v4298 = vpack.c.b16 %v4116, %v4109
        %v4299 = vpack.c.b16 %v4117, %v4110
        %v4300 = vpack.c.b16 %v4118, %v4111
        %v4301 = vpack.c.b16 %v4119, %v4112
        %v4302 = vpack.c.b16 %v4127, %v4120
        %v4303 = vpack.c.b16 %v4128, %v4121
        %v4304 = vpack.c.b16 %v4129, %v4122
        %v4305 = vpack.c.b16 %v4130, %v4123
        %v4306 = vpack.c.b16 %v4131, %v4124
        %v4307 = vpack.c.b16 %v4132, %v4125
        %v4308 = vpack.c.b16 %v4133, %v4126
        %v4485 = vsel %vm1722, %v3580, 0
        %4487 = vmatpush.bf16.msra.mxu0 %v4183
        %4488 = vmatpush.bf16.msra.mxu0 %v4176
        %4489 = vmatpush.bf16.msra.mxu0 %v4169
        %4490 = vmatpush.bf16.msra.mxu0 %v4162
        %4491 = vmatpush.bf16.msra.mxu0 %v4155
        %4492 = vmatpush.bf16.msra.mxu0 %v4148
        %4493 = vmatpush.bf16.msra.mxu0 %v4141
        %4494 = vmatpush.bf16.msra.mxu0 %v4134
        %4495 = vmatmul.bf16.gmra.mxu0 %v3577
        %v4496 = vpop.f32.mrf.mxu0
        %v4497 = vadd.f32 0.0, %v4496
        %v4498 = vpop.f32.mrf.mxu0
        %4499 = vdwg.mxu0
        %4500 = vmatpush.bf16.msra.mxu0 %v4239
        %4501 = vmatpush.bf16.msra.mxu0 %v4232
        %4502 = vmatpush.bf16.msra.mxu0 %v4225
        %4503 = vmatpush.bf16.msra.mxu0 %v4218
        %4504 = vmatpush.bf16.msra.mxu0 %v4211
        %4505 = vmatpush.bf16.msra.mxu0 %v4204
        %4506 = vmatpush.bf16.msra.mxu0 %v4197
        %4507 = vmatpush.bf16.msra.mxu0 %v4190
        %4508 = vmatmul.bf16.gmra.mxu0 %v3578
        %v4509 = vpop.f32.mrf.mxu0
        %v4510 = vadd.f32 %v4497, %v4509
        %v4511 = vpop.f32.mrf.mxu0
        %4512 = vdwg.mxu0
        %4513 = vmatpush.bf16.msra.mxu0 %v4295
        %4514 = vmatpush.bf16.msra.mxu0 %v4288
        %4515 = vmatpush.bf16.msra.mxu0 %v4281
        %4516 = vmatpush.bf16.msra.mxu0 %v4274
        %4517 = vmatpush.bf16.msra.mxu0 %v4267
        %4518 = vmatpush.bf16.msra.mxu0 %v4260
        %4519 = vmatpush.bf16.msra.mxu0 %v4253
        %4520 = vmatpush.bf16.msra.mxu0 %v4246
        %4521 = vmatmul.bf16.gmra.mxu0 %v3579
        %v4522 = vpop.f32.mrf.mxu0
        %v4523 = vadd.f32 %v4510, %v4522
        %v4524 = vpop.f32.mrf.mxu0
        %4525 = vdwg.mxu0
        %4526 = vmatpush.bf16.msra.mxu0 0
        %4527 = vmatpush.bf16.msra.mxu0 0
        %4528 = vmatpush.bf16.msra.mxu0 0
        %4529 = vmatpush.bf16.msra.mxu0 0
        %4530 = vmatpush.bf16.msra.mxu0 0
        %4531 = vmatpush.bf16.msra.mxu0 0
        %4532 = vmatpush.bf16.msra.mxu0 0
        %4533 = vmatpush.bf16.msra.mxu0 %v4302
        %4534 = vmatmul.bf16.gmra.mxu0 %v4485
        %v4535 = vpop.f32.mrf.mxu0
        %v4536 = vadd.f32 %v4523, %v4535
        %v4537 = vpop.f32.mrf.mxu0
        %4538 = vdwg.mxu0
        %4539 = vmatpush.bf16.msra.mxu0 %v4184
        %4540 = vmatpush.bf16.msra.mxu0 %v4177
        %4541 = vmatpush.bf16.msra.mxu0 %v4170
        %4542 = vmatpush.bf16.msra.mxu0 %v4163
        %4543 = vmatpush.bf16.msra.mxu0 %v4156
        %4544 = vmatpush.bf16.msra.mxu0 %v4149
        %4545 = vmatpush.bf16.msra.mxu0 %v4142
        %4546 = vmatpush.bf16.msra.mxu0 %v4135
        %4547 = vmatmul.bf16.gmra.mxu0 %v3577
        %v4548 = vpop.f32.mrf.mxu0
        %v4549 = vadd.f32 0.0, %v4548
        %v4550 = vpop.f32.mrf.mxu0
        %4551 = vdwg.mxu0
        %4552 = vmatpush.bf16.msra.mxu0 %v4240
        %4553 = vmatpush.bf16.msra.mxu0 %v4233
        %4554 = vmatpush.bf16.msra.mxu0 %v4226
        %4555 = vmatpush.bf16.msra.mxu0 %v4219
        %4556 = vmatpush.bf16.msra.mxu0 %v4212
        %4557 = vmatpush.bf16.msra.mxu0 %v4205
        %4558 = vmatpush.bf16.msra.mxu0 %v4198
        %4559 = vmatpush.bf16.msra.mxu0 %v4191
        %4560 = vmatmul.bf16.gmra.mxu0 %v3578
        %v4561 = vpop.f32.mrf.mxu0
        %v4562 = vadd.f32 %v4549, %v4561
        %v4563 = vpop.f32.mrf.mxu0
        %4564 = vdwg.mxu0
        %4565 = vmatpush.bf16.msra.mxu0 %v4296
        %4566 = vmatpush.bf16.msra.mxu0 %v4289
        %4567 = vmatpush.bf16.msra.mxu0 %v4282
        %4568 = vmatpush.bf16.msra.mxu0 %v4275
        %4569 = vmatpush.bf16.msra.mxu0 %v4268
        %4570 = vmatpush.bf16.msra.mxu0 %v4261
        %4571 = vmatpush.bf16.msra.mxu0 %v4254
        %4572 = vmatpush.bf16.msra.mxu0 %v4247
        %4573 = vmatmul.bf16.gmra.mxu0 %v3579
        %v4574 = vpop.f32.mrf.mxu0
        %v4575 = vadd.f32 %v4562, %v4574
        %v4576 = vpop.f32.mrf.mxu0
        %4577 = vdwg.mxu0
        %4578 = vmatpush.bf16.msra.mxu0 0
        %4579 = vmatpush.bf16.msra.mxu0 0
        %4580 = vmatpush.bf16.msra.mxu0 0
        %4581 = vmatpush.bf16.msra.mxu0 0
        %4582 = vmatpush.bf16.msra.mxu0 0
        %4583 = vmatpush.bf16.msra.mxu0 0
        %4584 = vmatpush.bf16.msra.mxu0 0
        %4585 = vmatpush.bf16.msra.mxu0 %v4303
        %4586 = vmatmul.bf16.gmra.mxu0 %v4485
        %v4587 = vpop.f32.mrf.mxu0
        %v4588 = vadd.f32 %v4575, %v4587
        %v4589 = vpop.f32.mrf.mxu0
        %4590 = vdwg.mxu0
        %4591 = vmatpush.bf16.msra.mxu0 %v4185
        %4592 = vmatpush.bf16.msra.mxu0 %v4178
        %4593 = vmatpush.bf16.msra.mxu0 %v4171
        %4594 = vmatpush.bf16.msra.mxu0 %v4164
        %4595 = vmatpush.bf16.msra.mxu0 %v4157
        %4596 = vmatpush.bf16.msra.mxu0 %v4150
        %4597 = vmatpush.bf16.msra.mxu0 %v4143
        %4598 = vmatpush.bf16.msra.mxu0 %v4136
        %4599 = vmatmul.bf16.gmra.mxu0 %v3577
        %v4600 = vpop.f32.mrf.mxu0
        %v4601 = vadd.f32 0.0, %v4600
        %v4602 = vpop.f32.mrf.mxu0
        %4603 = vdwg.mxu0
        %4604 = vmatpush.bf16.msra.mxu0 %v4241
        %4605 = vmatpush.bf16.msra.mxu0 %v4234
        %4606 = vmatpush.bf16.msra.mxu0 %v4227
        %4607 = vmatpush.bf16.msra.mxu0 %v4220
        %4608 = vmatpush.bf16.msra.mxu0 %v4213
        %4609 = vmatpush.bf16.msra.mxu0 %v4206
        %4610 = vmatpush.bf16.msra.mxu0 %v4199
        %4611 = vmatpush.bf16.msra.mxu0 %v4192
        %4612 = vmatmul.bf16.gmra.mxu0 %v3578
        %v4613 = vpop.f32.mrf.mxu0
        %v4614 = vadd.f32 %v4601, %v4613
        %v4615 = vpop.f32.mrf.mxu0
        %4616 = vdwg.mxu0
        %4617 = vmatpush.bf16.msra.mxu0 %v4297
        %4618 = vmatpush.bf16.msra.mxu0 %v4290
        %4619 = vmatpush.bf16.msra.mxu0 %v4283
        %4620 = vmatpush.bf16.msra.mxu0 %v4276
        %4621 = vmatpush.bf16.msra.mxu0 %v4269
        %4622 = vmatpush.bf16.msra.mxu0 %v4262
        %4623 = vmatpush.bf16.msra.mxu0 %v4255
        %4624 = vmatpush.bf16.msra.mxu0 %v4248
        %4625 = vmatmul.bf16.gmra.mxu0 %v3579
        %v4626 = vpop.f32.mrf.mxu0
        %v4627 = vadd.f32 %v4614, %v4626
        %v4628 = vpop.f32.mrf.mxu0
        %4629 = vdwg.mxu0
        %4630 = vmatpush.bf16.msra.mxu0 0
        %4631 = vmatpush.bf16.msra.mxu0 0
        %4632 = vmatpush.bf16.msra.mxu0 0
        %4633 = vmatpush.bf16.msra.mxu0 0
        %4634 = vmatpush.bf16.msra.mxu0 0
        %4635 = vmatpush.bf16.msra.mxu0 0
        %4636 = vmatpush.bf16.msra.mxu0 0
        %4637 = vmatpush.bf16.msra.mxu0 %v4304
        %4638 = vmatmul.bf16.gmra.mxu0 %v4485
        %v4639 = vpop.f32.mrf.mxu0
        %v4640 = vadd.f32 %v4627, %v4639
        %v4641 = vpop.f32.mrf.mxu0
        %4642 = vdwg.mxu0
        %4643 = vmatpush.bf16.msra.mxu0 %v4186
        %4644 = vmatpush.bf16.msra.mxu0 %v4179
        %4645 = vmatpush.bf16.msra.mxu0 %v4172
        %4646 = vmatpush.bf16.msra.mxu0 %v4165
        %4647 = vmatpush.bf16.msra.mxu0 %v4158
        %4648 = vmatpush.bf16.msra.mxu0 %v4151
        %4649 = vmatpush.bf16.msra.mxu0 %v4144
        %4650 = vmatpush.bf16.msra.mxu0 %v4137
        %4651 = vmatmul.bf16.gmra.mxu0 %v3577
        %v4652 = vpop.f32.mrf.mxu0
        %v4653 = vadd.f32 0.0, %v4652
        %v4654 = vpop.f32.mrf.mxu0
        %4655 = vdwg.mxu0
        %4656 = vmatpush.bf16.msra.mxu0 %v4242
        %4657 = vmatpush.bf16.msra.mxu0 %v4235
        %4658 = vmatpush.bf16.msra.mxu0 %v4228
        %4659 = vmatpush.bf16.msra.mxu0 %v4221
        %4660 = vmatpush.bf16.msra.mxu0 %v4214
        %4661 = vmatpush.bf16.msra.mxu0 %v4207
        %4662 = vmatpush.bf16.msra.mxu0 %v4200
        %4663 = vmatpush.bf16.msra.mxu0 %v4193
        %4664 = vmatmul.bf16.gmra.mxu0 %v3578
        %v4665 = vpop.f32.mrf.mxu0
        %v4666 = vadd.f32 %v4653, %v4665
        %v4667 = vpop.f32.mrf.mxu0
        %4668 = vdwg.mxu0
        %4669 = vmatpush.bf16.msra.mxu0 %v4298
        %4670 = vmatpush.bf16.msra.mxu0 %v4291
        %4671 = vmatpush.bf16.msra.mxu0 %v4284
        %4672 = vmatpush.bf16.msra.mxu0 %v4277
        %4673 = vmatpush.bf16.msra.mxu0 %v4270
        %4674 = vmatpush.bf16.msra.mxu0 %v4263
        %4675 = vmatpush.bf16.msra.mxu0 %v4256
        %4676 = vmatpush.bf16.msra.mxu0 %v4249
        %4677 = vmatmul.bf16.gmra.mxu0 %v3579
        %v4678 = vpop.f32.mrf.mxu0
        %v4679 = vadd.f32 %v4666, %v4678
        %v4680 = vpop.f32.mrf.mxu0
        %4681 = vdwg.mxu0
        %4682 = vmatpush.bf16.msra.mxu0 0
        %4683 = vmatpush.bf16.msra.mxu0 0
        %4684 = vmatpush.bf16.msra.mxu0 0
        %4685 = vmatpush.bf16.msra.mxu0 0
        %4686 = vmatpush.bf16.msra.mxu0 0
        %4687 = vmatpush.bf16.msra.mxu0 0
        %4688 = vmatpush.bf16.msra.mxu0 0
        %4689 = vmatpush.bf16.msra.mxu0 %v4305
        %4690 = vmatmul.bf16.gmra.mxu0 %v4485
        %v4691 = vpop.f32.mrf.mxu0
        %v4692 = vadd.f32 %v4679, %v4691
        %v4693 = vpop.f32.mrf.mxu0
        %4694 = vdwg.mxu0
        %4695 = vmatpush.bf16.msra.mxu0 %v4187
        %4696 = vmatpush.bf16.msra.mxu0 %v4180
        %4697 = vmatpush.bf16.msra.mxu0 %v4173
        %4698 = vmatpush.bf16.msra.mxu0 %v4166
        %4699 = vmatpush.bf16.msra.mxu0 %v4159
        %4700 = vmatpush.bf16.msra.mxu0 %v4152
        %4701 = vmatpush.bf16.msra.mxu0 %v4145
        %4702 = vmatpush.bf16.msra.mxu0 %v4138
        %4703 = vmatmul.bf16.gmra.mxu0 %v3577
        %v4704 = vpop.f32.mrf.mxu0
        %v4705 = vadd.f32 0.0, %v4704
        %v4706 = vpop.f32.mrf.mxu0
        %4707 = vdwg.mxu0
        %4708 = vmatpush.bf16.msra.mxu0 %v4243
        %4709 = vmatpush.bf16.msra.mxu0 %v4236
        %4710 = vmatpush.bf16.msra.mxu0 %v4229
        %4711 = vmatpush.bf16.msra.mxu0 %v4222
        %4712 = vmatpush.bf16.msra.mxu0 %v4215
        %4713 = vmatpush.bf16.msra.mxu0 %v4208
        %4714 = vmatpush.bf16.msra.mxu0 %v4201
        %4715 = vmatpush.bf16.msra.mxu0 %v4194
        %4716 = vmatmul.bf16.gmra.mxu0 %v3578
        %v4717 = vpop.f32.mrf.mxu0
        %v4718 = vadd.f32 %v4705, %v4717
        %v4719 = vpop.f32.mrf.mxu0
        %4720 = vdwg.mxu0
        %4721 = vmatpush.bf16.msra.mxu0 %v4299
        %4722 = vmatpush.bf16.msra.mxu0 %v4292
        %4723 = vmatpush.bf16.msra.mxu0 %v4285
        %4724 = vmatpush.bf16.msra.mxu0 %v4278
        %4725 = vmatpush.bf16.msra.mxu0 %v4271
        %4726 = vmatpush.bf16.msra.mxu0 %v4264
        %4727 = vmatpush.bf16.msra.mxu0 %v4257
        %4728 = vmatpush.bf16.msra.mxu0 %v4250
        %4729 = vmatmul.bf16.gmra.mxu0 %v3579
        %v4730 = vpop.f32.mrf.mxu0
        %v4731 = vadd.f32 %v4718, %v4730
        %v4732 = vpop.f32.mrf.mxu0
        %4733 = vdwg.mxu0
        %4734 = vmatpush.bf16.msra.mxu0 0
        %4735 = vmatpush.bf16.msra.mxu0 0
        %4736 = vmatpush.bf16.msra.mxu0 0
        %4737 = vmatpush.bf16.msra.mxu0 0
        %4738 = vmatpush.bf16.msra.mxu0 0
        %4739 = vmatpush.bf16.msra.mxu0 0
        %4740 = vmatpush.bf16.msra.mxu0 0
        %4741 = vmatpush.bf16.msra.mxu0 %v4306
        %4742 = vmatmul.bf16.gmra.mxu0 %v4485
        %v4743 = vpop.f32.mrf.mxu0
        %v4744 = vadd.f32 %v4731, %v4743
        %v4745 = vpop.f32.mrf.mxu0
        %4746 = vdwg.mxu0
        %4747 = vmatpush.bf16.msra.mxu0 %v4188
        %4748 = vmatpush.bf16.msra.mxu0 %v4181
        %4749 = vmatpush.bf16.msra.mxu0 %v4174
        %4750 = vmatpush.bf16.msra.mxu0 %v4167
        %4751 = vmatpush.bf16.msra.mxu0 %v4160
        %4752 = vmatpush.bf16.msra.mxu0 %v4153
        %4753 = vmatpush.bf16.msra.mxu0 %v4146
        %4754 = vmatpush.bf16.msra.mxu0 %v4139
        %4755 = vmatmul.bf16.gmra.mxu0 %v3577
        %v4756 = vpop.f32.mrf.mxu0
        %v4757 = vadd.f32 0.0, %v4756
        %v4758 = vpop.f32.mrf.mxu0
        %4759 = vdwg.mxu0
        %4760 = vmatpush.bf16.msra.mxu0 %v4244
        %4761 = vmatpush.bf16.msra.mxu0 %v4237
        %4762 = vmatpush.bf16.msra.mxu0 %v4230
        %4763 = vmatpush.bf16.msra.mxu0 %v4223
        %4764 = vmatpush.bf16.msra.mxu0 %v4216
        %4765 = vmatpush.bf16.msra.mxu0 %v4209
        %4766 = vmatpush.bf16.msra.mxu0 %v4202
        %4767 = vmatpush.bf16.msra.mxu0 %v4195
        %4768 = vmatmul.bf16.gmra.mxu0 %v3578
        %v4769 = vpop.f32.mrf.mxu0
        %v4770 = vadd.f32 %v4757, %v4769
        %v4771 = vpop.f32.mrf.mxu0
        %4772 = vdwg.mxu0
        %4773 = vmatpush.bf16.msra.mxu0 %v4300
        %4774 = vmatpush.bf16.msra.mxu0 %v4293
        %4775 = vmatpush.bf16.msra.mxu0 %v4286
        %4776 = vmatpush.bf16.msra.mxu0 %v4279
        %4777 = vmatpush.bf16.msra.mxu0 %v4272
        %4778 = vmatpush.bf16.msra.mxu0 %v4265
        %4779 = vmatpush.bf16.msra.mxu0 %v4258
        %4780 = vmatpush.bf16.msra.mxu0 %v4251
        %4781 = vmatmul.bf16.gmra.mxu0 %v3579
        %v4782 = vpop.f32.mrf.mxu0
        %v4783 = vadd.f32 %v4770, %v4782
        %v4784 = vpop.f32.mrf.mxu0
        %4785 = vdwg.mxu0
        %4786 = vmatpush.bf16.msra.mxu0 0
        %4787 = vmatpush.bf16.msra.mxu0 0
        %4788 = vmatpush.bf16.msra.mxu0 0
        %4789 = vmatpush.bf16.msra.mxu0 0
        %4790 = vmatpush.bf16.msra.mxu0 0
        %4791 = vmatpush.bf16.msra.mxu0 0
        %4792 = vmatpush.bf16.msra.mxu0 0
        %4793 = vmatpush.bf16.msra.mxu0 %v4307
        %4794 = vmatmul.bf16.gmra.mxu0 %v4485
        %v4795 = vpop.f32.mrf.mxu0
        %v4796 = vadd.f32 %v4783, %v4795
        %v4797 = vpop.f32.mrf.mxu0
        %4798 = vdwg.mxu0
        %4799 = vmatpush.bf16.msra.mxu0 %v4189
        %4800 = vmatpush.bf16.msra.mxu0 %v4182
        %4801 = vmatpush.bf16.msra.mxu0 %v4175
        %4802 = vmatpush.bf16.msra.mxu0 %v4168
        %4803 = vmatpush.bf16.msra.mxu0 %v4161
        %4804 = vmatpush.bf16.msra.mxu0 %v4154
        %4805 = vmatpush.bf16.msra.mxu0 %v4147
        %4806 = vmatpush.bf16.msra.mxu0 %v4140
        %4807 = vmatmul.bf16.gmra.mxu0 %v3577
        %v4808 = vpop.f32.mrf.mxu0
        %v4809 = vadd.f32 0.0, %v4808
        %v4810 = vpop.f32.mrf.mxu0
        %4811 = vdwg.mxu0
        %4812 = vmatpush.bf16.msra.mxu0 %v4245
        %4813 = vmatpush.bf16.msra.mxu0 %v4238
        %4814 = vmatpush.bf16.msra.mxu0 %v4231
        %4815 = vmatpush.bf16.msra.mxu0 %v4224
        %4816 = vmatpush.bf16.msra.mxu0 %v4217
        %4817 = vmatpush.bf16.msra.mxu0 %v4210
        %4818 = vmatpush.bf16.msra.mxu0 %v4203
        %4819 = vmatpush.bf16.msra.mxu0 %v4196
        %4820 = vmatmul.bf16.gmra.mxu0 %v3578
        %v4821 = vpop.f32.mrf.mxu0
        %v4822 = vadd.f32 %v4809, %v4821
        %v4823 = vpop.f32.mrf.mxu0
        %4824 = vdwg.mxu0
        %4825 = vmatpush.bf16.msra.mxu0 %v4301
        %4826 = vmatpush.bf16.msra.mxu0 %v4294
        %4827 = vmatpush.bf16.msra.mxu0 %v4287
        %4828 = vmatpush.bf16.msra.mxu0 %v4280
        %4829 = vmatpush.bf16.msra.mxu0 %v4273
        %4830 = vmatpush.bf16.msra.mxu0 %v4266
        %4831 = vmatpush.bf16.msra.mxu0 %v4259
        %4832 = vmatpush.bf16.msra.mxu0 %v4252
        %4833 = vmatmul.bf16.gmra.mxu0 %v3579
        %v4834 = vpop.f32.mrf.mxu0
        %v4835 = vadd.f32 %v4822, %v4834
        %v4836 = vpop.f32.mrf.mxu0
        %4837 = vdwg.mxu0
        %4838 = vmatpush.bf16.msra.mxu0 0
        %4839 = vmatpush.bf16.msra.mxu0 0
        %4840 = vmatpush.bf16.msra.mxu0 0
        %4841 = vmatpush.bf16.msra.mxu0 0
        %4842 = vmatpush.bf16.msra.mxu0 0
        %4843 = vmatpush.bf16.msra.mxu0 0
        %4844 = vmatpush.bf16.msra.mxu0 0
        %4845 = vmatpush.bf16.msra.mxu0 %v4308
        %4846 = vmatmul.bf16.gmra.mxu0 %v4485
        %v4847 = vpop.f32.mrf.mxu0
        %v4848 = vadd.f32 %v4835, %v4847
        %v4849 = vpop.f32.mrf.mxu0
        %4850 = vdwg.mxu0
        %v4851 = vadd.f32 %v3049, %v4536
        %v4852 = vadd.f32 %v3101, %v4588
        %v4853 = vadd.f32 %v3153, %v4640
        %v4854 = vadd.f32 %v3205, %v4692
        %v4855 = vadd.f32 %v3257, %v4744
        %v4856 = vadd.f32 %v3309, %v4796
        %v4857 = vadd.f32 %v3361, %v4848
        %v4858 = vld [vmem:[#allocation8] sm:$0x7f]
        %v4860 = vperm.slane %v4858, 0
        %v4861 = vperm.slane %v4858, 1
        %v4862 = vperm.slane %v4858, 2
        %v4863 = vperm.slane %v4858, 3
        %v4864 = vperm.slane %v4858, 4
        %v4865 = vperm.slane %v4858, 5
        %v4866 = vperm.slane %v4858, 6
        %v4874 = vmul.f32 %v4851, %v4860
        %v4875 = vmul.f32 %v4852, %v4861
        %v4876 = vmul.f32 %v4853, %v4862
        %v4877 = vmul.f32 %v4854, %v4863
        %v4878 = vmul.f32 %v4855, %v4864
        %v4879 = vmul.f32 %v4856, %v4865
        %v4880 = vmul.f32 %v4857, %v4866
        %v4881 = vld [vmem:[#allocation9] sm:$0x7f]
        %v4883 = vperm.slane %v4881, 0
        %v4884 = vperm.slane %v4881, 1
        %v4885 = vperm.slane %v4881, 2
        %v4886 = vperm.slane %v4881, 3
        %v4887 = vperm.slane %v4881, 4
        %v4888 = vperm.slane %v4881, 5
        %v4889 = vperm.slane %v4881, 6
        %v4897 = vadd.f32 %v4874, %v4883
        %v4898 = vadd.f32 %v4875, %v4884
        %v4899 = vadd.f32 %v4876, %v4885
        %v4900 = vadd.f32 %v4877, %v4886
        %v4901 = vadd.f32 %v4878, %v4887
        %v4902 = vadd.f32 %v4879, %v4888
        %v4903 = vadd.f32 %v4880, %v4889
        %v4904 = vsub.f32 0.0, %v4897
        %v4905 = vsub.f32 0.0, %v4898
        %v4906 = vsub.f32 0.0, %v4899
        %v4907 = vsub.f32 0.0, %v4900
        %v4908 = vsub.f32 0.0, %v4901
        %v4909 = vsub.f32 0.0, %v4902
        %v4910 = vsub.f32 0.0, %v4903
        %v4911 = vmul.f32 %v4904, 1.442695
        %v4912 = vpow.pop %v4911
        %v4913 = vmul.f32 %v4905, 1.442695
        %v4914 = vpow.pop %v4913
        %v4915 = vmul.f32 %v4906, 1.442695
        %v4916 = vpow.pop %v4915
        %v4917 = vmul.f32 %v4907, 1.442695
        %v4918 = vpow.pop %v4917
        %v4919 = vmul.f32 %v4908, 1.442695
        %v4920 = vpow.pop %v4919
        %v4921 = vmul.f32 %v4909, 1.442695
        %v4922 = vpow.pop %v4921
        %v4923 = vmul.f32 %v4910, 1.442695
        %v4924 = vpow.pop %v4923
        %v4925 = vadd.f32 %v4912, 1.0
        %v4926 = vadd.f32 %v4914, 1.0
        %v4927 = vadd.f32 %v4916, 1.0
        %v4928 = vadd.f32 %v4918, 1.0
        %v4929 = vadd.f32 %v4920, 1.0
        %v4930 = vadd.f32 %v4922, 1.0
        %v4931 = vadd.f32 %v4924, 1.0
        %v4932 = vrcp.pop %v4925
        %v4933 = vrcp.pop %v4926
        %v4934 = vrcp.pop %v4927
        %v4935 = vrcp.pop %v4928
        %v4936 = vrcp.pop %v4929
        %v4937 = vrcp.pop %v4930
        %v4938 = vrcp.pop %v4931
        %v4939 = vmul.f32 %v4897, %v4932
        %v4940 = vmul.f32 %v4898, %v4933
        %v4941 = vmul.f32 %v4899, %v4934
        %v4942 = vmul.f32 %v4900, %v4935
        %v4943 = vmul.f32 %v4901, %v4936
        %v4944 = vmul.f32 %v4902, %v4937
        %v4945 = vmul.f32 %v4903, %v4938
        %vm4946 = vcmask 1040384
        %vm4947 = vsmask.f32 256
        %vm4948 = vmand %vm4946, %vm4947
        %vm4949 = vcmask 1044484
        %vm4950 = vsmask.f32 4352
        %vm4951 = vmand %vm4949, %vm4950
        %vm4952 = vmor %vm4951, %vm4948
        %v4953 = vld [vmem:[#allocation2] sm:$0x11]
        %v4954 = vsel %vm4952, 0, %v4953
        %4955 = vst [vmem:[#allocation2] sm:$0x11] %v4954
        %v4956 = vld [vmem:[#allocation2 + $0x8] sm:$0x11]
        %v4957 = vsel %vm4952, 0, %v4956
        %4958 = vst [vmem:[#allocation2 + $0x8] sm:$0x11] %v4957
        %v4959 = vld [vmem:[#allocation2 + $0x10] sm:$0x11]
        %v4960 = vsel %vm4952, 0, %v4959
        %4961 = vst [vmem:[#allocation2 + $0x10] sm:$0x11] %v4960
        %vm4962 = vcmask 253952
        %vm4963 = vmand %vm4962, %vm4947
        %v4964 = vld [vmem:[#allocation2 + $0x18] sm:$0x1]
        %v4965 = vsel %vm4963, 0, %v4964
        %4966 = vst [vmem:[#allocation2 + $0x18] sm:$0x1] %v4965
        %vm4967 = vsmask.f32 7938
        %vm4968 = vmand %vm4946, %vm4967
        %vm4969 = vsmask.f32 7954
        %vm4970 = vmand %vm4949, %vm4969
        %vm4971 = vmor %vm4970, %vm4968
        %v4972 = vld [vmem:[#allocation2 + $0x1c] sm:$0x11]
        %v4973 = vsel %vm4971, 0, %v4972
        %4974 = vst [vmem:[#allocation2 + $0x1c] sm:$0x11] %v4973
        %v4975 = vld [vmem:[#allocation2 + $0x24] sm:$0x11]
        %v4976 = vsel %vm4971, 0, %v4975
        %4977 = vst [vmem:[#allocation2 + $0x24] sm:$0x11] %v4976
        %v4978 = vld [vmem:[#allocation2 + $0x2c] sm:$0x11]
        %v4979 = vsel %vm4971, 0, %v4978
        %4980 = vst [vmem:[#allocation2 + $0x2c] sm:$0x11] %v4979
        %vm4981 = vmand %vm4962, %vm4967
        %v4982 = vld [vmem:[#allocation2 + $0x34] sm:$0x1]
        %v4983 = vsel %vm4981, 0, %v4982
        %4984 = vst [vmem:[#allocation2 + $0x34] sm:$0x1] %v4983
        %v4985 = vpack.c.bf16 %v4940, %v4939
        %v4986 = vpack.c.bf16 %v4942, %v4941
        %v4987 = vpack.c.bf16 %v4944, %v4943
        %v4988 = vpack.c.bf16 %v4945, %v4945
        %v4990 = vshrl.u32 %v4985, 16
        %v4992 = vrot.slane %v4990, 7
        %v4993 = vshll.u32 %v4985, 16
        %v4995 = vor.u32 %v4992, %v4993
        %v4997 = vshrl.u32 %v4986, 16
        %v4999 = vrot.slane %v4997, 7
        %v5000 = vshll.u32 %v4986, 16
        %v5002 = vor.u32 %v4999, %v5000
        %v5004 = vshrl.u32 %v4987, 16
        %v5006 = vrot.slane %v5004, 7
        %v5007 = vshll.u32 %v4987, 16
        %v5009 = vor.u32 %v5006, %v5007
        %v5011 = vshrl.u32 %v4988, 16
        %v5013 = vrot.slane %v5011, 7
        %v5014 = vshll.u32 %v4988, 16
        %v5016 = vor.u32 %v5013, %v5014
        %v5017 = vrot.slane %v4992, 4
        %v5018 = vrot.slane %v4999, 4
        %v5019 = vrot.slane %v5006, 4
        %v5020 = vrot.slane %v5013, 4
        %vm5029 = vcmask 1043456
        %vm5030 = vmand %vm5029, %vm4967
        %vm5031 = vcmask 1047556
        %vm5032 = vmand %vm5031, %vm4969
        %vm5033 = vmor %vm5032, %vm5030
        %v5034 = vld [vmem:[#allocation2] sm:$0xff]
        %v5035 = vsel %vm5033, %v4995, %v5034
        %5036 = vst [vmem:[#allocation2] sm:$0xff] %v5035
        %v5037 = vld [vmem:[#allocation2 + $0x8] sm:$0xff]
        %v5038 = vsel %vm5033, %v5002, %v5037
        %5039 = vst [vmem:[#allocation2 + $0x8] sm:$0xff] %v5038
        %v5040 = vld [vmem:[#allocation2 + $0x10] sm:$0xff]
        %v5041 = vsel %vm5033, %v5009, %v5040
        %5042 = vst [vmem:[#allocation2 + $0x10] sm:$0xff] %v5041
        %vm5043 = vcmask 257024
        %vm5044 = vmand %vm5043, %vm4967
        %v5045 = vld [vmem:[#allocation2 + $0x18] sm:$0xf]
        %v5046 = vsel %vm5044, %v5016, %v5045
        %5047 = vst [vmem:[#allocation2 + $0x18] sm:$0xf] %v5046
        %v5048 = vld [vmem:[#allocation2 + $0x1c] sm:$0x11]
        %v5049 = vsel %vm4952, %v5017, %v5048
        %5050 = vst [vmem:[#allocation2 + $0x1c] sm:$0x11] %v5049
        %v5051 = vld [vmem:[#allocation2 + $0x24] sm:$0x11]
        %v5052 = vsel %vm4952, %v5018, %v5051
        %5053 = vst [vmem:[#allocation2 + $0x24] sm:$0x11] %v5052
        %v5054 = vld [vmem:[#allocation2 + $0x2c] sm:$0x11]
        %v5055 = vsel %vm4952, %v5019, %v5054
        %5056 = vst [vmem:[#allocation2 + $0x2c] sm:$0x11] %v5055
        %v5057 = vld [vmem:[#allocation2 + $0x34] sm:$0x1]
        %v5058 = vsel %vm4963, %v5020, %v5057
        %5059 = vst [vmem:[#allocation2 + $0x34] sm:$0x1] %v5058
        %v5060 = vld [vmem:[#allocation2] sm:$0xff]
        %v5061 = vld [vmem:[#allocation2 + $0x8] sm:$0xff]
        %v5062 = vld [vmem:[#allocation2 + $0x10] sm:$0xff]
        %v5063 = vld [vmem:[#allocation2 + $0x18] sm:$0xf]
        %v5064 = vld [vmem:[#allocation6] sm:$0xff]
        %v5065 = vld [vmem:[#allocation6 + $0x8] sm:$0xff]
        %v5066 = vld [vmem:[#allocation6 + $0x10] sm:$0xff]
        %v5067 = vld [vmem:[#allocation6 + $0x18] sm:$0xff]
        %v5068 = vld [vmem:[#allocation6 + $0x20] sm:$0xff]
        %v5069 = vld [vmem:[#allocation6 + $0x28] sm:$0xff]
        %v5070 = vld [vmem:[#allocation6 + $0x30] sm:$0xff]
        %v5071 = vld [vmem:[#allocation6 + $0x38] sm:$0xff]
        %v5072 = vld [vmem:[#allocation6 + $0x40] sm:$0xff]
        %v5073 = vld [vmem:[#allocation6 + $0x48] sm:$0xff]
        %v5074 = vld [vmem:[#allocation6 + $0x50] sm:$0xff]
        %v5075 = vld [vmem:[#allocation6 + $0x58] sm:$0xff]
        %v5076 = vld [vmem:[#allocation6 + $0x60] sm:$0xff]
        %v5077 = vld [vmem:[#allocation6 + $0x68] sm:$0xff]
        %v5078 = vld [vmem:[#allocation6 + $0x70] sm:$0xff]
        %v5079 = vld [vmem:[#allocation6 + $0x78] sm:$0xff]
        %v5080 = vld [vmem:[#allocation6 + $0x80] sm:$0xff]
        %v5081 = vld [vmem:[#allocation6 + $0x88] sm:$0xff]
        %v5082 = vld [vmem:[#allocation6 + $0x90] sm:$0xff]
        %v5083 = vld [vmem:[#allocation6 + $0x98] sm:$0xff]
        %v5084 = vld [vmem:[#allocation6 + $0xa0] sm:$0xff]
        %v5085 = vld [vmem:[#allocation6 + $0xa8] sm:$0xff]
        %v5086 = vld [vmem:[#allocation6 + $0xb0] sm:$0xff]
        %v5087 = vld [vmem:[#allocation6 + $0xb8] sm:$0xff]
        %v5088 = vld [vmem:[#allocation6 + $0xc0] sm:$0xff]
        %v5089 = vld [vmem:[#allocation6 + $0xc8] sm:$0xff]
        %v5090 = vld [vmem:[#allocation6 + $0xd0] sm:$0xff]
        %v5091 = vld [vmem:[#allocation6 + $0xd8] sm:$0xff]
        %v5092 = vld [vmem:[#allocation6 + $0xe0] sm:$0xff]
        %v5093 = vld [vmem:[#allocation6 + $0xe8] sm:$0xff]
        %v5094 = vld [vmem:[#allocation6 + $0xf0] sm:$0xff]
        %v5095 = vld [vmem:[#allocation6 + $0xf8] sm:$0xff]
        %v5096 = vld [vmem:[#allocation6 + $0x100] sm:$0xff]
        %v5097 = vld [vmem:[#allocation6 + $0x108] sm:$0xff]
        %v5098 = vld [vmem:[#allocation6 + $0x110] sm:$0xff]
        %v5099 = vld [vmem:[#allocation6 + $0x118] sm:$0xff]
        %v5100 = vld [vmem:[#allocation6 + $0x120] sm:$0xff]
        %v5101 = vld [vmem:[#allocation6 + $0x128] sm:$0xff]
        %v5102 = vld [vmem:[#allocation6 + $0x130] sm:$0xff]
        %v5103 = vld [vmem:[#allocation6 + $0x138] sm:$0xff]
        %v5104 = vld [vmem:[#allocation6 + $0x140] sm:$0xff]
        %v5105 = vld [vmem:[#allocation6 + $0x148] sm:$0xff]
        %v5106 = vld [vmem:[#allocation6 + $0x150] sm:$0xff]
        %v5107 = vld [vmem:[#allocation6 + $0x158] sm:$0xff]
        %v5108 = vld [vmem:[#allocation6 + $0x160] sm:$0xff]
        %v5109 = vld [vmem:[#allocation6 + $0x168] sm:$0xff]
        %v5110 = vld [vmem:[#allocation6 + $0x170] sm:$0xff]
        %v5111 = vld [vmem:[#allocation6 + $0x178] sm:$0xff]
        %v5112 = vld [vmem:[#allocation6 + $0x180] sm:$0xff]
        %v5113 = vld [vmem:[#allocation6 + $0x188] sm:$0xff]
        %v5114 = vld [vmem:[#allocation6 + $0x190] sm:$0xff]
        %v5115 = vld [vmem:[#allocation6 + $0x198] sm:$0xff]
        %v5116 = vld [vmem:[#allocation6 + $0x1a0] sm:$0xff]
        %v5117 = vld [vmem:[#allocation6 + $0x1a8] sm:$0xff]
        %v5118 = vld [vmem:[#allocation6 + $0x1b0] sm:$0xff]
        %v5119 = vld [vmem:[#allocation6 + $0x1b8] sm:$0xff]
        %v5120 = vld [vmem:[#allocation6 + $0x1c0] sm:$0xff]
        %v5121 = vld [vmem:[#allocation6 + $0x1c8] sm:$0xff]
        %v5122 = vld [vmem:[#allocation6 + $0x1d0] sm:$0xff]
        %v5123 = vld [vmem:[#allocation6 + $0x1d8] sm:$0xff]
        %v5124 = vld [vmem:[#allocation6 + $0x1e0] sm:$0xff]
        %v5125 = vld [vmem:[#allocation6 + $0x1e8] sm:$0xff]
        %v5126 = vld [vmem:[#allocation6 + $0x1f0] sm:$0xff]
        %v5127 = vld [vmem:[#allocation6 + $0x1f8] sm:$0xff]
        %v5128 = vld [vmem:[#allocation6 + $0x200] sm:$0xff]
        %v5129 = vld [vmem:[#allocation6 + $0x208] sm:$0xff]
        %v5130 = vld [vmem:[#allocation6 + $0x210] sm:$0xff]
        %v5131 = vld [vmem:[#allocation6 + $0x218] sm:$0xff]
        %v5132 = vld [vmem:[#allocation6 + $0x220] sm:$0xff]
        %v5133 = vld [vmem:[#allocation6 + $0x228] sm:$0xff]
        %v5134 = vld [vmem:[#allocation6 + $0x230] sm:$0xff]
        %v5135 = vld [vmem:[#allocation6 + $0x238] sm:$0xff]
        %v5136 = vld [vmem:[#allocation6 + $0x240] sm:$0xff]
        %v5137 = vld [vmem:[#allocation6 + $0x248] sm:$0xff]
        %v5138 = vld [vmem:[#allocation6 + $0x250] sm:$0xff]
        %v5139 = vld [vmem:[#allocation6 + $0x258] sm:$0xff]
        %v5140 = vld [vmem:[#allocation6 + $0x260] sm:$0xff]
        %v5141 = vld [vmem:[#allocation6 + $0x268] sm:$0xff]
        %v5142 = vld [vmem:[#allocation6 + $0x270] sm:$0xff]
        %v5143 = vld [vmem:[#allocation6 + $0x278] sm:$0xff]
        %v5144 = vld [vmem:[#allocation6 + $0x280] sm:$0xff]
        %v5145 = vld [vmem:[#allocation6 + $0x288] sm:$0xff]
        %v5146 = vld [vmem:[#allocation6 + $0x290] sm:$0xff]
        %v5147 = vld [vmem:[#allocation6 + $0x298] sm:$0xff]
        %v5148 = vld [vmem:[#allocation6 + $0x2a0] sm:$0xff]
        %v5149 = vld [vmem:[#allocation6 + $0x2a8] sm:$0xff]
        %v5150 = vld [vmem:[#allocation6 + $0x2b0] sm:$0xff]
        %v5151 = vld [vmem:[#allocation6 + $0x2b8] sm:$0xff]
        %v5152 = vld [vmem:[#allocation6 + $0x2c0] sm:$0xff]
        %v5153 = vld [vmem:[#allocation6 + $0x2c8] sm:$0xff]
        %v5154 = vld [vmem:[#allocation6 + $0x2d0] sm:$0xff]
        %v5155 = vld [vmem:[#allocation6 + $0x2d8] sm:$0xff]
        %v5156 = vld [vmem:[#allocation6 + $0x2e0] sm:$0xff]
        %v5157 = vld [vmem:[#allocation6 + $0x2e8] sm:$0xff]
        %v5158 = vld [vmem:[#allocation6 + $0x2f0] sm:$0xff]
        %v5159 = vld [vmem:[#allocation6 + $0x2f8] sm:$0xff]
        %v5160 = vld [vmem:[#allocation6 + $0x300] sm:$0xff]
        %v5161 = vld [vmem:[#allocation6 + $0x308] sm:$0xff]
        %v5162 = vld [vmem:[#allocation6 + $0x310] sm:$0xff]
        %v5163 = vld [vmem:[#allocation6 + $0x318] sm:$0xff]
        %v5164 = vld [vmem:[#allocation6 + $0x320] sm:$0xff]
        %v5165 = vld [vmem:[#allocation6 + $0x328] sm:$0xff]
        %v5166 = vld [vmem:[#allocation6 + $0x330] sm:$0xff]
        %v5167 = vld [vmem:[#allocation6 + $0x338] sm:$0xff]
        %v5168 = vld [vmem:[#allocation6 + $0x340] sm:$0xff]
        %v5169 = vld [vmem:[#allocation6 + $0x348] sm:$0xff]
        %v5170 = vld [vmem:[#allocation6 + $0x350] sm:$0xff]
        %v5171 = vld [vmem:[#allocation6 + $0x358] sm:$0xff]
        %v5172 = vld [vmem:[#allocation6 + $0x360] sm:$0xff]
        %v5173 = vld [vmem:[#allocation6 + $0x368] sm:$0xff]
        %v5174 = vld [vmem:[#allocation6 + $0x370] sm:$0xff]
        %v5175 = vld [vmem:[#allocation6 + $0x378] sm:$0xff]
        %v5176 = vld [vmem:[#allocation6 + $0x380] sm:$0xff]
        %v5177 = vld [vmem:[#allocation6 + $0x388] sm:$0xff]
        %v5178 = vld [vmem:[#allocation6 + $0x390] sm:$0xff]
        %v5179 = vld [vmem:[#allocation6 + $0x398] sm:$0xff]
        %v5180 = vld [vmem:[#allocation6 + $0x3a0] sm:$0xff]
        %v5181 = vld [vmem:[#allocation6 + $0x3a8] sm:$0xff]
        %v5182 = vld [vmem:[#allocation6 + $0x3b0] sm:$0xff]
        %v5183 = vld [vmem:[#allocation6 + $0x3b8] sm:$0xff]
        %v5184 = vld [vmem:[#allocation6 + $0x3c0] sm:$0xff]
        %v5185 = vld [vmem:[#allocation6 + $0x3c8] sm:$0xff]
        %v5186 = vld [vmem:[#allocation6 + $0x3d0] sm:$0xff]
        %v5187 = vld [vmem:[#allocation6 + $0x3d8] sm:$0xff]
        %v5188 = vld [vmem:[#allocation6 + $0x3e0] sm:$0xff]
        %v5189 = vld [vmem:[#allocation6 + $0x3e8] sm:$0xff]
        %v5190 = vld [vmem:[#allocation6 + $0x3f0] sm:$0xff]
        %v5191 = vld [vmem:[#allocation6 + $0x3f8] sm:$0xff]
        %v5192 = vld [vmem:[#allocation6 + $0x400] sm:$0xff]
        %v5193 = vld [vmem:[#allocation6 + $0x408] sm:$0xff]
        %v5194 = vld [vmem:[#allocation6 + $0x410] sm:$0xff]
        %v5195 = vld [vmem:[#allocation6 + $0x418] sm:$0xff]
        %v5196 = vld [vmem:[#allocation6 + $0x420] sm:$0xff]
        %v5197 = vld [vmem:[#allocation6 + $0x428] sm:$0xff]
        %v5198 = vld [vmem:[#allocation6 + $0x430] sm:$0xff]
        %v5199 = vld [vmem:[#allocation6 + $0x438] sm:$0xff]
        %v5200 = vld [vmem:[#allocation6 + $0x440] sm:$0xff]
        %v5201 = vld [vmem:[#allocation6 + $0x448] sm:$0xff]
        %v5202 = vld [vmem:[#allocation6 + $0x450] sm:$0xff]
        %v5203 = vld [vmem:[#allocation6 + $0x458] sm:$0xff]
        %v5204 = vld [vmem:[#allocation6 + $0x460] sm:$0xff]
        %v5205 = vld [vmem:[#allocation6 + $0x468] sm:$0xff]
        %v5206 = vld [vmem:[#allocation6 + $0x470] sm:$0xff]
        %v5207 = vld [vmem:[#allocation6 + $0x478] sm:$0xff]
        %v5208 = vld [vmem:[#allocation6 + $0x480] sm:$0xff]
        %v5209 = vld [vmem:[#allocation6 + $0x488] sm:$0xff]
        %v5210 = vld [vmem:[#allocation6 + $0x490] sm:$0xff]
        %v5211 = vld [vmem:[#allocation6 + $0x498] sm:$0xff]
        %v5212 = vld [vmem:[#allocation6 + $0x4a0] sm:$0xff]
        %v5213 = vld [vmem:[#allocation6 + $0x4a8] sm:$0xff]
        %v5214 = vld [vmem:[#allocation6 + $0x4b0] sm:$0xff]
        %v5215 = vld [vmem:[#allocation6 + $0x4b8] sm:$0xff]
        %v5216 = vld [vmem:[#allocation6 + $0x4c0] sm:$0xff]
        %v5217 = vld [vmem:[#allocation6 + $0x4c8] sm:$0xff]
        %v5218 = vld [vmem:[#allocation6 + $0x4d0] sm:$0xff]
        %v5219 = vld [vmem:[#allocation6 + $0x4d8] sm:$0xff]
        %v5220 = vld [vmem:[#allocation6 + $0x4e0] sm:$0xff]
        %v5221 = vld [vmem:[#allocation6 + $0x4e8] sm:$0xff]
        %v5222 = vld [vmem:[#allocation6 + $0x4f0] sm:$0xff]
        %v5223 = vld [vmem:[#allocation6 + $0x4f8] sm:$0xff]
        %v5224 = vld [vmem:[#allocation6 + $0x500] sm:$0xff]
        %v5225 = vld [vmem:[#allocation6 + $0x508] sm:$0xff]
        %v5226 = vld [vmem:[#allocation6 + $0x510] sm:$0xff]
        %v5227 = vld [vmem:[#allocation6 + $0x518] sm:$0xff]
        %v5228 = vld [vmem:[#allocation6 + $0x520] sm:$0xff]
        %v5229 = vld [vmem:[#allocation6 + $0x528] sm:$0xff]
        %v5230 = vld [vmem:[#allocation6 + $0x530] sm:$0xff]
        %v5231 = vld [vmem:[#allocation6 + $0x538] sm:$0xff]
        %v5232 = vld [vmem:[#allocation6 + $0x540] sm:$0xff]
        %v5233 = vld [vmem:[#allocation6 + $0x548] sm:$0xff]
        %v5234 = vld [vmem:[#allocation6 + $0x550] sm:$0xff]
        %v5235 = vld [vmem:[#allocation6 + $0x558] sm:$0xff]
        %v5236 = vld [vmem:[#allocation6 + $0x560] sm:$0xff]
        %v5237 = vld [vmem:[#allocation6 + $0x568] sm:$0xff]
        %v5238 = vld [vmem:[#allocation6 + $0x570] sm:$0xff]
        %v5239 = vld [vmem:[#allocation6 + $0x578] sm:$0xff]
        %v5240 = vld [vmem:[#allocation6 + $0x580] sm:$0xff]
        %v5241 = vld [vmem:[#allocation6 + $0x588] sm:$0xff]
        %v5242 = vld [vmem:[#allocation6 + $0x590] sm:$0xff]
        %v5243 = vld [vmem:[#allocation6 + $0x598] sm:$0xff]
        %v5244 = vld [vmem:[#allocation6 + $0x5a0] sm:$0xff]
        %v5245 = vld [vmem:[#allocation6 + $0x5a8] sm:$0xff]
        %v5246 = vld [vmem:[#allocation6 + $0x5b0] sm:$0xff]
        %v5247 = vld [vmem:[#allocation6 + $0x5b8] sm:$0xff]
        %v5248 = vld [vmem:[#allocation6 + $0x5c0] sm:$0xff]
        %v5249 = vld [vmem:[#allocation6 + $0x5c8] sm:$0xff]
        %v5250 = vld [vmem:[#allocation6 + $0x5d0] sm:$0xff]
        %v5251 = vld [vmem:[#allocation6 + $0x5d8] sm:$0xff]
        %v5252 = vld [vmem:[#allocation6 + $0x5e0] sm:$0xff]
        %v5253 = vld [vmem:[#allocation6 + $0x5e8] sm:$0xff]
        %v5254 = vld [vmem:[#allocation6 + $0x5f0] sm:$0xff]
        %v5255 = vld [vmem:[#allocation6 + $0x5f8] sm:$0xff]
        %v5256 = vld [vmem:[#allocation6 + $0x600] sm:$0xff]
        %v5257 = vld [vmem:[#allocation6 + $0x608] sm:$0xff]
        %v5258 = vld [vmem:[#allocation6 + $0x610] sm:$0xff]
        %v5259 = vld [vmem:[#allocation6 + $0x618] sm:$0xff]
        %v5260 = vld [vmem:[#allocation6 + $0x620] sm:$0xff]
        %v5261 = vld [vmem:[#allocation6 + $0x628] sm:$0xff]
        %v5262 = vld [vmem:[#allocation6 + $0x630] sm:$0xff]
        %v5263 = vld [vmem:[#allocation6 + $0x638] sm:$0xff]
        %v5264 = vld [vmem:[#allocation2 + $0x1c] sm:$0x11]
        %v5265 = vld [vmem:[#allocation2 + $0x24] sm:$0x11]
        %v5266 = vld [vmem:[#allocation2 + $0x2c] sm:$0x11]
        %v5267 = vld [vmem:[#allocation2 + $0x34] sm:$0x1]
        %s5268 = scalar_lea.vmem [#allocation6], 1600
        %v5269 = vld [vmem:[%s5268] sm:$0xff]
        %v5270 = vld [vmem:[%s5268 + $0x8] sm:$0xff]
        %v5271 = vld [vmem:[%s5268 + $0x10] sm:$0xff]
        %v5272 = vld [vmem:[%s5268 + $0x18] sm:$0xff]
        %v5273 = vld [vmem:[%s5268 + $0x20] sm:$0xff]
        %v5274 = vld [vmem:[%s5268 + $0x28] sm:$0xff]
        %v5275 = vld [vmem:[%s5268 + $0x30] sm:$0xff]
        %v5276 = vld [vmem:[%s5268 + $0x38] sm:$0xff]
        %v5277 = vld [vmem:[%s5268 + $0x40] sm:$0xff]
        %v5278 = vld [vmem:[%s5268 + $0x48] sm:$0xff]
        %v5279 = vld [vmem:[%s5268 + $0x50] sm:$0xff]
        %v5280 = vld [vmem:[%s5268 + $0x58] sm:$0xff]
        %v5281 = vld [vmem:[%s5268 + $0x60] sm:$0xff]
        %v5282 = vld [vmem:[%s5268 + $0x68] sm:$0xff]
        %v5283 = vld [vmem:[%s5268 + $0x70] sm:$0xff]
        %v5284 = vld [vmem:[%s5268 + $0x78] sm:$0xff]
        %v5285 = vld [vmem:[%s5268 + $0x80] sm:$0xff]
        %v5286 = vld [vmem:[%s5268 + $0x88] sm:$0xff]
        %v5287 = vld [vmem:[%s5268 + $0x90] sm:$0xff]
        %v5288 = vld [vmem:[%s5268 + $0x98] sm:$0xff]
        %v5289 = vld [vmem:[%s5268 + $0xa0] sm:$0xff]
        %v5290 = vld [vmem:[%s5268 + $0xa8] sm:$0xff]
        %v5291 = vld [vmem:[%s5268 + $0xb0] sm:$0xff]
        %v5292 = vld [vmem:[%s5268 + $0xb8] sm:$0xff]
        %v5293 = vld [vmem:[%s5268 + $0xc0] sm:$0xff]
        %v5294 = vld [vmem:[%s5268 + $0xc8] sm:$0xff]
        %v5295 = vld [vmem:[%s5268 + $0xd0] sm:$0xff]
        %v5296 = vld [vmem:[%s5268 + $0xd8] sm:$0xff]
        %v5297 = vld [vmem:[%s5268 + $0xe0] sm:$0xff]
        %v5298 = vld [vmem:[%s5268 + $0xe8] sm:$0xff]
        %v5299 = vld [vmem:[%s5268 + $0xf0] sm:$0xff]
        %v5300 = vld [vmem:[%s5268 + $0xf8] sm:$0xff]
        %v5301 = vld [vmem:[%s5268 + $0x100] sm:$0xff]
        %v5302 = vld [vmem:[%s5268 + $0x108] sm:$0xff]
        %v5303 = vld [vmem:[%s5268 + $0x110] sm:$0xff]
        %v5304 = vld [vmem:[%s5268 + $0x118] sm:$0xff]
        %v5305 = vld [vmem:[%s5268 + $0x120] sm:$0xff]
        %v5306 = vld [vmem:[%s5268 + $0x128] sm:$0xff]
        %v5307 = vld [vmem:[%s5268 + $0x130] sm:$0xff]
        %v5308 = vld [vmem:[%s5268 + $0x138] sm:$0xff]
        %v5309 = vld [vmem:[%s5268 + $0x140] sm:$0xff]
        %v5310 = vld [vmem:[%s5268 + $0x148] sm:$0xff]
        %v5311 = vld [vmem:[%s5268 + $0x150] sm:$0xff]
        %v5312 = vld [vmem:[%s5268 + $0x158] sm:$0xff]
        %v5313 = vld [vmem:[%s5268 + $0x160] sm:$0xff]
        %v5314 = vld [vmem:[%s5268 + $0x168] sm:$0xff]
        %v5315 = vld [vmem:[%s5268 + $0x170] sm:$0xff]
        %v5316 = vld [vmem:[%s5268 + $0x178] sm:$0xff]
        %v5317 = vld [vmem:[%s5268 + $0x180] sm:$0xff]
        %v5318 = vld [vmem:[%s5268 + $0x188] sm:$0xff]
        %v5319 = vld [vmem:[%s5268 + $0x190] sm:$0xff]
        %v5320 = vld [vmem:[%s5268 + $0x198] sm:$0xff]
        %v5321 = vld [vmem:[%s5268 + $0x1a0] sm:$0xff]
        %v5322 = vld [vmem:[%s5268 + $0x1a8] sm:$0xff]
        %v5323 = vld [vmem:[%s5268 + $0x1b0] sm:$0xff]
        %v5324 = vld [vmem:[%s5268 + $0x1b8] sm:$0xff]
        %v5325 = vld [vmem:[%s5268 + $0x1c0] sm:$0xff]
        %v5326 = vld [vmem:[%s5268 + $0x1c8] sm:$0xff]
        %v5327 = vld [vmem:[%s5268 + $0x1d0] sm:$0xff]
        %v5328 = vld [vmem:[%s5268 + $0x1d8] sm:$0xff]
        %v5329 = vld [vmem:[%s5268 + $0x1e0] sm:$0xff]
        %v5330 = vld [vmem:[%s5268 + $0x1e8] sm:$0xff]
        %v5331 = vld [vmem:[%s5268 + $0x1f0] sm:$0xff]
        %v5332 = vld [vmem:[%s5268 + $0x1f8] sm:$0xff]
        %v5333 = vld [vmem:[%s5268 + $0x200] sm:$0xff]
        %v5334 = vld [vmem:[%s5268 + $0x208] sm:$0xff]
        %v5335 = vld [vmem:[%s5268 + $0x210] sm:$0xff]
        %v5336 = vld [vmem:[%s5268 + $0x218] sm:$0xff]
        %v5337 = vld [vmem:[%s5268 + $0x220] sm:$0xff]
        %v5338 = vld [vmem:[%s5268 + $0x228] sm:$0xff]
        %v5339 = vld [vmem:[%s5268 + $0x230] sm:$0xff]
        %v5340 = vld [vmem:[%s5268 + $0x238] sm:$0xff]
        %v5341 = vld [vmem:[%s5268 + $0x240] sm:$0xff]
        %v5342 = vld [vmem:[%s5268 + $0x248] sm:$0xff]
        %v5343 = vld [vmem:[%s5268 + $0x250] sm:$0xff]
        %v5344 = vld [vmem:[%s5268 + $0x258] sm:$0xff]
        %v5345 = vld [vmem:[%s5268 + $0x260] sm:$0xff]
        %v5346 = vld [vmem:[%s5268 + $0x268] sm:$0xff]
        %v5347 = vld [vmem:[%s5268 + $0x270] sm:$0xff]
        %v5348 = vld [vmem:[%s5268 + $0x278] sm:$0xff]
        %v5349 = vld [vmem:[%s5268 + $0x280] sm:$0xff]
        %v5350 = vld [vmem:[%s5268 + $0x288] sm:$0xff]
        %v5351 = vld [vmem:[%s5268 + $0x290] sm:$0xff]
        %v5352 = vld [vmem:[%s5268 + $0x298] sm:$0xff]
        %v5353 = vld [vmem:[%s5268 + $0x2a0] sm:$0xff]
        %v5354 = vld [vmem:[%s5268 + $0x2a8] sm:$0xff]
        %v5355 = vld [vmem:[%s5268 + $0x2b0] sm:$0xff]
        %v5356 = vld [vmem:[%s5268 + $0x2b8] sm:$0xff]
        %v5357 = vld [vmem:[%s5268 + $0x2c0] sm:$0xff]
        %v5358 = vld [vmem:[%s5268 + $0x2c8] sm:$0xff]
        %v5359 = vld [vmem:[%s5268 + $0x2d0] sm:$0xff]
        %v5360 = vld [vmem:[%s5268 + $0x2d8] sm:$0xff]
        %v5361 = vld [vmem:[%s5268 + $0x2e0] sm:$0xff]
        %v5362 = vld [vmem:[%s5268 + $0x2e8] sm:$0xff]
        %v5363 = vld [vmem:[%s5268 + $0x2f0] sm:$0xff]
        %v5364 = vld [vmem:[%s5268 + $0x2f8] sm:$0xff]
        %v5365 = vld [vmem:[%s5268 + $0x300] sm:$0xff]
        %v5366 = vld [vmem:[%s5268 + $0x308] sm:$0xff]
        %v5367 = vld [vmem:[%s5268 + $0x310] sm:$0xff]
        %v5368 = vld [vmem:[%s5268 + $0x318] sm:$0xff]
        %v5369 = vld [vmem:[%s5268 + $0x320] sm:$0xff]
        %v5370 = vld [vmem:[%s5268 + $0x328] sm:$0xff]
        %v5371 = vld [vmem:[%s5268 + $0x330] sm:$0xff]
        %v5372 = vld [vmem:[%s5268 + $0x338] sm:$0xff]
        %v5373 = vld [vmem:[%s5268 + $0x340] sm:$0xff]
        %v5374 = vld [vmem:[%s5268 + $0x348] sm:$0xff]
        %v5375 = vld [vmem:[%s5268 + $0x350] sm:$0xff]
        %v5376 = vld [vmem:[%s5268 + $0x358] sm:$0xff]
        %v5377 = vld [vmem:[%s5268 + $0x360] sm:$0xff]
        %v5378 = vld [vmem:[%s5268 + $0x368] sm:$0xff]
        %v5379 = vld [vmem:[%s5268 + $0x370] sm:$0xff]
        %v5380 = vld [vmem:[%s5268 + $0x378] sm:$0xff]
        %v5381 = vld [vmem:[%s5268 + $0x380] sm:$0xff]
        %v5382 = vld [vmem:[%s5268 + $0x388] sm:$0xff]
        %v5383 = vld [vmem:[%s5268 + $0x390] sm:$0xff]
        %v5384 = vld [vmem:[%s5268 + $0x398] sm:$0xff]
        %v5385 = vld [vmem:[%s5268 + $0x3a0] sm:$0xff]
        %v5386 = vld [vmem:[%s5268 + $0x3a8] sm:$0xff]
        %v5387 = vld [vmem:[%s5268 + $0x3b0] sm:$0xff]
        %v5388 = vld [vmem:[%s5268 + $0x3b8] sm:$0xff]
        %v5389 = vld [vmem:[%s5268 + $0x3c0] sm:$0xff]
        %v5390 = vld [vmem:[%s5268 + $0x3c8] sm:$0xff]
        %v5391 = vld [vmem:[%s5268 + $0x3d0] sm:$0xff]
        %v5392 = vld [vmem:[%s5268 + $0x3d8] sm:$0xff]
        %v5393 = vld [vmem:[%s5268 + $0x3e0] sm:$0xff]
        %v5394 = vld [vmem:[%s5268 + $0x3e8] sm:$0xff]
        %v5395 = vld [vmem:[%s5268 + $0x3f0] sm:$0xff]
        %v5396 = vld [vmem:[%s5268 + $0x3f8] sm:$0xff]
        %v5397 = vld [vmem:[%s5268 + $0x400] sm:$0xff]
        %v5398 = vld [vmem:[%s5268 + $0x408] sm:$0xff]
        %v5399 = vld [vmem:[%s5268 + $0x410] sm:$0xff]
        %v5400 = vld [vmem:[%s5268 + $0x418] sm:$0xff]
        %v5401 = vld [vmem:[%s5268 + $0x420] sm:$0xff]
        %v5402 = vld [vmem:[%s5268 + $0x428] sm:$0xff]
        %v5403 = vld [vmem:[%s5268 + $0x430] sm:$0xff]
        %v5404 = vld [vmem:[%s5268 + $0x438] sm:$0xff]
        %v5405 = vld [vmem:[%s5268 + $0x440] sm:$0xff]
        %v5406 = vld [vmem:[%s5268 + $0x448] sm:$0xff]
        %v5407 = vld [vmem:[%s5268 + $0x450] sm:$0xff]
        %v5408 = vld [vmem:[%s5268 + $0x458] sm:$0xff]
        %v5409 = vld [vmem:[%s5268 + $0x460] sm:$0xff]
        %v5410 = vld [vmem:[%s5268 + $0x468] sm:$0xff]
        %v5411 = vld [vmem:[%s5268 + $0x470] sm:$0xff]
        %v5412 = vld [vmem:[%s5268 + $0x478] sm:$0xff]
        %v5413 = vld [vmem:[%s5268 + $0x480] sm:$0xff]
        %v5414 = vld [vmem:[%s5268 + $0x488] sm:$0xff]
        %v5415 = vld [vmem:[%s5268 + $0x490] sm:$0xff]
        %v5416 = vld [vmem:[%s5268 + $0x498] sm:$0xff]
        %v5417 = vld [vmem:[%s5268 + $0x4a0] sm:$0xff]
        %v5418 = vld [vmem:[%s5268 + $0x4a8] sm:$0xff]
        %v5419 = vld [vmem:[%s5268 + $0x4b0] sm:$0xff]
        %v5420 = vld [vmem:[%s5268 + $0x4b8] sm:$0xff]
        %v5421 = vld [vmem:[%s5268 + $0x4c0] sm:$0xff]
        %v5422 = vld [vmem:[%s5268 + $0x4c8] sm:$0xff]
        %v5423 = vld [vmem:[%s5268 + $0x4d0] sm:$0xff]
        %v5424 = vld [vmem:[%s5268 + $0x4d8] sm:$0xff]
        %v5425 = vld [vmem:[%s5268 + $0x4e0] sm:$0xff]
        %v5426 = vld [vmem:[%s5268 + $0x4e8] sm:$0xff]
        %v5427 = vld [vmem:[%s5268 + $0x4f0] sm:$0xff]
        %v5428 = vld [vmem:[%s5268 + $0x4f8] sm:$0xff]
        %v5429 = vld [vmem:[%s5268 + $0x500] sm:$0xff]
        %v5430 = vld [vmem:[%s5268 + $0x508] sm:$0xff]
        %v5431 = vld [vmem:[%s5268 + $0x510] sm:$0xff]
        %v5432 = vld [vmem:[%s5268 + $0x518] sm:$0xff]
        %v5433 = vld [vmem:[%s5268 + $0x520] sm:$0xff]
        %v5434 = vld [vmem:[%s5268 + $0x528] sm:$0xff]
        %v5435 = vld [vmem:[%s5268 + $0x530] sm:$0xff]
        %v5436 = vld [vmem:[%s5268 + $0x538] sm:$0xff]
        %v5437 = vld [vmem:[%s5268 + $0x540] sm:$0xff]
        %v5438 = vld [vmem:[%s5268 + $0x548] sm:$0xff]
        %v5439 = vld [vmem:[%s5268 + $0x550] sm:$0xff]
        %v5440 = vld [vmem:[%s5268 + $0x558] sm:$0xff]
        %v5441 = vld [vmem:[%s5268 + $0x560] sm:$0xff]
        %v5442 = vld [vmem:[%s5268 + $0x568] sm:$0xff]
        %v5443 = vld [vmem:[%s5268 + $0x570] sm:$0xff]
        %v5444 = vld [vmem:[%s5268 + $0x578] sm:$0xff]
        %v5445 = vld [vmem:[%s5268 + $0x580] sm:$0xff]
        %v5446 = vld [vmem:[%s5268 + $0x588] sm:$0xff]
        %v5447 = vld [vmem:[%s5268 + $0x590] sm:$0xff]
        %v5448 = vld [vmem:[%s5268 + $0x598] sm:$0xff]
        %v5449 = vld [vmem:[%s5268 + $0x5a0] sm:$0xff]
        %v5450 = vld [vmem:[%s5268 + $0x5a8] sm:$0xff]
        %v5451 = vld [vmem:[%s5268 + $0x5b0] sm:$0xff]
        %v5452 = vld [vmem:[%s5268 + $0x5b8] sm:$0xff]
        %v5453 = vld [vmem:[%s5268 + $0x5c0] sm:$0xff]
        %v5454 = vld [vmem:[%s5268 + $0x5c8] sm:$0xff]
        %v5455 = vld [vmem:[%s5268 + $0x5d0] sm:$0xff]
        %v5456 = vld [vmem:[%s5268 + $0x5d8] sm:$0xff]
        %v5457 = vld [vmem:[%s5268 + $0x5e0] sm:$0xff]
        %v5458 = vld [vmem:[%s5268 + $0x5e8] sm:$0xff]
        %v5459 = vld [vmem:[%s5268 + $0x5f0] sm:$0xff]
        %v5460 = vld [vmem:[%s5268 + $0x5f8] sm:$0xff]
        %v5461 = vld [vmem:[%s5268 + $0x600] sm:$0xff]
        %v5462 = vld [vmem:[%s5268 + $0x608] sm:$0xff]
        %v5463 = vld [vmem:[%s5268 + $0x610] sm:$0xff]
        %v5464 = vld [vmem:[%s5268 + $0x618] sm:$0xff]
        %v5465 = vld [vmem:[%s5268 + $0x620] sm:$0xff]
        %v5466 = vld [vmem:[%s5268 + $0x628] sm:$0xff]
        %v5467 = vld [vmem:[%s5268 + $0x630] sm:$0xff]
        %v5468 = vld [vmem:[%s5268 + $0x638] sm:$0xff]
        %v5477 = vunpack.c.l.b16 %v5060
        %v5478 = vunpack.c.h.b16 %v5060
        %v5479 = vunpack.c.l.b16 %v5061
        %v5480 = vunpack.c.h.b16 %v5061
        %v5481 = vunpack.c.l.b16 %v5062
        %v5482 = vunpack.c.h.b16 %v5062
        %v5483 = vunpack.c.l.b16 %v5063
        %v5484 = vunpack.c.l.b16 %v5264
        %v5485 = vunpack.c.h.b16 %v5264
        %v5486 = vunpack.c.l.b16 %v5265
        %v5487 = vunpack.c.h.b16 %v5265
        %v5488 = vunpack.c.l.b16 %v5266
        %v5489 = vunpack.c.h.b16 %v5266
        %v5490 = vunpack.c.l.b16 %v5267
        %v5491 = vpack.c.b16 %v5484, %v5477
        %v5492 = vpack.c.b16 %v5485, %v5478
        %v5493 = vpack.c.b16 %v5486, %v5479
        %v5494 = vpack.c.b16 %v5487, %v5480
        %v5495 = vpack.c.b16 %v5488, %v5481
        %v5496 = vpack.c.b16 %v5489, %v5482
        %v5497 = vpack.c.b16 %v5490, %v5483
        %v5499 = vshrl.u32 %v5491, 16
        %v5501 = vshll.u32 %v5491, 16
        %v5503 = vrot.slane %v5501, 1
        %v5504 = vor.u32 %v5499, %v5503
        %v5506 = vshrl.u32 %v5492, 16
        %v5508 = vshll.u32 %v5492, 16
        %v5510 = vrot.slane %v5508, 1
        %v5511 = vor.u32 %v5506, %v5510
        %v5513 = vshrl.u32 %v5493, 16
        %v5515 = vshll.u32 %v5493, 16
        %v5517 = vrot.slane %v5515, 1
        %v5518 = vor.u32 %v5513, %v5517
        %v5520 = vshrl.u32 %v5494, 16
        %v5522 = vshll.u32 %v5494, 16
        %v5524 = vrot.slane %v5522, 1
        %v5525 = vor.u32 %v5520, %v5524
        %v5527 = vshrl.u32 %v5495, 16
        %v5529 = vshll.u32 %v5495, 16
        %v5531 = vrot.slane %v5529, 1
        %v5532 = vor.u32 %v5527, %v5531
        %v5534 = vshrl.u32 %v5496, 16
        %v5536 = vshll.u32 %v5496, 16
        %v5538 = vrot.slane %v5536, 1
        %v5539 = vor.u32 %v5534, %v5538
        %v5541 = vshrl.u32 %v5497, 16
        %v5543 = vshll.u32 %v5497, 16
        %v5545 = vrot.slane %v5543, 1
        %v5546 = vor.u32 %v5541, %v5545
        %v5753 = vunpack.c.l.b16 %v5269
        %v5754 = vunpack.c.h.b16 %v5269
        %v5755 = vunpack.c.l.b16 %v5270
        %v5756 = vunpack.c.h.b16 %v5270
        %v5757 = vunpack.c.l.b16 %v5271
        %v5758 = vunpack.c.h.b16 %v5271
        %v5759 = vunpack.c.l.b16 %v5272
        %v5760 = vunpack.c.h.b16 %v5272
        %v5761 = vunpack.c.l.b16 %v5273
        %v5762 = vunpack.c.h.b16 %v5273
        %v5763 = vunpack.c.l.b16 %v5274
        %v5764 = vunpack.c.h.b16 %v5274
        %v5765 = vunpack.c.l.b16 %v5275
        %v5766 = vunpack.c.h.b16 %v5275
        %v5767 = vunpack.c.l.b16 %v5276
        %v5768 = vunpack.c.h.b16 %v5276
        %v5769 = vunpack.c.l.b16 %v5277
        %v5770 = vunpack.c.h.b16 %v5277
        %v5771 = vunpack.c.l.b16 %v5278
        %v5772 = vunpack.c.h.b16 %v5278
        %v5773 = vunpack.c.l.b16 %v5279
        %v5774 = vunpack.c.h.b16 %v5279
        %v5775 = vunpack.c.l.b16 %v5280
        %v5776 = vunpack.c.h.b16 %v5280
        %v5777 = vunpack.c.l.b16 %v5281
        %v5778 = vunpack.c.h.b16 %v5281
        %v5779 = vunpack.c.l.b16 %v5282
        %v5780 = vunpack.c.h.b16 %v5282
        %v5781 = vunpack.c.l.b16 %v5283
        %v5782 = vunpack.c.h.b16 %v5283
        %v5783 = vunpack.c.l.b16 %v5284
        %v5784 = vunpack.c.h.b16 %v5284
        %v5785 = vunpack.c.l.b16 %v5285
        %v5786 = vunpack.c.h.b16 %v5285
        %v5787 = vunpack.c.l.b16 %v5286
        %v5788 = vunpack.c.h.b16 %v5286
        %v5789 = vunpack.c.l.b16 %v5287
        %v5790 = vunpack.c.h.b16 %v5287
        %v5791 = vunpack.c.l.b16 %v5288
        %v5792 = vunpack.c.h.b16 %v5288
        %v5793 = vunpack.c.l.b16 %v5289
        %v5794 = vunpack.c.h.b16 %v5289
        %v5795 = vunpack.c.l.b16 %v5290
        %v5796 = vunpack.c.h.b16 %v5290
        %v5797 = vunpack.c.l.b16 %v5291
        %v5798 = vunpack.c.h.b16 %v5291
        %v5799 = vunpack.c.l.b16 %v5292
        %v5800 = vunpack.c.h.b16 %v5292
        %v5801 = vunpack.c.l.b16 %v5293
        %v5802 = vunpack.c.h.b16 %v5293
        %v5803 = vunpack.c.l.b16 %v5294
        %v5804 = vunpack.c.h.b16 %v5294
        %v5805 = vunpack.c.l.b16 %v5295
        %v5806 = vunpack.c.h.b16 %v5295
        %v5807 = vunpack.c.l.b16 %v5296
        %v5808 = vunpack.c.h.b16 %v5296
        %v5809 = vunpack.c.l.b16 %v5297
        %v5810 = vunpack.c.h.b16 %v5297
        %v5811 = vunpack.c.l.b16 %v5298
        %v5812 = vunpack.c.h.b16 %v5298
        %v5813 = vunpack.c.l.b16 %v5299
        %v5814 = vunpack.c.h.b16 %v5299
        %v5815 = vunpack.c.l.b16 %v5300
        %v5816 = vunpack.c.h.b16 %v5300
        %v5817 = vunpack.c.l.b16 %v5301
        %v5818 = vunpack.c.h.b16 %v5301
        %v5819 = vunpack.c.l.b16 %v5302
        %v5820 = vunpack.c.h.b16 %v5302
        %v5821 = vunpack.c.l.b16 %v5303
        %v5822 = vunpack.c.h.b16 %v5303
        %v5823 = vunpack.c.l.b16 %v5304
        %v5824 = vunpack.c.h.b16 %v5304
        %v5825 = vunpack.c.l.b16 %v5305
        %v5826 = vunpack.c.h.b16 %v5305
        %v5827 = vunpack.c.l.b16 %v5306
        %v5828 = vunpack.c.h.b16 %v5306
        %v5829 = vunpack.c.l.b16 %v5307
        %v5830 = vunpack.c.h.b16 %v5307
        %v5831 = vunpack.c.l.b16 %v5308
        %v5832 = vunpack.c.h.b16 %v5308
        %v5833 = vunpack.c.l.b16 %v5309
        %v5834 = vunpack.c.h.b16 %v5309
        %v5835 = vunpack.c.l.b16 %v5310
        %v5836 = vunpack.c.h.b16 %v5310
        %v5837 = vunpack.c.l.b16 %v5311
        %v5838 = vunpack.c.h.b16 %v5311
        %v5839 = vunpack.c.l.b16 %v5312
        %v5840 = vunpack.c.h.b16 %v5312
        %v5841 = vunpack.c.l.b16 %v5313
        %v5842 = vunpack.c.h.b16 %v5313
        %v5843 = vunpack.c.l.b16 %v5314
        %v5844 = vunpack.c.h.b16 %v5314
        %v5845 = vunpack.c.l.b16 %v5315
        %v5846 = vunpack.c.h.b16 %v5315
        %v5847 = vunpack.c.l.b16 %v5316
        %v5848 = vunpack.c.h.b16 %v5316
        %v5849 = vunpack.c.l.b16 %v5317
        %v5850 = vunpack.c.h.b16 %v5317
        %v5851 = vunpack.c.l.b16 %v5318
        %v5852 = vunpack.c.h.b16 %v5318
        %v5853 = vunpack.c.l.b16 %v5319
        %v5854 = vunpack.c.h.b16 %v5319
        %v5855 = vunpack.c.l.b16 %v5320
        %v5856 = vunpack.c.h.b16 %v5320
        %v5857 = vunpack.c.l.b16 %v5321
        %v5858 = vunpack.c.h.b16 %v5321
        %v5859 = vunpack.c.l.b16 %v5322
        %v5860 = vunpack.c.h.b16 %v5322
        %v5861 = vunpack.c.l.b16 %v5323
        %v5862 = vunpack.c.h.b16 %v5323
        %v5863 = vunpack.c.l.b16 %v5324
        %v5864 = vunpack.c.h.b16 %v5324
        %v5865 = vunpack.c.l.b16 %v5325
        %v5866 = vunpack.c.h.b16 %v5325
        %v5867 = vunpack.c.l.b16 %v5326
        %v5868 = vunpack.c.h.b16 %v5326
        %v5869 = vunpack.c.l.b16 %v5327
        %v5870 = vunpack.c.h.b16 %v5327
        %v5871 = vunpack.c.l.b16 %v5328
        %v5872 = vunpack.c.h.b16 %v5328
        %v5873 = vunpack.c.l.b16 %v5329
        %v5874 = vunpack.c.h.b16 %v5329
        %v5875 = vunpack.c.l.b16 %v5330
        %v5876 = vunpack.c.h.b16 %v5330
        %v5877 = vunpack.c.l.b16 %v5331
        %v5878 = vunpack.c.h.b16 %v5331
        %v5879 = vunpack.c.l.b16 %v5332
        %v5880 = vunpack.c.h.b16 %v5332
        %v5881 = vunpack.c.l.b16 %v5333
        %v5882 = vunpack.c.h.b16 %v5333
        %v5883 = vunpack.c.l.b16 %v5334
        %v5884 = vunpack.c.h.b16 %v5334
        %v5885 = vunpack.c.l.b16 %v5335
        %v5886 = vunpack.c.h.b16 %v5335
        %v5887 = vunpack.c.l.b16 %v5336
        %v5888 = vunpack.c.h.b16 %v5336
        %v5889 = vunpack.c.l.b16 %v5337
        %v5890 = vunpack.c.h.b16 %v5337
        %v5891 = vunpack.c.l.b16 %v5338
        %v5892 = vunpack.c.h.b16 %v5338
        %v5893 = vunpack.c.l.b16 %v5339
        %v5894 = vunpack.c.h.b16 %v5339
        %v5895 = vunpack.c.l.b16 %v5340
        %v5896 = vunpack.c.h.b16 %v5340
        %v5897 = vunpack.c.l.b16 %v5341
        %v5898 = vunpack.c.h.b16 %v5341
        %v5899 = vunpack.c.l.b16 %v5342
        %v5900 = vunpack.c.h.b16 %v5342
        %v5901 = vunpack.c.l.b16 %v5343
        %v5902 = vunpack.c.h.b16 %v5343
        %v5903 = vunpack.c.l.b16 %v5344
        %v5904 = vunpack.c.h.b16 %v5344
        %v5905 = vunpack.c.l.b16 %v5345
        %v5906 = vunpack.c.h.b16 %v5345
        %v5907 = vunpack.c.l.b16 %v5346
        %v5908 = vunpack.c.h.b16 %v5346
        %v5909 = vunpack.c.l.b16 %v5347
        %v5910 = vunpack.c.h.b16 %v5347
        %v5911 = vunpack.c.l.b16 %v5348
        %v5912 = vunpack.c.h.b16 %v5348
        %v5913 = vunpack.c.l.b16 %v5349
        %v5914 = vunpack.c.h.b16 %v5349
        %v5915 = vunpack.c.l.b16 %v5350
        %v5916 = vunpack.c.h.b16 %v5350
        %v5917 = vunpack.c.l.b16 %v5351
        %v5918 = vunpack.c.h.b16 %v5351
        %v5919 = vunpack.c.l.b16 %v5352
        %v5920 = vunpack.c.h.b16 %v5352
        %v5921 = vunpack.c.l.b16 %v5353
        %v5922 = vunpack.c.h.b16 %v5353
        %v5923 = vunpack.c.l.b16 %v5354
        %v5924 = vunpack.c.h.b16 %v5354
        %v5925 = vunpack.c.l.b16 %v5355
        %v5926 = vunpack.c.h.b16 %v5355
        %v5927 = vunpack.c.l.b16 %v5356
        %v5928 = vunpack.c.h.b16 %v5356
        %v5929 = vunpack.c.l.b16 %v5357
        %v5930 = vunpack.c.h.b16 %v5357
        %v5931 = vunpack.c.l.b16 %v5358
        %v5932 = vunpack.c.h.b16 %v5358
        %v5933 = vunpack.c.l.b16 %v5359
        %v5934 = vunpack.c.h.b16 %v5359
        %v5935 = vunpack.c.l.b16 %v5360
        %v5936 = vunpack.c.h.b16 %v5360
        %v5937 = vunpack.c.l.b16 %v5361
        %v5938 = vunpack.c.h.b16 %v5361
        %v5939 = vunpack.c.l.b16 %v5362
        %v5940 = vunpack.c.h.b16 %v5362
        %v5941 = vunpack.c.l.b16 %v5363
        %v5942 = vunpack.c.h.b16 %v5363
        %v5943 = vunpack.c.l.b16 %v5364
        %v5944 = vunpack.c.h.b16 %v5364
        %v5945 = vunpack.c.l.b16 %v5365
        %v5946 = vunpack.c.h.b16 %v5365
        %v5947 = vunpack.c.l.b16 %v5366
        %v5948 = vunpack.c.h.b16 %v5366
        %v5949 = vunpack.c.l.b16 %v5367
        %v5950 = vunpack.c.h.b16 %v5367
        %v5951 = vunpack.c.l.b16 %v5368
        %v5952 = vunpack.c.h.b16 %v5368
        %v5953 = vunpack.c.l.b16 %v5369
        %v5954 = vunpack.c.h.b16 %v5369
        %v5955 = vunpack.c.l.b16 %v5370
        %v5956 = vunpack.c.h.b16 %v5370
        %v5957 = vunpack.c.l.b16 %v5371
        %v5958 = vunpack.c.h.b16 %v5371
        %v5959 = vunpack.c.l.b16 %v5372
        %v5960 = vunpack.c.h.b16 %v5372
        %v5961 = vunpack.c.l.b16 %v5373
        %v5962 = vunpack.c.h.b16 %v5373
        %v5963 = vunpack.c.l.b16 %v5374
        %v5964 = vunpack.c.h.b16 %v5374
        %v5965 = vunpack.c.l.b16 %v5375
        %v5966 = vunpack.c.h.b16 %v5375
        %v5967 = vunpack.c.l.b16 %v5376
        %v5968 = vunpack.c.h.b16 %v5376
        %v5969 = vunpack.c.l.b16 %v5377
        %v5970 = vunpack.c.h.b16 %v5377
        %v5971 = vunpack.c.l.b16 %v5378
        %v5972 = vunpack.c.h.b16 %v5378
        %v5973 = vunpack.c.l.b16 %v5379
        %v5974 = vunpack.c.h.b16 %v5379
        %v5975 = vunpack.c.l.b16 %v5380
        %v5976 = vunpack.c.h.b16 %v5380
        %v5977 = vunpack.c.l.b16 %v5381
        %v5978 = vunpack.c.h.b16 %v5381
        %v5979 = vunpack.c.l.b16 %v5382
        %v5980 = vunpack.c.h.b16 %v5382
        %v5981 = vunpack.c.l.b16 %v5383
        %v5982 = vunpack.c.h.b16 %v5383
        %v5983 = vunpack.c.l.b16 %v5384
        %v5984 = vunpack.c.h.b16 %v5384
        %v5985 = vunpack.c.l.b16 %v5385
        %v5986 = vunpack.c.h.b16 %v5385
        %v5987 = vunpack.c.l.b16 %v5386
        %v5988 = vunpack.c.h.b16 %v5386
        %v5989 = vunpack.c.l.b16 %v5387
        %v5990 = vunpack.c.h.b16 %v5387
        %v5991 = vunpack.c.l.b16 %v5388
        %v5992 = vunpack.c.h.b16 %v5388
        %v5993 = vunpack.c.l.b16 %v5389
        %v5994 = vunpack.c.h.b16 %v5389
        %v5995 = vunpack.c.l.b16 %v5390
        %v5996 = vunpack.c.h.b16 %v5390
        %v5997 = vunpack.c.l.b16 %v5391
        %v5998 = vunpack.c.h.b16 %v5391
        %v5999 = vunpack.c.l.b16 %v5392
        %v6000 = vunpack.c.h.b16 %v5392
        %v6001 = vunpack.c.l.b16 %v5393
        %v6002 = vunpack.c.h.b16 %v5393
        %v6003 = vunpack.c.l.b16 %v5394
        %v6004 = vunpack.c.h.b16 %v5394
        %v6005 = vunpack.c.l.b16 %v5395
        %v6006 = vunpack.c.h.b16 %v5395
        %v6007 = vunpack.c.l.b16 %v5396
        %v6008 = vunpack.c.h.b16 %v5396
        %v6009 = vunpack.c.l.b16 %v5397
        %v6010 = vunpack.c.h.b16 %v5397
        %v6011 = vunpack.c.l.b16 %v5398
        %v6012 = vunpack.c.h.b16 %v5398
        %v6013 = vunpack.c.l.b16 %v5399
        %v6014 = vunpack.c.h.b16 %v5399
        %v6015 = vunpack.c.l.b16 %v5400
        %v6016 = vunpack.c.h.b16 %v5400
        %v6017 = vunpack.c.l.b16 %v5401
        %v6018 = vunpack.c.h.b16 %v5401
        %v6019 = vunpack.c.l.b16 %v5402
        %v6020 = vunpack.c.h.b16 %v5402
        %v6021 = vunpack.c.l.b16 %v5403
        %v6022 = vunpack.c.h.b16 %v5403
        %v6023 = vunpack.c.l.b16 %v5404
        %v6024 = vunpack.c.h.b16 %v5404
        %v6025 = vunpack.c.l.b16 %v5405
        %v6026 = vunpack.c.h.b16 %v5405
        %v6027 = vunpack.c.l.b16 %v5406
        %v6028 = vunpack.c.h.b16 %v5406
        %v6029 = vunpack.c.l.b16 %v5407
        %v6030 = vunpack.c.h.b16 %v5407
        %v6031 = vunpack.c.l.b16 %v5408
        %v6032 = vunpack.c.h.b16 %v5408
        %v6033 = vunpack.c.l.b16 %v5409
        %v6034 = vunpack.c.h.b16 %v5409
        %v6035 = vunpack.c.l.b16 %v5410
        %v6036 = vunpack.c.h.b16 %v5410
        %v6037 = vunpack.c.l.b16 %v5411
        %v6038 = vunpack.c.h.b16 %v5411
        %v6039 = vunpack.c.l.b16 %v5412
        %v6040 = vunpack.c.h.b16 %v5412
        %v6041 = vunpack.c.l.b16 %v5413
        %v6042 = vunpack.c.h.b16 %v5413
        %v6043 = vunpack.c.l.b16 %v5414
        %v6044 = vunpack.c.h.b16 %v5414
        %v6045 = vunpack.c.l.b16 %v5415
        %v6046 = vunpack.c.h.b16 %v5415
        %v6047 = vunpack.c.l.b16 %v5416
        %v6048 = vunpack.c.h.b16 %v5416
        %v6049 = vunpack.c.l.b16 %v5417
        %v6050 = vunpack.c.h.b16 %v5417
        %v6051 = vunpack.c.l.b16 %v5418
        %v6052 = vunpack.c.h.b16 %v5418
        %v6053 = vunpack.c.l.b16 %v5419
        %v6054 = vunpack.c.h.b16 %v5419
        %v6055 = vunpack.c.l.b16 %v5420
        %v6056 = vunpack.c.h.b16 %v5420
        %v6057 = vunpack.c.l.b16 %v5421
        %v6058 = vunpack.c.h.b16 %v5421
        %v6059 = vunpack.c.l.b16 %v5422
        %v6060 = vunpack.c.h.b16 %v5422
        %v6061 = vunpack.c.l.b16 %v5423
        %v6062 = vunpack.c.h.b16 %v5423
        %v6063 = vunpack.c.l.b16 %v5424
        %v6064 = vunpack.c.h.b16 %v5424
        %v6065 = vunpack.c.l.b16 %v5425
        %v6066 = vunpack.c.h.b16 %v5425
        %v6067 = vunpack.c.l.b16 %v5426
        %v6068 = vunpack.c.h.b16 %v5426
        %v6069 = vunpack.c.l.b16 %v5427
        %v6070 = vunpack.c.h.b16 %v5427
        %v6071 = vunpack.c.l.b16 %v5428
        %v6072 = vunpack.c.h.b16 %v5428
        %v6073 = vunpack.c.l.b16 %v5429
        %v6074 = vunpack.c.h.b16 %v5429
        %v6075 = vunpack.c.l.b16 %v5430
        %v6076 = vunpack.c.h.b16 %v5430
        %v6077 = vunpack.c.l.b16 %v5431
        %v6078 = vunpack.c.h.b16 %v5431
        %v6079 = vunpack.c.l.b16 %v5432
        %v6080 = vunpack.c.h.b16 %v5432
        %v6081 = vunpack.c.l.b16 %v5433
        %v6082 = vunpack.c.h.b16 %v5433
        %v6083 = vunpack.c.l.b16 %v5434
        %v6084 = vunpack.c.h.b16 %v5434
        %v6085 = vunpack.c.l.b16 %v5435
        %v6086 = vunpack.c.h.b16 %v5435
        %v6087 = vunpack.c.l.b16 %v5436
        %v6088 = vunpack.c.h.b16 %v5436
        %v6089 = vunpack.c.l.b16 %v5437
        %v6090 = vunpack.c.h.b16 %v5437
        %v6091 = vunpack.c.l.b16 %v5438
        %v6092 = vunpack.c.h.b16 %v5438
        %v6093 = vunpack.c.l.b16 %v5439
        %v6094 = vunpack.c.h.b16 %v5439
        %v6095 = vunpack.c.l.b16 %v5440
        %v6096 = vunpack.c.h.b16 %v5440
        %v6097 = vunpack.c.l.b16 %v5441
        %v6098 = vunpack.c.h.b16 %v5441
        %v6099 = vunpack.c.l.b16 %v5442
        %v6100 = vunpack.c.h.b16 %v5442
        %v6101 = vunpack.c.l.b16 %v5443
        %v6102 = vunpack.c.h.b16 %v5443
        %v6103 = vunpack.c.l.b16 %v5444
        %v6104 = vunpack.c.h.b16 %v5444
        %v6105 = vunpack.c.l.b16 %v5445
        %v6106 = vunpack.c.h.b16 %v5445
        %v6107 = vunpack.c.l.b16 %v5446
        %v6108 = vunpack.c.h.b16 %v5446
        %v6109 = vunpack.c.l.b16 %v5447
        %v6110 = vunpack.c.h.b16 %v5447
        %v6111 = vunpack.c.l.b16 %v5448
        %v6112 = vunpack.c.h.b16 %v5448
        %v6113 = vunpack.c.l.b16 %v5449
        %v6114 = vunpack.c.h.b16 %v5449
        %v6115 = vunpack.c.l.b16 %v5450
        %v6116 = vunpack.c.h.b16 %v5450
        %v6117 = vunpack.c.l.b16 %v5451
        %v6118 = vunpack.c.h.b16 %v5451
        %v6119 = vunpack.c.l.b16 %v5452
        %v6120 = vunpack.c.h.b16 %v5452
        %v6121 = vunpack.c.l.b16 %v5453
        %v6122 = vunpack.c.h.b16 %v5453
        %v6123 = vunpack.c.l.b16 %v5454
        %v6124 = vunpack.c.h.b16 %v5454
        %v6125 = vunpack.c.l.b16 %v5455
        %v6126 = vunpack.c.h.b16 %v5455
        %v6127 = vunpack.c.l.b16 %v5456
        %v6128 = vunpack.c.h.b16 %v5456
        %v6129 = vunpack.c.l.b16 %v5457
        %v6130 = vunpack.c.h.b16 %v5457
        %v6131 = vunpack.c.l.b16 %v5458
        %v6132 = vunpack.c.h.b16 %v5458
        %v6133 = vunpack.c.l.b16 %v5459
        %v6134 = vunpack.c.h.b16 %v5459
        %v6135 = vunpack.c.l.b16 %v5460
        %v6136 = vunpack.c.h.b16 %v5460
        %v6137 = vunpack.c.l.b16 %v5461
        %v6138 = vunpack.c.h.b16 %v5461
        %v6139 = vunpack.c.l.b16 %v5462
        %v6140 = vunpack.c.h.b16 %v5462
        %v6141 = vunpack.c.l.b16 %v5463
        %v6142 = vunpack.c.h.b16 %v5463
        %v6143 = vunpack.c.l.b16 %v5464
        %v6144 = vunpack.c.h.b16 %v5464
        %v6145 = vunpack.c.l.b16 %v5465
        %v6146 = vunpack.c.h.b16 %v5465
        %v6147 = vunpack.c.l.b16 %v5466
        %v6148 = vunpack.c.h.b16 %v5466
        %v6149 = vunpack.c.l.b16 %v5467
        %v6150 = vunpack.c.h.b16 %v5467
        %v6151 = vunpack.c.l.b16 %v5468
        %v6152 = vunpack.c.h.b16 %v5468
        %v6153 = vpack.c.b16 %v5757, %v5753
        %v6154 = vpack.c.b16 %v5758, %v5754
        %v6155 = vpack.c.b16 %v5759, %v5755
        %v6156 = vpack.c.b16 %v5760, %v5756
        %v6157 = vpack.c.b16 %v5765, %v5761
        %v6158 = vpack.c.b16 %v5766, %v5762
        %v6159 = vpack.c.b16 %v5767, %v5763
        %v6160 = vpack.c.b16 %v5768, %v5764
        %v6161 = vpack.c.b16 %v5773, %v5769
        %v6162 = vpack.c.b16 %v5774, %v5770
        %v6163 = vpack.c.b16 %v5775, %v5771
        %v6164 = vpack.c.b16 %v5776, %v5772
        %v6165 = vpack.c.b16 %v5781, %v5777
        %v6166 = vpack.c.b16 %v5782, %v5778
        %v6167 = vpack.c.b16 %v5783, %v5779
        %v6168 = vpack.c.b16 %v5784, %v5780
        %v6169 = vpack.c.b16 %v5789, %v5785
        %v6170 = vpack.c.b16 %v5790, %v5786
        %v6171 = vpack.c.b16 %v5791, %v5787
        %v6172 = vpack.c.b16 %v5792, %v5788
        %v6173 = vpack.c.b16 %v5797, %v5793
        %v6174 = vpack.c.b16 %v5798, %v5794
        %v6175 = vpack.c.b16 %v5799, %v5795
        %v6176 = vpack.c.b16 %v5800, %v5796
        %v6177 = vpack.c.b16 %v5805, %v5801
        %v6178 = vpack.c.b16 %v5806, %v5802
        %v6179 = vpack.c.b16 %v5807, %v5803
        %v6180 = vpack.c.b16 %v5808, %v5804
        %v6181 = vpack.c.b16 %v5813, %v5809
        %v6182 = vpack.c.b16 %v5814, %v5810
        %v6183 = vpack.c.b16 %v5815, %v5811
        %v6184 = vpack.c.b16 %v5816, %v5812
        %v6185 = vpack.c.b16 %v5821, %v5817
        %v6186 = vpack.c.b16 %v5822, %v5818
        %v6187 = vpack.c.b16 %v5823, %v5819
        %v6188 = vpack.c.b16 %v5824, %v5820
        %v6189 = vpack.c.b16 %v5829, %v5825
        %v6190 = vpack.c.b16 %v5830, %v5826
        %v6191 = vpack.c.b16 %v5831, %v5827
        %v6192 = vpack.c.b16 %v5832, %v5828
        %v6193 = vpack.c.b16 %v5837, %v5833
        %v6194 = vpack.c.b16 %v5838, %v5834
        %v6195 = vpack.c.b16 %v5839, %v5835
        %v6196 = vpack.c.b16 %v5840, %v5836
        %v6197 = vpack.c.b16 %v5845, %v5841
        %v6198 = vpack.c.b16 %v5846, %v5842
        %v6199 = vpack.c.b16 %v5847, %v5843
        %v6200 = vpack.c.b16 %v5848, %v5844
        %v6201 = vpack.c.b16 %v5853, %v5849
        %v6202 = vpack.c.b16 %v5854, %v5850
        %v6203 = vpack.c.b16 %v5855, %v5851
        %v6204 = vpack.c.b16 %v5856, %v5852
        %v6205 = vpack.c.b16 %v5861, %v5857
        %v6206 = vpack.c.b16 %v5862, %v5858
        %v6207 = vpack.c.b16 %v5863, %v5859
        %v6208 = vpack.c.b16 %v5864, %v5860
        %v6209 = vpack.c.b16 %v5869, %v5865
        %v6210 = vpack.c.b16 %v5870, %v5866
        %v6211 = vpack.c.b16 %v5871, %v5867
        %v6212 = vpack.c.b16 %v5872, %v5868
        %v6213 = vpack.c.b16 %v5877, %v5873
        %v6214 = vpack.c.b16 %v5878, %v5874
        %v6215 = vpack.c.b16 %v5879, %v5875
        %v6216 = vpack.c.b16 %v5880, %v5876
        %v6217 = vpack.c.b16 %v5885, %v5881
        %v6218 = vpack.c.b16 %v5886, %v5882
        %v6219 = vpack.c.b16 %v5887, %v5883
        %v6220 = vpack.c.b16 %v5888, %v5884
        %v6221 = vpack.c.b16 %v5893, %v5889
        %v6222 = vpack.c.b16 %v5894, %v5890
        %v6223 = vpack.c.b16 %v5895, %v5891
        %v6224 = vpack.c.b16 %v5896, %v5892
        %v6225 = vpack.c.b16 %v5901, %v5897
        %v6226 = vpack.c.b16 %v5902, %v5898
        %v6227 = vpack.c.b16 %v5903, %v5899
        %v6228 = vpack.c.b16 %v5904, %v5900
        %v6229 = vpack.c.b16 %v5909, %v5905
        %v6230 = vpack.c.b16 %v5910, %v5906
        %v6231 = vpack.c.b16 %v5911, %v5907
        %v6232 = vpack.c.b16 %v5912, %v5908
        %v6233 = vpack.c.b16 %v5917, %v5913
        %v6234 = vpack.c.b16 %v5918, %v5914
        %v6235 = vpack.c.b16 %v5919, %v5915
        %v6236 = vpack.c.b16 %v5920, %v5916
        %v6237 = vpack.c.b16 %v5925, %v5921
        %v6238 = vpack.c.b16 %v5926, %v5922
        %v6239 = vpack.c.b16 %v5927, %v5923
        %v6240 = vpack.c.b16 %v5928, %v5924
        %v6241 = vpack.c.b16 %v5933, %v5929
        %v6242 = vpack.c.b16 %v5934, %v5930
        %v6243 = vpack.c.b16 %v5935, %v5931
        %v6244 = vpack.c.b16 %v5936, %v5932
        %v6245 = vpack.c.b16 %v5941, %v5937
        %v6246 = vpack.c.b16 %v5942, %v5938
        %v6247 = vpack.c.b16 %v5943, %v5939
        %v6248 = vpack.c.b16 %v5944, %v5940
        %v6249 = vpack.c.b16 %v5949, %v5945
        %v6250 = vpack.c.b16 %v5950, %v5946
        %v6251 = vpack.c.b16 %v5951, %v5947
        %v6252 = vpack.c.b16 %v5952, %v5948
        %v6253 = vpack.c.b16 %v5957, %v5953
        %v6254 = vpack.c.b16 %v5958, %v5954
        %v6255 = vpack.c.b16 %v5959, %v5955
        %v6256 = vpack.c.b16 %v5960, %v5956
        %v6257 = vpack.c.b16 %v5965, %v5961
        %v6258 = vpack.c.b16 %v5966, %v5962
        %v6259 = vpack.c.b16 %v5967, %v5963
        %v6260 = vpack.c.b16 %v5968, %v5964
        %v6261 = vpack.c.b16 %v5973, %v5969
        %v6262 = vpack.c.b16 %v5974, %v5970
        %v6263 = vpack.c.b16 %v5975, %v5971
        %v6264 = vpack.c.b16 %v5976, %v5972
        %v6265 = vpack.c.b16 %v5981, %v5977
        %v6266 = vpack.c.b16 %v5982, %v5978
        %v6267 = vpack.c.b16 %v5983, %v5979
        %v6268 = vpack.c.b16 %v5984, %v5980
        %v6269 = vpack.c.b16 %v5989, %v5985
        %v6270 = vpack.c.b16 %v5990, %v5986
        %v6271 = vpack.c.b16 %v5991, %v5987
        %v6272 = vpack.c.b16 %v5992, %v5988
        %v6273 = vpack.c.b16 %v5997, %v5993
        %v6274 = vpack.c.b16 %v5998, %v5994
        %v6275 = vpack.c.b16 %v5999, %v5995
        %v6276 = vpack.c.b16 %v6000, %v5996
        %v6277 = vpack.c.b16 %v6005, %v6001
        %v6278 = vpack.c.b16 %v6006, %v6002
        %v6279 = vpack.c.b16 %v6007, %v6003
        %v6280 = vpack.c.b16 %v6008, %v6004
        %v6281 = vpack.c.b16 %v6013, %v6009
        %v6282 = vpack.c.b16 %v6014, %v6010
        %v6283 = vpack.c.b16 %v6015, %v6011
        %v6284 = vpack.c.b16 %v6016, %v6012
        %v6285 = vpack.c.b16 %v6021, %v6017
        %v6286 = vpack.c.b16 %v6022, %v6018
        %v6287 = vpack.c.b16 %v6023, %v6019
        %v6288 = vpack.c.b16 %v6024, %v6020
        %v6289 = vpack.c.b16 %v6029, %v6025
        %v6290 = vpack.c.b16 %v6030, %v6026
        %v6291 = vpack.c.b16 %v6031, %v6027
        %v6292 = vpack.c.b16 %v6032, %v6028
        %v6293 = vpack.c.b16 %v6037, %v6033
        %v6294 = vpack.c.b16 %v6038, %v6034
        %v6295 = vpack.c.b16 %v6039, %v6035
        %v6296 = vpack.c.b16 %v6040, %v6036
        %v6297 = vpack.c.b16 %v6045, %v6041
        %v6298 = vpack.c.b16 %v6046, %v6042
        %v6299 = vpack.c.b16 %v6047, %v6043
        %v6300 = vpack.c.b16 %v6048, %v6044
        %v6301 = vpack.c.b16 %v6053, %v6049
        %v6302 = vpack.c.b16 %v6054, %v6050
        %v6303 = vpack.c.b16 %v6055, %v6051
        %v6304 = vpack.c.b16 %v6056, %v6052
        %v6305 = vpack.c.b16 %v6061, %v6057
        %v6306 = vpack.c.b16 %v6062, %v6058
        %v6307 = vpack.c.b16 %v6063, %v6059
        %v6308 = vpack.c.b16 %v6064, %v6060
        %v6309 = vpack.c.b16 %v6069, %v6065
        %v6310 = vpack.c.b16 %v6070, %v6066
        %v6311 = vpack.c.b16 %v6071, %v6067
        %v6312 = vpack.c.b16 %v6072, %v6068
        %v6313 = vpack.c.b16 %v6077, %v6073
        %v6314 = vpack.c.b16 %v6078, %v6074
        %v6315 = vpack.c.b16 %v6079, %v6075
        %v6316 = vpack.c.b16 %v6080, %v6076
        %v6317 = vpack.c.b16 %v6085, %v6081
        %v6318 = vpack.c.b16 %v6086, %v6082
        %v6319 = vpack.c.b16 %v6087, %v6083
        %v6320 = vpack.c.b16 %v6088, %v6084
        %v6321 = vpack.c.b16 %v6093, %v6089
        %v6322 = vpack.c.b16 %v6094, %v6090
        %v6323 = vpack.c.b16 %v6095, %v6091
        %v6324 = vpack.c.b16 %v6096, %v6092
        %v6325 = vpack.c.b16 %v6101, %v6097
        %v6326 = vpack.c.b16 %v6102, %v6098
        %v6327 = vpack.c.b16 %v6103, %v6099
        %v6328 = vpack.c.b16 %v6104, %v6100
        %v6329 = vpack.c.b16 %v6109, %v6105
        %v6330 = vpack.c.b16 %v6110, %v6106
        %v6331 = vpack.c.b16 %v6111, %v6107
        %v6332 = vpack.c.b16 %v6112, %v6108
        %v6333 = vpack.c.b16 %v6117, %v6113
        %v6334 = vpack.c.b16 %v6118, %v6114
        %v6335 = vpack.c.b16 %v6119, %v6115
        %v6336 = vpack.c.b16 %v6120, %v6116
        %v6337 = vpack.c.b16 %v6125, %v6121
        %v6338 = vpack.c.b16 %v6126, %v6122
        %v6339 = vpack.c.b16 %v6127, %v6123
        %v6340 = vpack.c.b16 %v6128, %v6124
        %v6341 = vpack.c.b16 %v6133, %v6129
        %v6342 = vpack.c.b16 %v6134, %v6130
        %v6343 = vpack.c.b16 %v6135, %v6131
        %v6344 = vpack.c.b16 %v6136, %v6132
        %v6345 = vpack.c.b16 %v6141, %v6137
        %v6346 = vpack.c.b16 %v6142, %v6138
        %v6347 = vpack.c.b16 %v6143, %v6139
        %v6348 = vpack.c.b16 %v6144, %v6140
        %v6349 = vpack.c.b16 %v6149, %v6145
        %v6350 = vpack.c.b16 %v6150, %v6146
        %v6351 = vpack.c.b16 %v6151, %v6147
        %v6352 = vpack.c.b16 %v6152, %v6148
        %vm6553 = vcmask 261120
        %v6555 = vsel %vm6553, %v5546, 0
        %6557 = vmatpush.bf16.msra.mxu0 %v6181
        %6558 = vmatpush.bf16.msra.mxu0 %v6177
        %6559 = vmatpush.bf16.msra.mxu0 %v6173
        %6560 = vmatpush.bf16.msra.mxu0 %v6169
        %6561 = vmatpush.bf16.msra.mxu0 %v6165
        %6562 = vmatpush.bf16.msra.mxu0 %v6161
        %6563 = vmatpush.bf16.msra.mxu0 %v6157
        %6564 = vmatpush.bf16.msra.mxu0 %v6153
        %6565 = vmatmul.bf16.gmra.mxu0 %v5504
        %v6566 = vpop.f32.mrf.mxu0
        %v6567 = vadd.f32 0.0, %v6566
        %v6568 = vpop.f32.mrf.mxu0
        %6569 = vdwg.mxu0
        %6570 = vmatpush.bf16.msra.mxu0 %v6213
        %6571 = vmatpush.bf16.msra.mxu0 %v6209
        %6572 = vmatpush.bf16.msra.mxu0 %v6205
        %6573 = vmatpush.bf16.msra.mxu0 %v6201
        %6574 = vmatpush.bf16.msra.mxu0 %v6197
        %6575 = vmatpush.bf16.msra.mxu0 %v6193
        %6576 = vmatpush.bf16.msra.mxu0 %v6189
        %6577 = vmatpush.bf16.msra.mxu0 %v6185
        %6578 = vmatmul.bf16.gmra.mxu0 %v5511
        %v6579 = vpop.f32.mrf.mxu0
        %v6580 = vadd.f32 %v6567, %v6579
        %v6581 = vpop.f32.mrf.mxu0
        %6582 = vdwg.mxu0
        %6583 = vmatpush.bf16.msra.mxu0 %v6245
        %6584 = vmatpush.bf16.msra.mxu0 %v6241
        %6585 = vmatpush.bf16.msra.mxu0 %v6237
        %6586 = vmatpush.bf16.msra.mxu0 %v6233
        %6587 = vmatpush.bf16.msra.mxu0 %v6229
        %6588 = vmatpush.bf16.msra.mxu0 %v6225
        %6589 = vmatpush.bf16.msra.mxu0 %v6221
        %6590 = vmatpush.bf16.msra.mxu0 %v6217
        %6591 = vmatmul.bf16.gmra.mxu0 %v5518
        %v6592 = vpop.f32.mrf.mxu0
        %v6593 = vadd.f32 %v6580, %v6592
        %v6594 = vpop.f32.mrf.mxu0
        %6595 = vdwg.mxu0
        %6596 = vmatpush.bf16.msra.mxu0 %v6277
        %6597 = vmatpush.bf16.msra.mxu0 %v6273
        %6598 = vmatpush.bf16.msra.mxu0 %v6269
        %6599 = vmatpush.bf16.msra.mxu0 %v6265
        %6600 = vmatpush.bf16.msra.mxu0 %v6261
        %6601 = vmatpush.bf16.msra.mxu0 %v6257
        %6602 = vmatpush.bf16.msra.mxu0 %v6253
        %6603 = vmatpush.bf16.msra.mxu0 %v6249
        %6604 = vmatmul.bf16.gmra.mxu0 %v5525
        %v6605 = vpop.f32.mrf.mxu0
        %v6606 = vadd.f32 %v6593, %v6605
        %v6607 = vpop.f32.mrf.mxu0
        %6608 = vdwg.mxu0
        %6609 = vmatpush.bf16.msra.mxu0 %v6309
        %6610 = vmatpush.bf16.msra.mxu0 %v6305
        %6611 = vmatpush.bf16.msra.mxu0 %v6301
        %6612 = vmatpush.bf16.msra.mxu0 %v6297
        %6613 = vmatpush.bf16.msra.mxu0 %v6293
        %6614 = vmatpush.bf16.msra.mxu0 %v6289
        %6615 = vmatpush.bf16.msra.mxu0 %v6285
        %6616 = vmatpush.bf16.msra.mxu0 %v6281
        %6617 = vmatmul.bf16.gmra.mxu0 %v5532
        %v6618 = vpop.f32.mrf.mxu0
        %v6619 = vadd.f32 %v6606, %v6618
        %v6620 = vpop.f32.mrf.mxu0
        %6621 = vdwg.mxu0
        %6622 = vmatpush.bf16.msra.mxu0 %v6341
        %6623 = vmatpush.bf16.msra.mxu0 %v6337
        %6624 = vmatpush.bf16.msra.mxu0 %v6333
        %6625 = vmatpush.bf16.msra.mxu0 %v6329
        %6626 = vmatpush.bf16.msra.mxu0 %v6325
        %6627 = vmatpush.bf16.msra.mxu0 %v6321
        %6628 = vmatpush.bf16.msra.mxu0 %v6317
        %6629 = vmatpush.bf16.msra.mxu0 %v6313
        %6630 = vmatmul.bf16.gmra.mxu0 %v5539
        %v6631 = vpop.f32.mrf.mxu0
        %v6632 = vadd.f32 %v6619, %v6631
        %v6633 = vpop.f32.mrf.mxu0
        %6634 = vdwg.mxu0
        %6635 = vmatpush.bf16.msra.mxu0 0
        %6636 = vmatpush.bf16.msra.mxu0 0
        %6637 = vmatpush.bf16.msra.mxu0 0
        %6638 = vmatpush.bf16.msra.mxu0 0
        %6639 = vmatpush.bf16.msra.mxu0 0
        %6640 = vmatpush.bf16.msra.mxu0 0
        %6641 = vmatpush.bf16.msra.mxu0 %v6349
        %6642 = vmatpush.bf16.msra.mxu0 %v6345
        %6643 = vmatmul.bf16.gmra.mxu0 %v6555
        %v6644 = vpop.f32.mrf.mxu0
        %v6645 = vadd.f32 %v6632, %v6644
        %v6646 = vpop.f32.mrf.mxu0
        %6647 = vdwg.mxu0
        %6648 = vmatpush.bf16.msra.mxu0 %v6182
        %6649 = vmatpush.bf16.msra.mxu0 %v6178
        %6650 = vmatpush.bf16.msra.mxu0 %v6174
        %6651 = vmatpush.bf16.msra.mxu0 %v6170
        %6652 = vmatpush.bf16.msra.mxu0 %v6166
        %6653 = vmatpush.bf16.msra.mxu0 %v6162
        %6654 = vmatpush.bf16.msra.mxu0 %v6158
        %6655 = vmatpush.bf16.msra.mxu0 %v6154
        %6656 = vmatmul.bf16.gmra.mxu0 %v5504
        %v6657 = vpop.f32.mrf.mxu0
        %v6658 = vadd.f32 0.0, %v6657
        %v6659 = vpop.f32.mrf.mxu0
        %6660 = vdwg.mxu0
        %6661 = vmatpush.bf16.msra.mxu0 %v6214
        %6662 = vmatpush.bf16.msra.mxu0 %v6210
        %6663 = vmatpush.bf16.msra.mxu0 %v6206
        %6664 = vmatpush.bf16.msra.mxu0 %v6202
        %6665 = vmatpush.bf16.msra.mxu0 %v6198
        %6666 = vmatpush.bf16.msra.mxu0 %v6194
        %6667 = vmatpush.bf16.msra.mxu0 %v6190
        %6668 = vmatpush.bf16.msra.mxu0 %v6186
        %6669 = vmatmul.bf16.gmra.mxu0 %v5511
        %v6670 = vpop.f32.mrf.mxu0
        %v6671 = vadd.f32 %v6658, %v6670
        %v6672 = vpop.f32.mrf.mxu0
        %6673 = vdwg.mxu0
        %6674 = vmatpush.bf16.msra.mxu0 %v6246
        %6675 = vmatpush.bf16.msra.mxu0 %v6242
        %6676 = vmatpush.bf16.msra.mxu0 %v6238
        %6677 = vmatpush.bf16.msra.mxu0 %v6234
        %6678 = vmatpush.bf16.msra.mxu0 %v6230
        %6679 = vmatpush.bf16.msra.mxu0 %v6226
        %6680 = vmatpush.bf16.msra.mxu0 %v6222
        %6681 = vmatpush.bf16.msra.mxu0 %v6218
        %6682 = vmatmul.bf16.gmra.mxu0 %v5518
        %v6683 = vpop.f32.mrf.mxu0
        %v6684 = vadd.f32 %v6671, %v6683
        %v6685 = vpop.f32.mrf.mxu0
        %6686 = vdwg.mxu0
        %6687 = vmatpush.bf16.msra.mxu0 %v6278
        %6688 = vmatpush.bf16.msra.mxu0 %v6274
        %6689 = vmatpush.bf16.msra.mxu0 %v6270
        %6690 = vmatpush.bf16.msra.mxu0 %v6266
        %6691 = vmatpush.bf16.msra.mxu0 %v6262
        %6692 = vmatpush.bf16.msra.mxu0 %v6258
        %6693 = vmatpush.bf16.msra.mxu0 %v6254
        %6694 = vmatpush.bf16.msra.mxu0 %v6250
        %6695 = vmatmul.bf16.gmra.mxu0 %v5525
        %v6696 = vpop.f32.mrf.mxu0
        %v6697 = vadd.f32 %v6684, %v6696
        %v6698 = vpop.f32.mrf.mxu0
        %6699 = vdwg.mxu0
        %6700 = vmatpush.bf16.msra.mxu0 %v6310
        %6701 = vmatpush.bf16.msra.mxu0 %v6306
        %6702 = vmatpush.bf16.msra.mxu0 %v6302
        %6703 = vmatpush.bf16.msra.mxu0 %v6298
        %6704 = vmatpush.bf16.msra.mxu0 %v6294
        %6705 = vmatpush.bf16.msra.mxu0 %v6290
        %6706 = vmatpush.bf16.msra.mxu0 %v6286
        %6707 = vmatpush.bf16.msra.mxu0 %v6282
        %6708 = vmatmul.bf16.gmra.mxu0 %v5532
        %v6709 = vpop.f32.mrf.mxu0
        %v6710 = vadd.f32 %v6697, %v6709
        %v6711 = vpop.f32.mrf.mxu0
        %6712 = vdwg.mxu0
        %6713 = vmatpush.bf16.msra.mxu0 %v6342
        %6714 = vmatpush.bf16.msra.mxu0 %v6338
        %6715 = vmatpush.bf16.msra.mxu0 %v6334
        %6716 = vmatpush.bf16.msra.mxu0 %v6330
        %6717 = vmatpush.bf16.msra.mxu0 %v6326
        %6718 = vmatpush.bf16.msra.mxu0 %v6322
        %6719 = vmatpush.bf16.msra.mxu0 %v6318
        %6720 = vmatpush.bf16.msra.mxu0 %v6314
        %6721 = vmatmul.bf16.gmra.mxu0 %v5539
        %v6722 = vpop.f32.mrf.mxu0
        %v6723 = vadd.f32 %v6710, %v6722
        %v6724 = vpop.f32.mrf.mxu0
        %6725 = vdwg.mxu0
        %6726 = vmatpush.bf16.msra.mxu0 0
        %6727 = vmatpush.bf16.msra.mxu0 0
        %6728 = vmatpush.bf16.msra.mxu0 0
        %6729 = vmatpush.bf16.msra.mxu0 0
        %6730 = vmatpush.bf16.msra.mxu0 0
        %6731 = vmatpush.bf16.msra.mxu0 0
        %6732 = vmatpush.bf16.msra.mxu0 %v6350
        %6733 = vmatpush.bf16.msra.mxu0 %v6346
        %6734 = vmatmul.bf16.gmra.mxu0 %v6555
        %v6735 = vpop.f32.mrf.mxu0
        %v6736 = vadd.f32 %v6723, %v6735
        %v6737 = vpop.f32.mrf.mxu0
        %6738 = vdwg.mxu0
        %6739 = vmatpush.bf16.msra.mxu0 %v6183
        %6740 = vmatpush.bf16.msra.mxu0 %v6179
        %6741 = vmatpush.bf16.msra.mxu0 %v6175
        %6742 = vmatpush.bf16.msra.mxu0 %v6171
        %6743 = vmatpush.bf16.msra.mxu0 %v6167
        %6744 = vmatpush.bf16.msra.mxu0 %v6163
        %6745 = vmatpush.bf16.msra.mxu0 %v6159
        %6746 = vmatpush.bf16.msra.mxu0 %v6155
        %6747 = vmatmul.bf16.gmra.mxu0 %v5504
        %v6748 = vpop.f32.mrf.mxu0
        %v6749 = vadd.f32 0.0, %v6748
        %v6750 = vpop.f32.mrf.mxu0
        %6751 = vdwg.mxu0
        %6752 = vmatpush.bf16.msra.mxu0 %v6215
        %6753 = vmatpush.bf16.msra.mxu0 %v6211
        %6754 = vmatpush.bf16.msra.mxu0 %v6207
        %6755 = vmatpush.bf16.msra.mxu0 %v6203
        %6756 = vmatpush.bf16.msra.mxu0 %v6199
        %6757 = vmatpush.bf16.msra.mxu0 %v6195
        %6758 = vmatpush.bf16.msra.mxu0 %v6191
        %6759 = vmatpush.bf16.msra.mxu0 %v6187
        %6760 = vmatmul.bf16.gmra.mxu0 %v5511
        %v6761 = vpop.f32.mrf.mxu0
        %v6762 = vadd.f32 %v6749, %v6761
        %v6763 = vpop.f32.mrf.mxu0
        %6764 = vdwg.mxu0
        %6765 = vmatpush.bf16.msra.mxu0 %v6247
        %6766 = vmatpush.bf16.msra.mxu0 %v6243
        %6767 = vmatpush.bf16.msra.mxu0 %v6239
        %6768 = vmatpush.bf16.msra.mxu0 %v6235
        %6769 = vmatpush.bf16.msra.mxu0 %v6231
        %6770 = vmatpush.bf16.msra.mxu0 %v6227
        %6771 = vmatpush.bf16.msra.mxu0 %v6223
        %6772 = vmatpush.bf16.msra.mxu0 %v6219
        %6773 = vmatmul.bf16.gmra.mxu0 %v5518
        %v6774 = vpop.f32.mrf.mxu0
        %v6775 = vadd.f32 %v6762, %v6774
        %v6776 = vpop.f32.mrf.mxu0
        %6777 = vdwg.mxu0
        %6778 = vmatpush.bf16.msra.mxu0 %v6279
        %6779 = vmatpush.bf16.msra.mxu0 %v6275
        %6780 = vmatpush.bf16.msra.mxu0 %v6271
        %6781 = vmatpush.bf16.msra.mxu0 %v6267
        %6782 = vmatpush.bf16.msra.mxu0 %v6263
        %6783 = vmatpush.bf16.msra.mxu0 %v6259
        %6784 = vmatpush.bf16.msra.mxu0 %v6255
        %6785 = vmatpush.bf16.msra.mxu0 %v6251
        %6786 = vmatmul.bf16.gmra.mxu0 %v5525
        %v6787 = vpop.f32.mrf.mxu0
        %v6788 = vadd.f32 %v6775, %v6787
        %v6789 = vpop.f32.mrf.mxu0
        %6790 = vdwg.mxu0
        %6791 = vmatpush.bf16.msra.mxu0 %v6311
        %6792 = vmatpush.bf16.msra.mxu0 %v6307
        %6793 = vmatpush.bf16.msra.mxu0 %v6303
        %6794 = vmatpush.bf16.msra.mxu0 %v6299
        %6795 = vmatpush.bf16.msra.mxu0 %v6295
        %6796 = vmatpush.bf16.msra.mxu0 %v6291
        %6797 = vmatpush.bf16.msra.mxu0 %v6287
        %6798 = vmatpush.bf16.msra.mxu0 %v6283
        %6799 = vmatmul.bf16.gmra.mxu0 %v5532
        %v6800 = vpop.f32.mrf.mxu0
        %v6801 = vadd.f32 %v6788, %v6800
        %v6802 = vpop.f32.mrf.mxu0
        %6803 = vdwg.mxu0
        %6804 = vmatpush.bf16.msra.mxu0 %v6343
        %6805 = vmatpush.bf16.msra.mxu0 %v6339
        %6806 = vmatpush.bf16.msra.mxu0 %v6335
        %6807 = vmatpush.bf16.msra.mxu0 %v6331
        %6808 = vmatpush.bf16.msra.mxu0 %v6327
        %6809 = vmatpush.bf16.msra.mxu0 %v6323
        %6810 = vmatpush.bf16.msra.mxu0 %v6319
        %6811 = vmatpush.bf16.msra.mxu0 %v6315
        %6812 = vmatmul.bf16.gmra.mxu0 %v5539
        %v6813 = vpop.f32.mrf.mxu0
        %v6814 = vadd.f32 %v6801, %v6813
        %v6815 = vpop.f32.mrf.mxu0
        %6816 = vdwg.mxu0
        %6817 = vmatpush.bf16.msra.mxu0 0
        %6818 = vmatpush.bf16.msra.mxu0 0
        %6819 = vmatpush.bf16.msra.mxu0 0
        %6820 = vmatpush.bf16.msra.mxu0 0
        %6821 = vmatpush.bf16.msra.mxu0 0
        %6822 = vmatpush.bf16.msra.mxu0 0
        %6823 = vmatpush.bf16.msra.mxu0 %v6351
        %6824 = vmatpush.bf16.msra.mxu0 %v6347
        %6825 = vmatmul.bf16.gmra.mxu0 %v6555
        %v6826 = vpop.f32.mrf.mxu0
        %v6827 = vadd.f32 %v6814, %v6826
        %v6828 = vpop.f32.mrf.mxu0
        %6829 = vdwg.mxu0
        %6830 = vmatpush.bf16.msra.mxu0 %v6184
        %6831 = vmatpush.bf16.msra.mxu0 %v6180
        %6832 = vmatpush.bf16.msra.mxu0 %v6176
        %6833 = vmatpush.bf16.msra.mxu0 %v6172
        %6834 = vmatpush.bf16.msra.mxu0 %v6168
        %6835 = vmatpush.bf16.msra.mxu0 %v6164
        %6836 = vmatpush.bf16.msra.mxu0 %v6160
        %6837 = vmatpush.bf16.msra.mxu0 %v6156
        %6838 = vmatmul.bf16.gmra.mxu0 %v5504
        %v6839 = vpop.f32.mrf.mxu0
        %v6840 = vadd.f32 0.0, %v6839
        %v6841 = vpop.f32.mrf.mxu0
        %6842 = vdwg.mxu0
        %6843 = vmatpush.bf16.msra.mxu0 %v6216
        %6844 = vmatpush.bf16.msra.mxu0 %v6212
        %6845 = vmatpush.bf16.msra.mxu0 %v6208
        %6846 = vmatpush.bf16.msra.mxu0 %v6204
        %6847 = vmatpush.bf16.msra.mxu0 %v6200
        %6848 = vmatpush.bf16.msra.mxu0 %v6196
        %6849 = vmatpush.bf16.msra.mxu0 %v6192
        %6850 = vmatpush.bf16.msra.mxu0 %v6188
        %6851 = vmatmul.bf16.gmra.mxu0 %v5511
        %v6852 = vpop.f32.mrf.mxu0
        %v6853 = vadd.f32 %v6840, %v6852
        %v6854 = vpop.f32.mrf.mxu0
        %6855 = vdwg.mxu0
        %6856 = vmatpush.bf16.msra.mxu0 %v6248
        %6857 = vmatpush.bf16.msra.mxu0 %v6244
        %6858 = vmatpush.bf16.msra.mxu0 %v6240
        %6859 = vmatpush.bf16.msra.mxu0 %v6236
        %6860 = vmatpush.bf16.msra.mxu0 %v6232
        %6861 = vmatpush.bf16.msra.mxu0 %v6228
        %6862 = vmatpush.bf16.msra.mxu0 %v6224
        %6863 = vmatpush.bf16.msra.mxu0 %v6220
        %6864 = vmatmul.bf16.gmra.mxu0 %v5518
        %v6865 = vpop.f32.mrf.mxu0
        %v6866 = vadd.f32 %v6853, %v6865
        %v6867 = vpop.f32.mrf.mxu0
        %6868 = vdwg.mxu0
        %6869 = vmatpush.bf16.msra.mxu0 %v6280
        %6870 = vmatpush.bf16.msra.mxu0 %v6276
        %6871 = vmatpush.bf16.msra.mxu0 %v6272
        %6872 = vmatpush.bf16.msra.mxu0 %v6268
        %6873 = vmatpush.bf16.msra.mxu0 %v6264
        %6874 = vmatpush.bf16.msra.mxu0 %v6260
        %6875 = vmatpush.bf16.msra.mxu0 %v6256
        %6876 = vmatpush.bf16.msra.mxu0 %v6252
        %6877 = vmatmul.bf16.gmra.mxu0 %v5525
        %v6878 = vpop.f32.mrf.mxu0
        %v6879 = vadd.f32 %v6866, %v6878
        %v6880 = vpop.f32.mrf.mxu0
        %6881 = vdwg.mxu0
        %6882 = vmatpush.bf16.msra.mxu0 %v6312
        %6883 = vmatpush.bf16.msra.mxu0 %v6308
        %6884 = vmatpush.bf16.msra.mxu0 %v6304
        %6885 = vmatpush.bf16.msra.mxu0 %v6300
        %6886 = vmatpush.bf16.msra.mxu0 %v6296
        %6887 = vmatpush.bf16.msra.mxu0 %v6292
        %6888 = vmatpush.bf16.msra.mxu0 %v6288
        %6889 = vmatpush.bf16.msra.mxu0 %v6284
        %6890 = vmatmul.bf16.gmra.mxu0 %v5532
        %v6891 = vpop.f32.mrf.mxu0
        %v6892 = vadd.f32 %v6879, %v6891
        %v6893 = vpop.f32.mrf.mxu0
        %6894 = vdwg.mxu0
        %6895 = vmatpush.bf16.msra.mxu0 %v6344
        %6896 = vmatpush.bf16.msra.mxu0 %v6340
        %6897 = vmatpush.bf16.msra.mxu0 %v6336
        %6898 = vmatpush.bf16.msra.mxu0 %v6332
        %6899 = vmatpush.bf16.msra.mxu0 %v6328
        %6900 = vmatpush.bf16.msra.mxu0 %v6324
        %6901 = vmatpush.bf16.msra.mxu0 %v6320
        %6902 = vmatpush.bf16.msra.mxu0 %v6316
        %6903 = vmatmul.bf16.gmra.mxu0 %v5539
        %v6904 = vpop.f32.mrf.mxu0
        %v6905 = vadd.f32 %v6892, %v6904
        %v6906 = vpop.f32.mrf.mxu0
        %6907 = vdwg.mxu0
        %6908 = vmatpush.bf16.msra.mxu0 0
        %6909 = vmatpush.bf16.msra.mxu0 0
        %6910 = vmatpush.bf16.msra.mxu0 0
        %6911 = vmatpush.bf16.msra.mxu0 0
        %6912 = vmatpush.bf16.msra.mxu0 0
        %6913 = vmatpush.bf16.msra.mxu0 0
        %6914 = vmatpush.bf16.msra.mxu0 %v6352
        %6915 = vmatpush.bf16.msra.mxu0 %v6348
        %6916 = vmatmul.bf16.gmra.mxu0 %v6555
        %v6917 = vpop.f32.mrf.mxu0
        %v6918 = vadd.f32 %v6905, %v6917
        %v6919 = vpop.f32.mrf.mxu0
        %6920 = vdwg.mxu0
        %v6921 = vpack.c.b16 %v5477, %v5477
        %v6922 = vpack.c.b16 %v5478, %v5478
        %v6923 = vpack.c.b16 %v5479, %v5479
        %v6924 = vpack.c.b16 %v5480, %v5480
        %v6925 = vpack.c.b16 %v5481, %v5481
        %v6926 = vpack.c.b16 %v5482, %v5482
        %v6927 = vpack.c.b16 %v5483, %v5483
        %v7134 = vunpack.c.l.b16 %v5064
        %v7135 = vunpack.c.h.b16 %v5064
        %v7136 = vunpack.c.l.b16 %v5065
        %v7137 = vunpack.c.h.b16 %v5065
        %v7138 = vunpack.c.l.b16 %v5066
        %v7139 = vunpack.c.h.b16 %v5066
        %v7140 = vunpack.c.l.b16 %v5067
        %v7141 = vunpack.c.h.b16 %v5067
        %v7142 = vunpack.c.l.b16 %v5068
        %v7143 = vunpack.c.h.b16 %v5068
        %v7144 = vunpack.c.l.b16 %v5069
        %v7145 = vunpack.c.h.b16 %v5069
        %v7146 = vunpack.c.l.b16 %v5070
        %v7147 = vunpack.c.h.b16 %v5070
        %v7148 = vunpack.c.l.b16 %v5071
        %v7149 = vunpack.c.h.b16 %v5071
        %v7150 = vunpack.c.l.b16 %v5072
        %v7151 = vunpack.c.h.b16 %v5072
        %v7152 = vunpack.c.l.b16 %v5073
        %v7153 = vunpack.c.h.b16 %v5073
        %v7154 = vunpack.c.l.b16 %v5074
        %v7155 = vunpack.c.h.b16 %v5074
        %v7156 = vunpack.c.l.b16 %v5075
        %v7157 = vunpack.c.h.b16 %v5075
        %v7158 = vunpack.c.l.b16 %v5076
        %v7159 = vunpack.c.h.b16 %v5076
        %v7160 = vunpack.c.l.b16 %v5077
        %v7161 = vunpack.c.h.b16 %v5077
        %v7162 = vunpack.c.l.b16 %v5078
        %v7163 = vunpack.c.h.b16 %v5078
        %v7164 = vunpack.c.l.b16 %v5079
        %v7165 = vunpack.c.h.b16 %v5079
        %v7166 = vunpack.c.l.b16 %v5080
        %v7167 = vunpack.c.h.b16 %v5080
        %v7168 = vunpack.c.l.b16 %v5081
        %v7169 = vunpack.c.h.b16 %v5081
        %v7170 = vunpack.c.l.b16 %v5082
        %v7171 = vunpack.c.h.b16 %v5082
        %v7172 = vunpack.c.l.b16 %v5083
        %v7173 = vunpack.c.h.b16 %v5083
        %v7174 = vunpack.c.l.b16 %v5084
        %v7175 = vunpack.c.h.b16 %v5084
        %v7176 = vunpack.c.l.b16 %v5085
        %v7177 = vunpack.c.h.b16 %v5085
        %v7178 = vunpack.c.l.b16 %v5086
        %v7179 = vunpack.c.h.b16 %v5086
        %v7180 = vunpack.c.l.b16 %v5087
        %v7181 = vunpack.c.h.b16 %v5087
        %v7182 = vunpack.c.l.b16 %v5088
        %v7183 = vunpack.c.h.b16 %v5088
        %v7184 = vunpack.c.l.b16 %v5089
        %v7185 = vunpack.c.h.b16 %v5089
        %v7186 = vunpack.c.l.b16 %v5090
        %v7187 = vunpack.c.h.b16 %v5090
        %v7188 = vunpack.c.l.b16 %v5091
        %v7189 = vunpack.c.h.b16 %v5091
        %v7190 = vunpack.c.l.b16 %v5092
        %v7191 = vunpack.c.h.b16 %v5092
        %v7192 = vunpack.c.l.b16 %v5093
        %v7193 = vunpack.c.h.b16 %v5093
        %v7194 = vunpack.c.l.b16 %v5094
        %v7195 = vunpack.c.h.b16 %v5094
        %v7196 = vunpack.c.l.b16 %v5095
        %v7197 = vunpack.c.h.b16 %v5095
        %v7198 = vunpack.c.l.b16 %v5096
        %v7199 = vunpack.c.h.b16 %v5096
        %v7200 = vunpack.c.l.b16 %v5097
        %v7201 = vunpack.c.h.b16 %v5097
        %v7202 = vunpack.c.l.b16 %v5098
        %v7203 = vunpack.c.h.b16 %v5098
        %v7204 = vunpack.c.l.b16 %v5099
        %v7205 = vunpack.c.h.b16 %v5099
        %v7206 = vunpack.c.l.b16 %v5100
        %v7207 = vunpack.c.h.b16 %v5100
        %v7208 = vunpack.c.l.b16 %v5101
        %v7209 = vunpack.c.h.b16 %v5101
        %v7210 = vunpack.c.l.b16 %v5102
        %v7211 = vunpack.c.h.b16 %v5102
        %v7212 = vunpack.c.l.b16 %v5103
        %v7213 = vunpack.c.h.b16 %v5103
        %v7214 = vunpack.c.l.b16 %v5104
        %v7215 = vunpack.c.h.b16 %v5104
        %v7216 = vunpack.c.l.b16 %v5105
        %v7217 = vunpack.c.h.b16 %v5105
        %v7218 = vunpack.c.l.b16 %v5106
        %v7219 = vunpack.c.h.b16 %v5106
        %v7220 = vunpack.c.l.b16 %v5107
        %v7221 = vunpack.c.h.b16 %v5107
        %v7222 = vunpack.c.l.b16 %v5108
        %v7223 = vunpack.c.h.b16 %v5108
        %v7224 = vunpack.c.l.b16 %v5109
        %v7225 = vunpack.c.h.b16 %v5109
        %v7226 = vunpack.c.l.b16 %v5110
        %v7227 = vunpack.c.h.b16 %v5110
        %v7228 = vunpack.c.l.b16 %v5111
        %v7229 = vunpack.c.h.b16 %v5111
        %v7230 = vunpack.c.l.b16 %v5112
        %v7231 = vunpack.c.h.b16 %v5112
        %v7232 = vunpack.c.l.b16 %v5113
        %v7233 = vunpack.c.h.b16 %v5113
        %v7234 = vunpack.c.l.b16 %v5114
        %v7235 = vunpack.c.h.b16 %v5114
        %v7236 = vunpack.c.l.b16 %v5115
        %v7237 = vunpack.c.h.b16 %v5115
        %v7238 = vunpack.c.l.b16 %v5116
        %v7239 = vunpack.c.h.b16 %v5116
        %v7240 = vunpack.c.l.b16 %v5117
        %v7241 = vunpack.c.h.b16 %v5117
        %v7242 = vunpack.c.l.b16 %v5118
        %v7243 = vunpack.c.h.b16 %v5118
        %v7244 = vunpack.c.l.b16 %v5119
        %v7245 = vunpack.c.h.b16 %v5119
        %v7246 = vunpack.c.l.b16 %v5120
        %v7247 = vunpack.c.h.b16 %v5120
        %v7248 = vunpack.c.l.b16 %v5121
        %v7249 = vunpack.c.h.b16 %v5121
        %v7250 = vunpack.c.l.b16 %v5122
        %v7251 = vunpack.c.h.b16 %v5122
        %v7252 = vunpack.c.l.b16 %v5123
        %v7253 = vunpack.c.h.b16 %v5123
        %v7254 = vunpack.c.l.b16 %v5124
        %v7255 = vunpack.c.h.b16 %v5124
        %v7256 = vunpack.c.l.b16 %v5125
        %v7257 = vunpack.c.h.b16 %v5125
        %v7258 = vunpack.c.l.b16 %v5126
        %v7259 = vunpack.c.h.b16 %v5126
        %v7260 = vunpack.c.l.b16 %v5127
        %v7261 = vunpack.c.h.b16 %v5127
        %v7262 = vunpack.c.l.b16 %v5128
        %v7263 = vunpack.c.h.b16 %v5128
        %v7264 = vunpack.c.l.b16 %v5129
        %v7265 = vunpack.c.h.b16 %v5129
        %v7266 = vunpack.c.l.b16 %v5130
        %v7267 = vunpack.c.h.b16 %v5130
        %v7268 = vunpack.c.l.b16 %v5131
        %v7269 = vunpack.c.h.b16 %v5131
        %v7270 = vunpack.c.l.b16 %v5132
        %v7271 = vunpack.c.h.b16 %v5132
        %v7272 = vunpack.c.l.b16 %v5133
        %v7273 = vunpack.c.h.b16 %v5133
        %v7274 = vunpack.c.l.b16 %v5134
        %v7275 = vunpack.c.h.b16 %v5134
        %v7276 = vunpack.c.l.b16 %v5135
        %v7277 = vunpack.c.h.b16 %v5135
        %v7278 = vunpack.c.l.b16 %v5136
        %v7279 = vunpack.c.h.b16 %v5136
        %v7280 = vunpack.c.l.b16 %v5137
        %v7281 = vunpack.c.h.b16 %v5137
        %v7282 = vunpack.c.l.b16 %v5138
        %v7283 = vunpack.c.h.b16 %v5138
        %v7284 = vunpack.c.l.b16 %v5139
        %v7285 = vunpack.c.h.b16 %v5139
        %v7286 = vunpack.c.l.b16 %v5140
        %v7287 = vunpack.c.h.b16 %v5140
        %v7288 = vunpack.c.l.b16 %v5141
        %v7289 = vunpack.c.h.b16 %v5141
        %v7290 = vunpack.c.l.b16 %v5142
        %v7291 = vunpack.c.h.b16 %v5142
        %v7292 = vunpack.c.l.b16 %v5143
        %v7293 = vunpack.c.h.b16 %v5143
        %v7294 = vunpack.c.l.b16 %v5144
        %v7295 = vunpack.c.h.b16 %v5144
        %v7296 = vunpack.c.l.b16 %v5145
        %v7297 = vunpack.c.h.b16 %v5145
        %v7298 = vunpack.c.l.b16 %v5146
        %v7299 = vunpack.c.h.b16 %v5146
        %v7300 = vunpack.c.l.b16 %v5147
        %v7301 = vunpack.c.h.b16 %v5147
        %v7302 = vunpack.c.l.b16 %v5148
        %v7303 = vunpack.c.h.b16 %v5148
        %v7304 = vunpack.c.l.b16 %v5149
        %v7305 = vunpack.c.h.b16 %v5149
        %v7306 = vunpack.c.l.b16 %v5150
        %v7307 = vunpack.c.h.b16 %v5150
        %v7308 = vunpack.c.l.b16 %v5151
        %v7309 = vunpack.c.h.b16 %v5151
        %v7310 = vunpack.c.l.b16 %v5152
        %v7311 = vunpack.c.h.b16 %v5152
        %v7312 = vunpack.c.l.b16 %v5153
        %v7313 = vunpack.c.h.b16 %v5153
        %v7314 = vunpack.c.l.b16 %v5154
        %v7315 = vunpack.c.h.b16 %v5154
        %v7316 = vunpack.c.l.b16 %v5155
        %v7317 = vunpack.c.h.b16 %v5155
        %v7318 = vunpack.c.l.b16 %v5156
        %v7319 = vunpack.c.h.b16 %v5156
        %v7320 = vunpack.c.l.b16 %v5157
        %v7321 = vunpack.c.h.b16 %v5157
        %v7322 = vunpack.c.l.b16 %v5158
        %v7323 = vunpack.c.h.b16 %v5158
        %v7324 = vunpack.c.l.b16 %v5159
        %v7325 = vunpack.c.h.b16 %v5159
        %v7326 = vunpack.c.l.b16 %v5160
        %v7327 = vunpack.c.h.b16 %v5160
        %v7328 = vunpack.c.l.b16 %v5161
        %v7329 = vunpack.c.h.b16 %v5161
        %v7330 = vunpack.c.l.b16 %v5162
        %v7331 = vunpack.c.h.b16 %v5162
        %v7332 = vunpack.c.l.b16 %v5163
        %v7333 = vunpack.c.h.b16 %v5163
        %v7334 = vunpack.c.l.b16 %v5164
        %v7335 = vunpack.c.h.b16 %v5164
        %v7336 = vunpack.c.l.b16 %v5165
        %v7337 = vunpack.c.h.b16 %v5165
        %v7338 = vunpack.c.l.b16 %v5166
        %v7339 = vunpack.c.h.b16 %v5166
        %v7340 = vunpack.c.l.b16 %v5167
        %v7341 = vunpack.c.h.b16 %v5167
        %v7342 = vunpack.c.l.b16 %v5168
        %v7343 = vunpack.c.h.b16 %v5168
        %v7344 = vunpack.c.l.b16 %v5169
        %v7345 = vunpack.c.h.b16 %v5169
        %v7346 = vunpack.c.l.b16 %v5170
        %v7347 = vunpack.c.h.b16 %v5170
        %v7348 = vunpack.c.l.b16 %v5171
        %v7349 = vunpack.c.h.b16 %v5171
        %v7350 = vunpack.c.l.b16 %v5172
        %v7351 = vunpack.c.h.b16 %v5172
        %v7352 = vunpack.c.l.b16 %v5173
        %v7353 = vunpack.c.h.b16 %v5173
        %v7354 = vunpack.c.l.b16 %v5174
        %v7355 = vunpack.c.h.b16 %v5174
        %v7356 = vunpack.c.l.b16 %v5175
        %v7357 = vunpack.c.h.b16 %v5175
        %v7358 = vunpack.c.l.b16 %v5176
        %v7359 = vunpack.c.h.b16 %v5176
        %v7360 = vunpack.c.l.b16 %v5177
        %v7361 = vunpack.c.h.b16 %v5177
        %v7362 = vunpack.c.l.b16 %v5178
        %v7363 = vunpack.c.h.b16 %v5178
        %v7364 = vunpack.c.l.b16 %v5179
        %v7365 = vunpack.c.h.b16 %v5179
        %v7366 = vunpack.c.l.b16 %v5180
        %v7367 = vunpack.c.h.b16 %v5180
        %v7368 = vunpack.c.l.b16 %v5181
        %v7369 = vunpack.c.h.b16 %v5181
        %v7370 = vunpack.c.l.b16 %v5182
        %v7371 = vunpack.c.h.b16 %v5182
        %v7372 = vunpack.c.l.b16 %v5183
        %v7373 = vunpack.c.h.b16 %v5183
        %v7374 = vunpack.c.l.b16 %v5184
        %v7375 = vunpack.c.h.b16 %v5184
        %v7376 = vunpack.c.l.b16 %v5185
        %v7377 = vunpack.c.h.b16 %v5185
        %v7378 = vunpack.c.l.b16 %v5186
        %v7379 = vunpack.c.h.b16 %v5186
        %v7380 = vunpack.c.l.b16 %v5187
        %v7381 = vunpack.c.h.b16 %v5187
        %v7382 = vunpack.c.l.b16 %v5188
        %v7383 = vunpack.c.h.b16 %v5188
        %v7384 = vunpack.c.l.b16 %v5189
        %v7385 = vunpack.c.h.b16 %v5189
        %v7386 = vunpack.c.l.b16 %v5190
        %v7387 = vunpack.c.h.b16 %v5190
        %v7388 = vunpack.c.l.b16 %v5191
        %v7389 = vunpack.c.h.b16 %v5191
        %v7390 = vunpack.c.l.b16 %v5192
        %v7391 = vunpack.c.h.b16 %v5192
        %v7392 = vunpack.c.l.b16 %v5193
        %v7393 = vunpack.c.h.b16 %v5193
        %v7394 = vunpack.c.l.b16 %v5194
        %v7395 = vunpack.c.h.b16 %v5194
        %v7396 = vunpack.c.l.b16 %v5195
        %v7397 = vunpack.c.h.b16 %v5195
        %v7398 = vunpack.c.l.b16 %v5196
        %v7399 = vunpack.c.h.b16 %v5196
        %v7400 = vunpack.c.l.b16 %v5197
        %v7401 = vunpack.c.h.b16 %v5197
        %v7402 = vunpack.c.l.b16 %v5198
        %v7403 = vunpack.c.h.b16 %v5198
        %v7404 = vunpack.c.l.b16 %v5199
        %v7405 = vunpack.c.h.b16 %v5199
        %v7406 = vunpack.c.l.b16 %v5200
        %v7407 = vunpack.c.h.b16 %v5200
        %v7408 = vunpack.c.l.b16 %v5201
        %v7409 = vunpack.c.h.b16 %v5201
        %v7410 = vunpack.c.l.b16 %v5202
        %v7411 = vunpack.c.h.b16 %v5202
        %v7412 = vunpack.c.l.b16 %v5203
        %v7413 = vunpack.c.h.b16 %v5203
        %v7414 = vunpack.c.l.b16 %v5204
        %v7415 = vunpack.c.h.b16 %v5204
        %v7416 = vunpack.c.l.b16 %v5205
        %v7417 = vunpack.c.h.b16 %v5205
        %v7418 = vunpack.c.l.b16 %v5206
        %v7419 = vunpack.c.h.b16 %v5206
        %v7420 = vunpack.c.l.b16 %v5207
        %v7421 = vunpack.c.h.b16 %v5207
        %v7422 = vunpack.c.l.b16 %v5208
        %v7423 = vunpack.c.h.b16 %v5208
        %v7424 = vunpack.c.l.b16 %v5209
        %v7425 = vunpack.c.h.b16 %v5209
        %v7426 = vunpack.c.l.b16 %v5210
        %v7427 = vunpack.c.h.b16 %v5210
        %v7428 = vunpack.c.l.b16 %v5211
        %v7429 = vunpack.c.h.b16 %v5211
        %v7430 = vunpack.c.l.b16 %v5212
        %v7431 = vunpack.c.h.b16 %v5212
        %v7432 = vunpack.c.l.b16 %v5213
        %v7433 = vunpack.c.h.b16 %v5213
        %v7434 = vunpack.c.l.b16 %v5214
        %v7435 = vunpack.c.h.b16 %v5214
        %v7436 = vunpack.c.l.b16 %v5215
        %v7437 = vunpack.c.h.b16 %v5215
        %v7438 = vunpack.c.l.b16 %v5216
        %v7439 = vunpack.c.h.b16 %v5216
        %v7440 = vunpack.c.l.b16 %v5217
        %v7441 = vunpack.c.h.b16 %v5217
        %v7442 = vunpack.c.l.b16 %v5218
        %v7443 = vunpack.c.h.b16 %v5218
        %v7444 = vunpack.c.l.b16 %v5219
        %v7445 = vunpack.c.h.b16 %v5219
        %v7446 = vunpack.c.l.b16 %v5220
        %v7447 = vunpack.c.h.b16 %v5220
        %v7448 = vunpack.c.l.b16 %v5221
        %v7449 = vunpack.c.h.b16 %v5221
        %v7450 = vunpack.c.l.b16 %v5222
        %v7451 = vunpack.c.h.b16 %v5222
        %v7452 = vunpack.c.l.b16 %v5223
        %v7453 = vunpack.c.h.b16 %v5223
        %v7454 = vunpack.c.l.b16 %v5224
        %v7455 = vunpack.c.h.b16 %v5224
        %v7456 = vunpack.c.l.b16 %v5225
        %v7457 = vunpack.c.h.b16 %v5225
        %v7458 = vunpack.c.l.b16 %v5226
        %v7459 = vunpack.c.h.b16 %v5226
        %v7460 = vunpack.c.l.b16 %v5227
        %v7461 = vunpack.c.h.b16 %v5227
        %v7462 = vunpack.c.l.b16 %v5228
        %v7463 = vunpack.c.h.b16 %v5228
        %v7464 = vunpack.c.l.b16 %v5229
        %v7465 = vunpack.c.h.b16 %v5229
        %v7466 = vunpack.c.l.b16 %v5230
        %v7467 = vunpack.c.h.b16 %v5230
        %v7468 = vunpack.c.l.b16 %v5231
        %v7469 = vunpack.c.h.b16 %v5231
        %v7470 = vunpack.c.l.b16 %v5232
        %v7471 = vunpack.c.h.b16 %v5232
        %v7472 = vunpack.c.l.b16 %v5233
        %v7473 = vunpack.c.h.b16 %v5233
        %v7474 = vunpack.c.l.b16 %v5234
        %v7475 = vunpack.c.h.b16 %v5234
        %v7476 = vunpack.c.l.b16 %v5235
        %v7477 = vunpack.c.h.b16 %v5235
        %v7478 = vunpack.c.l.b16 %v5236
        %v7479 = vunpack.c.h.b16 %v5236
        %v7480 = vunpack.c.l.b16 %v5237
        %v7481 = vunpack.c.h.b16 %v5237
        %v7482 = vunpack.c.l.b16 %v5238
        %v7483 = vunpack.c.h.b16 %v5238
        %v7484 = vunpack.c.l.b16 %v5239
        %v7485 = vunpack.c.h.b16 %v5239
        %v7486 = vunpack.c.l.b16 %v5240
        %v7487 = vunpack.c.h.b16 %v5240
        %v7488 = vunpack.c.l.b16 %v5241
        %v7489 = vunpack.c.h.b16 %v5241
        %v7490 = vunpack.c.l.b16 %v5242
        %v7491 = vunpack.c.h.b16 %v5242
        %v7492 = vunpack.c.l.b16 %v5243
        %v7493 = vunpack.c.h.b16 %v5243
        %v7494 = vunpack.c.l.b16 %v5244
        %v7495 = vunpack.c.h.b16 %v5244
        %v7496 = vunpack.c.l.b16 %v5245
        %v7497 = vunpack.c.h.b16 %v5245
        %v7498 = vunpack.c.l.b16 %v5246
        %v7499 = vunpack.c.h.b16 %v5246
        %v7500 = vunpack.c.l.b16 %v5247
        %v7501 = vunpack.c.h.b16 %v5247
        %v7502 = vunpack.c.l.b16 %v5248
        %v7503 = vunpack.c.h.b16 %v5248
        %v7504 = vunpack.c.l.b16 %v5249
        %v7505 = vunpack.c.h.b16 %v5249
        %v7506 = vunpack.c.l.b16 %v5250
        %v7507 = vunpack.c.h.b16 %v5250
        %v7508 = vunpack.c.l.b16 %v5251
        %v7509 = vunpack.c.h.b16 %v5251
        %v7510 = vunpack.c.l.b16 %v5252
        %v7511 = vunpack.c.h.b16 %v5252
        %v7512 = vunpack.c.l.b16 %v5253
        %v7513 = vunpack.c.h.b16 %v5253
        %v7514 = vunpack.c.l.b16 %v5254
        %v7515 = vunpack.c.h.b16 %v5254
        %v7516 = vunpack.c.l.b16 %v5255
        %v7517 = vunpack.c.h.b16 %v5255
        %v7518 = vunpack.c.l.b16 %v5256
        %v7519 = vunpack.c.h.b16 %v5256
        %v7520 = vunpack.c.l.b16 %v5257
        %v7521 = vunpack.c.h.b16 %v5257
        %v7522 = vunpack.c.l.b16 %v5258
        %v7523 = vunpack.c.h.b16 %v5258
        %v7524 = vunpack.c.l.b16 %v5259
        %v7525 = vunpack.c.h.b16 %v5259
        %v7526 = vunpack.c.l.b16 %v5260
        %v7527 = vunpack.c.h.b16 %v5260
        %v7528 = vunpack.c.l.b16 %v5261
        %v7529 = vunpack.c.h.b16 %v5261
        %v7530 = vunpack.c.l.b16 %v5262
        %v7531 = vunpack.c.h.b16 %v5262
        %v7532 = vunpack.c.l.b16 %v5263
        %v7533 = vunpack.c.h.b16 %v5263
        %v7534 = vpack.c.b16 %v7138, %v7134
        %v7535 = vpack.c.b16 %v7139, %v7135
        %v7536 = vpack.c.b16 %v7140, %v7136
        %v7537 = vpack.c.b16 %v7141, %v7137
        %v7538 = vpack.c.b16 %v7146, %v7142
        %v7539 = vpack.c.b16 %v7147, %v7143
        %v7540 = vpack.c.b16 %v7148, %v7144
        %v7541 = vpack.c.b16 %v7149, %v7145
        %v7542 = vpack.c.b16 %v7154, %v7150
        %v7543 = vpack.c.b16 %v7155, %v7151
        %v7544 = vpack.c.b16 %v7156, %v7152
        %v7545 = vpack.c.b16 %v7157, %v7153
        %v7546 = vpack.c.b16 %v7162, %v7158
        %v7547 = vpack.c.b16 %v7163, %v7159
        %v7548 = vpack.c.b16 %v7164, %v7160
        %v7549 = vpack.c.b16 %v7165, %v7161
        %v7550 = vpack.c.b16 %v7170, %v7166
        %v7551 = vpack.c.b16 %v7171, %v7167
        %v7552 = vpack.c.b16 %v7172, %v7168
        %v7553 = vpack.c.b16 %v7173, %v7169
        %v7554 = vpack.c.b16 %v7178, %v7174
        %v7555 = vpack.c.b16 %v7179, %v7175
        %v7556 = vpack.c.b16 %v7180, %v7176
        %v7557 = vpack.c.b16 %v7181, %v7177
        %v7558 = vpack.c.b16 %v7186, %v7182
        %v7559 = vpack.c.b16 %v7187, %v7183
        %v7560 = vpack.c.b16 %v7188, %v7184
        %v7561 = vpack.c.b16 %v7189, %v7185
        %v7562 = vpack.c.b16 %v7194, %v7190
        %v7563 = vpack.c.b16 %v7195, %v7191
        %v7564 = vpack.c.b16 %v7196, %v7192
        %v7565 = vpack.c.b16 %v7197, %v7193
        %v7566 = vpack.c.b16 %v7202, %v7198
        %v7567 = vpack.c.b16 %v7203, %v7199
        %v7568 = vpack.c.b16 %v7204, %v7200
        %v7569 = vpack.c.b16 %v7205, %v7201
        %v7570 = vpack.c.b16 %v7210, %v7206
        %v7571 = vpack.c.b16 %v7211, %v7207
        %v7572 = vpack.c.b16 %v7212, %v7208
        %v7573 = vpack.c.b16 %v7213, %v7209
        %v7574 = vpack.c.b16 %v7218, %v7214
        %v7575 = vpack.c.b16 %v7219, %v7215
        %v7576 = vpack.c.b16 %v7220, %v7216
        %v7577 = vpack.c.b16 %v7221, %v7217
        %v7578 = vpack.c.b16 %v7226, %v7222
        %v7579 = vpack.c.b16 %v7227, %v7223
        %v7580 = vpack.c.b16 %v7228, %v7224
        %v7581 = vpack.c.b16 %v7229, %v7225
        %v7582 = vpack.c.b16 %v7234, %v7230
        %v7583 = vpack.c.b16 %v7235, %v7231
        %v7584 = vpack.c.b16 %v7236, %v7232
        %v7585 = vpack.c.b16 %v7237, %v7233
        %v7586 = vpack.c.b16 %v7242, %v7238
        %v7587 = vpack.c.b16 %v7243, %v7239
        %v7588 = vpack.c.b16 %v7244, %v7240
        %v7589 = vpack.c.b16 %v7245, %v7241
        %v7590 = vpack.c.b16 %v7250, %v7246
        %v7591 = vpack.c.b16 %v7251, %v7247
        %v7592 = vpack.c.b16 %v7252, %v7248
        %v7593 = vpack.c.b16 %v7253, %v7249
        %v7594 = vpack.c.b16 %v7258, %v7254
        %v7595 = vpack.c.b16 %v7259, %v7255
        %v7596 = vpack.c.b16 %v7260, %v7256
        %v7597 = vpack.c.b16 %v7261, %v7257
        %v7598 = vpack.c.b16 %v7266, %v7262
        %v7599 = vpack.c.b16 %v7267, %v7263
        %v7600 = vpack.c.b16 %v7268, %v7264
        %v7601 = vpack.c.b16 %v7269, %v7265
        %v7602 = vpack.c.b16 %v7274, %v7270
        %v7603 = vpack.c.b16 %v7275, %v7271
        %v7604 = vpack.c.b16 %v7276, %v7272
        %v7605 = vpack.c.b16 %v7277, %v7273
        %v7606 = vpack.c.b16 %v7282, %v7278
        %v7607 = vpack.c.b16 %v7283, %v7279
        %v7608 = vpack.c.b16 %v7284, %v7280
        %v7609 = vpack.c.b16 %v7285, %v7281
        %v7610 = vpack.c.b16 %v7290, %v7286
        %v7611 = vpack.c.b16 %v7291, %v7287
        %v7612 = vpack.c.b16 %v7292, %v7288
        %v7613 = vpack.c.b16 %v7293, %v7289
        %v7614 = vpack.c.b16 %v7298, %v7294
        %v7615 = vpack.c.b16 %v7299, %v7295
        %v7616 = vpack.c.b16 %v7300, %v7296
        %v7617 = vpack.c.b16 %v7301, %v7297
        %v7618 = vpack.c.b16 %v7306, %v7302
        %v7619 = vpack.c.b16 %v7307, %v7303
        %v7620 = vpack.c.b16 %v7308, %v7304
        %v7621 = vpack.c.b16 %v7309, %v7305
        %v7622 = vpack.c.b16 %v7314, %v7310
        %v7623 = vpack.c.b16 %v7315, %v7311
        %v7624 = vpack.c.b16 %v7316, %v7312
        %v7625 = vpack.c.b16 %v7317, %v7313
        %v7626 = vpack.c.b16 %v7322, %v7318
        %v7627 = vpack.c.b16 %v7323, %v7319
        %v7628 = vpack.c.b16 %v7324, %v7320
        %v7629 = vpack.c.b16 %v7325, %v7321
        %v7630 = vpack.c.b16 %v7330, %v7326
        %v7631 = vpack.c.b16 %v7331, %v7327
        %v7632 = vpack.c.b16 %v7332, %v7328
        %v7633 = vpack.c.b16 %v7333, %v7329
        %v7634 = vpack.c.b16 %v7338, %v7334
        %v7635 = vpack.c.b16 %v7339, %v7335
        %v7636 = vpack.c.b16 %v7340, %v7336
        %v7637 = vpack.c.b16 %v7341, %v7337
        %v7638 = vpack.c.b16 %v7346, %v7342
        %v7639 = vpack.c.b16 %v7347, %v7343
        %v7640 = vpack.c.b16 %v7348, %v7344
        %v7641 = vpack.c.b16 %v7349, %v7345
        %v7642 = vpack.c.b16 %v7354, %v7350
        %v7643 = vpack.c.b16 %v7355, %v7351
        %v7644 = vpack.c.b16 %v7356, %v7352
        %v7645 = vpack.c.b16 %v7357, %v7353
        %v7646 = vpack.c.b16 %v7362, %v7358
        %v7647 = vpack.c.b16 %v7363, %v7359
        %v7648 = vpack.c.b16 %v7364, %v7360
        %v7649 = vpack.c.b16 %v7365, %v7361
        %v7650 = vpack.c.b16 %v7370, %v7366
        %v7651 = vpack.c.b16 %v7371, %v7367
        %v7652 = vpack.c.b16 %v7372, %v7368
        %v7653 = vpack.c.b16 %v7373, %v7369
        %v7654 = vpack.c.b16 %v7378, %v7374
        %v7655 = vpack.c.b16 %v7379, %v7375
        %v7656 = vpack.c.b16 %v7380, %v7376
        %v7657 = vpack.c.b16 %v7381, %v7377
        %v7658 = vpack.c.b16 %v7386, %v7382
        %v7659 = vpack.c.b16 %v7387, %v7383
        %v7660 = vpack.c.b16 %v7388, %v7384
        %v7661 = vpack.c.b16 %v7389, %v7385
        %v7662 = vpack.c.b16 %v7394, %v7390
        %v7663 = vpack.c.b16 %v7395, %v7391
        %v7664 = vpack.c.b16 %v7396, %v7392
        %v7665 = vpack.c.b16 %v7397, %v7393
        %v7666 = vpack.c.b16 %v7402, %v7398
        %v7667 = vpack.c.b16 %v7403, %v7399
        %v7668 = vpack.c.b16 %v7404, %v7400
        %v7669 = vpack.c.b16 %v7405, %v7401
        %v7670 = vpack.c.b16 %v7410, %v7406
        %v7671 = vpack.c.b16 %v7411, %v7407
        %v7672 = vpack.c.b16 %v7412, %v7408
        %v7673 = vpack.c.b16 %v7413, %v7409
        %v7674 = vpack.c.b16 %v7418, %v7414
        %v7675 = vpack.c.b16 %v7419, %v7415
        %v7676 = vpack.c.b16 %v7420, %v7416
        %v7677 = vpack.c.b16 %v7421, %v7417
        %v7678 = vpack.c.b16 %v7426, %v7422
        %v7679 = vpack.c.b16 %v7427, %v7423
        %v7680 = vpack.c.b16 %v7428, %v7424
        %v7681 = vpack.c.b16 %v7429, %v7425
        %v7682 = vpack.c.b16 %v7434, %v7430
        %v7683 = vpack.c.b16 %v7435, %v7431
        %v7684 = vpack.c.b16 %v7436, %v7432
        %v7685 = vpack.c.b16 %v7437, %v7433
        %v7686 = vpack.c.b16 %v7442, %v7438
        %v7687 = vpack.c.b16 %v7443, %v7439
        %v7688 = vpack.c.b16 %v7444, %v7440
        %v7689 = vpack.c.b16 %v7445, %v7441
        %v7690 = vpack.c.b16 %v7450, %v7446
        %v7691 = vpack.c.b16 %v7451, %v7447
        %v7692 = vpack.c.b16 %v7452, %v7448
        %v7693 = vpack.c.b16 %v7453, %v7449
        %v7694 = vpack.c.b16 %v7458, %v7454
        %v7695 = vpack.c.b16 %v7459, %v7455
        %v7696 = vpack.c.b16 %v7460, %v7456
        %v7697 = vpack.c.b16 %v7461, %v7457
        %v7698 = vpack.c.b16 %v7466, %v7462
        %v7699 = vpack.c.b16 %v7467, %v7463
        %v7700 = vpack.c.b16 %v7468, %v7464
        %v7701 = vpack.c.b16 %v7469, %v7465
        %v7702 = vpack.c.b16 %v7474, %v7470
        %v7703 = vpack.c.b16 %v7475, %v7471
        %v7704 = vpack.c.b16 %v7476, %v7472
        %v7705 = vpack.c.b16 %v7477, %v7473
        %v7706 = vpack.c.b16 %v7482, %v7478
        %v7707 = vpack.c.b16 %v7483, %v7479
        %v7708 = vpack.c.b16 %v7484, %v7480
        %v7709 = vpack.c.b16 %v7485, %v7481
        %v7710 = vpack.c.b16 %v7490, %v7486
        %v7711 = vpack.c.b16 %v7491, %v7487
        %v7712 = vpack.c.b16 %v7492, %v7488
        %v7713 = vpack.c.b16 %v7493, %v7489
        %v7714 = vpack.c.b16 %v7498, %v7494
        %v7715 = vpack.c.b16 %v7499, %v7495
        %v7716 = vpack.c.b16 %v7500, %v7496
        %v7717 = vpack.c.b16 %v7501, %v7497
        %v7718 = vpack.c.b16 %v7506, %v7502
        %v7719 = vpack.c.b16 %v7507, %v7503
        %v7720 = vpack.c.b16 %v7508, %v7504
        %v7721 = vpack.c.b16 %v7509, %v7505
        %v7722 = vpack.c.b16 %v7514, %v7510
        %v7723 = vpack.c.b16 %v7515, %v7511
        %v7724 = vpack.c.b16 %v7516, %v7512
        %v7725 = vpack.c.b16 %v7517, %v7513
        %v7726 = vpack.c.b16 %v7522, %v7518
        %v7727 = vpack.c.b16 %v7523, %v7519
        %v7728 = vpack.c.b16 %v7524, %v7520
        %v7729 = vpack.c.b16 %v7525, %v7521
        %v7730 = vpack.c.b16 %v7530, %v7526
        %v7731 = vpack.c.b16 %v7531, %v7527
        %v7732 = vpack.c.b16 %v7532, %v7528
        %v7733 = vpack.c.b16 %v7533, %v7529
        %v7935 = vsel %vm6553, %v6927, 0
        %7937 = vmatpush.bf16.msra.mxu0 %v7562
        %7938 = vmatpush.bf16.msra.mxu0 %v7558
        %7939 = vmatpush.bf16.msra.mxu0 %v7554
        %7940 = vmatpush.bf16.msra.mxu0 %v7550
        %7941 = vmatpush.bf16.msra.mxu0 %v7546
        %7942 = vmatpush.bf16.msra.mxu0 %v7542
        %7943 = vmatpush.bf16.msra.mxu0 %v7538
        %7944 = vmatpush.bf16.msra.mxu0 %v7534
        %7945 = vmatmul.bf16.gmra.mxu0 %v6921
        %v7946 = vpop.f32.mrf.mxu0
        %v7947 = vadd.f32 %v6645, %v7946
        %v7948 = vpop.f32.mrf.mxu0
        %7949 = vdwg.mxu0
        %7950 = vmatpush.bf16.msra.mxu0 %v7594
        %7951 = vmatpush.bf16.msra.mxu0 %v7590
        %7952 = vmatpush.bf16.msra.mxu0 %v7586
        %7953 = vmatpush.bf16.msra.mxu0 %v7582
        %7954 = vmatpush.bf16.msra.mxu0 %v7578
        %7955 = vmatpush.bf16.msra.mxu0 %v7574
        %7956 = vmatpush.bf16.msra.mxu0 %v7570
        %7957 = vmatpush.bf16.msra.mxu0 %v7566
        %7958 = vmatmul.bf16.gmra.mxu0 %v6922
        %v7959 = vpop.f32.mrf.mxu0
        %v7960 = vadd.f32 %v7947, %v7959
        %v7961 = vpop.f32.mrf.mxu0
        %7962 = vdwg.mxu0
        %7963 = vmatpush.bf16.msra.mxu0 %v7626
        %7964 = vmatpush.bf16.msra.mxu0 %v7622
        %7965 = vmatpush.bf16.msra.mxu0 %v7618
        %7966 = vmatpush.bf16.msra.mxu0 %v7614
        %7967 = vmatpush.bf16.msra.mxu0 %v7610
        %7968 = vmatpush.bf16.msra.mxu0 %v7606
        %7969 = vmatpush.bf16.msra.mxu0 %v7602
        %7970 = vmatpush.bf16.msra.mxu0 %v7598
        %7971 = vmatmul.bf16.gmra.mxu0 %v6923
        %v7972 = vpop.f32.mrf.mxu0
        %v7973 = vadd.f32 %v7960, %v7972
        %v7974 = vpop.f32.mrf.mxu0
        %7975 = vdwg.mxu0
        %7976 = vmatpush.bf16.msra.mxu0 %v7658
        %7977 = vmatpush.bf16.msra.mxu0 %v7654
        %7978 = vmatpush.bf16.msra.mxu0 %v7650
        %7979 = vmatpush.bf16.msra.mxu0 %v7646
        %7980 = vmatpush.bf16.msra.mxu0 %v7642
        %7981 = vmatpush.bf16.msra.mxu0 %v7638
        %7982 = vmatpush.bf16.msra.mxu0 %v7634
        %7983 = vmatpush.bf16.msra.mxu0 %v7630
        %7984 = vmatmul.bf16.gmra.mxu0 %v6924
        %v7985 = vpop.f32.mrf.mxu0
        %v7986 = vadd.f32 %v7973, %v7985
        %v7987 = vpop.f32.mrf.mxu0
        %7988 = vdwg.mxu0
        %7989 = vmatpush.bf16.msra.mxu0 %v7690
        %7990 = vmatpush.bf16.msra.mxu0 %v7686
        %7991 = vmatpush.bf16.msra.mxu0 %v7682
        %7992 = vmatpush.bf16.msra.mxu0 %v7678
        %7993 = vmatpush.bf16.msra.mxu0 %v7674
        %7994 = vmatpush.bf16.msra.mxu0 %v7670
        %7995 = vmatpush.bf16.msra.mxu0 %v7666
        %7996 = vmatpush.bf16.msra.mxu0 %v7662
        %7997 = vmatmul.bf16.gmra.mxu0 %v6925
        %v7998 = vpop.f32.mrf.mxu0
        %v7999 = vadd.f32 %v7986, %v7998
        %v8000 = vpop.f32.mrf.mxu0
        %8001 = vdwg.mxu0
        %8002 = vmatpush.bf16.msra.mxu0 %v7722
        %8003 = vmatpush.bf16.msra.mxu0 %v7718
        %8004 = vmatpush.bf16.msra.mxu0 %v7714
        %8005 = vmatpush.bf16.msra.mxu0 %v7710
        %8006 = vmatpush.bf16.msra.mxu0 %v7706
        %8007 = vmatpush.bf16.msra.mxu0 %v7702
        %8008 = vmatpush.bf16.msra.mxu0 %v7698
        %8009 = vmatpush.bf16.msra.mxu0 %v7694
        %8010 = vmatmul.bf16.gmra.mxu0 %v6926
        %v8011 = vpop.f32.mrf.mxu0
        %v8012 = vadd.f32 %v7999, %v8011
        %v8013 = vpop.f32.mrf.mxu0
        %8014 = vdwg.mxu0
        %8015 = vmatpush.bf16.msra.mxu0 0
        %8016 = vmatpush.bf16.msra.mxu0 0
        %8017 = vmatpush.bf16.msra.mxu0 0
        %8018 = vmatpush.bf16.msra.mxu0 0
        %8019 = vmatpush.bf16.msra.mxu0 0
        %8020 = vmatpush.bf16.msra.mxu0 0
        %8021 = vmatpush.bf16.msra.mxu0 %v7730
        %8022 = vmatpush.bf16.msra.mxu0 %v7726
        %8023 = vmatmul.bf16.gmra.mxu0 %v7935
        %v8024 = vpop.f32.mrf.mxu0
        %v8025 = vadd.f32 %v8012, %v8024
        %v8026 = vpop.f32.mrf.mxu0
        %8027 = vdwg.mxu0
        %8028 = vmatpush.bf16.msra.mxu0 %v7563
        %8029 = vmatpush.bf16.msra.mxu0 %v7559
        %8030 = vmatpush.bf16.msra.mxu0 %v7555
        %8031 = vmatpush.bf16.msra.mxu0 %v7551
        %8032 = vmatpush.bf16.msra.mxu0 %v7547
        %8033 = vmatpush.bf16.msra.mxu0 %v7543
        %8034 = vmatpush.bf16.msra.mxu0 %v7539
        %8035 = vmatpush.bf16.msra.mxu0 %v7535
        %8036 = vmatmul.bf16.gmra.mxu0 %v6921
        %v8037 = vpop.f32.mrf.mxu0
        %v8038 = vadd.f32 %v6736, %v8037
        %v8039 = vpop.f32.mrf.mxu0
        %8040 = vdwg.mxu0
        %8041 = vmatpush.bf16.msra.mxu0 %v7595
        %8042 = vmatpush.bf16.msra.mxu0 %v7591
        %8043 = vmatpush.bf16.msra.mxu0 %v7587
        %8044 = vmatpush.bf16.msra.mxu0 %v7583
        %8045 = vmatpush.bf16.msra.mxu0 %v7579
        %8046 = vmatpush.bf16.msra.mxu0 %v7575
        %8047 = vmatpush.bf16.msra.mxu0 %v7571
        %8048 = vmatpush.bf16.msra.mxu0 %v7567
        %8049 = vmatmul.bf16.gmra.mxu0 %v6922
        %v8050 = vpop.f32.mrf.mxu0
        %v8051 = vadd.f32 %v8038, %v8050
        %v8052 = vpop.f32.mrf.mxu0
        %8053 = vdwg.mxu0
        %8054 = vmatpush.bf16.msra.mxu0 %v7627
        %8055 = vmatpush.bf16.msra.mxu0 %v7623
        %8056 = vmatpush.bf16.msra.mxu0 %v7619
        %8057 = vmatpush.bf16.msra.mxu0 %v7615
        %8058 = vmatpush.bf16.msra.mxu0 %v7611
        %8059 = vmatpush.bf16.msra.mxu0 %v7607
        %8060 = vmatpush.bf16.msra.mxu0 %v7603
        %8061 = vmatpush.bf16.msra.mxu0 %v7599
        %8062 = vmatmul.bf16.gmra.mxu0 %v6923
        %v8063 = vpop.f32.mrf.mxu0
        %v8064 = vadd.f32 %v8051, %v8063
        %v8065 = vpop.f32.mrf.mxu0
        %8066 = vdwg.mxu0
        %8067 = vmatpush.bf16.msra.mxu0 %v7659
        %8068 = vmatpush.bf16.msra.mxu0 %v7655
        %8069 = vmatpush.bf16.msra.mxu0 %v7651
        %8070 = vmatpush.bf16.msra.mxu0 %v7647
        %8071 = vmatpush.bf16.msra.mxu0 %v7643
        %8072 = vmatpush.bf16.msra.mxu0 %v7639
        %8073 = vmatpush.bf16.msra.mxu0 %v7635
        %8074 = vmatpush.bf16.msra.mxu0 %v7631
        %8075 = vmatmul.bf16.gmra.mxu0 %v6924
        %v8076 = vpop.f32.mrf.mxu0
        %v8077 = vadd.f32 %v8064, %v8076
        %v8078 = vpop.f32.mrf.mxu0
        %8079 = vdwg.mxu0
        %8080 = vmatpush.bf16.msra.mxu0 %v7691
        %8081 = vmatpush.bf16.msra.mxu0 %v7687
        %8082 = vmatpush.bf16.msra.mxu0 %v7683
        %8083 = vmatpush.bf16.msra.mxu0 %v7679
        %8084 = vmatpush.bf16.msra.mxu0 %v7675
        %8085 = vmatpush.bf16.msra.mxu0 %v7671
        %8086 = vmatpush.bf16.msra.mxu0 %v7667
        %8087 = vmatpush.bf16.msra.mxu0 %v7663
        %8088 = vmatmul.bf16.gmra.mxu0 %v6925
        %v8089 = vpop.f32.mrf.mxu0
        %v8090 = vadd.f32 %v8077, %v8089
        %v8091 = vpop.f32.mrf.mxu0
        %8092 = vdwg.mxu0
        %8093 = vmatpush.bf16.msra.mxu0 %v7723
        %8094 = vmatpush.bf16.msra.mxu0 %v7719
        %8095 = vmatpush.bf16.msra.mxu0 %v7715
        %8096 = vmatpush.bf16.msra.mxu0 %v7711
        %8097 = vmatpush.bf16.msra.mxu0 %v7707
        %8098 = vmatpush.bf16.msra.mxu0 %v7703
        %8099 = vmatpush.bf16.msra.mxu0 %v7699
        %8100 = vmatpush.bf16.msra.mxu0 %v7695
        %8101 = vmatmul.bf16.gmra.mxu0 %v6926
        %v8102 = vpop.f32.mrf.mxu0
        %v8103 = vadd.f32 %v8090, %v8102
        %v8104 = vpop.f32.mrf.mxu0
        %8105 = vdwg.mxu0
        %8106 = vmatpush.bf16.msra.mxu0 0
        %8107 = vmatpush.bf16.msra.mxu0 0
        %8108 = vmatpush.bf16.msra.mxu0 0
        %8109 = vmatpush.bf16.msra.mxu0 0
        %8110 = vmatpush.bf16.msra.mxu0 0
        %8111 = vmatpush.bf16.msra.mxu0 0
        %8112 = vmatpush.bf16.msra.mxu0 %v7731
        %8113 = vmatpush.bf16.msra.mxu0 %v7727
        %8114 = vmatmul.bf16.gmra.mxu0 %v7935
        %v8115 = vpop.f32.mrf.mxu0
        %v8116 = vadd.f32 %v8103, %v8115
        %v8117 = vpop.f32.mrf.mxu0
        %8118 = vdwg.mxu0
        %8119 = vmatpush.bf16.msra.mxu0 %v7564
        %8120 = vmatpush.bf16.msra.mxu0 %v7560
        %8121 = vmatpush.bf16.msra.mxu0 %v7556
        %8122 = vmatpush.bf16.msra.mxu0 %v7552
        %8123 = vmatpush.bf16.msra.mxu0 %v7548
        %8124 = vmatpush.bf16.msra.mxu0 %v7544
        %8125 = vmatpush.bf16.msra.mxu0 %v7540
        %8126 = vmatpush.bf16.msra.mxu0 %v7536
        %8127 = vmatmul.bf16.gmra.mxu0 %v6921
        %v8128 = vpop.f32.mrf.mxu0
        %v8129 = vadd.f32 %v6827, %v8128
        %v8130 = vpop.f32.mrf.mxu0
        %8131 = vdwg.mxu0
        %8132 = vmatpush.bf16.msra.mxu0 %v7596
        %8133 = vmatpush.bf16.msra.mxu0 %v7592
        %8134 = vmatpush.bf16.msra.mxu0 %v7588
        %8135 = vmatpush.bf16.msra.mxu0 %v7584
        %8136 = vmatpush.bf16.msra.mxu0 %v7580
        %8137 = vmatpush.bf16.msra.mxu0 %v7576
        %8138 = vmatpush.bf16.msra.mxu0 %v7572
        %8139 = vmatpush.bf16.msra.mxu0 %v7568
        %8140 = vmatmul.bf16.gmra.mxu0 %v6922
        %v8141 = vpop.f32.mrf.mxu0
        %v8142 = vadd.f32 %v8129, %v8141
        %v8143 = vpop.f32.mrf.mxu0
        %8144 = vdwg.mxu0
        %8145 = vmatpush.bf16.msra.mxu0 %v7628
        %8146 = vmatpush.bf16.msra.mxu0 %v7624
        %8147 = vmatpush.bf16.msra.mxu0 %v7620
        %8148 = vmatpush.bf16.msra.mxu0 %v7616
        %8149 = vmatpush.bf16.msra.mxu0 %v7612
        %8150 = vmatpush.bf16.msra.mxu0 %v7608
        %8151 = vmatpush.bf16.msra.mxu0 %v7604
        %8152 = vmatpush.bf16.msra.mxu0 %v7600
        %8153 = vmatmul.bf16.gmra.mxu0 %v6923
        %v8154 = vpop.f32.mrf.mxu0
        %v8155 = vadd.f32 %v8142, %v8154
        %v8156 = vpop.f32.mrf.mxu0
        %8157 = vdwg.mxu0
        %8158 = vmatpush.bf16.msra.mxu0 %v7660
        %8159 = vmatpush.bf16.msra.mxu0 %v7656
        %8160 = vmatpush.bf16.msra.mxu0 %v7652
        %8161 = vmatpush.bf16.msra.mxu0 %v7648
        %8162 = vmatpush.bf16.msra.mxu0 %v7644
        %8163 = vmatpush.bf16.msra.mxu0 %v7640
        %8164 = vmatpush.bf16.msra.mxu0 %v7636
        %8165 = vmatpush.bf16.msra.mxu0 %v7632
        %8166 = vmatmul.bf16.gmra.mxu0 %v6924
        %v8167 = vpop.f32.mrf.mxu0
        %v8168 = vadd.f32 %v8155, %v8167
        %v8169 = vpop.f32.mrf.mxu0
        %8170 = vdwg.mxu0
        %8171 = vmatpush.bf16.msra.mxu0 %v7692
        %8172 = vmatpush.bf16.msra.mxu0 %v7688
        %8173 = vmatpush.bf16.msra.mxu0 %v7684
        %8174 = vmatpush.bf16.msra.mxu0 %v7680
        %8175 = vmatpush.bf16.msra.mxu0 %v7676
        %8176 = vmatpush.bf16.msra.mxu0 %v7672
        %8177 = vmatpush.bf16.msra.mxu0 %v7668
        %8178 = vmatpush.bf16.msra.mxu0 %v7664
        %8179 = vmatmul.bf16.gmra.mxu0 %v6925
        %v8180 = vpop.f32.mrf.mxu0
        %v8181 = vadd.f32 %v8168, %v8180
        %v8182 = vpop.f32.mrf.mxu0
        %8183 = vdwg.mxu0
        %8184 = vmatpush.bf16.msra.mxu0 %v7724
        %8185 = vmatpush.bf16.msra.mxu0 %v7720
        %8186 = vmatpush.bf16.msra.mxu0 %v7716
        %8187 = vmatpush.bf16.msra.mxu0 %v7712
        %8188 = vmatpush.bf16.msra.mxu0 %v7708
        %8189 = vmatpush.bf16.msra.mxu0 %v7704
        %8190 = vmatpush.bf16.msra.mxu0 %v7700
        %8191 = vmatpush.bf16.msra.mxu0 %v7696
        %8192 = vmatmul.bf16.gmra.mxu0 %v6926
        %v8193 = vpop.f32.mrf.mxu0
        %v8194 = vadd.f32 %v8181, %v8193
        %v8195 = vpop.f32.mrf.mxu0
        %8196 = vdwg.mxu0
        %8197 = vmatpush.bf16.msra.mxu0 0
        %8198 = vmatpush.bf16.msra.mxu0 0
        %8199 = vmatpush.bf16.msra.mxu0 0
        %8200 = vmatpush.bf16.msra.mxu0 0
        %8201 = vmatpush.bf16.msra.mxu0 0
        %8202 = vmatpush.bf16.msra.mxu0 0
        %8203 = vmatpush.bf16.msra.mxu0 %v7732
        %8204 = vmatpush.bf16.msra.mxu0 %v7728
        %8205 = vmatmul.bf16.gmra.mxu0 %v7935
        %v8206 = vpop.f32.mrf.mxu0
        %v8207 = vadd.f32 %v8194, %v8206
        %v8208 = vpop.f32.mrf.mxu0
        %8209 = vdwg.mxu0
        %8210 = vmatpush.bf16.msra.mxu0 %v7565
        %8211 = vmatpush.bf16.msra.mxu0 %v7561
        %8212 = vmatpush.bf16.msra.mxu0 %v7557
        %8213 = vmatpush.bf16.msra.mxu0 %v7553
        %8214 = vmatpush.bf16.msra.mxu0 %v7549
        %8215 = vmatpush.bf16.msra.mxu0 %v7545
        %8216 = vmatpush.bf16.msra.mxu0 %v7541
        %8217 = vmatpush.bf16.msra.mxu0 %v7537
        %8218 = vmatmul.bf16.gmra.mxu0 %v6921
        %v8219 = vpop.f32.mrf.mxu0
        %v8220 = vadd.f32 %v6918, %v8219
        %v8221 = vpop.f32.mrf.mxu0
        %8222 = vdwg.mxu0
        %8223 = vmatpush.bf16.msra.mxu0 %v7597
        %8224 = vmatpush.bf16.msra.mxu0 %v7593
        %8225 = vmatpush.bf16.msra.mxu0 %v7589
        %8226 = vmatpush.bf16.msra.mxu0 %v7585
        %8227 = vmatpush.bf16.msra.mxu0 %v7581
        %8228 = vmatpush.bf16.msra.mxu0 %v7577
        %8229 = vmatpush.bf16.msra.mxu0 %v7573
        %8230 = vmatpush.bf16.msra.mxu0 %v7569
        %8231 = vmatmul.bf16.gmra.mxu0 %v6922
        %v8232 = vpop.f32.mrf.mxu0
        %v8233 = vadd.f32 %v8220, %v8232
        %v8234 = vpop.f32.mrf.mxu0
        %8235 = vdwg.mxu0
        %8236 = vmatpush.bf16.msra.mxu0 %v7629
        %8237 = vmatpush.bf16.msra.mxu0 %v7625
        %8238 = vmatpush.bf16.msra.mxu0 %v7621
        %8239 = vmatpush.bf16.msra.mxu0 %v7617
        %8240 = vmatpush.bf16.msra.mxu0 %v7613
        %8241 = vmatpush.bf16.msra.mxu0 %v7609
        %8242 = vmatpush.bf16.msra.mxu0 %v7605
        %8243 = vmatpush.bf16.msra.mxu0 %v7601
        %8244 = vmatmul.bf16.gmra.mxu0 %v6923
        %v8245 = vpop.f32.mrf.mxu0
        %v8246 = vadd.f32 %v8233, %v8245
        %v8247 = vpop.f32.mrf.mxu0
        %8248 = vdwg.mxu0
        %8249 = vmatpush.bf16.msra.mxu0 %v7661
        %8250 = vmatpush.bf16.msra.mxu0 %v7657
        %8251 = vmatpush.bf16.msra.mxu0 %v7653
        %8252 = vmatpush.bf16.msra.mxu0 %v7649
        %8253 = vmatpush.bf16.msra.mxu0 %v7645
        %8254 = vmatpush.bf16.msra.mxu0 %v7641
        %8255 = vmatpush.bf16.msra.mxu0 %v7637
        %8256 = vmatpush.bf16.msra.mxu0 %v7633
        %8257 = vmatmul.bf16.gmra.mxu0 %v6924
        %v8258 = vpop.f32.mrf.mxu0
        %v8259 = vadd.f32 %v8246, %v8258
        %v8260 = vpop.f32.mrf.mxu0
        %8261 = vdwg.mxu0
        %8262 = vmatpush.bf16.msra.mxu0 %v7693
        %8263 = vmatpush.bf16.msra.mxu0 %v7689
        %8264 = vmatpush.bf16.msra.mxu0 %v7685
        %8265 = vmatpush.bf16.msra.mxu0 %v7681
        %8266 = vmatpush.bf16.msra.mxu0 %v7677
        %8267 = vmatpush.bf16.msra.mxu0 %v7673
        %8268 = vmatpush.bf16.msra.mxu0 %v7669
        %8269 = vmatpush.bf16.msra.mxu0 %v7665
        %8270 = vmatmul.bf16.gmra.mxu0 %v6925
        %v8271 = vpop.f32.mrf.mxu0
        %v8272 = vadd.f32 %v8259, %v8271
        %v8273 = vpop.f32.mrf.mxu0
        %8274 = vdwg.mxu0
        %8275 = vmatpush.bf16.msra.mxu0 %v7725
        %8276 = vmatpush.bf16.msra.mxu0 %v7721
        %8277 = vmatpush.bf16.msra.mxu0 %v7717
        %8278 = vmatpush.bf16.msra.mxu0 %v7713
        %8279 = vmatpush.bf16.msra.mxu0 %v7709
        %8280 = vmatpush.bf16.msra.mxu0 %v7705
        %8281 = vmatpush.bf16.msra.mxu0 %v7701
        %8282 = vmatpush.bf16.msra.mxu0 %v7697
        %8283 = vmatmul.bf16.gmra.mxu0 %v6926
        %v8284 = vpop.f32.mrf.mxu0
        %v8285 = vadd.f32 %v8272, %v8284
        %v8286 = vpop.f32.mrf.mxu0
        %8287 = vdwg.mxu0
        %8288 = vmatpush.bf16.msra.mxu0 0
        %8289 = vmatpush.bf16.msra.mxu0 0
        %8290 = vmatpush.bf16.msra.mxu0 0
        %8291 = vmatpush.bf16.msra.mxu0 0
        %8292 = vmatpush.bf16.msra.mxu0 0
        %8293 = vmatpush.bf16.msra.mxu0 0
        %8294 = vmatpush.bf16.msra.mxu0 %v7733
        %8295 = vmatpush.bf16.msra.mxu0 %v7729
        %8296 = vmatmul.bf16.gmra.mxu0 %v7935
        %v8297 = vpop.f32.mrf.mxu0
        %v8298 = vadd.f32 %v8285, %v8297
        %v8299 = vpop.f32.mrf.mxu0
        %8300 = vdwg.mxu0
        %v8301 = vld [vmem:[#allocation2] sm:$0xee]
        %v8302 = vld [vmem:[#allocation2 + $0x8] sm:$0xee]
        %v8303 = vld [vmem:[#allocation2 + $0x10] sm:$0xee]
        %v8304 = vld [vmem:[#allocation2 + $0x18] sm:$0xe]
        %s8305 = scalar_lea.vmem [#allocation6], 3200
        %v8306 = vld [vmem:[%s8305] sm:$0xff]
        %v8307 = vld [vmem:[%s8305 + $0x8] sm:$0xff]
        %v8308 = vld [vmem:[%s8305 + $0x10] sm:$0xff]
        %v8309 = vld [vmem:[%s8305 + $0x18] sm:$0xff]
        %v8310 = vld [vmem:[%s8305 + $0x20] sm:$0xff]
        %v8311 = vld [vmem:[%s8305 + $0x28] sm:$0xff]
        %v8312 = vld [vmem:[%s8305 + $0x30] sm:$0xff]
        %v8313 = vld [vmem:[%s8305 + $0x38] sm:$0xff]
        %v8314 = vld [vmem:[%s8305 + $0x40] sm:$0xff]
        %v8315 = vld [vmem:[%s8305 + $0x48] sm:$0xff]
        %v8316 = vld [vmem:[%s8305 + $0x50] sm:$0xff]
        %v8317 = vld [vmem:[%s8305 + $0x58] sm:$0xff]
        %v8318 = vld [vmem:[%s8305 + $0x60] sm:$0xff]
        %v8319 = vld [vmem:[%s8305 + $0x68] sm:$0xff]
        %v8320 = vld [vmem:[%s8305 + $0x70] sm:$0xff]
        %v8321 = vld [vmem:[%s8305 + $0x78] sm:$0xff]
        %v8322 = vld [vmem:[%s8305 + $0x80] sm:$0xff]
        %v8323 = vld [vmem:[%s8305 + $0x88] sm:$0xff]
        %v8324 = vld [vmem:[%s8305 + $0x90] sm:$0xff]
        %v8325 = vld [vmem:[%s8305 + $0x98] sm:$0xff]
        %v8326 = vld [vmem:[%s8305 + $0xa0] sm:$0xff]
        %v8327 = vld [vmem:[%s8305 + $0xa8] sm:$0xff]
        %v8328 = vld [vmem:[%s8305 + $0xb0] sm:$0xff]
        %v8329 = vld [vmem:[%s8305 + $0xb8] sm:$0xff]
        %v8330 = vld [vmem:[%s8305 + $0xc0] sm:$0xff]
        %v8331 = vld [vmem:[%s8305 + $0xc8] sm:$0xff]
        %v8332 = vld [vmem:[%s8305 + $0xd0] sm:$0xff]
        %v8333 = vld [vmem:[%s8305 + $0xd8] sm:$0xff]
        %v8334 = vld [vmem:[%s8305 + $0xe0] sm:$0xff]
        %v8335 = vld [vmem:[%s8305 + $0xe8] sm:$0xff]
        %v8336 = vld [vmem:[%s8305 + $0xf0] sm:$0xff]
        %v8337 = vld [vmem:[%s8305 + $0xf8] sm:$0xff]
        %v8338 = vld [vmem:[%s8305 + $0x100] sm:$0xff]
        %v8339 = vld [vmem:[%s8305 + $0x108] sm:$0xff]
        %v8340 = vld [vmem:[%s8305 + $0x110] sm:$0xff]
        %v8341 = vld [vmem:[%s8305 + $0x118] sm:$0xff]
        %v8342 = vld [vmem:[%s8305 + $0x120] sm:$0xff]
        %v8343 = vld [vmem:[%s8305 + $0x128] sm:$0xff]
        %v8344 = vld [vmem:[%s8305 + $0x130] sm:$0xff]
        %v8345 = vld [vmem:[%s8305 + $0x138] sm:$0xff]
        %v8346 = vld [vmem:[%s8305 + $0x140] sm:$0xff]
        %v8347 = vld [vmem:[%s8305 + $0x148] sm:$0xff]
        %v8348 = vld [vmem:[%s8305 + $0x150] sm:$0xff]
        %v8349 = vld [vmem:[%s8305 + $0x158] sm:$0xff]
        %v8350 = vld [vmem:[%s8305 + $0x160] sm:$0xff]
        %v8351 = vld [vmem:[%s8305 + $0x168] sm:$0xff]
        %v8352 = vld [vmem:[%s8305 + $0x170] sm:$0xff]
        %v8353 = vld [vmem:[%s8305 + $0x178] sm:$0xff]
        %v8354 = vld [vmem:[%s8305 + $0x180] sm:$0xff]
        %v8355 = vld [vmem:[%s8305 + $0x188] sm:$0xff]
        %v8356 = vld [vmem:[%s8305 + $0x190] sm:$0xff]
        %v8357 = vld [vmem:[%s8305 + $0x198] sm:$0xff]
        %v8358 = vld [vmem:[%s8305 + $0x1a0] sm:$0xff]
        %v8359 = vld [vmem:[%s8305 + $0x1a8] sm:$0xff]
        %v8360 = vld [vmem:[%s8305 + $0x1b0] sm:$0xff]
        %v8361 = vld [vmem:[%s8305 + $0x1b8] sm:$0xff]
        %v8362 = vld [vmem:[%s8305 + $0x1c0] sm:$0xff]
        %v8363 = vld [vmem:[%s8305 + $0x1c8] sm:$0xff]
        %v8364 = vld [vmem:[%s8305 + $0x1d0] sm:$0xff]
        %v8365 = vld [vmem:[%s8305 + $0x1d8] sm:$0xff]
        %v8366 = vld [vmem:[%s8305 + $0x1e0] sm:$0xff]
        %v8367 = vld [vmem:[%s8305 + $0x1e8] sm:$0xff]
        %v8368 = vld [vmem:[%s8305 + $0x1f0] sm:$0xff]
        %v8369 = vld [vmem:[%s8305 + $0x1f8] sm:$0xff]
        %v8370 = vld [vmem:[%s8305 + $0x200] sm:$0xff]
        %v8371 = vld [vmem:[%s8305 + $0x208] sm:$0xff]
        %v8372 = vld [vmem:[%s8305 + $0x210] sm:$0xff]
        %v8373 = vld [vmem:[%s8305 + $0x218] sm:$0xff]
        %v8374 = vld [vmem:[%s8305 + $0x220] sm:$0xff]
        %v8375 = vld [vmem:[%s8305 + $0x228] sm:$0xff]
        %v8376 = vld [vmem:[%s8305 + $0x230] sm:$0xff]
        %v8377 = vld [vmem:[%s8305 + $0x238] sm:$0xff]
        %v8378 = vld [vmem:[%s8305 + $0x240] sm:$0xff]
        %v8379 = vld [vmem:[%s8305 + $0x248] sm:$0xff]
        %v8380 = vld [vmem:[%s8305 + $0x250] sm:$0xff]
        %v8381 = vld [vmem:[%s8305 + $0x258] sm:$0xff]
        %v8382 = vld [vmem:[%s8305 + $0x260] sm:$0xff]
        %v8383 = vld [vmem:[%s8305 + $0x268] sm:$0xff]
        %v8384 = vld [vmem:[%s8305 + $0x270] sm:$0xff]
        %v8385 = vld [vmem:[%s8305 + $0x278] sm:$0xff]
        %v8386 = vld [vmem:[%s8305 + $0x280] sm:$0xff]
        %v8387 = vld [vmem:[%s8305 + $0x288] sm:$0xff]
        %v8388 = vld [vmem:[%s8305 + $0x290] sm:$0xff]
        %v8389 = vld [vmem:[%s8305 + $0x298] sm:$0xff]
        %v8390 = vld [vmem:[%s8305 + $0x2a0] sm:$0xff]
        %v8391 = vld [vmem:[%s8305 + $0x2a8] sm:$0xff]
        %v8392 = vld [vmem:[%s8305 + $0x2b0] sm:$0xff]
        %v8393 = vld [vmem:[%s8305 + $0x2b8] sm:$0xff]
        %v8394 = vld [vmem:[%s8305 + $0x2c0] sm:$0xff]
        %v8395 = vld [vmem:[%s8305 + $0x2c8] sm:$0xff]
        %v8396 = vld [vmem:[%s8305 + $0x2d0] sm:$0xff]
        %v8397 = vld [vmem:[%s8305 + $0x2d8] sm:$0xff]
        %v8398 = vld [vmem:[%s8305 + $0x2e0] sm:$0xff]
        %v8399 = vld [vmem:[%s8305 + $0x2e8] sm:$0xff]
        %v8400 = vld [vmem:[%s8305 + $0x2f0] sm:$0xff]
        %v8401 = vld [vmem:[%s8305 + $0x2f8] sm:$0xff]
        %v8402 = vld [vmem:[%s8305 + $0x300] sm:$0xff]
        %v8403 = vld [vmem:[%s8305 + $0x308] sm:$0xff]
        %v8404 = vld [vmem:[%s8305 + $0x310] sm:$0xff]
        %v8405 = vld [vmem:[%s8305 + $0x318] sm:$0xff]
        %v8406 = vld [vmem:[%s8305 + $0x320] sm:$0xff]
        %v8407 = vld [vmem:[%s8305 + $0x328] sm:$0xff]
        %v8408 = vld [vmem:[%s8305 + $0x330] sm:$0xff]
        %v8409 = vld [vmem:[%s8305 + $0x338] sm:$0xff]
        %v8410 = vld [vmem:[%s8305 + $0x340] sm:$0xff]
        %v8411 = vld [vmem:[%s8305 + $0x348] sm:$0xff]
        %v8412 = vld [vmem:[%s8305 + $0x350] sm:$0xff]
        %v8413 = vld [vmem:[%s8305 + $0x358] sm:$0xff]
        %v8414 = vld [vmem:[%s8305 + $0x360] sm:$0xff]
        %v8415 = vld [vmem:[%s8305 + $0x368] sm:$0xff]
        %v8416 = vld [vmem:[%s8305 + $0x370] sm:$0xff]
        %v8417 = vld [vmem:[%s8305 + $0x378] sm:$0xff]
        %v8418 = vld [vmem:[%s8305 + $0x380] sm:$0xff]
        %v8419 = vld [vmem:[%s8305 + $0x388] sm:$0xff]
        %v8420 = vld [vmem:[%s8305 + $0x390] sm:$0xff]
        %v8421 = vld [vmem:[%s8305 + $0x398] sm:$0xff]
        %v8422 = vld [vmem:[%s8305 + $0x3a0] sm:$0xff]
        %v8423 = vld [vmem:[%s8305 + $0x3a8] sm:$0xff]
        %v8424 = vld [vmem:[%s8305 + $0x3b0] sm:$0xff]
        %v8425 = vld [vmem:[%s8305 + $0x3b8] sm:$0xff]
        %v8426 = vld [vmem:[%s8305 + $0x3c0] sm:$0xff]
        %v8427 = vld [vmem:[%s8305 + $0x3c8] sm:$0xff]
        %v8428 = vld [vmem:[%s8305 + $0x3d0] sm:$0xff]
        %v8429 = vld [vmem:[%s8305 + $0x3d8] sm:$0xff]
        %v8430 = vld [vmem:[%s8305 + $0x3e0] sm:$0xff]
        %v8431 = vld [vmem:[%s8305 + $0x3e8] sm:$0xff]
        %v8432 = vld [vmem:[%s8305 + $0x3f0] sm:$0xff]
        %v8433 = vld [vmem:[%s8305 + $0x3f8] sm:$0xff]
        %v8434 = vld [vmem:[%s8305 + $0x400] sm:$0xff]
        %v8435 = vld [vmem:[%s8305 + $0x408] sm:$0xff]
        %v8436 = vld [vmem:[%s8305 + $0x410] sm:$0xff]
        %v8437 = vld [vmem:[%s8305 + $0x418] sm:$0xff]
        %v8438 = vld [vmem:[%s8305 + $0x420] sm:$0xff]
        %v8439 = vld [vmem:[%s8305 + $0x428] sm:$0xff]
        %v8440 = vld [vmem:[%s8305 + $0x430] sm:$0xff]
        %v8441 = vld [vmem:[%s8305 + $0x438] sm:$0xff]
        %v8442 = vld [vmem:[%s8305 + $0x440] sm:$0xff]
        %v8443 = vld [vmem:[%s8305 + $0x448] sm:$0xff]
        %v8444 = vld [vmem:[%s8305 + $0x450] sm:$0xff]
        %v8445 = vld [vmem:[%s8305 + $0x458] sm:$0xff]
        %v8446 = vld [vmem:[%s8305 + $0x460] sm:$0xff]
        %v8447 = vld [vmem:[%s8305 + $0x468] sm:$0xff]
        %v8448 = vld [vmem:[%s8305 + $0x470] sm:$0xff]
        %v8449 = vld [vmem:[%s8305 + $0x478] sm:$0xff]
        %v8450 = vld [vmem:[%s8305 + $0x480] sm:$0xff]
        %v8451 = vld [vmem:[%s8305 + $0x488] sm:$0xff]
        %v8452 = vld [vmem:[%s8305 + $0x490] sm:$0xff]
        %v8453 = vld [vmem:[%s8305 + $0x498] sm:$0xff]
        %v8454 = vld [vmem:[%s8305 + $0x4a0] sm:$0xff]
        %v8455 = vld [vmem:[%s8305 + $0x4a8] sm:$0xff]
        %v8456 = vld [vmem:[%s8305 + $0x4b0] sm:$0xff]
        %v8457 = vld [vmem:[%s8305 + $0x4b8] sm:$0xff]
        %v8458 = vld [vmem:[%s8305 + $0x4c0] sm:$0xff]
        %v8459 = vld [vmem:[%s8305 + $0x4c8] sm:$0xff]
        %v8460 = vld [vmem:[%s8305 + $0x4d0] sm:$0xff]
        %v8461 = vld [vmem:[%s8305 + $0x4d8] sm:$0xff]
        %v8462 = vld [vmem:[%s8305 + $0x4e0] sm:$0xff]
        %v8463 = vld [vmem:[%s8305 + $0x4e8] sm:$0xff]
        %v8464 = vld [vmem:[%s8305 + $0x4f0] sm:$0xff]
        %v8465 = vld [vmem:[%s8305 + $0x4f8] sm:$0xff]
        %v8466 = vld [vmem:[%s8305 + $0x500] sm:$0xff]
        %v8467 = vld [vmem:[%s8305 + $0x508] sm:$0xff]
        %v8468 = vld [vmem:[%s8305 + $0x510] sm:$0xff]
        %v8469 = vld [vmem:[%s8305 + $0x518] sm:$0xff]
        %v8470 = vld [vmem:[%s8305 + $0x520] sm:$0xff]
        %v8471 = vld [vmem:[%s8305 + $0x528] sm:$0xff]
        %v8472 = vld [vmem:[%s8305 + $0x530] sm:$0xff]
        %v8473 = vld [vmem:[%s8305 + $0x538] sm:$0xff]
        %v8474 = vld [vmem:[%s8305 + $0x540] sm:$0xff]
        %v8475 = vld [vmem:[%s8305 + $0x548] sm:$0xff]
        %v8476 = vld [vmem:[%s8305 + $0x550] sm:$0xff]
        %v8477 = vld [vmem:[%s8305 + $0x558] sm:$0xff]
        %v8478 = vld [vmem:[%s8305 + $0x560] sm:$0xff]
        %v8479 = vld [vmem:[%s8305 + $0x568] sm:$0xff]
        %v8480 = vld [vmem:[%s8305 + $0x570] sm:$0xff]
        %v8481 = vld [vmem:[%s8305 + $0x578] sm:$0xff]
        %v8482 = vld [vmem:[%s8305 + $0x580] sm:$0xff]
        %v8483 = vld [vmem:[%s8305 + $0x588] sm:$0xff]
        %v8484 = vld [vmem:[%s8305 + $0x590] sm:$0xff]
        %v8485 = vld [vmem:[%s8305 + $0x598] sm:$0xff]
        %v8486 = vld [vmem:[%s8305 + $0x5a0] sm:$0xff]
        %v8487 = vld [vmem:[%s8305 + $0x5a8] sm:$0xff]
        %v8488 = vld [vmem:[%s8305 + $0x5b0] sm:$0xff]
        %v8489 = vld [vmem:[%s8305 + $0x5b8] sm:$0xff]
        %v8490 = vld [vmem:[%s8305 + $0x5c0] sm:$0xff]
        %v8491 = vld [vmem:[%s8305 + $0x5c8] sm:$0xff]
        %v8492 = vld [vmem:[%s8305 + $0x5d0] sm:$0xff]
        %v8493 = vld [vmem:[%s8305 + $0x5d8] sm:$0xff]
        %v8494 = vld [vmem:[%s8305 + $0x5e0] sm:$0xff]
        %v8495 = vld [vmem:[%s8305 + $0x5e8] sm:$0xff]
        %v8496 = vld [vmem:[%s8305 + $0x5f0] sm:$0xff]
        %v8497 = vld [vmem:[%s8305 + $0x5f8] sm:$0xff]
        %v8498 = vld [vmem:[%s8305 + $0x600] sm:$0xff]
        %v8499 = vld [vmem:[%s8305 + $0x608] sm:$0xff]
        %v8500 = vld [vmem:[%s8305 + $0x610] sm:$0xff]
        %v8501 = vld [vmem:[%s8305 + $0x618] sm:$0xff]
        %v8502 = vld [vmem:[%s8305 + $0x620] sm:$0xff]
        %v8503 = vld [vmem:[%s8305 + $0x628] sm:$0xff]
        %v8504 = vld [vmem:[%s8305 + $0x630] sm:$0xff]
        %v8505 = vld [vmem:[%s8305 + $0x638] sm:$0xff]
        %v8510 = vunpack.c.l.b16 %v8301
        %v8511 = vunpack.c.h.b16 %v8301
        %v8512 = vunpack.c.l.b16 %v8302
        %v8513 = vunpack.c.h.b16 %v8302
        %v8514 = vunpack.c.l.b16 %v8303
        %v8515 = vunpack.c.h.b16 %v8303
        %v8516 = vunpack.c.l.b16 %v8304
        %v8517 = vpack.c.b16 %v5484, %v8510
        %v8518 = vpack.c.b16 %v5485, %v8511
        %v8519 = vpack.c.b16 %v5486, %v8512
        %v8520 = vpack.c.b16 %v5487, %v8513
        %v8521 = vpack.c.b16 %v5488, %v8514
        %v8522 = vpack.c.b16 %v5489, %v8515
        %v8523 = vpack.c.b16 %v5490, %v8516
        %v8524 = vrot.slane %v8517, 1
        %v8525 = vrot.slane %v8518, 1
        %v8526 = vrot.slane %v8519, 1
        %v8527 = vrot.slane %v8520, 1
        %v8528 = vrot.slane %v8521, 1
        %v8529 = vrot.slane %v8522, 1
        %v8530 = vrot.slane %v8523, 1
        %v8737 = vunpack.c.l.b16 %v8306
        %v8738 = vunpack.c.h.b16 %v8306
        %v8739 = vunpack.c.l.b16 %v8307
        %v8740 = vunpack.c.h.b16 %v8307
        %v8741 = vunpack.c.l.b16 %v8308
        %v8742 = vunpack.c.h.b16 %v8308
        %v8743 = vunpack.c.l.b16 %v8309
        %v8744 = vunpack.c.h.b16 %v8309
        %v8745 = vunpack.c.l.b16 %v8310
        %v8746 = vunpack.c.h.b16 %v8310
        %v8747 = vunpack.c.l.b16 %v8311
        %v8748 = vunpack.c.h.b16 %v8311
        %v8749 = vunpack.c.l.b16 %v8312
        %v8750 = vunpack.c.h.b16 %v8312
        %v8751 = vunpack.c.l.b16 %v8313
        %v8752 = vunpack.c.h.b16 %v8313
        %v8753 = vunpack.c.l.b16 %v8314
        %v8754 = vunpack.c.h.b16 %v8314
        %v8755 = vunpack.c.l.b16 %v8315
        %v8756 = vunpack.c.h.b16 %v8315
        %v8757 = vunpack.c.l.b16 %v8316
        %v8758 = vunpack.c.h.b16 %v8316
        %v8759 = vunpack.c.l.b16 %v8317
        %v8760 = vunpack.c.h.b16 %v8317
        %v8761 = vunpack.c.l.b16 %v8318
        %v8762 = vunpack.c.h.b16 %v8318
        %v8763 = vunpack.c.l.b16 %v8319
        %v8764 = vunpack.c.h.b16 %v8319
        %v8765 = vunpack.c.l.b16 %v8320
        %v8766 = vunpack.c.h.b16 %v8320
        %v8767 = vunpack.c.l.b16 %v8321
        %v8768 = vunpack.c.h.b16 %v8321
        %v8769 = vunpack.c.l.b16 %v8322
        %v8770 = vunpack.c.h.b16 %v8322
        %v8771 = vunpack.c.l.b16 %v8323
        %v8772 = vunpack.c.h.b16 %v8323
        %v8773 = vunpack.c.l.b16 %v8324
        %v8774 = vunpack.c.h.b16 %v8324
        %v8775 = vunpack.c.l.b16 %v8325
        %v8776 = vunpack.c.h.b16 %v8325
        %v8777 = vunpack.c.l.b16 %v8326
        %v8778 = vunpack.c.h.b16 %v8326
        %v8779 = vunpack.c.l.b16 %v8327
        %v8780 = vunpack.c.h.b16 %v8327
        %v8781 = vunpack.c.l.b16 %v8328
        %v8782 = vunpack.c.h.b16 %v8328
        %v8783 = vunpack.c.l.b16 %v8329
        %v8784 = vunpack.c.h.b16 %v8329
        %v8785 = vunpack.c.l.b16 %v8330
        %v8786 = vunpack.c.h.b16 %v8330
        %v8787 = vunpack.c.l.b16 %v8331
        %v8788 = vunpack.c.h.b16 %v8331
        %v8789 = vunpack.c.l.b16 %v8332
        %v8790 = vunpack.c.h.b16 %v8332
        %v8791 = vunpack.c.l.b16 %v8333
        %v8792 = vunpack.c.h.b16 %v8333
        %v8793 = vunpack.c.l.b16 %v8334
        %v8794 = vunpack.c.h.b16 %v8334
        %v8795 = vunpack.c.l.b16 %v8335
        %v8796 = vunpack.c.h.b16 %v8335
        %v8797 = vunpack.c.l.b16 %v8336
        %v8798 = vunpack.c.h.b16 %v8336
        %v8799 = vunpack.c.l.b16 %v8337
        %v8800 = vunpack.c.h.b16 %v8337
        %v8801 = vunpack.c.l.b16 %v8338
        %v8802 = vunpack.c.h.b16 %v8338
        %v8803 = vunpack.c.l.b16 %v8339
        %v8804 = vunpack.c.h.b16 %v8339
        %v8805 = vunpack.c.l.b16 %v8340
        %v8806 = vunpack.c.h.b16 %v8340
        %v8807 = vunpack.c.l.b16 %v8341
        %v8808 = vunpack.c.h.b16 %v8341
        %v8809 = vunpack.c.l.b16 %v8342
        %v8810 = vunpack.c.h.b16 %v8342
        %v8811 = vunpack.c.l.b16 %v8343
        %v8812 = vunpack.c.h.b16 %v8343
        %v8813 = vunpack.c.l.b16 %v8344
        %v8814 = vunpack.c.h.b16 %v8344
        %v8815 = vunpack.c.l.b16 %v8345
        %v8816 = vunpack.c.h.b16 %v8345
        %v8817 = vunpack.c.l.b16 %v8346
        %v8818 = vunpack.c.h.b16 %v8346
        %v8819 = vunpack.c.l.b16 %v8347
        %v8820 = vunpack.c.h.b16 %v8347
        %v8821 = vunpack.c.l.b16 %v8348
        %v8822 = vunpack.c.h.b16 %v8348
        %v8823 = vunpack.c.l.b16 %v8349
        %v8824 = vunpack.c.h.b16 %v8349
        %v8825 = vunpack.c.l.b16 %v8350
        %v8826 = vunpack.c.h.b16 %v8350
        %v8827 = vunpack.c.l.b16 %v8351
        %v8828 = vunpack.c.h.b16 %v8351
        %v8829 = vunpack.c.l.b16 %v8352
        %v8830 = vunpack.c.h.b16 %v8352
        %v8831 = vunpack.c.l.b16 %v8353
        %v8832 = vunpack.c.h.b16 %v8353
        %v8833 = vunpack.c.l.b16 %v8354
        %v8834 = vunpack.c.h.b16 %v8354
        %v8835 = vunpack.c.l.b16 %v8355
        %v8836 = vunpack.c.h.b16 %v8355
        %v8837 = vunpack.c.l.b16 %v8356
        %v8838 = vunpack.c.h.b16 %v8356
        %v8839 = vunpack.c.l.b16 %v8357
        %v8840 = vunpack.c.h.b16 %v8357
        %v8841 = vunpack.c.l.b16 %v8358
        %v8842 = vunpack.c.h.b16 %v8358
        %v8843 = vunpack.c.l.b16 %v8359
        %v8844 = vunpack.c.h.b16 %v8359
        %v8845 = vunpack.c.l.b16 %v8360
        %v8846 = vunpack.c.h.b16 %v8360
        %v8847 = vunpack.c.l.b16 %v8361
        %v8848 = vunpack.c.h.b16 %v8361
        %v8849 = vunpack.c.l.b16 %v8362
        %v8850 = vunpack.c.h.b16 %v8362
        %v8851 = vunpack.c.l.b16 %v8363
        %v8852 = vunpack.c.h.b16 %v8363
        %v8853 = vunpack.c.l.b16 %v8364
        %v8854 = vunpack.c.h.b16 %v8364
        %v8855 = vunpack.c.l.b16 %v8365
        %v8856 = vunpack.c.h.b16 %v8365
        %v8857 = vunpack.c.l.b16 %v8366
        %v8858 = vunpack.c.h.b16 %v8366
        %v8859 = vunpack.c.l.b16 %v8367
        %v8860 = vunpack.c.h.b16 %v8367
        %v8861 = vunpack.c.l.b16 %v8368
        %v8862 = vunpack.c.h.b16 %v8368
        %v8863 = vunpack.c.l.b16 %v8369
        %v8864 = vunpack.c.h.b16 %v8369
        %v8865 = vunpack.c.l.b16 %v8370
        %v8866 = vunpack.c.h.b16 %v8370
        %v8867 = vunpack.c.l.b16 %v8371
        %v8868 = vunpack.c.h.b16 %v8371
        %v8869 = vunpack.c.l.b16 %v8372
        %v8870 = vunpack.c.h.b16 %v8372
        %v8871 = vunpack.c.l.b16 %v8373
        %v8872 = vunpack.c.h.b16 %v8373
        %v8873 = vunpack.c.l.b16 %v8374
        %v8874 = vunpack.c.h.b16 %v8374
        %v8875 = vunpack.c.l.b16 %v8375
        %v8876 = vunpack.c.h.b16 %v8375
        %v8877 = vunpack.c.l.b16 %v8376
        %v8878 = vunpack.c.h.b16 %v8376
        %v8879 = vunpack.c.l.b16 %v8377
        %v8880 = vunpack.c.h.b16 %v8377
        %v8881 = vunpack.c.l.b16 %v8378
        %v8882 = vunpack.c.h.b16 %v8378
        %v8883 = vunpack.c.l.b16 %v8379
        %v8884 = vunpack.c.h.b16 %v8379
        %v8885 = vunpack.c.l.b16 %v8380
        %v8886 = vunpack.c.h.b16 %v8380
        %v8887 = vunpack.c.l.b16 %v8381
        %v8888 = vunpack.c.h.b16 %v8381
        %v8889 = vunpack.c.l.b16 %v8382
        %v8890 = vunpack.c.h.b16 %v8382
        %v8891 = vunpack.c.l.b16 %v8383
        %v8892 = vunpack.c.h.b16 %v8383
        %v8893 = vunpack.c.l.b16 %v8384
        %v8894 = vunpack.c.h.b16 %v8384
        %v8895 = vunpack.c.l.b16 %v8385
        %v8896 = vunpack.c.h.b16 %v8385
        %v8897 = vunpack.c.l.b16 %v8386
        %v8898 = vunpack.c.h.b16 %v8386
        %v8899 = vunpack.c.l.b16 %v8387
        %v8900 = vunpack.c.h.b16 %v8387
        %v8901 = vunpack.c.l.b16 %v8388
        %v8902 = vunpack.c.h.b16 %v8388
        %v8903 = vunpack.c.l.b16 %v8389
        %v8904 = vunpack.c.h.b16 %v8389
        %v8905 = vunpack.c.l.b16 %v8390
        %v8906 = vunpack.c.h.b16 %v8390
        %v8907 = vunpack.c.l.b16 %v8391
        %v8908 = vunpack.c.h.b16 %v8391
        %v8909 = vunpack.c.l.b16 %v8392
        %v8910 = vunpack.c.h.b16 %v8392
        %v8911 = vunpack.c.l.b16 %v8393
        %v8912 = vunpack.c.h.b16 %v8393
        %v8913 = vunpack.c.l.b16 %v8394
        %v8914 = vunpack.c.h.b16 %v8394
        %v8915 = vunpack.c.l.b16 %v8395
        %v8916 = vunpack.c.h.b16 %v8395
        %v8917 = vunpack.c.l.b16 %v8396
        %v8918 = vunpack.c.h.b16 %v8396
        %v8919 = vunpack.c.l.b16 %v8397
        %v8920 = vunpack.c.h.b16 %v8397
        %v8921 = vunpack.c.l.b16 %v8398
        %v8922 = vunpack.c.h.b16 %v8398
        %v8923 = vunpack.c.l.b16 %v8399
        %v8924 = vunpack.c.h.b16 %v8399
        %v8925 = vunpack.c.l.b16 %v8400
        %v8926 = vunpack.c.h.b16 %v8400
        %v8927 = vunpack.c.l.b16 %v8401
        %v8928 = vunpack.c.h.b16 %v8401
        %v8929 = vunpack.c.l.b16 %v8402
        %v8930 = vunpack.c.h.b16 %v8402
        %v8931 = vunpack.c.l.b16 %v8403
        %v8932 = vunpack.c.h.b16 %v8403
        %v8933 = vunpack.c.l.b16 %v8404
        %v8934 = vunpack.c.h.b16 %v8404
        %v8935 = vunpack.c.l.b16 %v8405
        %v8936 = vunpack.c.h.b16 %v8405
        %v8937 = vunpack.c.l.b16 %v8406
        %v8938 = vunpack.c.h.b16 %v8406
        %v8939 = vunpack.c.l.b16 %v8407
        %v8940 = vunpack.c.h.b16 %v8407
        %v8941 = vunpack.c.l.b16 %v8408
        %v8942 = vunpack.c.h.b16 %v8408
        %v8943 = vunpack.c.l.b16 %v8409
        %v8944 = vunpack.c.h.b16 %v8409
        %v8945 = vunpack.c.l.b16 %v8410
        %v8946 = vunpack.c.h.b16 %v8410
        %v8947 = vunpack.c.l.b16 %v8411
        %v8948 = vunpack.c.h.b16 %v8411
        %v8949 = vunpack.c.l.b16 %v8412
        %v8950 = vunpack.c.h.b16 %v8412
        %v8951 = vunpack.c.l.b16 %v8413
        %v8952 = vunpack.c.h.b16 %v8413
        %v8953 = vunpack.c.l.b16 %v8414
        %v8954 = vunpack.c.h.b16 %v8414
        %v8955 = vunpack.c.l.b16 %v8415
        %v8956 = vunpack.c.h.b16 %v8415
        %v8957 = vunpack.c.l.b16 %v8416
        %v8958 = vunpack.c.h.b16 %v8416
        %v8959 = vunpack.c.l.b16 %v8417
        %v8960 = vunpack.c.h.b16 %v8417
        %v8961 = vunpack.c.l.b16 %v8418
        %v8962 = vunpack.c.h.b16 %v8418
        %v8963 = vunpack.c.l.b16 %v8419
        %v8964 = vunpack.c.h.b16 %v8419
        %v8965 = vunpack.c.l.b16 %v8420
        %v8966 = vunpack.c.h.b16 %v8420
        %v8967 = vunpack.c.l.b16 %v8421
        %v8968 = vunpack.c.h.b16 %v8421
        %v8969 = vunpack.c.l.b16 %v8422
        %v8970 = vunpack.c.h.b16 %v8422
        %v8971 = vunpack.c.l.b16 %v8423
        %v8972 = vunpack.c.h.b16 %v8423
        %v8973 = vunpack.c.l.b16 %v8424
        %v8974 = vunpack.c.h.b16 %v8424
        %v8975 = vunpack.c.l.b16 %v8425
        %v8976 = vunpack.c.h.b16 %v8425
        %v8977 = vunpack.c.l.b16 %v8426
        %v8978 = vunpack.c.h.b16 %v8426
        %v8979 = vunpack.c.l.b16 %v8427
        %v8980 = vunpack.c.h.b16 %v8427
        %v8981 = vunpack.c.l.b16 %v8428
        %v8982 = vunpack.c.h.b16 %v8428
        %v8983 = vunpack.c.l.b16 %v8429
        %v8984 = vunpack.c.h.b16 %v8429
        %v8985 = vunpack.c.l.b16 %v8430
        %v8986 = vunpack.c.h.b16 %v8430
        %v8987 = vunpack.c.l.b16 %v8431
        %v8988 = vunpack.c.h.b16 %v8431
        %v8989 = vunpack.c.l.b16 %v8432
        %v8990 = vunpack.c.h.b16 %v8432
        %v8991 = vunpack.c.l.b16 %v8433
        %v8992 = vunpack.c.h.b16 %v8433
        %v8993 = vunpack.c.l.b16 %v8434
        %v8994 = vunpack.c.h.b16 %v8434
        %v8995 = vunpack.c.l.b16 %v8435
        %v8996 = vunpack.c.h.b16 %v8435
        %v8997 = vunpack.c.l.b16 %v8436
        %v8998 = vunpack.c.h.b16 %v8436
        %v8999 = vunpack.c.l.b16 %v8437
        %v9000 = vunpack.c.h.b16 %v8437
        %v9001 = vunpack.c.l.b16 %v8438
        %v9002 = vunpack.c.h.b16 %v8438
        %v9003 = vunpack.c.l.b16 %v8439
        %v9004 = vunpack.c.h.b16 %v8439
        %v9005 = vunpack.c.l.b16 %v8440
        %v9006 = vunpack.c.h.b16 %v8440
        %v9007 = vunpack.c.l.b16 %v8441
        %v9008 = vunpack.c.h.b16 %v8441
        %v9009 = vunpack.c.l.b16 %v8442
        %v9010 = vunpack.c.h.b16 %v8442
        %v9011 = vunpack.c.l.b16 %v8443
        %v9012 = vunpack.c.h.b16 %v8443
        %v9013 = vunpack.c.l.b16 %v8444
        %v9014 = vunpack.c.h.b16 %v8444
        %v9015 = vunpack.c.l.b16 %v8445
        %v9016 = vunpack.c.h.b16 %v8445
        %v9017 = vunpack.c.l.b16 %v8446
        %v9018 = vunpack.c.h.b16 %v8446
        %v9019 = vunpack.c.l.b16 %v8447
        %v9020 = vunpack.c.h.b16 %v8447
        %v9021 = vunpack.c.l.b16 %v8448
        %v9022 = vunpack.c.h.b16 %v8448
        %v9023 = vunpack.c.l.b16 %v8449
        %v9024 = vunpack.c.h.b16 %v8449
        %v9025 = vunpack.c.l.b16 %v8450
        %v9026 = vunpack.c.h.b16 %v8450
        %v9027 = vunpack.c.l.b16 %v8451
        %v9028 = vunpack.c.h.b16 %v8451
        %v9029 = vunpack.c.l.b16 %v8452
        %v9030 = vunpack.c.h.b16 %v8452
        %v9031 = vunpack.c.l.b16 %v8453
        %v9032 = vunpack.c.h.b16 %v8453
        %v9033 = vunpack.c.l.b16 %v8454
        %v9034 = vunpack.c.h.b16 %v8454
        %v9035 = vunpack.c.l.b16 %v8455
        %v9036 = vunpack.c.h.b16 %v8455
        %v9037 = vunpack.c.l.b16 %v8456
        %v9038 = vunpack.c.h.b16 %v8456
        %v9039 = vunpack.c.l.b16 %v8457
        %v9040 = vunpack.c.h.b16 %v8457
        %v9041 = vunpack.c.l.b16 %v8458
        %v9042 = vunpack.c.h.b16 %v8458
        %v9043 = vunpack.c.l.b16 %v8459
        %v9044 = vunpack.c.h.b16 %v8459
        %v9045 = vunpack.c.l.b16 %v8460
        %v9046 = vunpack.c.h.b16 %v8460
        %v9047 = vunpack.c.l.b16 %v8461
        %v9048 = vunpack.c.h.b16 %v8461
        %v9049 = vunpack.c.l.b16 %v8462
        %v9050 = vunpack.c.h.b16 %v8462
        %v9051 = vunpack.c.l.b16 %v8463
        %v9052 = vunpack.c.h.b16 %v8463
        %v9053 = vunpack.c.l.b16 %v8464
        %v9054 = vunpack.c.h.b16 %v8464
        %v9055 = vunpack.c.l.b16 %v8465
        %v9056 = vunpack.c.h.b16 %v8465
        %v9057 = vunpack.c.l.b16 %v8466
        %v9058 = vunpack.c.h.b16 %v8466
        %v9059 = vunpack.c.l.b16 %v8467
        %v9060 = vunpack.c.h.b16 %v8467
        %v9061 = vunpack.c.l.b16 %v8468
        %v9062 = vunpack.c.h.b16 %v8468
        %v9063 = vunpack.c.l.b16 %v8469
        %v9064 = vunpack.c.h.b16 %v8469
        %v9065 = vunpack.c.l.b16 %v8470
        %v9066 = vunpack.c.h.b16 %v8470
        %v9067 = vunpack.c.l.b16 %v8471
        %v9068 = vunpack.c.h.b16 %v8471
        %v9069 = vunpack.c.l.b16 %v8472
        %v9070 = vunpack.c.h.b16 %v8472
        %v9071 = vunpack.c.l.b16 %v8473
        %v9072 = vunpack.c.h.b16 %v8473
        %v9073 = vunpack.c.l.b16 %v8474
        %v9074 = vunpack.c.h.b16 %v8474
        %v9075 = vunpack.c.l.b16 %v8475
        %v9076 = vunpack.c.h.b16 %v8475
        %v9077 = vunpack.c.l.b16 %v8476
        %v9078 = vunpack.c.h.b16 %v8476
        %v9079 = vunpack.c.l.b16 %v8477
        %v9080 = vunpack.c.h.b16 %v8477
        %v9081 = vunpack.c.l.b16 %v8478
        %v9082 = vunpack.c.h.b16 %v8478
        %v9083 = vunpack.c.l.b16 %v8479
        %v9084 = vunpack.c.h.b16 %v8479
        %v9085 = vunpack.c.l.b16 %v8480
        %v9086 = vunpack.c.h.b16 %v8480
        %v9087 = vunpack.c.l.b16 %v8481
        %v9088 = vunpack.c.h.b16 %v8481
        %v9089 = vunpack.c.l.b16 %v8482
        %v9090 = vunpack.c.h.b16 %v8482
        %v9091 = vunpack.c.l.b16 %v8483
        %v9092 = vunpack.c.h.b16 %v8483
        %v9093 = vunpack.c.l.b16 %v8484
        %v9094 = vunpack.c.h.b16 %v8484
        %v9095 = vunpack.c.l.b16 %v8485
        %v9096 = vunpack.c.h.b16 %v8485
        %v9097 = vunpack.c.l.b16 %v8486
        %v9098 = vunpack.c.h.b16 %v8486
        %v9099 = vunpack.c.l.b16 %v8487
        %v9100 = vunpack.c.h.b16 %v8487
        %v9101 = vunpack.c.l.b16 %v8488
        %v9102 = vunpack.c.h.b16 %v8488
        %v9103 = vunpack.c.l.b16 %v8489
        %v9104 = vunpack.c.h.b16 %v8489
        %v9105 = vunpack.c.l.b16 %v8490
        %v9106 = vunpack.c.h.b16 %v8490
        %v9107 = vunpack.c.l.b16 %v8491
        %v9108 = vunpack.c.h.b16 %v8491
        %v9109 = vunpack.c.l.b16 %v8492
        %v9110 = vunpack.c.h.b16 %v8492
        %v9111 = vunpack.c.l.b16 %v8493
        %v9112 = vunpack.c.h.b16 %v8493
        %v9113 = vunpack.c.l.b16 %v8494
        %v9114 = vunpack.c.h.b16 %v8494
        %v9115 = vunpack.c.l.b16 %v8495
        %v9116 = vunpack.c.h.b16 %v8495
        %v9117 = vunpack.c.l.b16 %v8496
        %v9118 = vunpack.c.h.b16 %v8496
        %v9119 = vunpack.c.l.b16 %v8497
        %v9120 = vunpack.c.h.b16 %v8497
        %v9121 = vunpack.c.l.b16 %v8498
        %v9122 = vunpack.c.h.b16 %v8498
        %v9123 = vunpack.c.l.b16 %v8499
        %v9124 = vunpack.c.h.b16 %v8499
        %v9125 = vunpack.c.l.b16 %v8500
        %v9126 = vunpack.c.h.b16 %v8500
        %v9127 = vunpack.c.l.b16 %v8501
        %v9128 = vunpack.c.h.b16 %v8501
        %v9129 = vunpack.c.l.b16 %v8502
        %v9130 = vunpack.c.h.b16 %v8502
        %v9131 = vunpack.c.l.b16 %v8503
        %v9132 = vunpack.c.h.b16 %v8503
        %v9133 = vunpack.c.l.b16 %v8504
        %v9134 = vunpack.c.h.b16 %v8504
        %v9135 = vunpack.c.l.b16 %v8505
        %v9136 = vunpack.c.h.b16 %v8505
        %v9137 = vpack.c.b16 %v8741, %v8737
        %v9138 = vpack.c.b16 %v8742, %v8738
        %v9139 = vpack.c.b16 %v8743, %v8739
        %v9140 = vpack.c.b16 %v8744, %v8740
        %v9141 = vpack.c.b16 %v8749, %v8745
        %v9142 = vpack.c.b16 %v8750, %v8746
        %v9143 = vpack.c.b16 %v8751, %v8747
        %v9144 = vpack.c.b16 %v8752, %v8748
        %v9145 = vpack.c.b16 %v8757, %v8753
        %v9146 = vpack.c.b16 %v8758, %v8754
        %v9147 = vpack.c.b16 %v8759, %v8755
        %v9148 = vpack.c.b16 %v8760, %v8756
        %v9149 = vpack.c.b16 %v8765, %v8761
        %v9150 = vpack.c.b16 %v8766, %v8762
        %v9151 = vpack.c.b16 %v8767, %v8763
        %v9152 = vpack.c.b16 %v8768, %v8764
        %v9153 = vpack.c.b16 %v8773, %v8769
        %v9154 = vpack.c.b16 %v8774, %v8770
        %v9155 = vpack.c.b16 %v8775, %v8771
        %v9156 = vpack.c.b16 %v8776, %v8772
        %v9157 = vpack.c.b16 %v8781, %v8777
        %v9158 = vpack.c.b16 %v8782, %v8778
        %v9159 = vpack.c.b16 %v8783, %v8779
        %v9160 = vpack.c.b16 %v8784, %v8780
        %v9161 = vpack.c.b16 %v8789, %v8785
        %v9162 = vpack.c.b16 %v8790, %v8786
        %v9163 = vpack.c.b16 %v8791, %v8787
        %v9164 = vpack.c.b16 %v8792, %v8788
        %v9165 = vpack.c.b16 %v8797, %v8793
        %v9166 = vpack.c.b16 %v8798, %v8794
        %v9167 = vpack.c.b16 %v8799, %v8795
        %v9168 = vpack.c.b16 %v8800, %v8796
        %v9169 = vpack.c.b16 %v8805, %v8801
        %v9170 = vpack.c.b16 %v8806, %v8802
        %v9171 = vpack.c.b16 %v8807, %v8803
        %v9172 = vpack.c.b16 %v8808, %v8804
        %v9173 = vpack.c.b16 %v8813, %v8809
        %v9174 = vpack.c.b16 %v8814, %v8810
        %v9175 = vpack.c.b16 %v8815, %v8811
        %v9176 = vpack.c.b16 %v8816, %v8812
        %v9177 = vpack.c.b16 %v8821, %v8817
        %v9178 = vpack.c.b16 %v8822, %v8818
        %v9179 = vpack.c.b16 %v8823, %v8819
        %v9180 = vpack.c.b16 %v8824, %v8820
        %v9181 = vpack.c.b16 %v8829, %v8825
        %v9182 = vpack.c.b16 %v8830, %v8826
        %v9183 = vpack.c.b16 %v8831, %v8827
        %v9184 = vpack.c.b16 %v8832, %v8828
        %v9185 = vpack.c.b16 %v8837, %v8833
        %v9186 = vpack.c.b16 %v8838, %v8834
        %v9187 = vpack.c.b16 %v8839, %v8835
        %v9188 = vpack.c.b16 %v8840, %v8836
        %v9189 = vpack.c.b16 %v8845, %v8841
        %v9190 = vpack.c.b16 %v8846, %v8842
        %v9191 = vpack.c.b16 %v8847, %v8843
        %v9192 = vpack.c.b16 %v8848, %v8844
        %v9193 = vpack.c.b16 %v8853, %v8849
        %v9194 = vpack.c.b16 %v8854, %v8850
        %v9195 = vpack.c.b16 %v8855, %v8851
        %v9196 = vpack.c.b16 %v8856, %v8852
        %v9197 = vpack.c.b16 %v8861, %v8857
        %v9198 = vpack.c.b16 %v8862, %v8858
        %v9199 = vpack.c.b16 %v8863, %v8859
        %v9200 = vpack.c.b16 %v8864, %v8860
        %v9201 = vpack.c.b16 %v8869, %v8865
        %v9202 = vpack.c.b16 %v8870, %v8866
        %v9203 = vpack.c.b16 %v8871, %v8867
        %v9204 = vpack.c.b16 %v8872, %v8868
        %v9205 = vpack.c.b16 %v8877, %v8873
        %v9206 = vpack.c.b16 %v8878, %v8874
        %v9207 = vpack.c.b16 %v8879, %v8875
        %v9208 = vpack.c.b16 %v8880, %v8876
        %v9209 = vpack.c.b16 %v8885, %v8881
        %v9210 = vpack.c.b16 %v8886, %v8882
        %v9211 = vpack.c.b16 %v8887, %v8883
        %v9212 = vpack.c.b16 %v8888, %v8884
        %v9213 = vpack.c.b16 %v8893, %v8889
        %v9214 = vpack.c.b16 %v8894, %v8890
        %v9215 = vpack.c.b16 %v8895, %v8891
        %v9216 = vpack.c.b16 %v8896, %v8892
        %v9217 = vpack.c.b16 %v8901, %v8897
        %v9218 = vpack.c.b16 %v8902, %v8898
        %v9219 = vpack.c.b16 %v8903, %v8899
        %v9220 = vpack.c.b16 %v8904, %v8900
        %v9221 = vpack.c.b16 %v8909, %v8905
        %v9222 = vpack.c.b16 %v8910, %v8906
        %v9223 = vpack.c.b16 %v8911, %v8907
        %v9224 = vpack.c.b16 %v8912, %v8908
        %v9225 = vpack.c.b16 %v8917, %v8913
        %v9226 = vpack.c.b16 %v8918, %v8914
        %v9227 = vpack.c.b16 %v8919, %v8915
        %v9228 = vpack.c.b16 %v8920, %v8916
        %v9229 = vpack.c.b16 %v8925, %v8921
        %v9230 = vpack.c.b16 %v8926, %v8922
        %v9231 = vpack.c.b16 %v8927, %v8923
        %v9232 = vpack.c.b16 %v8928, %v8924
        %v9233 = vpack.c.b16 %v8933, %v8929
        %v9234 = vpack.c.b16 %v8934, %v8930
        %v9235 = vpack.c.b16 %v8935, %v8931
        %v9236 = vpack.c.b16 %v8936, %v8932
        %v9237 = vpack.c.b16 %v8941, %v8937
        %v9238 = vpack.c.b16 %v8942, %v8938
        %v9239 = vpack.c.b16 %v8943, %v8939
        %v9240 = vpack.c.b16 %v8944, %v8940
        %v9241 = vpack.c.b16 %v8949, %v8945
        %v9242 = vpack.c.b16 %v8950, %v8946
        %v9243 = vpack.c.b16 %v8951, %v8947
        %v9244 = vpack.c.b16 %v8952, %v8948
        %v9245 = vpack.c.b16 %v8957, %v8953
        %v9246 = vpack.c.b16 %v8958, %v8954
        %v9247 = vpack.c.b16 %v8959, %v8955
        %v9248 = vpack.c.b16 %v8960, %v8956
        %v9249 = vpack.c.b16 %v8965, %v8961
        %v9250 = vpack.c.b16 %v8966, %v8962
        %v9251 = vpack.c.b16 %v8967, %v8963
        %v9252 = vpack.c.b16 %v8968, %v8964
        %v9253 = vpack.c.b16 %v8973, %v8969
        %v9254 = vpack.c.b16 %v8974, %v8970
        %v9255 = vpack.c.b16 %v8975, %v8971
        %v9256 = vpack.c.b16 %v8976, %v8972
        %v9257 = vpack.c.b16 %v8981, %v8977
        %v9258 = vpack.c.b16 %v8982, %v8978
        %v9259 = vpack.c.b16 %v8983, %v8979
        %v9260 = vpack.c.b16 %v8984, %v8980
        %v9261 = vpack.c.b16 %v8989, %v8985
        %v9262 = vpack.c.b16 %v8990, %v8986
        %v9263 = vpack.c.b16 %v8991, %v8987
        %v9264 = vpack.c.b16 %v8992, %v8988
        %v9265 = vpack.c.b16 %v8997, %v8993
        %v9266 = vpack.c.b16 %v8998, %v8994
        %v9267 = vpack.c.b16 %v8999, %v8995
        %v9268 = vpack.c.b16 %v9000, %v8996
        %v9269 = vpack.c.b16 %v9005, %v9001
        %v9270 = vpack.c.b16 %v9006, %v9002
        %v9271 = vpack.c.b16 %v9007, %v9003
        %v9272 = vpack.c.b16 %v9008, %v9004
        %v9273 = vpack.c.b16 %v9013, %v9009
        %v9274 = vpack.c.b16 %v9014, %v9010
        %v9275 = vpack.c.b16 %v9015, %v9011
        %v9276 = vpack.c.b16 %v9016, %v9012
        %v9277 = vpack.c.b16 %v9021, %v9017
        %v9278 = vpack.c.b16 %v9022, %v9018
        %v9279 = vpack.c.b16 %v9023, %v9019
        %v9280 = vpack.c.b16 %v9024, %v9020
        %v9281 = vpack.c.b16 %v9029, %v9025
        %v9282 = vpack.c.b16 %v9030, %v9026
        %v9283 = vpack.c.b16 %v9031, %v9027
        %v9284 = vpack.c.b16 %v9032, %v9028
        %v9285 = vpack.c.b16 %v9037, %v9033
        %v9286 = vpack.c.b16 %v9038, %v9034
        %v9287 = vpack.c.b16 %v9039, %v9035
        %v9288 = vpack.c.b16 %v9040, %v9036
        %v9289 = vpack.c.b16 %v9045, %v9041
        %v9290 = vpack.c.b16 %v9046, %v9042
        %v9291 = vpack.c.b16 %v9047, %v9043
        %v9292 = vpack.c.b16 %v9048, %v9044
        %v9293 = vpack.c.b16 %v9053, %v9049
        %v9294 = vpack.c.b16 %v9054, %v9050
        %v9295 = vpack.c.b16 %v9055, %v9051
        %v9296 = vpack.c.b16 %v9056, %v9052
        %v9297 = vpack.c.b16 %v9061, %v9057
        %v9298 = vpack.c.b16 %v9062, %v9058
        %v9299 = vpack.c.b16 %v9063, %v9059
        %v9300 = vpack.c.b16 %v9064, %v9060
        %v9301 = vpack.c.b16 %v9069, %v9065
        %v9302 = vpack.c.b16 %v9070, %v9066
        %v9303 = vpack.c.b16 %v9071, %v9067
        %v9304 = vpack.c.b16 %v9072, %v9068
        %v9305 = vpack.c.b16 %v9077, %v9073
        %v9306 = vpack.c.b16 %v9078, %v9074
        %v9307 = vpack.c.b16 %v9079, %v9075
        %v9308 = vpack.c.b16 %v9080, %v9076
        %v9309 = vpack.c.b16 %v9085, %v9081
        %v9310 = vpack.c.b16 %v9086, %v9082
        %v9311 = vpack.c.b16 %v9087, %v9083
        %v9312 = vpack.c.b16 %v9088, %v9084
        %v9313 = vpack.c.b16 %v9093, %v9089
        %v9314 = vpack.c.b16 %v9094, %v9090
        %v9315 = vpack.c.b16 %v9095, %v9091
        %v9316 = vpack.c.b16 %v9096, %v9092
        %v9317 = vpack.c.b16 %v9101, %v9097
        %v9318 = vpack.c.b16 %v9102, %v9098
        %v9319 = vpack.c.b16 %v9103, %v9099
        %v9320 = vpack.c.b16 %v9104, %v9100
        %v9321 = vpack.c.b16 %v9109, %v9105
        %v9322 = vpack.c.b16 %v9110, %v9106
        %v9323 = vpack.c.b16 %v9111, %v9107
        %v9324 = vpack.c.b16 %v9112, %v9108
        %v9325 = vpack.c.b16 %v9117, %v9113
        %v9326 = vpack.c.b16 %v9118, %v9114
        %v9327 = vpack.c.b16 %v9119, %v9115
        %v9328 = vpack.c.b16 %v9120, %v9116
        %v9329 = vpack.c.b16 %v9125, %v9121
        %v9330 = vpack.c.b16 %v9126, %v9122
        %v9331 = vpack.c.b16 %v9127, %v9123
        %v9332 = vpack.c.b16 %v9128, %v9124
        %v9333 = vpack.c.b16 %v9133, %v9129
        %v9334 = vpack.c.b16 %v9134, %v9130
        %v9335 = vpack.c.b16 %v9135, %v9131
        %v9336 = vpack.c.b16 %v9136, %v9132
        %v9538 = vsel %vm6553, %v8530, 0
        %9540 = vmatpush.bf16.msra.mxu0 %v9165
        %9541 = vmatpush.bf16.msra.mxu0 %v9161
        %9542 = vmatpush.bf16.msra.mxu0 %v9157
        %9543 = vmatpush.bf16.msra.mxu0 %v9153
        %9544 = vmatpush.bf16.msra.mxu0 %v9149
        %9545 = vmatpush.bf16.msra.mxu0 %v9145
        %9546 = vmatpush.bf16.msra.mxu0 %v9141
        %9547 = vmatpush.bf16.msra.mxu0 %v9137
        %9548 = vmatmul.bf16.gmra.mxu0 %v8524
        %v9549 = vpop.f32.mrf.mxu0
        %v9550 = vadd.f32 0.0, %v9549
        %v9551 = vpop.f32.mrf.mxu0
        %9552 = vdwg.mxu0
        %9553 = vmatpush.bf16.msra.mxu0 %v9197
        %9554 = vmatpush.bf16.msra.mxu0 %v9193
        %9555 = vmatpush.bf16.msra.mxu0 %v9189
        %9556 = vmatpush.bf16.msra.mxu0 %v9185
        %9557 = vmatpush.bf16.msra.mxu0 %v9181
        %9558 = vmatpush.bf16.msra.mxu0 %v9177
        %9559 = vmatpush.bf16.msra.mxu0 %v9173
        %9560 = vmatpush.bf16.msra.mxu0 %v9169
        %9561 = vmatmul.bf16.gmra.mxu0 %v8525
        %v9562 = vpop.f32.mrf.mxu0
        %v9563 = vadd.f32 %v9550, %v9562
        %v9564 = vpop.f32.mrf.mxu0
        %9565 = vdwg.mxu0
        %9566 = vmatpush.bf16.msra.mxu0 %v9229
        %9567 = vmatpush.bf16.msra.mxu0 %v9225
        %9568 = vmatpush.bf16.msra.mxu0 %v9221
        %9569 = vmatpush.bf16.msra.mxu0 %v9217
        %9570 = vmatpush.bf16.msra.mxu0 %v9213
        %9571 = vmatpush.bf16.msra.mxu0 %v9209
        %9572 = vmatpush.bf16.msra.mxu0 %v9205
        %9573 = vmatpush.bf16.msra.mxu0 %v9201
        %9574 = vmatmul.bf16.gmra.mxu0 %v8526
        %v9575 = vpop.f32.mrf.mxu0
        %v9576 = vadd.f32 %v9563, %v9575
        %v9577 = vpop.f32.mrf.mxu0
        %9578 = vdwg.mxu0
        %9579 = vmatpush.bf16.msra.mxu0 %v9261
        %9580 = vmatpush.bf16.msra.mxu0 %v9257
        %9581 = vmatpush.bf16.msra.mxu0 %v9253
        %9582 = vmatpush.bf16.msra.mxu0 %v9249
        %9583 = vmatpush.bf16.msra.mxu0 %v9245
        %9584 = vmatpush.bf16.msra.mxu0 %v9241
        %9585 = vmatpush.bf16.msra.mxu0 %v9237
        %9586 = vmatpush.bf16.msra.mxu0 %v9233
        %9587 = vmatmul.bf16.gmra.mxu0 %v8527
        %v9588 = vpop.f32.mrf.mxu0
        %v9589 = vadd.f32 %v9576, %v9588
        %v9590 = vpop.f32.mrf.mxu0
        %9591 = vdwg.mxu0
        %9592 = vmatpush.bf16.msra.mxu0 %v9293
        %9593 = vmatpush.bf16.msra.mxu0 %v9289
        %9594 = vmatpush.bf16.msra.mxu0 %v9285
        %9595 = vmatpush.bf16.msra.mxu0 %v9281
        %9596 = vmatpush.bf16.msra.mxu0 %v9277
        %9597 = vmatpush.bf16.msra.mxu0 %v9273
        %9598 = vmatpush.bf16.msra.mxu0 %v9269
        %9599 = vmatpush.bf16.msra.mxu0 %v9265
        %9600 = vmatmul.bf16.gmra.mxu0 %v8528
        %v9601 = vpop.f32.mrf.mxu0
        %v9602 = vadd.f32 %v9589, %v9601
        %v9603 = vpop.f32.mrf.mxu0
        %9604 = vdwg.mxu0
        %9605 = vmatpush.bf16.msra.mxu0 %v9325
        %9606 = vmatpush.bf16.msra.mxu0 %v9321
        %9607 = vmatpush.bf16.msra.mxu0 %v9317
        %9608 = vmatpush.bf16.msra.mxu0 %v9313
        %9609 = vmatpush.bf16.msra.mxu0 %v9309
        %9610 = vmatpush.bf16.msra.mxu0 %v9305
        %9611 = vmatpush.bf16.msra.mxu0 %v9301
        %9612 = vmatpush.bf16.msra.mxu0 %v9297
        %9613 = vmatmul.bf16.gmra.mxu0 %v8529
        %v9614 = vpop.f32.mrf.mxu0
        %v9615 = vadd.f32 %v9602, %v9614
        %v9616 = vpop.f32.mrf.mxu0
        %9617 = vdwg.mxu0
        %9618 = vmatpush.bf16.msra.mxu0 0
        %9619 = vmatpush.bf16.msra.mxu0 0
        %9620 = vmatpush.bf16.msra.mxu0 0
        %9621 = vmatpush.bf16.msra.mxu0 0
        %9622 = vmatpush.bf16.msra.mxu0 0
        %9623 = vmatpush.bf16.msra.mxu0 0
        %9624 = vmatpush.bf16.msra.mxu0 %v9333
        %9625 = vmatpush.bf16.msra.mxu0 %v9329
        %9626 = vmatmul.bf16.gmra.mxu0 %v9538
        %v9627 = vpop.f32.mrf.mxu0
        %v9628 = vadd.f32 %v9615, %v9627
        %v9629 = vpop.f32.mrf.mxu0
        %9630 = vdwg.mxu0
        %9631 = vmatpush.bf16.msra.mxu0 %v9166
        %9632 = vmatpush.bf16.msra.mxu0 %v9162
        %9633 = vmatpush.bf16.msra.mxu0 %v9158
        %9634 = vmatpush.bf16.msra.mxu0 %v9154
        %9635 = vmatpush.bf16.msra.mxu0 %v9150
        %9636 = vmatpush.bf16.msra.mxu0 %v9146
        %9637 = vmatpush.bf16.msra.mxu0 %v9142
        %9638 = vmatpush.bf16.msra.mxu0 %v9138
        %9639 = vmatmul.bf16.gmra.mxu0 %v8524
        %v9640 = vpop.f32.mrf.mxu0
        %v9641 = vadd.f32 0.0, %v9640
        %v9642 = vpop.f32.mrf.mxu0
        %9643 = vdwg.mxu0
        %9644 = vmatpush.bf16.msra.mxu0 %v9198
        %9645 = vmatpush.bf16.msra.mxu0 %v9194
        %9646 = vmatpush.bf16.msra.mxu0 %v9190
        %9647 = vmatpush.bf16.msra.mxu0 %v9186
        %9648 = vmatpush.bf16.msra.mxu0 %v9182
        %9649 = vmatpush.bf16.msra.mxu0 %v9178
        %9650 = vmatpush.bf16.msra.mxu0 %v9174
        %9651 = vmatpush.bf16.msra.mxu0 %v9170
        %9652 = vmatmul.bf16.gmra.mxu0 %v8525
        %v9653 = vpop.f32.mrf.mxu0
        %v9654 = vadd.f32 %v9641, %v9653
        %v9655 = vpop.f32.mrf.mxu0
        %9656 = vdwg.mxu0
        %9657 = vmatpush.bf16.msra.mxu0 %v9230
        %9658 = vmatpush.bf16.msra.mxu0 %v9226
        %9659 = vmatpush.bf16.msra.mxu0 %v9222
        %9660 = vmatpush.bf16.msra.mxu0 %v9218
        %9661 = vmatpush.bf16.msra.mxu0 %v9214
        %9662 = vmatpush.bf16.msra.mxu0 %v9210
        %9663 = vmatpush.bf16.msra.mxu0 %v9206
        %9664 = vmatpush.bf16.msra.mxu0 %v9202
        %9665 = vmatmul.bf16.gmra.mxu0 %v8526
        %v9666 = vpop.f32.mrf.mxu0
        %v9667 = vadd.f32 %v9654, %v9666
        %v9668 = vpop.f32.mrf.mxu0
        %9669 = vdwg.mxu0
        %9670 = vmatpush.bf16.msra.mxu0 %v9262
        %9671 = vmatpush.bf16.msra.mxu0 %v9258
        %9672 = vmatpush.bf16.msra.mxu0 %v9254
        %9673 = vmatpush.bf16.msra.mxu0 %v9250
        %9674 = vmatpush.bf16.msra.mxu0 %v9246
        %9675 = vmatpush.bf16.msra.mxu0 %v9242
        %9676 = vmatpush.bf16.msra.mxu0 %v9238
        %9677 = vmatpush.bf16.msra.mxu0 %v9234
        %9678 = vmatmul.bf16.gmra.mxu0 %v8527
        %v9679 = vpop.f32.mrf.mxu0
        %v9680 = vadd.f32 %v9667, %v9679
        %v9681 = vpop.f32.mrf.mxu0
        %9682 = vdwg.mxu0
        %9683 = vmatpush.bf16.msra.mxu0 %v9294
        %9684 = vmatpush.bf16.msra.mxu0 %v9290
        %9685 = vmatpush.bf16.msra.mxu0 %v9286
        %9686 = vmatpush.bf16.msra.mxu0 %v9282
        %9687 = vmatpush.bf16.msra.mxu0 %v9278
        %9688 = vmatpush.bf16.msra.mxu0 %v9274
        %9689 = vmatpush.bf16.msra.mxu0 %v9270
        %9690 = vmatpush.bf16.msra.mxu0 %v9266
        %9691 = vmatmul.bf16.gmra.mxu0 %v8528
        %v9692 = vpop.f32.mrf.mxu0
        %v9693 = vadd.f32 %v9680, %v9692
        %v9694 = vpop.f32.mrf.mxu0
        %9695 = vdwg.mxu0
        %9696 = vmatpush.bf16.msra.mxu0 %v9326
        %9697 = vmatpush.bf16.msra.mxu0 %v9322
        %9698 = vmatpush.bf16.msra.mxu0 %v9318
        %9699 = vmatpush.bf16.msra.mxu0 %v9314
        %9700 = vmatpush.bf16.msra.mxu0 %v9310
        %9701 = vmatpush.bf16.msra.mxu0 %v9306
        %9702 = vmatpush.bf16.msra.mxu0 %v9302
        %9703 = vmatpush.bf16.msra.mxu0 %v9298
        %9704 = vmatmul.bf16.gmra.mxu0 %v8529
        %v9705 = vpop.f32.mrf.mxu0
        %v9706 = vadd.f32 %v9693, %v9705
        %v9707 = vpop.f32.mrf.mxu0
        %9708 = vdwg.mxu0
        %9709 = vmatpush.bf16.msra.mxu0 0
        %9710 = vmatpush.bf16.msra.mxu0 0
        %9711 = vmatpush.bf16.msra.mxu0 0
        %9712 = vmatpush.bf16.msra.mxu0 0
        %9713 = vmatpush.bf16.msra.mxu0 0
        %9714 = vmatpush.bf16.msra.mxu0 0
        %9715 = vmatpush.bf16.msra.mxu0 %v9334
        %9716 = vmatpush.bf16.msra.mxu0 %v9330
        %9717 = vmatmul.bf16.gmra.mxu0 %v9538
        %v9718 = vpop.f32.mrf.mxu0
        %v9719 = vadd.f32 %v9706, %v9718
        %v9720 = vpop.f32.mrf.mxu0
        %9721 = vdwg.mxu0
        %9722 = vmatpush.bf16.msra.mxu0 %v9167
        %9723 = vmatpush.bf16.msra.mxu0 %v9163
        %9724 = vmatpush.bf16.msra.mxu0 %v9159
        %9725 = vmatpush.bf16.msra.mxu0 %v9155
        %9726 = vmatpush.bf16.msra.mxu0 %v9151
        %9727 = vmatpush.bf16.msra.mxu0 %v9147
        %9728 = vmatpush.bf16.msra.mxu0 %v9143
        %9729 = vmatpush.bf16.msra.mxu0 %v9139
        %9730 = vmatmul.bf16.gmra.mxu0 %v8524
        %v9731 = vpop.f32.mrf.mxu0
        %v9732 = vadd.f32 0.0, %v9731
        %v9733 = vpop.f32.mrf.mxu0
        %9734 = vdwg.mxu0
        %9735 = vmatpush.bf16.msra.mxu0 %v9199
        %9736 = vmatpush.bf16.msra.mxu0 %v9195
        %9737 = vmatpush.bf16.msra.mxu0 %v9191
        %9738 = vmatpush.bf16.msra.mxu0 %v9187
        %9739 = vmatpush.bf16.msra.mxu0 %v9183
        %9740 = vmatpush.bf16.msra.mxu0 %v9179
        %9741 = vmatpush.bf16.msra.mxu0 %v9175
        %9742 = vmatpush.bf16.msra.mxu0 %v9171
        %9743 = vmatmul.bf16.gmra.mxu0 %v8525
        %v9744 = vpop.f32.mrf.mxu0
        %v9745 = vadd.f32 %v9732, %v9744
        %v9746 = vpop.f32.mrf.mxu0
        %9747 = vdwg.mxu0
        %9748 = vmatpush.bf16.msra.mxu0 %v9231
        %9749 = vmatpush.bf16.msra.mxu0 %v9227
        %9750 = vmatpush.bf16.msra.mxu0 %v9223
        %9751 = vmatpush.bf16.msra.mxu0 %v9219
        %9752 = vmatpush.bf16.msra.mxu0 %v9215
        %9753 = vmatpush.bf16.msra.mxu0 %v9211
        %9754 = vmatpush.bf16.msra.mxu0 %v9207
        %9755 = vmatpush.bf16.msra.mxu0 %v9203
        %9756 = vmatmul.bf16.gmra.mxu0 %v8526
        %v9757 = vpop.f32.mrf.mxu0
        %v9758 = vadd.f32 %v9745, %v9757
        %v9759 = vpop.f32.mrf.mxu0
        %9760 = vdwg.mxu0
        %9761 = vmatpush.bf16.msra.mxu0 %v9263
        %9762 = vmatpush.bf16.msra.mxu0 %v9259
        %9763 = vmatpush.bf16.msra.mxu0 %v9255
        %9764 = vmatpush.bf16.msra.mxu0 %v9251
        %9765 = vmatpush.bf16.msra.mxu0 %v9247
        %9766 = vmatpush.bf16.msra.mxu0 %v9243
        %9767 = vmatpush.bf16.msra.mxu0 %v9239
        %9768 = vmatpush.bf16.msra.mxu0 %v9235
        %9769 = vmatmul.bf16.gmra.mxu0 %v8527
        %v9770 = vpop.f32.mrf.mxu0
        %v9771 = vadd.f32 %v9758, %v9770
        %v9772 = vpop.f32.mrf.mxu0
        %9773 = vdwg.mxu0
        %9774 = vmatpush.bf16.msra.mxu0 %v9295
        %9775 = vmatpush.bf16.msra.mxu0 %v9291
        %9776 = vmatpush.bf16.msra.mxu0 %v9287
        %9777 = vmatpush.bf16.msra.mxu0 %v9283
        %9778 = vmatpush.bf16.msra.mxu0 %v9279
        %9779 = vmatpush.bf16.msra.mxu0 %v9275
        %9780 = vmatpush.bf16.msra.mxu0 %v9271
        %9781 = vmatpush.bf16.msra.mxu0 %v9267
        %9782 = vmatmul.bf16.gmra.mxu0 %v8528
        %v9783 = vpop.f32.mrf.mxu0
        %v9784 = vadd.f32 %v9771, %v9783
        %v9785 = vpop.f32.mrf.mxu0
        %9786 = vdwg.mxu0
        %9787 = vmatpush.bf16.msra.mxu0 %v9327
        %9788 = vmatpush.bf16.msra.mxu0 %v9323
        %9789 = vmatpush.bf16.msra.mxu0 %v9319
        %9790 = vmatpush.bf16.msra.mxu0 %v9315
        %9791 = vmatpush.bf16.msra.mxu0 %v9311
        %9792 = vmatpush.bf16.msra.mxu0 %v9307
        %9793 = vmatpush.bf16.msra.mxu0 %v9303
        %9794 = vmatpush.bf16.msra.mxu0 %v9299
        %9795 = vmatmul.bf16.gmra.mxu0 %v8529
        %v9796 = vpop.f32.mrf.mxu0
        %v9797 = vadd.f32 %v9784, %v9796
        %v9798 = vpop.f32.mrf.mxu0
        %9799 = vdwg.mxu0
        %9800 = vmatpush.bf16.msra.mxu0 0
        %9801 = vmatpush.bf16.msra.mxu0 0
        %9802 = vmatpush.bf16.msra.mxu0 0
        %9803 = vmatpush.bf16.msra.mxu0 0
        %9804 = vmatpush.bf16.msra.mxu0 0
        %9805 = vmatpush.bf16.msra.mxu0 0
        %9806 = vmatpush.bf16.msra.mxu0 %v9335
        %9807 = vmatpush.bf16.msra.mxu0 %v9331
        %9808 = vmatmul.bf16.gmra.mxu0 %v9538
        %v9809 = vpop.f32.mrf.mxu0
        %v9810 = vadd.f32 %v9797, %v9809
        %v9811 = vpop.f32.mrf.mxu0
        %9812 = vdwg.mxu0
        %9813 = vmatpush.bf16.msra.mxu0 %v9168
        %9814 = vmatpush.bf16.msra.mxu0 %v9164
        %9815 = vmatpush.bf16.msra.mxu0 %v9160
        %9816 = vmatpush.bf16.msra.mxu0 %v9156
        %9817 = vmatpush.bf16.msra.mxu0 %v9152
        %9818 = vmatpush.bf16.msra.mxu0 %v9148
        %9819 = vmatpush.bf16.msra.mxu0 %v9144
        %9820 = vmatpush.bf16.msra.mxu0 %v9140
        %9821 = vmatmul.bf16.gmra.mxu0 %v8524
        %v9822 = vpop.f32.mrf.mxu0
        %v9823 = vadd.f32 0.0, %v9822
        %v9824 = vpop.f32.mrf.mxu0
        %9825 = vdwg.mxu0
        %9826 = vmatpush.bf16.msra.mxu0 %v9200
        %9827 = vmatpush.bf16.msra.mxu0 %v9196
        %9828 = vmatpush.bf16.msra.mxu0 %v9192
        %9829 = vmatpush.bf16.msra.mxu0 %v9188
        %9830 = vmatpush.bf16.msra.mxu0 %v9184
        %9831 = vmatpush.bf16.msra.mxu0 %v9180
        %9832 = vmatpush.bf16.msra.mxu0 %v9176
        %9833 = vmatpush.bf16.msra.mxu0 %v9172
        %9834 = vmatmul.bf16.gmra.mxu0 %v8525
        %v9835 = vpop.f32.mrf.mxu0
        %v9836 = vadd.f32 %v9823, %v9835
        %v9837 = vpop.f32.mrf.mxu0
        %9838 = vdwg.mxu0
        %9839 = vmatpush.bf16.msra.mxu0 %v9232
        %9840 = vmatpush.bf16.msra.mxu0 %v9228
        %9841 = vmatpush.bf16.msra.mxu0 %v9224
        %9842 = vmatpush.bf16.msra.mxu0 %v9220
        %9843 = vmatpush.bf16.msra.mxu0 %v9216
        %9844 = vmatpush.bf16.msra.mxu0 %v9212
        %9845 = vmatpush.bf16.msra.mxu0 %v9208
        %9846 = vmatpush.bf16.msra.mxu0 %v9204
        %9847 = vmatmul.bf16.gmra.mxu0 %v8526
        %v9848 = vpop.f32.mrf.mxu0
        %v9849 = vadd.f32 %v9836, %v9848
        %v9850 = vpop.f32.mrf.mxu0
        %9851 = vdwg.mxu0
        %9852 = vmatpush.bf16.msra.mxu0 %v9264
        %9853 = vmatpush.bf16.msra.mxu0 %v9260
        %9854 = vmatpush.bf16.msra.mxu0 %v9256
        %9855 = vmatpush.bf16.msra.mxu0 %v9252
        %9856 = vmatpush.bf16.msra.mxu0 %v9248
        %9857 = vmatpush.bf16.msra.mxu0 %v9244
        %9858 = vmatpush.bf16.msra.mxu0 %v9240
        %9859 = vmatpush.bf16.msra.mxu0 %v9236
        %9860 = vmatmul.bf16.gmra.mxu0 %v8527
        %v9861 = vpop.f32.mrf.mxu0
        %v9862 = vadd.f32 %v9849, %v9861
        %v9863 = vpop.f32.mrf.mxu0
        %9864 = vdwg.mxu0
        %9865 = vmatpush.bf16.msra.mxu0 %v9296
        %9866 = vmatpush.bf16.msra.mxu0 %v9292
        %9867 = vmatpush.bf16.msra.mxu0 %v9288
        %9868 = vmatpush.bf16.msra.mxu0 %v9284
        %9869 = vmatpush.bf16.msra.mxu0 %v9280
        %9870 = vmatpush.bf16.msra.mxu0 %v9276
        %9871 = vmatpush.bf16.msra.mxu0 %v9272
        %9872 = vmatpush.bf16.msra.mxu0 %v9268
        %9873 = vmatmul.bf16.gmra.mxu0 %v8528
        %v9874 = vpop.f32.mrf.mxu0
        %v9875 = vadd.f32 %v9862, %v9874
        %v9876 = vpop.f32.mrf.mxu0
        %9877 = vdwg.mxu0
        %9878 = vmatpush.bf16.msra.mxu0 %v9328
        %9879 = vmatpush.bf16.msra.mxu0 %v9324
        %9880 = vmatpush.bf16.msra.mxu0 %v9320
        %9881 = vmatpush.bf16.msra.mxu0 %v9316
        %9882 = vmatpush.bf16.msra.mxu0 %v9312
        %9883 = vmatpush.bf16.msra.mxu0 %v9308
        %9884 = vmatpush.bf16.msra.mxu0 %v9304
        %9885 = vmatpush.bf16.msra.mxu0 %v9300
        %9886 = vmatmul.bf16.gmra.mxu0 %v8529
        %v9887 = vpop.f32.mrf.mxu0
        %v9888 = vadd.f32 %v9875, %v9887
        %v9889 = vpop.f32.mrf.mxu0
        %9890 = vdwg.mxu0
        %9891 = vmatpush.bf16.msra.mxu0 0
        %9892 = vmatpush.bf16.msra.mxu0 0
        %9893 = vmatpush.bf16.msra.mxu0 0
        %9894 = vmatpush.bf16.msra.mxu0 0
        %9895 = vmatpush.bf16.msra.mxu0 0
        %9896 = vmatpush.bf16.msra.mxu0 0
        %9897 = vmatpush.bf16.msra.mxu0 %v9336
        %9898 = vmatpush.bf16.msra.mxu0 %v9332
        %9899 = vmatmul.bf16.gmra.mxu0 %v9538
        %v9900 = vpop.f32.mrf.mxu0
        %v9901 = vadd.f32 %v9888, %v9900
        %v9902 = vpop.f32.mrf.mxu0
        %9903 = vdwg.mxu0
        %v9904 = vadd.f32 %v8025, %v9628
        %v9905 = vadd.f32 %v8116, %v9719
        %v9906 = vadd.f32 %v8207, %v9810
        %v9907 = vadd.f32 %v8298, %v9901
        %v9908 = vld [vmem:[#allocation11] sm:$0xf]
        %v9910 = vperm.slane %v9908, 0
        %v9911 = vperm.slane %v9908, 1
        %v9912 = vperm.slane %v9908, 2
        %v9913 = vperm.slane %v9908, 3
        %v9918 = vmul.f32 %v9904, %v9910
        %v9919 = vmul.f32 %v9905, %v9911
        %v9920 = vmul.f32 %v9906, %v9912
        %v9921 = vmul.f32 %v9907, %v9913
        %v9922 = vld [vmem:[#allocation12] sm:$0xf]
        %v9924 = vperm.slane %v9922, 0
        %v9925 = vperm.slane %v9922, 1
        %v9926 = vperm.slane %v9922, 2
        %v9927 = vperm.slane %v9922, 3
        %v9932 = vadd.f32 %v9918, %v9924
        %v9933 = vadd.f32 %v9919, %v9925
        %v9934 = vadd.f32 %v9920, %v9926
        %v9935 = vadd.f32 %v9921, %v9927
        %v9936 = vsub.f32 0.0, %v9932
        %v9937 = vsub.f32 0.0, %v9933
        %v9938 = vsub.f32 0.0, %v9934
        %v9939 = vsub.f32 0.0, %v9935
        %v9940 = vmul.f32 %v9936, 1.442695
        %v9941 = vpow.pop %v9940
        %v9942 = vmul.f32 %v9937, 1.442695
        %v9943 = vpow.pop %v9942
        %v9944 = vmul.f32 %v9938, 1.442695
        %v9945 = vpow.pop %v9944
        %v9946 = vmul.f32 %v9939, 1.442695
        %v9947 = vpow.pop %v9946
        %v9948 = vadd.f32 %v9941, 1.0
        %v9949 = vadd.f32 %v9943, 1.0
        %v9950 = vadd.f32 %v9945, 1.0
        %v9951 = vadd.f32 %v9947, 1.0
        %v9952 = vrcp.pop %v9948
        %v9953 = vrcp.pop %v9949
        %v9954 = vrcp.pop %v9950
        %v9955 = vrcp.pop %v9951
        %v9956 = vmul.f32 %v9932, %v9952
        %v9957 = vmul.f32 %v9933, %v9953
        %v9958 = vmul.f32 %v9934, %v9954
        %v9959 = vmul.f32 %v9935, %v9955
        %9960 = vst [vmem:[%s363] sm:$0xff] %v9956
        %9961 = vst [vmem:[%s363 + $0x8] sm:$0xff] %v9957
        %9962 = vst [vmem:[%s363 + $0x10] sm:$0xff] %v9958
        %9963 = vst [vmem:[%s363 + $0x18] sm:$0xff] %v9959
        %s9964 = sand.u32 %s185, 1
        %s9965 = scalar_lea.sflag [#allocation5], %s9964
        %s9966 = sand.u32 %s185, 1
        %s9967 = smul.addr %s9966, 32
        %s9968 = scalar_lea.vmem [#allocation14], %s9967
        // Predicated region
        $region73: #{tpu_custom_call.1} parent=47 // pred_check
          %p9969 = pneg %p195
        $region74: #{tpu_custom_call.1} parent=47 // pred_check_branch
          %9971 = sbr.rel (%p9969) target = $region76
        $region75: #{tpu_custom_call.1} parent=47 // pred_region
          %9973 = vsyncadd %s9965, 0
          %s9974 = smul.addr %s25, 4
          %s9975 = smul.addr %s9974, 8
          %s9976 = scalar_lea.hbm %s7, %s9975
          %s9978 = sshll.u32 %s9968, 4
          %s9979 = int_to_ptr.vmem [resolvable:$true] %s9978
          %s9980 = sshll.u32 %s9976, 4
          %s9981 = int_to_ptr.hbm [resolvable:$true] %s9980
          %9983 = dma.vmem_to_hbm [thread:$0]  %s9979, 512, %s9981, %s9965
        $region76: #{tpu_custom_call.1} parent=47 // pred_fallthru
          _
      $region48: #{tpu_custom_call.1} parent=5 // pred_fallthru
        _
      %p9984 = scmp.le.s32.totalorder 2, %s20
      // Predicated region
      $region77: #{tpu_custom_call.1} parent=5 // pred_check
        %p9985 = pneg %p9984
      $region78: #{tpu_custom_call.1} parent=5 // pred_check_branch
        %9987 = sbr.rel (%p9985) target = $region80
      $region79: #{tpu_custom_call.1} parent=5 // pred_region
        %s9988 = ssub.s32 %s20, 2
        // Predicated region
        $region81: #{tpu_custom_call.1} parent=79 // pred_check
          %p9989 = pneg %p201
        $region82: #{tpu_custom_call.1} parent=79 // pred_check_branch
          %9991 = sbr.rel (%p9989) target = $region84
        $region83: #{tpu_custom_call.1} parent=79 // pred_region
          %s9992 = sand.u32 %s186, 1
          %s9993 = scalar_lea.sflag [#allocation5], %s9992
          %s9994 = sand.u32 %s186, 1
          %s9995 = smul.addr %s9994, 32
          %s9996 = scalar_lea.vmem [#allocation14], %s9995
          %9998 = dma.done %s9993, 512
        $region84: #{tpu_custom_call.1} parent=79 // pred_fallthru
          _
      $region80: #{tpu_custom_call.1} parent=5 // pred_fallthru
        _
    $region6: #{tpu_custom_call.1} parent=1 // loop_footer
      %s24 = sadd.s32 1, %s20
    $region7: #{tpu_custom_call.1} parent=1 // loop_footer_branch
      %19 = sbr.rel target = $region3
    $region8: #{tpu_custom_call.1} parent=1 // loop_exit
      _
    %9999 = vsyncpa [#allocation4], 1
    %s10000 = scalar_lea.sflag [#allocation4], 1
    %10001 = vsyncpa %s10000, 1
    %10002 = vsyncpa [#allocation7], 1
    %10003 = vsyncpa [#allocation10], 1
    %10004 = vsyncpa [#allocation13], 1
    %10005 = vsyncpa [#allocation5], 1
    %s10006 = scalar_lea.sflag [#allocation5], 1
    %10007 = vsyncpa %s10006, 1

</llo_original>
